<compile_context>
chip_gen: v7x
topology: tpu7x:2x2x1
jax: 0.10.0
libtpu: 0.0.40
codegen_flags: <defaults>
</compile_context>

<pallas_src>
import jax
import jax.numpy as jnp
from jax import lax
from jax.experimental import pallas as pl
from jax.experimental.pallas import tpu as pltpu

EMB = 64        # emb_dim
HEADS = 8       # heads (module default)
FF_MULT = 4     # ff_hidden_mult
LN_EPS = 1e-5   # torch.nn.LayerNorm default

# parameter ordering used for both blocks
_PKEYS = ("wq", "wkv", "wu", "bu", "ln1_g", "ln1_b",
          "w1", "b1", "w2", "b2", "ln2_g", "ln2_b")


# ------------------------------ kernel helpers ------------------------------

def _layernorm(y, gamma, beta):
    # y: (t, E) f32; normalize over last axis (biased variance, like torch LN).
    mean = jnp.mean(y, axis=-1, keepdims=True)
    var = jnp.mean(jnp.square(y - mean), axis=-1, keepdims=True)
    return (y - mean) * lax.rsqrt(var + LN_EPS) * gamma + beta


def _att_block(x_q, x_k, len_q, len_k,
               wq_ref, wkv_ref, wu_ref, bu_ref, g1_ref, be1_ref,
               w1_ref, bf1_ref, w2_ref, bf2_ref, g2_ref, be2_ref):
    """One att_block (MHA + LN + FF + LN) on in-VMEM activations.

    x_q: (t_q, E) f32, x_k: (t_k, E) f32, len_q/len_k: valid lengths
    (traced int32 scalar or python int).  Returns (t_q, E) f32."""
    t_q, e = x_q.shape
    t_k = x_k.shape[0]
    h = wq_ref.shape[1] // e

    # ---- projections: Q = x_q @ Wq, [K|V] = x_k @ Wkv (f32 acc) ----
    Q = jnp.dot(x_q, wq_ref[...], preferred_element_type=jnp.float32)    # (t_q, h*e)
    KV = jnp.dot(x_k, wkv_ref[...], preferred_element_type=jnp.float32)  # (t_k, 2*h*e)
    K = KV[:, :h * e]
    V = KV[:, h * e:]

    # ---- additive padding mask (head-invariant, built once) ----
    iq = lax.broadcasted_iota(jnp.int32, (t_q, t_k), 0)
    jk = lax.broadcasted_iota(jnp.int32, (t_q, t_k), 1)
    valid = (iq < len_q) & (jk < len_k)
    neg = jnp.float32(-1e9)

    # (q / e^0.25) @ (k / e^0.25)^T == (q @ k^T) / sqrt(e)
    inv_scale = jnp.float32(1.0 / (e ** 0.5))

    # ---- multi-head attention (static loop over heads) ----
    head_outs = []
    for hd in range(h):
        qh = Q[:, hd * e:(hd + 1) * e]                       # (t_q, e)
        kh = K[:, hd * e:(hd + 1) * e]                       # (t_k, e)
        vh = V[:, hd * e:(hd + 1) * e]                       # (t_k, e)

        dot = lax.dot_general(qh, kh, (((1,), (1,)), ((), ())),
                              preferred_element_type=jnp.float32)  # (t_q, t_k)
        dot = dot * inv_scale
        dot = jnp.where(valid, dot, neg)

        # numerically-stable softmax over t_k (f32 stats)
        m = jnp.max(dot, axis=-1, keepdims=True)
        p = jnp.exp(dot - m)
        p = p / jnp.sum(p, axis=-1, keepdims=True)

        head_outs.append(jnp.dot(p, vh, preferred_element_type=jnp.float32))

    att = jnp.concatenate(head_outs, axis=-1)                # (t_q, h*e)

    # ---- unify heads + residual + LayerNorm 1 ----
    y = jnp.dot(att, wu_ref[...], preferred_element_type=jnp.float32) + bu_ref[...]
    x = _layernorm(x_q + y, g1_ref[...], be1_ref[...])

    # ---- feed-forward (Linear -> ReLU -> Linear) + residual + LayerNorm 2 ----
    hid = jnp.dot(x, w1_ref[...], preferred_element_type=jnp.float32) + bf1_ref[...]
    hid = jnp.maximum(hid, 0.0)
    ff = jnp.dot(hid, w2_ref[...], preferred_element_type=jnp.float32) + bf2_ref[...]
    return _layernorm(x + ff, g2_ref[...], be2_ref[...])


def _transformer_kernel(len_ref,                 # scalar prefetch (SMEM): (b,) int32
                        embs_ref, task_ref,      # activations (VMEM tiles)
                        *refs):                  # 12 self params, 12 cross params, out
    self_p = refs[0:12]
    cross_p = refs[12:24]
    o_ref = refs[24]

    bi = pl.program_id(0)
    len_e = len_ref[bi]                          # valid length of `embs` for this batch

    embs = embs_ref[0]                           # (t_e, E) f32
    task = task_ref[0]                           # (t_t, E) f32
    t_t = task.shape[0]

    # self-attention block: q = k = embs, mask_q = mask_k = lengths
    embs = _att_block(embs, embs, len_e, len_e, *self_p)
    # cross-attention block: q = task (mask_q = None -> all valid), k = embs
    out = _att_block(task, embs, t_t, len_e, *cross_p)

    o_ref[0] = out.astype(o_ref.dtype)


# ----------------------------- wrapper -----------------------------

def transformer_fwd(params, embs, task, lengths=None):
    """embs: (b, t_e, E), task: (b, t_t, E).
    lengths: (b,) int32 number of valid timesteps of `embs` (None == all valid);
    this is the Pallas-side encoding of the torch `mask` argument."""
    b, t_e, e = embs.shape
    t_t = task.shape[1]
    if lengths is None:
        lengths = jnp.full((b,), t_e, jnp.int32)
    lengths = lengths.astype(jnp.int32)

    block_params = ([params["self_att1"][k] for k in _PKEYS] +
                    [params["cross_att1"][k] for k in _PKEYS])

    def _full(shape):
        # weight tile: full extent, constant index map -> resident in VMEM
        return pl.BlockSpec(shape, lambda bi, ln, _s=len(shape): (0,) * _s)

    in_specs = ([pl.BlockSpec((1, t_e, e), lambda bi, ln: (bi, 0, 0)),   # embs
                 pl.BlockSpec((1, t_t, e), lambda bi, ln: (bi, 0, 0))]   # task
                + [_full(p.shape) for p in block_params])

    grid_spec = pltpu.PrefetchScalarGridSpec(
        num_scalar_prefetch=1,
        grid=(b,),
        in_specs=in_specs,
        out_specs=pl.BlockSpec((1, t_t, e), lambda bi, ln: (bi, 0, 0)),
    )

    return pl.pallas_call(
        _transformer_kernel,
        out_shape=jax.ShapeDtypeStruct((b, t_t, e), jnp.float32),
        grid_spec=grid_spec,
        compiler_params=pltpu.CompilerParams(
            dimension_semantics=("parallel",)),
    )(lengths, embs, task, *block_params)


# ----------------------------- parameter init -----------------------------

def _uniform(key, shape, fan_in):
    bound = 1.0 / (fan_in ** 0.5)
    return jax.random.uniform(key, shape, jnp.float32, -bound, bound)


def init_att_block(key, e, h, ff_mult):
    k1, k2, k3, k4, k5, k6, k7, k8, k9 = jax.random.split(key, 9)
    hid = ff_mult * e
    wk = _uniform(k1, (e, e * h), e)
    wv = _uniform(k2, (e, e * h), e)
    return {
        # attention (weights stored (in, out); projections have no bias)
        "wq": _uniform(k3, (e, e * h), e),
        "wkv": jnp.concatenate([wk, wv], axis=1),        # merged K|V projection
        "wu": _uniform(k4, (h * e, e), h * e),
        "bu": _uniform(k5, (1, e), h * e),
        # layer norms
        "ln1_g": jnp.ones((1, e), jnp.float32),
        "ln1_b": jnp.zeros((1, e), jnp.float32),
        "ln2_g": jnp.ones((1, e), jnp.float32),
        "ln2_b": jnp.zeros((1, e), jnp.float32),
        # feed-forward
        "w1": _uniform(k6, (e, hid), e),
        "b1": _uniform(k7, (1, hid), e),
        "w2": _uniform(k8, (hid, e), hid),
        "b2": _uniform(k9, (1, e), hid),
    }


def init_transformer(key, e=EMB, h=HEADS, ff_mult=FF_MULT):
    k1, k2 = jax.random.split(key)
    return {
        "self_att1": init_att_block(k1, e, h, ff_mult),
        "cross_att1": init_att_block(k2, e, h, ff_mult),
    }


# ----------------------------------- main ----------------------------------

if __name__ == "__main__":
    key = jax.random.PRNGKey(0)
    k_params, k_embs, k_task = jax.random.split(key, 3)

    B, T_EMBS, T_TASK = 2, 8, 8
    params = init_transformer(k_params)

    embs = jax.random.normal(k_embs, (B, T_EMBS, EMB), jnp.float32)
    task = jax.random.normal(k_task, (B, T_TASK, EMB), jnp.float32)

    # padding mask: batch 0 uses all 8 timesteps of `embs`, batch 1 only the first 6
    lengths = jnp.array([8, 6], jnp.int32)

    fwd = jax.jit(transformer_fwd)
    out = fwd(params, embs, task, lengths)
    out = jax.block_until_ready(out)

    assert out.shape == (B, T_TASK, EMB)
    assert bool(jnp.all(jnp.isfinite(out)))
    print("KERNEL_OK")
</pallas_src>

<mosaic_0001>
module attributes {stable_mosaic.version = 11 : i64} {
  func.func @_transformer_kernel(%arg0: i32, %arg1: memref<2xi32, #tpu.memory_space<smem>>, %arg2: memref<1x8x64xf32, #tpu.memory_space<vmem>>, %arg3: memref<1x8x64xf32, #tpu.memory_space<vmem>>, %arg4: memref<64x512xf32, #tpu.memory_space<vmem>>, %arg5: memref<64x1024xf32, #tpu.memory_space<vmem>>, %arg6: memref<512x64xf32, #tpu.memory_space<vmem>>, %arg7: memref<1x64xf32, #tpu.memory_space<vmem>>, %arg8: memref<1x64xf32, #tpu.memory_space<vmem>>, %arg9: memref<1x64xf32, #tpu.memory_space<vmem>>, %arg10: memref<64x256xf32, #tpu.memory_space<vmem>>, %arg11: memref<1x256xf32, #tpu.memory_space<vmem>>, %arg12: memref<256x64xf32, #tpu.memory_space<vmem>>, %arg13: memref<1x64xf32, #tpu.memory_space<vmem>>, %arg14: memref<1x64xf32, #tpu.memory_space<vmem>>, %arg15: memref<1x64xf32, #tpu.memory_space<vmem>>, %arg16: memref<64x512xf32, #tpu.memory_space<vmem>>, %arg17: memref<64x1024xf32, #tpu.memory_space<vmem>>, %arg18: memref<512x64xf32, #tpu.memory_space<vmem>>, %arg19: memref<1x64xf32, #tpu.memory_space<vmem>>, %arg20: memref<1x64xf32, #tpu.memory_space<vmem>>, %arg21: memref<1x64xf32, #tpu.memory_space<vmem>>, %arg22: memref<64x256xf32, #tpu.memory_space<vmem>>, %arg23: memref<1x256xf32, #tpu.memory_space<vmem>>, %arg24: memref<256x64xf32, #tpu.memory_space<vmem>>, %arg25: memref<1x64xf32, #tpu.memory_space<vmem>>, %arg26: memref<1x64xf32, #tpu.memory_space<vmem>>, %arg27: memref<1x64xf32, #tpu.memory_space<vmem>>, %arg28: memref<1x8x64xf32, #tpu.memory_space<vmem>>) attributes {dimension_semantics = [#tpu.dimension_semantics<parallel>], iteration_bounds = array<i64: 2>, scalar_prefetch = 1 : i64, scratch_operands = 0 : i64, tpu.core_type = #tpu.core_type<tc>, window_params = [{transform_indices = @transform_0, window_bounds = array<i64: 1, 8, 64>}, {transform_indices = @transform_1, window_bounds = array<i64: 1, 8, 64>}, {pipeline_mode = #tpu.pipeline_mode<synchronous>, transform_indices = @transform_2, window_bounds = array<i64: 64, 512>}, {pipeline_mode = #tpu.pipeline_mode<synchronous>, transform_indices = @transform_3, window_bounds = array<i64: 64, 1024>}, {pipeline_mode = #tpu.pipeline_mode<synchronous>, transform_indices = @transform_4, window_bounds = array<i64: 512, 64>}, {pipeline_mode = #tpu.pipeline_mode<synchronous>, transform_indices = @transform_5, window_bounds = array<i64: 1, 64>}, {pipeline_mode = #tpu.pipeline_mode<synchronous>, transform_indices = @transform_6, window_bounds = array<i64: 1, 64>}, {pipeline_mode = #tpu.pipeline_mode<synchronous>, transform_indices = @transform_7, window_bounds = array<i64: 1, 64>}, {pipeline_mode = #tpu.pipeline_mode<synchronous>, transform_indices = @transform_8, window_bounds = array<i64: 64, 256>}, {pipeline_mode = #tpu.pipeline_mode<synchronous>, transform_indices = @transform_9, window_bounds = array<i64: 1, 256>}, {pipeline_mode = #tpu.pipeline_mode<synchronous>, transform_indices = @transform_10, window_bounds = array<i64: 256, 64>}, {pipeline_mode = #tpu.pipeline_mode<synchronous>, transform_indices = @transform_11, window_bounds = array<i64: 1, 64>}, {pipeline_mode = #tpu.pipeline_mode<synchronous>, transform_indices = @transform_12, window_bounds = array<i64: 1, 64>}, {pipeline_mode = #tpu.pipeline_mode<synchronous>, transform_indices = @transform_13, window_bounds = array<i64: 1, 64>}, {pipeline_mode = #tpu.pipeline_mode<synchronous>, transform_indices = @transform_14, window_bounds = array<i64: 64, 512>}, {pipeline_mode = #tpu.pipeline_mode<synchronous>, transform_indices = @transform_15, window_bounds = array<i64: 64, 1024>}, {pipeline_mode = #tpu.pipeline_mode<synchronous>, transform_indices = @transform_16, window_bounds = array<i64: 512, 64>}, {pipeline_mode = #tpu.pipeline_mode<synchronous>, transform_indices = @transform_17, window_bounds = array<i64: 1, 64>}, {pipeline_mode = #tpu.pipeline_mode<synchronous>, transform_indices = @transform_18, window_bounds = array<i64: 1, 64>}, {pipeline_mode = #tpu.pipeline_mode<synchronous>, transform_indices = @transform_19, window_bounds = array<i64: 1, 64>}, {pipeline_mode = #tpu.pipeline_mode<synchronous>, transform_indices = @transform_20, window_bounds = array<i64: 64, 256>}, {pipeline_mode = #tpu.pipeline_mode<synchronous>, transform_indices = @transform_21, window_bounds = array<i64: 1, 256>}, {pipeline_mode = #tpu.pipeline_mode<synchronous>, transform_indices = @transform_22, window_bounds = array<i64: 256, 64>}, {pipeline_mode = #tpu.pipeline_mode<synchronous>, transform_indices = @transform_23, window_bounds = array<i64: 1, 64>}, {pipeline_mode = #tpu.pipeline_mode<synchronous>, transform_indices = @transform_24, window_bounds = array<i64: 1, 64>}, {pipeline_mode = #tpu.pipeline_mode<synchronous>, transform_indices = @transform_25, window_bounds = array<i64: 1, 64>}, {transform_indices = @transform_26, window_bounds = array<i64: 1, 8, 64>}]} {
    %0 = arith.index_cast %arg0 : i32 to index
    %1 = memref.load %arg1[%0] : memref<2xi32, #tpu.memory_space<smem>>
    %c0 = arith.constant 0 : index
    %c0_0 = arith.constant 0 : index
    %c0_1 = arith.constant 0 : index
    %2 = vector.load %arg2[%c0, %c0_0, %c0_1] : memref<1x8x64xf32, #tpu.memory_space<vmem>>, vector<1x8x64xf32>
    %3 = vector.shape_cast %2 : vector<1x8x64xf32> to vector<8x64xf32>
    %c0_2 = arith.constant 0 : index
    %c0_3 = arith.constant 0 : index
    %c0_4 = arith.constant 0 : index
    %4 = vector.load %arg3[%c0_2, %c0_3, %c0_4] : memref<1x8x64xf32, #tpu.memory_space<vmem>>, vector<1x8x64xf32>
    %5 = vector.shape_cast %4 : vector<1x8x64xf32> to vector<8x64xf32>
    %c0_5 = arith.constant 0 : index
    %c0_6 = arith.constant 0 : index
    %6 = vector.load %arg4[%c0_5, %c0_6] : memref<64x512xf32, #tpu.memory_space<vmem>>, vector<64x512xf32>
    %cst = arith.constant dense<0.000000e+00> : vector<8x512xf32>
    %7 = tpu.matmul %3, %6, %cst {dimension_numbers = #tpu.dot_dimension_numbers<[1], [0], [0], [1], [0, 0, 1, 1], [], []>} : vector<8x64xf32>, vector<64x512xf32>, vector<8x512xf32> -> vector<8x512xf32>
    %c0_7 = arith.constant 0 : index
    %c0_8 = arith.constant 0 : index
    %8 = vector.load %arg5[%c0_7, %c0_8] : memref<64x1024xf32, #tpu.memory_space<vmem>>, vector<64x1024xf32>
    %cst_9 = arith.constant dense<0.000000e+00> : vector<8x1024xf32>
    %9 = tpu.matmul %3, %8, %cst_9 {dimension_numbers = #tpu.dot_dimension_numbers<[1], [0], [0], [1], [0, 0, 1, 1], [], []>} : vector<8x64xf32>, vector<64x1024xf32>, vector<8x1024xf32> -> vector<8x1024xf32>
    %10 = vector.extract_strided_slice %9 {offsets = [0, 0], sizes = [8, 512], strides = [1, 1]} : vector<8x1024xf32> to vector<8x512xf32>
    %11 = vector.extract_strided_slice %9 {offsets = [0, 512], sizes = [8, 512], strides = [1, 1]} : vector<8x1024xf32> to vector<8x512xf32>
    %12 = tpu.iota {dimensions = array<i32: 0>} : vector<8x8xi32>
    %13 = tpu.iota {dimensions = array<i32: 1>} : vector<8x8xi32>
    %14 = vector.broadcast %1 : i32 to vector<8x8xi32>
    %15 = arith.cmpi slt, %12, %14 : vector<8x8xi32>
    %16 = vector.broadcast %1 : i32 to vector<8x8xi32>
    %17 = arith.cmpi slt, %13, %16 : vector<8x8xi32>
    %18 = arith.andi %15, %17 : vector<8x8xi1>
    %19 = vector.extract_strided_slice %7 {offsets = [0, 0], sizes = [8, 64], strides = [1, 1]} : vector<8x512xf32> to vector<8x64xf32>
    %20 = vector.extract_strided_slice %10 {offsets = [0, 0], sizes = [8, 64], strides = [1, 1]} : vector<8x512xf32> to vector<8x64xf32>
    %21 = vector.extract_strided_slice %11 {offsets = [0, 0], sizes = [8, 64], strides = [1, 1]} : vector<8x512xf32> to vector<8x64xf32>
    %cst_10 = arith.constant dense<0.000000e+00> : vector<8x8xf32>
    %22 = tpu.matmul %19, %20, %cst_10 {dimension_numbers = #tpu.dot_dimension_numbers<[1], [1], [0], [0], [0, 0, 1, 0], [], []>} : vector<8x64xf32>, vector<8x64xf32>, vector<8x8xf32> -> vector<8x8xf32>
    %cst_11 = arith.constant 1.250000e-01 : f32
    %23 = vector.broadcast %cst_11 : f32 to vector<8x8xf32>
    %24 = arith.mulf %22, %23 : vector<8x8xf32>
    %cst_12 = arith.constant -1.000000e+09 : f32
    %25 = vector.broadcast %cst_12 : f32 to vector<8x8xf32>
    %26 = arith.select %18, %24, %25 : vector<8x8xi1>, vector<8x8xf32>
    %cst_13 = arith.constant dense<0xFF800000> : vector<8xf32>
    %27 = vector.multi_reduction <maximumf>, %26, %cst_13 [1] : vector<8x8xf32> to vector<8xf32>
    %28 = vector.shape_cast %27 : vector<8xf32> to vector<8x1xf32>
    %29 = vector.broadcast %28 : vector<8x1xf32> to vector<8x8xf32>
    %30 = arith.subf %26, %29 : vector<8x8xf32>
    %31 = math.exp %30 : vector<8x8xf32>
    %cst_14 = arith.constant dense<0.000000e+00> : vector<8xf32>
    %32 = vector.multi_reduction <add>, %31, %cst_14 [1] : vector<8x8xf32> to vector<8xf32>
    %33 = vector.shape_cast %32 : vector<8xf32> to vector<8x1xf32>
    %34 = vector.broadcast %33 : vector<8x1xf32> to vector<8x8xf32>
    %35 = arith.divf %31, %34 : vector<8x8xf32>
    %cst_15 = arith.constant dense<0.000000e+00> : vector<8x64xf32>
    %36 = tpu.matmul %35, %21, %cst_15 {dimension_numbers = #tpu.dot_dimension_numbers<[1], [0], [0], [1], [0, 0, 1, 1], [], []>} : vector<8x8xf32>, vector<8x64xf32>, vector<8x64xf32> -> vector<8x64xf32>
    %37 = vector.extract_strided_slice %7 {offsets = [0, 64], sizes = [8, 64], strides = [1, 1]} : vector<8x512xf32> to vector<8x64xf32>
    %38 = vector.extract_strided_slice %10 {offsets = [0, 64], sizes = [8, 64], strides = [1, 1]} : vector<8x512xf32> to vector<8x64xf32>
    %39 = vector.extract_strided_slice %11 {offsets = [0, 64], sizes = [8, 64], strides = [1, 1]} : vector<8x512xf32> to vector<8x64xf32>
    %cst_16 = arith.constant dense<0.000000e+00> : vector<8x8xf32>
    %40 = tpu.matmul %37, %38, %cst_16 {dimension_numbers = #tpu.dot_dimension_numbers<[1], [1], [0], [0], [0, 0, 1, 0], [], []>} : vector<8x64xf32>, vector<8x64xf32>, vector<8x8xf32> -> vector<8x8xf32>
    %cst_17 = arith.constant 1.250000e-01 : f32
    %41 = vector.broadcast %cst_17 : f32 to vector<8x8xf32>
    %42 = arith.mulf %40, %41 : vector<8x8xf32>
    %cst_18 = arith.constant -1.000000e+09 : f32
    %43 = vector.broadcast %cst_18 : f32 to vector<8x8xf32>
    %44 = arith.select %18, %42, %43 : vector<8x8xi1>, vector<8x8xf32>
    %cst_19 = arith.constant dense<0xFF800000> : vector<8xf32>
    %45 = vector.multi_reduction <maximumf>, %44, %cst_19 [1] : vector<8x8xf32> to vector<8xf32>
    %46 = vector.shape_cast %45 : vector<8xf32> to vector<8x1xf32>
    %47 = vector.broadcast %46 : vector<8x1xf32> to vector<8x8xf32>
    %48 = arith.subf %44, %47 : vector<8x8xf32>
    %49 = math.exp %48 : vector<8x8xf32>
    %cst_20 = arith.constant dense<0.000000e+00> : vector<8xf32>
    %50 = vector.multi_reduction <add>, %49, %cst_20 [1] : vector<8x8xf32> to vector<8xf32>
    %51 = vector.shape_cast %50 : vector<8xf32> to vector<8x1xf32>
    %52 = vector.broadcast %51 : vector<8x1xf32> to vector<8x8xf32>
    %53 = arith.divf %49, %52 : vector<8x8xf32>
    %cst_21 = arith.constant dense<0.000000e+00> : vector<8x64xf32>
    %54 = tpu.matmul %53, %39, %cst_21 {dimension_numbers = #tpu.dot_dimension_numbers<[1], [0], [0], [1], [0, 0, 1, 1], [], []>} : vector<8x8xf32>, vector<8x64xf32>, vector<8x64xf32> -> vector<8x64xf32>
    %55 = vector.extract_strided_slice %7 {offsets = [0, 128], sizes = [8, 64], strides = [1, 1]} : vector<8x512xf32> to vector<8x64xf32>
    %56 = vector.extract_strided_slice %10 {offsets = [0, 128], sizes = [8, 64], strides = [1, 1]} : vector<8x512xf32> to vector<8x64xf32>
    %57 = vector.extract_strided_slice %11 {offsets = [0, 128], sizes = [8, 64], strides = [1, 1]} : vector<8x512xf32> to vector<8x64xf32>
    %cst_22 = arith.constant dense<0.000000e+00> : vector<8x8xf32>
    %58 = tpu.matmul %55, %56, %cst_22 {dimension_numbers = #tpu.dot_dimension_numbers<[1], [1], [0], [0], [0, 0, 1, 0], [], []>} : vector<8x64xf32>, vector<8x64xf32>, vector<8x8xf32> -> vector<8x8xf32>
    %cst_23 = arith.constant 1.250000e-01 : f32
    %59 = vector.broadcast %cst_23 : f32 to vector<8x8xf32>
    %60 = arith.mulf %58, %59 : vector<8x8xf32>
    %cst_24 = arith.constant -1.000000e+09 : f32
    %61 = vector.broadcast %cst_24 : f32 to vector<8x8xf32>
    %62 = arith.select %18, %60, %61 : vector<8x8xi1>, vector<8x8xf32>
    %cst_25 = arith.constant dense<0xFF800000> : vector<8xf32>
    %63 = vector.multi_reduction <maximumf>, %62, %cst_25 [1] : vector<8x8xf32> to vector<8xf32>
    %64 = vector.shape_cast %63 : vector<8xf32> to vector<8x1xf32>
    %65 = vector.broadcast %64 : vector<8x1xf32> to vector<8x8xf32>
    %66 = arith.subf %62, %65 : vector<8x8xf32>
    %67 = math.exp %66 : vector<8x8xf32>
    %cst_26 = arith.constant dense<0.000000e+00> : vector<8xf32>
    %68 = vector.multi_reduction <add>, %67, %cst_26 [1] : vector<8x8xf32> to vector<8xf32>
    %69 = vector.shape_cast %68 : vector<8xf32> to vector<8x1xf32>
    %70 = vector.broadcast %69 : vector<8x1xf32> to vector<8x8xf32>
    %71 = arith.divf %67, %70 : vector<8x8xf32>
    %cst_27 = arith.constant dense<0.000000e+00> : vector<8x64xf32>
    %72 = tpu.matmul %71, %57, %cst_27 {dimension_numbers = #tpu.dot_dimension_numbers<[1], [0], [0], [1], [0, 0, 1, 1], [], []>} : vector<8x8xf32>, vector<8x64xf32>, vector<8x64xf32> -> vector<8x64xf32>
    %73 = vector.extract_strided_slice %7 {offsets = [0, 192], sizes = [8, 64], strides = [1, 1]} : vector<8x512xf32> to vector<8x64xf32>
    %74 = vector.extract_strided_slice %10 {offsets = [0, 192], sizes = [8, 64], strides = [1, 1]} : vector<8x512xf32> to vector<8x64xf32>
    %75 = vector.extract_strided_slice %11 {offsets = [0, 192], sizes = [8, 64], strides = [1, 1]} : vector<8x512xf32> to vector<8x64xf32>
    %cst_28 = arith.constant dense<0.000000e+00> : vector<8x8xf32>
    %76 = tpu.matmul %73, %74, %cst_28 {dimension_numbers = #tpu.dot_dimension_numbers<[1], [1], [0], [0], [0, 0, 1, 0], [], []>} : vector<8x64xf32>, vector<8x64xf32>, vector<8x8xf32> -> vector<8x8xf32>
    %cst_29 = arith.constant 1.250000e-01 : f32
    %77 = vector.broadcast %cst_29 : f32 to vector<8x8xf32>
    %78 = arith.mulf %76, %77 : vector<8x8xf32>
    %cst_30 = arith.constant -1.000000e+09 : f32
    %79 = vector.broadcast %cst_30 : f32 to vector<8x8xf32>
    %80 = arith.select %18, %78, %79 : vector<8x8xi1>, vector<8x8xf32>
    %cst_31 = arith.constant dense<0xFF800000> : vector<8xf32>
    %81 = vector.multi_reduction <maximumf>, %80, %cst_31 [1] : vector<8x8xf32> to vector<8xf32>
    %82 = vector.shape_cast %81 : vector<8xf32> to vector<8x1xf32>
    %83 = vector.broadcast %82 : vector<8x1xf32> to vector<8x8xf32>
    %84 = arith.subf %80, %83 : vector<8x8xf32>
    %85 = math.exp %84 : vector<8x8xf32>
    %cst_32 = arith.constant dense<0.000000e+00> : vector<8xf32>
    %86 = vector.multi_reduction <add>, %85, %cst_32 [1] : vector<8x8xf32> to vector<8xf32>
    %87 = vector.shape_cast %86 : vector<8xf32> to vector<8x1xf32>
    %88 = vector.broadcast %87 : vector<8x1xf32> to vector<8x8xf32>
    %89 = arith.divf %85, %88 : vector<8x8xf32>
    %cst_33 = arith.constant dense<0.000000e+00> : vector<8x64xf32>
    %90 = tpu.matmul %89, %75, %cst_33 {dimension_numbers = #tpu.dot_dimension_numbers<[1], [0], [0], [1], [0, 0, 1, 1], [], []>} : vector<8x8xf32>, vector<8x64xf32>, vector<8x64xf32> -> vector<8x64xf32>
    %91 = vector.extract_strided_slice %7 {offsets = [0, 256], sizes = [8, 64], strides = [1, 1]} : vector<8x512xf32> to vector<8x64xf32>
    %92 = vector.extract_strided_slice %10 {offsets = [0, 256], sizes = [8, 64], strides = [1, 1]} : vector<8x512xf32> to vector<8x64xf32>
    %93 = vector.extract_strided_slice %11 {offsets = [0, 256], sizes = [8, 64], strides = [1, 1]} : vector<8x512xf32> to vector<8x64xf32>
    %cst_34 = arith.constant dense<0.000000e+00> : vector<8x8xf32>
    %94 = tpu.matmul %91, %92, %cst_34 {dimension_numbers = #tpu.dot_dimension_numbers<[1], [1], [0], [0], [0, 0, 1, 0], [], []>} : vector<8x64xf32>, vector<8x64xf32>, vector<8x8xf32> -> vector<8x8xf32>
    %cst_35 = arith.constant 1.250000e-01 : f32
    %95 = vector.broadcast %cst_35 : f32 to vector<8x8xf32>
    %96 = arith.mulf %94, %95 : vector<8x8xf32>
    %cst_36 = arith.constant -1.000000e+09 : f32
    %97 = vector.broadcast %cst_36 : f32 to vector<8x8xf32>
    %98 = arith.select %18, %96, %97 : vector<8x8xi1>, vector<8x8xf32>
    %cst_37 = arith.constant dense<0xFF800000> : vector<8xf32>
    %99 = vector.multi_reduction <maximumf>, %98, %cst_37 [1] : vector<8x8xf32> to vector<8xf32>
    %100 = vector.shape_cast %99 : vector<8xf32> to vector<8x1xf32>
    %101 = vector.broadcast %100 : vector<8x1xf32> to vector<8x8xf32>
    %102 = arith.subf %98, %101 : vector<8x8xf32>
    %103 = math.exp %102 : vector<8x8xf32>
    %cst_38 = arith.constant dense<0.000000e+00> : vector<8xf32>
    %104 = vector.multi_reduction <add>, %103, %cst_38 [1] : vector<8x8xf32> to vector<8xf32>
    %105 = vector.shape_cast %104 : vector<8xf32> to vector<8x1xf32>
    %106 = vector.broadcast %105 : vector<8x1xf32> to vector<8x8xf32>
    %107 = arith.divf %103, %106 : vector<8x8xf32>
    %cst_39 = arith.constant dense<0.000000e+00> : vector<8x64xf32>
    %108 = tpu.matmul %107, %93, %cst_39 {dimension_numbers = #tpu.dot_dimension_numbers<[1], [0], [0], [1], [0, 0, 1, 1], [], []>} : vector<8x8xf32>, vector<8x64xf32>, vector<8x64xf32> -> vector<8x64xf32>
    %109 = vector.extract_strided_slice %7 {offsets = [0, 320], sizes = [8, 64], strides = [1, 1]} : vector<8x512xf32> to vector<8x64xf32>
    %110 = vector.extract_strided_slice %10 {offsets = [0, 320], sizes = [8, 64], strides = [1, 1]} : vector<8x512xf32> to vector<8x64xf32>
    %111 = vector.extract_strided_slice %11 {offsets = [0, 320], sizes = [8, 64], strides = [1, 1]} : vector<8x512xf32> to vector<8x64xf32>
    %cst_40 = arith.constant dense<0.000000e+00> : vector<8x8xf32>
    %112 = tpu.matmul %109, %110, %cst_40 {dimension_numbers = #tpu.dot_dimension_numbers<[1], [1], [0], [0], [0, 0, 1, 0], [], []>} : vector<8x64xf32>, vector<8x64xf32>, vector<8x8xf32> -> vector<8x8xf32>
    %cst_41 = arith.constant 1.250000e-01 : f32
    %113 = vector.broadcast %cst_41 : f32 to vector<8x8xf32>
    %114 = arith.mulf %112, %113 : vector<8x8xf32>
    %cst_42 = arith.constant -1.000000e+09 : f32
    %115 = vector.broadcast %cst_42 : f32 to vector<8x8xf32>
    %116 = arith.select %18, %114, %115 : vector<8x8xi1>, vector<8x8xf32>
    %cst_43 = arith.constant dense<0xFF800000> : vector<8xf32>
    %117 = vector.multi_reduction <maximumf>, %116, %cst_43 [1] : vector<8x8xf32> to vector<8xf32>
    %118 = vector.shape_cast %117 : vector<8xf32> to vector<8x1xf32>
    %119 = vector.broadcast %118 : vector<8x1xf32> to vector<8x8xf32>
    %120 = arith.subf %116, %119 : vector<8x8xf32>
    %121 = math.exp %120 : vector<8x8xf32>
    %cst_44 = arith.constant dense<0.000000e+00> : vector<8xf32>
    %122 = vector.multi_reduction <add>, %121, %cst_44 [1] : vector<8x8xf32> to vector<8xf32>
    %123 = vector.shape_cast %122 : vector<8xf32> to vector<8x1xf32>
    %124 = vector.broadcast %123 : vector<8x1xf32> to vector<8x8xf32>
    %125 = arith.divf %121, %124 : vector<8x8xf32>
    %cst_45 = arith.constant dense<0.000000e+00> : vector<8x64xf32>
    %126 = tpu.matmul %125, %111, %cst_45 {dimension_numbers = #tpu.dot_dimension_numbers<[1], [0], [0], [1], [0, 0, 1, 1], [], []>} : vector<8x8xf32>, vector<8x64xf32>, vector<8x64xf32> -> vector<8x64xf32>
    %127 = vector.extract_strided_slice %7 {offsets = [0, 384], sizes = [8, 64], strides = [1, 1]} : vector<8x512xf32> to vector<8x64xf32>
    %128 = vector.extract_strided_slice %10 {offsets = [0, 384], sizes = [8, 64], strides = [1, 1]} : vector<8x512xf32> to vector<8x64xf32>
    %129 = vector.extract_strided_slice %11 {offsets = [0, 384], sizes = [8, 64], strides = [1, 1]} : vector<8x512xf32> to vector<8x64xf32>
    %cst_46 = arith.constant dense<0.000000e+00> : vector<8x8xf32>
    %130 = tpu.matmul %127, %128, %cst_46 {dimension_numbers = #tpu.dot_dimension_numbers<[1], [1], [0], [0], [0, 0, 1, 0], [], []>} : vector<8x64xf32>, vector<8x64xf32>, vector<8x8xf32> -> vector<8x8xf32>
    %cst_47 = arith.constant 1.250000e-01 : f32
    %131 = vector.broadcast %cst_47 : f32 to vector<8x8xf32>
    %132 = arith.mulf %130, %131 : vector<8x8xf32>
    %cst_48 = arith.constant -1.000000e+09 : f32
    %133 = vector.broadcast %cst_48 : f32 to vector<8x8xf32>
    %134 = arith.select %18, %132, %133 : vector<8x8xi1>, vector<8x8xf32>
    %cst_49 = arith.constant dense<0xFF800000> : vector<8xf32>
    %135 = vector.multi_reduction <maximumf>, %134, %cst_49 [1] : vector<8x8xf32> to vector<8xf32>
    %136 = vector.shape_cast %135 : vector<8xf32> to vector<8x1xf32>
    %137 = vector.broadcast %136 : vector<8x1xf32> to vector<8x8xf32>
    %138 = arith.subf %134, %137 : vector<8x8xf32>
    %139 = math.exp %138 : vector<8x8xf32>
    %cst_50 = arith.constant dense<0.000000e+00> : vector<8xf32>
    %140 = vector.multi_reduction <add>, %139, %cst_50 [1] : vector<8x8xf32> to vector<8xf32>
    %141 = vector.shape_cast %140 : vector<8xf32> to vector<8x1xf32>
    %142 = vector.broadcast %141 : vector<8x1xf32> to vector<8x8xf32>
    %143 = arith.divf %139, %142 : vector<8x8xf32>
    %cst_51 = arith.constant dense<0.000000e+00> : vector<8x64xf32>
    %144 = tpu.matmul %143, %129, %cst_51 {dimension_numbers = #tpu.dot_dimension_numbers<[1], [0], [0], [1], [0, 0, 1, 1], [], []>} : vector<8x8xf32>, vector<8x64xf32>, vector<8x64xf32> -> vector<8x64xf32>
    %145 = vector.extract_strided_slice %7 {offsets = [0, 448], sizes = [8, 64], strides = [1, 1]} : vector<8x512xf32> to vector<8x64xf32>
    %146 = vector.extract_strided_slice %10 {offsets = [0, 448], sizes = [8, 64], strides = [1, 1]} : vector<8x512xf32> to vector<8x64xf32>
    %147 = vector.extract_strided_slice %11 {offsets = [0, 448], sizes = [8, 64], strides = [1, 1]} : vector<8x512xf32> to vector<8x64xf32>
    %cst_52 = arith.constant dense<0.000000e+00> : vector<8x8xf32>
    %148 = tpu.matmul %145, %146, %cst_52 {dimension_numbers = #tpu.dot_dimension_numbers<[1], [1], [0], [0], [0, 0, 1, 0], [], []>} : vector<8x64xf32>, vector<8x64xf32>, vector<8x8xf32> -> vector<8x8xf32>
    %cst_53 = arith.constant 1.250000e-01 : f32
    %149 = vector.broadcast %cst_53 : f32 to vector<8x8xf32>
    %150 = arith.mulf %148, %149 : vector<8x8xf32>
    %cst_54 = arith.constant -1.000000e+09 : f32
    %151 = vector.broadcast %cst_54 : f32 to vector<8x8xf32>
    %152 = arith.select %18, %150, %151 : vector<8x8xi1>, vector<8x8xf32>
    %cst_55 = arith.constant dense<0xFF800000> : vector<8xf32>
    %153 = vector.multi_reduction <maximumf>, %152, %cst_55 [1] : vector<8x8xf32> to vector<8xf32>
    %154 = vector.shape_cast %153 : vector<8xf32> to vector<8x1xf32>
    %155 = vector.broadcast %154 : vector<8x1xf32> to vector<8x8xf32>
    %156 = arith.subf %152, %155 : vector<8x8xf32>
    %157 = math.exp %156 : vector<8x8xf32>
    %cst_56 = arith.constant dense<0.000000e+00> : vector<8xf32>
    %158 = vector.multi_reduction <add>, %157, %cst_56 [1] : vector<8x8xf32> to vector<8xf32>
    %159 = vector.shape_cast %158 : vector<8xf32> to vector<8x1xf32>
    %160 = vector.broadcast %159 : vector<8x1xf32> to vector<8x8xf32>
    %161 = arith.divf %157, %160 : vector<8x8xf32>
    %cst_57 = arith.constant dense<0.000000e+00> : vector<8x64xf32>
    %162 = tpu.matmul %161, %147, %cst_57 {dimension_numbers = #tpu.dot_dimension_numbers<[1], [0], [0], [1], [0, 0, 1, 1], [], []>} : vector<8x8xf32>, vector<8x64xf32>, vector<8x64xf32> -> vector<8x64xf32>
    %163 = tpu.concatenate %36, %54, %72, %90, %108, %126, %144, %162 in 1 : vector<8x64xf32>, vector<8x64xf32>, vector<8x64xf32>, vector<8x64xf32>, vector<8x64xf32>, vector<8x64xf32>, vector<8x64xf32>, vector<8x64xf32> -> vector<8x512xf32>
    %c0_58 = arith.constant 0 : index
    %c0_59 = arith.constant 0 : index
    %164 = vector.load %arg6[%c0_58, %c0_59] : memref<512x64xf32, #tpu.memory_space<vmem>>, vector<512x64xf32>
    %cst_60 = arith.constant dense<0.000000e+00> : vector<8x64xf32>
    %165 = tpu.matmul %163, %164, %cst_60 {dimension_numbers = #tpu.dot_dimension_numbers<[1], [0], [0], [1], [0, 0, 1, 1], [], []>} : vector<8x512xf32>, vector<512x64xf32>, vector<8x64xf32> -> vector<8x64xf32>
    %c0_61 = arith.constant 0 : index
    %c0_62 = arith.constant 0 : index
    %166 = vector.load %arg7[%c0_61, %c0_62] : memref<1x64xf32, #tpu.memory_space<vmem>>, vector<1x64xf32>
    %167 = vector.broadcast %166 : vector<1x64xf32> to vector<8x64xf32>
    %168 = arith.addf %165, %167 : vector<8x64xf32>
    %169 = arith.addf %3, %168 : vector<8x64xf32>
    %c0_63 = arith.constant 0 : index
    %c0_64 = arith.constant 0 : index
    %170 = vector.load %arg8[%c0_63, %c0_64] : memref<1x64xf32, #tpu.memory_space<vmem>>, vector<1x64xf32>
    %c0_65 = arith.constant 0 : index
    %c0_66 = arith.constant 0 : index
    %171 = vector.load %arg9[%c0_65, %c0_66] : memref<1x64xf32, #tpu.memory_space<vmem>>, vector<1x64xf32>
    %cst_67 = arith.constant dense<0.000000e+00> : vector<8xf32>
    %172 = vector.multi_reduction <add>, %169, %cst_67 [1] : vector<8x64xf32> to vector<8xf32>
    %173 = vector.shape_cast %172 : vector<8xf32> to vector<8x1xf32>
    %cst_68 = arith.constant 6.400000e+01 : f32
    %174 = vector.broadcast %cst_68 : f32 to vector<8x1xf32>
    %175 = arith.divf %173, %174 : vector<8x1xf32>
    %176 = vector.broadcast %175 : vector<8x1xf32> to vector<8x64xf32>
    %177 = arith.subf %169, %176 : vector<8x64xf32>
    %178 = arith.mulf %177, %177 : vector<8x64xf32>
    %cst_69 = arith.constant dense<0.000000e+00> : vector<8xf32>
    %179 = vector.multi_reduction <add>, %178, %cst_69 [1] : vector<8x64xf32> to vector<8xf32>
    %180 = vector.shape_cast %179 : vector<8xf32> to vector<8x1xf32>
    %cst_70 = arith.constant 6.400000e+01 : f32
    %181 = vector.broadcast %cst_70 : f32 to vector<8x1xf32>
    %182 = arith.divf %180, %181 : vector<8x1xf32>
    %183 = vector.broadcast %175 : vector<8x1xf32> to vector<8x64xf32>
    %184 = arith.subf %169, %183 : vector<8x64xf32>
    %cst_71 = arith.constant 9.99999974E-6 : f32
    %185 = vector.broadcast %cst_71 : f32 to vector<8x1xf32>
    %186 = arith.addf %182, %185 : vector<8x1xf32>
    %187 = math.rsqrt %186 : vector<8x1xf32>
    %188 = vector.broadcast %187 : vector<8x1xf32> to vector<8x64xf32>
    %189 = arith.mulf %184, %188 : vector<8x64xf32>
    %190 = vector.broadcast %170 : vector<1x64xf32> to vector<8x64xf32>
    %191 = arith.mulf %189, %190 : vector<8x64xf32>
    %192 = vector.broadcast %171 : vector<1x64xf32> to vector<8x64xf32>
    %193 = arith.addf %191, %192 : vector<8x64xf32>
    %c0_72 = arith.constant 0 : index
    %c0_73 = arith.constant 0 : index
    %194 = vector.load %arg10[%c0_72, %c0_73] : memref<64x256xf32, #tpu.memory_space<vmem>>, vector<64x256xf32>
    %cst_74 = arith.constant dense<0.000000e+00> : vector<8x256xf32>
    %195 = tpu.matmul %193, %194, %cst_74 {dimension_numbers = #tpu.dot_dimension_numbers<[1], [0], [0], [1], [0, 0, 1, 1], [], []>} : vector<8x64xf32>, vector<64x256xf32>, vector<8x256xf32> -> vector<8x256xf32>
    %c0_75 = arith.constant 0 : index
    %c0_76 = arith.constant 0 : index
    %196 = vector.load %arg11[%c0_75, %c0_76] : memref<1x256xf32, #tpu.memory_space<vmem>>, vector<1x256xf32>
    %197 = vector.broadcast %196 : vector<1x256xf32> to vector<8x256xf32>
    %198 = arith.addf %195, %197 : vector<8x256xf32>
    %cst_77 = arith.constant 0.000000e+00 : f32
    %199 = vector.broadcast %cst_77 : f32 to vector<8x256xf32>
    %200 = arith.maximumf %198, %199 : vector<8x256xf32>
    %c0_78 = arith.constant 0 : index
    %c0_79 = arith.constant 0 : index
    %201 = vector.load %arg12[%c0_78, %c0_79] : memref<256x64xf32, #tpu.memory_space<vmem>>, vector<256x64xf32>
    %cst_80 = arith.constant dense<0.000000e+00> : vector<8x64xf32>
    %202 = tpu.matmul %200, %201, %cst_80 {dimension_numbers = #tpu.dot_dimension_numbers<[1], [0], [0], [1], [0, 0, 1, 1], [], []>} : vector<8x256xf32>, vector<256x64xf32>, vector<8x64xf32> -> vector<8x64xf32>
    %c0_81 = arith.constant 0 : index
    %c0_82 = arith.constant 0 : index
    %203 = vector.load %arg13[%c0_81, %c0_82] : memref<1x64xf32, #tpu.memory_space<vmem>>, vector<1x64xf32>
    %204 = vector.broadcast %203 : vector<1x64xf32> to vector<8x64xf32>
    %205 = arith.addf %202, %204 : vector<8x64xf32>
    %206 = arith.addf %193, %205 : vector<8x64xf32>
    %c0_83 = arith.constant 0 : index
    %c0_84 = arith.constant 0 : index
    %207 = vector.load %arg14[%c0_83, %c0_84] : memref<1x64xf32, #tpu.memory_space<vmem>>, vector<1x64xf32>
    %c0_85 = arith.constant 0 : index
    %c0_86 = arith.constant 0 : index
    %208 = vector.load %arg15[%c0_85, %c0_86] : memref<1x64xf32, #tpu.memory_space<vmem>>, vector<1x64xf32>
    %cst_87 = arith.constant dense<0.000000e+00> : vector<8xf32>
    %209 = vector.multi_reduction <add>, %206, %cst_87 [1] : vector<8x64xf32> to vector<8xf32>
    %210 = vector.shape_cast %209 : vector<8xf32> to vector<8x1xf32>
    %cst_88 = arith.constant 6.400000e+01 : f32
    %211 = vector.broadcast %cst_88 : f32 to vector<8x1xf32>
    %212 = arith.divf %210, %211 : vector<8x1xf32>
    %213 = vector.broadcast %212 : vector<8x1xf32> to vector<8x64xf32>
    %214 = arith.subf %206, %213 : vector<8x64xf32>
    %215 = arith.mulf %214, %214 : vector<8x64xf32>
    %cst_89 = arith.constant dense<0.000000e+00> : vector<8xf32>
    %216 = vector.multi_reduction <add>, %215, %cst_89 [1] : vector<8x64xf32> to vector<8xf32>
    %217 = vector.shape_cast %216 : vector<8xf32> to vector<8x1xf32>
    %cst_90 = arith.constant 6.400000e+01 : f32
    %218 = vector.broadcast %cst_90 : f32 to vector<8x1xf32>
    %219 = arith.divf %217, %218 : vector<8x1xf32>
    %220 = vector.broadcast %212 : vector<8x1xf32> to vector<8x64xf32>
    %221 = arith.subf %206, %220 : vector<8x64xf32>
    %cst_91 = arith.constant 9.99999974E-6 : f32
    %222 = vector.broadcast %cst_91 : f32 to vector<8x1xf32>
    %223 = arith.addf %219, %222 : vector<8x1xf32>
    %224 = math.rsqrt %223 : vector<8x1xf32>
    %225 = vector.broadcast %224 : vector<8x1xf32> to vector<8x64xf32>
    %226 = arith.mulf %221, %225 : vector<8x64xf32>
    %227 = vector.broadcast %207 : vector<1x64xf32> to vector<8x64xf32>
    %228 = arith.mulf %226, %227 : vector<8x64xf32>
    %229 = vector.broadcast %208 : vector<1x64xf32> to vector<8x64xf32>
    %230 = arith.addf %228, %229 : vector<8x64xf32>
    %c0_92 = arith.constant 0 : index
    %c0_93 = arith.constant 0 : index
    %231 = vector.load %arg16[%c0_92, %c0_93] : memref<64x512xf32, #tpu.memory_space<vmem>>, vector<64x512xf32>
    %cst_94 = arith.constant dense<0.000000e+00> : vector<8x512xf32>
    %232 = tpu.matmul %5, %231, %cst_94 {dimension_numbers = #tpu.dot_dimension_numbers<[1], [0], [0], [1], [0, 0, 1, 1], [], []>} : vector<8x64xf32>, vector<64x512xf32>, vector<8x512xf32> -> vector<8x512xf32>
    %c0_95 = arith.constant 0 : index
    %c0_96 = arith.constant 0 : index
    %233 = vector.load %arg17[%c0_95, %c0_96] : memref<64x1024xf32, #tpu.memory_space<vmem>>, vector<64x1024xf32>
    %cst_97 = arith.constant dense<0.000000e+00> : vector<8x1024xf32>
    %234 = tpu.matmul %230, %233, %cst_97 {dimension_numbers = #tpu.dot_dimension_numbers<[1], [0], [0], [1], [0, 0, 1, 1], [], []>} : vector<8x64xf32>, vector<64x1024xf32>, vector<8x1024xf32> -> vector<8x1024xf32>
    %235 = vector.extract_strided_slice %234 {offsets = [0, 0], sizes = [8, 512], strides = [1, 1]} : vector<8x1024xf32> to vector<8x512xf32>
    %236 = vector.extract_strided_slice %234 {offsets = [0, 512], sizes = [8, 512], strides = [1, 1]} : vector<8x1024xf32> to vector<8x512xf32>
    %237 = tpu.iota {dimensions = array<i32: 0>} : vector<8x8xi32>
    %238 = tpu.iota {dimensions = array<i32: 1>} : vector<8x8xi32>
    %c8_i32 = arith.constant 8 : i32
    %239 = vector.broadcast %c8_i32 : i32 to vector<8x8xi32>
    %240 = arith.cmpi slt, %237, %239 : vector<8x8xi32>
    %241 = vector.broadcast %1 : i32 to vector<8x8xi32>
    %242 = arith.cmpi slt, %238, %241 : vector<8x8xi32>
    %243 = arith.andi %240, %242 : vector<8x8xi1>
    %244 = vector.extract_strided_slice %232 {offsets = [0, 0], sizes = [8, 64], strides = [1, 1]} : vector<8x512xf32> to vector<8x64xf32>
    %245 = vector.extract_strided_slice %235 {offsets = [0, 0], sizes = [8, 64], strides = [1, 1]} : vector<8x512xf32> to vector<8x64xf32>
    %246 = vector.extract_strided_slice %236 {offsets = [0, 0], sizes = [8, 64], strides = [1, 1]} : vector<8x512xf32> to vector<8x64xf32>
    %cst_98 = arith.constant dense<0.000000e+00> : vector<8x8xf32>
    %247 = tpu.matmul %244, %245, %cst_98 {dimension_numbers = #tpu.dot_dimension_numbers<[1], [1], [0], [0], [0, 0, 1, 0], [], []>} : vector<8x64xf32>, vector<8x64xf32>, vector<8x8xf32> -> vector<8x8xf32>
    %cst_99 = arith.constant 1.250000e-01 : f32
    %248 = vector.broadcast %cst_99 : f32 to vector<8x8xf32>
    %249 = arith.mulf %247, %248 : vector<8x8xf32>
    %cst_100 = arith.constant -1.000000e+09 : f32
    %250 = vector.broadcast %cst_100 : f32 to vector<8x8xf32>
    %251 = arith.select %243, %249, %250 : vector<8x8xi1>, vector<8x8xf32>
    %cst_101 = arith.constant dense<0xFF800000> : vector<8xf32>
    %252 = vector.multi_reduction <maximumf>, %251, %cst_101 [1] : vector<8x8xf32> to vector<8xf32>
    %253 = vector.shape_cast %252 : vector<8xf32> to vector<8x1xf32>
    %254 = vector.broadcast %253 : vector<8x1xf32> to vector<8x8xf32>
    %255 = arith.subf %251, %254 : vector<8x8xf32>
    %256 = math.exp %255 : vector<8x8xf32>
    %cst_102 = arith.constant dense<0.000000e+00> : vector<8xf32>
    %257 = vector.multi_reduction <add>, %256, %cst_102 [1] : vector<8x8xf32> to vector<8xf32>
    %258 = vector.shape_cast %257 : vector<8xf32> to vector<8x1xf32>
    %259 = vector.broadcast %258 : vector<8x1xf32> to vector<8x8xf32>
    %260 = arith.divf %256, %259 : vector<8x8xf32>
    %cst_103 = arith.constant dense<0.000000e+00> : vector<8x64xf32>
    %261 = tpu.matmul %260, %246, %cst_103 {dimension_numbers = #tpu.dot_dimension_numbers<[1], [0], [0], [1], [0, 0, 1, 1], [], []>} : vector<8x8xf32>, vector<8x64xf32>, vector<8x64xf32> -> vector<8x64xf32>
    %262 = vector.extract_strided_slice %232 {offsets = [0, 64], sizes = [8, 64], strides = [1, 1]} : vector<8x512xf32> to vector<8x64xf32>
    %263 = vector.extract_strided_slice %235 {offsets = [0, 64], sizes = [8, 64], strides = [1, 1]} : vector<8x512xf32> to vector<8x64xf32>
    %264 = vector.extract_strided_slice %236 {offsets = [0, 64], sizes = [8, 64], strides = [1, 1]} : vector<8x512xf32> to vector<8x64xf32>
    %cst_104 = arith.constant dense<0.000000e+00> : vector<8x8xf32>
    %265 = tpu.matmul %262, %263, %cst_104 {dimension_numbers = #tpu.dot_dimension_numbers<[1], [1], [0], [0], [0, 0, 1, 0], [], []>} : vector<8x64xf32>, vector<8x64xf32>, vector<8x8xf32> -> vector<8x8xf32>
    %cst_105 = arith.constant 1.250000e-01 : f32
    %266 = vector.broadcast %cst_105 : f32 to vector<8x8xf32>
    %267 = arith.mulf %265, %266 : vector<8x8xf32>
    %cst_106 = arith.constant -1.000000e+09 : f32
    %268 = vector.broadcast %cst_106 : f32 to vector<8x8xf32>
    %269 = arith.select %243, %267, %268 : vector<8x8xi1>, vector<8x8xf32>
    %cst_107 = arith.constant dense<0xFF800000> : vector<8xf32>
    %270 = vector.multi_reduction <maximumf>, %269, %cst_107 [1] : vector<8x8xf32> to vector<8xf32>
    %271 = vector.shape_cast %270 : vector<8xf32> to vector<8x1xf32>
    %272 = vector.broadcast %271 : vector<8x1xf32> to vector<8x8xf32>
    %273 = arith.subf %269, %272 : vector<8x8xf32>
    %274 = math.exp %273 : vector<8x8xf32>
    %cst_108 = arith.constant dense<0.000000e+00> : vector<8xf32>
    %275 = vector.multi_reduction <add>, %274, %cst_108 [1] : vector<8x8xf32> to vector<8xf32>
    %276 = vector.shape_cast %275 : vector<8xf32> to vector<8x1xf32>
    %277 = vector.broadcast %276 : vector<8x1xf32> to vector<8x8xf32>
    %278 = arith.divf %274, %277 : vector<8x8xf32>
    %cst_109 = arith.constant dense<0.000000e+00> : vector<8x64xf32>
    %279 = tpu.matmul %278, %264, %cst_109 {dimension_numbers = #tpu.dot_dimension_numbers<[1], [0], [0], [1], [0, 0, 1, 1], [], []>} : vector<8x8xf32>, vector<8x64xf32>, vector<8x64xf32> -> vector<8x64xf32>
    %280 = vector.extract_strided_slice %232 {offsets = [0, 128], sizes = [8, 64], strides = [1, 1]} : vector<8x512xf32> to vector<8x64xf32>
    %281 = vector.extract_strided_slice %235 {offsets = [0, 128], sizes = [8, 64], strides = [1, 1]} : vector<8x512xf32> to vector<8x64xf32>
    %282 = vector.extract_strided_slice %236 {offsets = [0, 128], sizes = [8, 64], strides = [1, 1]} : vector<8x512xf32> to vector<8x64xf32>
    %cst_110 = arith.constant dense<0.000000e+00> : vector<8x8xf32>
    %283 = tpu.matmul %280, %281, %cst_110 {dimension_numbers = #tpu.dot_dimension_numbers<[1], [1], [0], [0], [0, 0, 1, 0], [], []>} : vector<8x64xf32>, vector<8x64xf32>, vector<8x8xf32> -> vector<8x8xf32>
    %cst_111 = arith.constant 1.250000e-01 : f32
    %284 = vector.broadcast %cst_111 : f32 to vector<8x8xf32>
    %285 = arith.mulf %283, %284 : vector<8x8xf32>
    %cst_112 = arith.constant -1.000000e+09 : f32
    %286 = vector.broadcast %cst_112 : f32 to vector<8x8xf32>
    %287 = arith.select %243, %285, %286 : vector<8x8xi1>, vector<8x8xf32>
    %cst_113 = arith.constant dense<0xFF800000> : vector<8xf32>
    %288 = vector.multi_reduction <maximumf>, %287, %cst_113 [1] : vector<8x8xf32> to vector<8xf32>
    %289 = vector.shape_cast %288 : vector<8xf32> to vector<8x1xf32>
    %290 = vector.broadcast %289 : vector<8x1xf32> to vector<8x8xf32>
    %291 = arith.subf %287, %290 : vector<8x8xf32>
    %292 = math.exp %291 : vector<8x8xf32>
    %cst_114 = arith.constant dense<0.000000e+00> : vector<8xf32>
    %293 = vector.multi_reduction <add>, %292, %cst_114 [1] : vector<8x8xf32> to vector<8xf32>
    %294 = vector.shape_cast %293 : vector<8xf32> to vector<8x1xf32>
    %295 = vector.broadcast %294 : vector<8x1xf32> to vector<8x8xf32>
    %296 = arith.divf %292, %295 : vector<8x8xf32>
    %cst_115 = arith.constant dense<0.000000e+00> : vector<8x64xf32>
    %297 = tpu.matmul %296, %282, %cst_115 {dimension_numbers = #tpu.dot_dimension_numbers<[1], [0], [0], [1], [0, 0, 1, 1], [], []>} : vector<8x8xf32>, vector<8x64xf32>, vector<8x64xf32> -> vector<8x64xf32>
    %298 = vector.extract_strided_slice %232 {offsets = [0, 192], sizes = [8, 64], strides = [1, 1]} : vector<8x512xf32> to vector<8x64xf32>
    %299 = vector.extract_strided_slice %235 {offsets = [0, 192], sizes = [8, 64], strides = [1, 1]} : vector<8x512xf32> to vector<8x64xf32>
    %300 = vector.extract_strided_slice %236 {offsets = [0, 192], sizes = [8, 64], strides = [1, 1]} : vector<8x512xf32> to vector<8x64xf32>
    %cst_116 = arith.constant dense<0.000000e+00> : vector<8x8xf32>
    %301 = tpu.matmul %298, %299, %cst_116 {dimension_numbers = #tpu.dot_dimension_numbers<[1], [1], [0], [0], [0, 0, 1, 0], [], []>} : vector<8x64xf32>, vector<8x64xf32>, vector<8x8xf32> -> vector<8x8xf32>
    %cst_117 = arith.constant 1.250000e-01 : f32
    %302 = vector.broadcast %cst_117 : f32 to vector<8x8xf32>
    %303 = arith.mulf %301, %302 : vector<8x8xf32>
    %cst_118 = arith.constant -1.000000e+09 : f32
    %304 = vector.broadcast %cst_118 : f32 to vector<8x8xf32>
    %305 = arith.select %243, %303, %304 : vector<8x8xi1>, vector<8x8xf32>
    %cst_119 = arith.constant dense<0xFF800000> : vector<8xf32>
    %306 = vector.multi_reduction <maximumf>, %305, %cst_119 [1] : vector<8x8xf32> to vector<8xf32>
    %307 = vector.shape_cast %306 : vector<8xf32> to vector<8x1xf32>
    %308 = vector.broadcast %307 : vector<8x1xf32> to vector<8x8xf32>
    %309 = arith.subf %305, %308 : vector<8x8xf32>
    %310 = math.exp %309 : vector<8x8xf32>
    %cst_120 = arith.constant dense<0.000000e+00> : vector<8xf32>
    %311 = vector.multi_reduction <add>, %310, %cst_120 [1] : vector<8x8xf32> to vector<8xf32>
    %312 = vector.shape_cast %311 : vector<8xf32> to vector<8x1xf32>
    %313 = vector.broadcast %312 : vector<8x1xf32> to vector<8x8xf32>
    %314 = arith.divf %310, %313 : vector<8x8xf32>
    %cst_121 = arith.constant dense<0.000000e+00> : vector<8x64xf32>
    %315 = tpu.matmul %314, %300, %cst_121 {dimension_numbers = #tpu.dot_dimension_numbers<[1], [0], [0], [1], [0, 0, 1, 1], [], []>} : vector<8x8xf32>, vector<8x64xf32>, vector<8x64xf32> -> vector<8x64xf32>
    %316 = vector.extract_strided_slice %232 {offsets = [0, 256], sizes = [8, 64], strides = [1, 1]} : vector<8x512xf32> to vector<8x64xf32>
    %317 = vector.extract_strided_slice %235 {offsets = [0, 256], sizes = [8, 64], strides = [1, 1]} : vector<8x512xf32> to vector<8x64xf32>
    %318 = vector.extract_strided_slice %236 {offsets = [0, 256], sizes = [8, 64], strides = [1, 1]} : vector<8x512xf32> to vector<8x64xf32>
    %cst_122 = arith.constant dense<0.000000e+00> : vector<8x8xf32>
    %319 = tpu.matmul %316, %317, %cst_122 {dimension_numbers = #tpu.dot_dimension_numbers<[1], [1], [0], [0], [0, 0, 1, 0], [], []>} : vector<8x64xf32>, vector<8x64xf32>, vector<8x8xf32> -> vector<8x8xf32>
    %cst_123 = arith.constant 1.250000e-01 : f32
    %320 = vector.broadcast %cst_123 : f32 to vector<8x8xf32>
    %321 = arith.mulf %319, %320 : vector<8x8xf32>
    %cst_124 = arith.constant -1.000000e+09 : f32
    %322 = vector.broadcast %cst_124 : f32 to vector<8x8xf32>
    %323 = arith.select %243, %321, %322 : vector<8x8xi1>, vector<8x8xf32>
    %cst_125 = arith.constant dense<0xFF800000> : vector<8xf32>
    %324 = vector.multi_reduction <maximumf>, %323, %cst_125 [1] : vector<8x8xf32> to vector<8xf32>
    %325 = vector.shape_cast %324 : vector<8xf32> to vector<8x1xf32>
    %326 = vector.broadcast %325 : vector<8x1xf32> to vector<8x8xf32>
    %327 = arith.subf %323, %326 : vector<8x8xf32>
    %328 = math.exp %327 : vector<8x8xf32>
    %cst_126 = arith.constant dense<0.000000e+00> : vector<8xf32>
    %329 = vector.multi_reduction <add>, %328, %cst_126 [1] : vector<8x8xf32> to vector<8xf32>
    %330 = vector.shape_cast %329 : vector<8xf32> to vector<8x1xf32>
    %331 = vector.broadcast %330 : vector<8x1xf32> to vector<8x8xf32>
    %332 = arith.divf %328, %331 : vector<8x8xf32>
    %cst_127 = arith.constant dense<0.000000e+00> : vector<8x64xf32>
    %333 = tpu.matmul %332, %318, %cst_127 {dimension_numbers = #tpu.dot_dimension_numbers<[1], [0], [0], [1], [0, 0, 1, 1], [], []>} : vector<8x8xf32>, vector<8x64xf32>, vector<8x64xf32> -> vector<8x64xf32>
    %334 = vector.extract_strided_slice %232 {offsets = [0, 320], sizes = [8, 64], strides = [1, 1]} : vector<8x512xf32> to vector<8x64xf32>
    %335 = vector.extract_strided_slice %235 {offsets = [0, 320], sizes = [8, 64], strides = [1, 1]} : vector<8x512xf32> to vector<8x64xf32>
    %336 = vector.extract_strided_slice %236 {offsets = [0, 320], sizes = [8, 64], strides = [1, 1]} : vector<8x512xf32> to vector<8x64xf32>
    %cst_128 = arith.constant dense<0.000000e+00> : vector<8x8xf32>
    %337 = tpu.matmul %334, %335, %cst_128 {dimension_numbers = #tpu.dot_dimension_numbers<[1], [1], [0], [0], [0, 0, 1, 0], [], []>} : vector<8x64xf32>, vector<8x64xf32>, vector<8x8xf32> -> vector<8x8xf32>
    %cst_129 = arith.constant 1.250000e-01 : f32
    %338 = vector.broadcast %cst_129 : f32 to vector<8x8xf32>
    %339 = arith.mulf %337, %338 : vector<8x8xf32>
    %cst_130 = arith.constant -1.000000e+09 : f32
    %340 = vector.broadcast %cst_130 : f32 to vector<8x8xf32>
    %341 = arith.select %243, %339, %340 : vector<8x8xi1>, vector<8x8xf32>
    %cst_131 = arith.constant dense<0xFF800000> : vector<8xf32>
    %342 = vector.multi_reduction <maximumf>, %341, %cst_131 [1] : vector<8x8xf32> to vector<8xf32>
    %343 = vector.shape_cast %342 : vector<8xf32> to vector<8x1xf32>
    %344 = vector.broadcast %343 : vector<8x1xf32> to vector<8x8xf32>
    %345 = arith.subf %341, %344 : vector<8x8xf32>
    %346 = math.exp %345 : vector<8x8xf32>
    %cst_132 = arith.constant dense<0.000000e+00> : vector<8xf32>
    %347 = vector.multi_reduction <add>, %346, %cst_132 [1] : vector<8x8xf32> to vector<8xf32>
    %348 = vector.shape_cast %347 : vector<8xf32> to vector<8x1xf32>
    %349 = vector.broadcast %348 : vector<8x1xf32> to vector<8x8xf32>
    %350 = arith.divf %346, %349 : vector<8x8xf32>
    %cst_133 = arith.constant dense<0.000000e+00> : vector<8x64xf32>
    %351 = tpu.matmul %350, %336, %cst_133 {dimension_numbers = #tpu.dot_dimension_numbers<[1], [0], [0], [1], [0, 0, 1, 1], [], []>} : vector<8x8xf32>, vector<8x64xf32>, vector<8x64xf32> -> vector<8x64xf32>
    %352 = vector.extract_strided_slice %232 {offsets = [0, 384], sizes = [8, 64], strides = [1, 1]} : vector<8x512xf32> to vector<8x64xf32>
    %353 = vector.extract_strided_slice %235 {offsets = [0, 384], sizes = [8, 64], strides = [1, 1]} : vector<8x512xf32> to vector<8x64xf32>
    %354 = vector.extract_strided_slice %236 {offsets = [0, 384], sizes = [8, 64], strides = [1, 1]} : vector<8x512xf32> to vector<8x64xf32>
    %cst_134 = arith.constant dense<0.000000e+00> : vector<8x8xf32>
    %355 = tpu.matmul %352, %353, %cst_134 {dimension_numbers = #tpu.dot_dimension_numbers<[1], [1], [0], [0], [0, 0, 1, 0], [], []>} : vector<8x64xf32>, vector<8x64xf32>, vector<8x8xf32> -> vector<8x8xf32>
    %cst_135 = arith.constant 1.250000e-01 : f32
    %356 = vector.broadcast %cst_135 : f32 to vector<8x8xf32>
    %357 = arith.mulf %355, %356 : vector<8x8xf32>
    %cst_136 = arith.constant -1.000000e+09 : f32
    %358 = vector.broadcast %cst_136 : f32 to vector<8x8xf32>
    %359 = arith.select %243, %357, %358 : vector<8x8xi1>, vector<8x8xf32>
    %cst_137 = arith.constant dense<0xFF800000> : vector<8xf32>
    %360 = vector.multi_reduction <maximumf>, %359, %cst_137 [1] : vector<8x8xf32> to vector<8xf32>
    %361 = vector.shape_cast %360 : vector<8xf32> to vector<8x1xf32>
    %362 = vector.broadcast %361 : vector<8x1xf32> to vector<8x8xf32>
    %363 = arith.subf %359, %362 : vector<8x8xf32>
    %364 = math.exp %363 : vector<8x8xf32>
    %cst_138 = arith.constant dense<0.000000e+00> : vector<8xf32>
    %365 = vector.multi_reduction <add>, %364, %cst_138 [1] : vector<8x8xf32> to vector<8xf32>
    %366 = vector.shape_cast %365 : vector<8xf32> to vector<8x1xf32>
    %367 = vector.broadcast %366 : vector<8x1xf32> to vector<8x8xf32>
    %368 = arith.divf %364, %367 : vector<8x8xf32>
    %cst_139 = arith.constant dense<0.000000e+00> : vector<8x64xf32>
    %369 = tpu.matmul %368, %354, %cst_139 {dimension_numbers = #tpu.dot_dimension_numbers<[1], [0], [0], [1], [0, 0, 1, 1], [], []>} : vector<8x8xf32>, vector<8x64xf32>, vector<8x64xf32> -> vector<8x64xf32>
    %370 = vector.extract_strided_slice %232 {offsets = [0, 448], sizes = [8, 64], strides = [1, 1]} : vector<8x512xf32> to vector<8x64xf32>
    %371 = vector.extract_strided_slice %235 {offsets = [0, 448], sizes = [8, 64], strides = [1, 1]} : vector<8x512xf32> to vector<8x64xf32>
    %372 = vector.extract_strided_slice %236 {offsets = [0, 448], sizes = [8, 64], strides = [1, 1]} : vector<8x512xf32> to vector<8x64xf32>
    %cst_140 = arith.constant dense<0.000000e+00> : vector<8x8xf32>
    %373 = tpu.matmul %370, %371, %cst_140 {dimension_numbers = #tpu.dot_dimension_numbers<[1], [1], [0], [0], [0, 0, 1, 0], [], []>} : vector<8x64xf32>, vector<8x64xf32>, vector<8x8xf32> -> vector<8x8xf32>
    %cst_141 = arith.constant 1.250000e-01 : f32
    %374 = vector.broadcast %cst_141 : f32 to vector<8x8xf32>
    %375 = arith.mulf %373, %374 : vector<8x8xf32>
    %cst_142 = arith.constant -1.000000e+09 : f32
    %376 = vector.broadcast %cst_142 : f32 to vector<8x8xf32>
    %377 = arith.select %243, %375, %376 : vector<8x8xi1>, vector<8x8xf32>
    %cst_143 = arith.constant dense<0xFF800000> : vector<8xf32>
    %378 = vector.multi_reduction <maximumf>, %377, %cst_143 [1] : vector<8x8xf32> to vector<8xf32>
    %379 = vector.shape_cast %378 : vector<8xf32> to vector<8x1xf32>
    %380 = vector.broadcast %379 : vector<8x1xf32> to vector<8x8xf32>
    %381 = arith.subf %377, %380 : vector<8x8xf32>
    %382 = math.exp %381 : vector<8x8xf32>
    %cst_144 = arith.constant dense<0.000000e+00> : vector<8xf32>
    %383 = vector.multi_reduction <add>, %382, %cst_144 [1] : vector<8x8xf32> to vector<8xf32>
    %384 = vector.shape_cast %383 : vector<8xf32> to vector<8x1xf32>
    %385 = vector.broadcast %384 : vector<8x1xf32> to vector<8x8xf32>
    %386 = arith.divf %382, %385 : vector<8x8xf32>
    %cst_145 = arith.constant dense<0.000000e+00> : vector<8x64xf32>
    %387 = tpu.matmul %386, %372, %cst_145 {dimension_numbers = #tpu.dot_dimension_numbers<[1], [0], [0], [1], [0, 0, 1, 1], [], []>} : vector<8x8xf32>, vector<8x64xf32>, vector<8x64xf32> -> vector<8x64xf32>
    %388 = tpu.concatenate %261, %279, %297, %315, %333, %351, %369, %387 in 1 : vector<8x64xf32>, vector<8x64xf32>, vector<8x64xf32>, vector<8x64xf32>, vector<8x64xf32>, vector<8x64xf32>, vector<8x64xf32>, vector<8x64xf32> -> vector<8x512xf32>
    %c0_146 = arith.constant 0 : index
    %c0_147 = arith.constant 0 : index
    %389 = vector.load %arg18[%c0_146, %c0_147] : memref<512x64xf32, #tpu.memory_space<vmem>>, vector<512x64xf32>
    %cst_148 = arith.constant dense<0.000000e+00> : vector<8x64xf32>
    %390 = tpu.matmul %388, %389, %cst_148 {dimension_numbers = #tpu.dot_dimension_numbers<[1], [0], [0], [1], [0, 0, 1, 1], [], []>} : vector<8x512xf32>, vector<512x64xf32>, vector<8x64xf32> -> vector<8x64xf32>
    %c0_149 = arith.constant 0 : index
    %c0_150 = arith.constant 0 : index
    %391 = vector.load %arg19[%c0_149, %c0_150] : memref<1x64xf32, #tpu.memory_space<vmem>>, vector<1x64xf32>
    %392 = vector.broadcast %391 : vector<1x64xf32> to vector<8x64xf32>
    %393 = arith.addf %390, %392 : vector<8x64xf32>
    %394 = arith.addf %5, %393 : vector<8x64xf32>
    %c0_151 = arith.constant 0 : index
    %c0_152 = arith.constant 0 : index
    %395 = vector.load %arg20[%c0_151, %c0_152] : memref<1x64xf32, #tpu.memory_space<vmem>>, vector<1x64xf32>
    %c0_153 = arith.constant 0 : index
    %c0_154 = arith.constant 0 : index
    %396 = vector.load %arg21[%c0_153, %c0_154] : memref<1x64xf32, #tpu.memory_space<vmem>>, vector<1x64xf32>
    %cst_155 = arith.constant dense<0.000000e+00> : vector<8xf32>
    %397 = vector.multi_reduction <add>, %394, %cst_155 [1] : vector<8x64xf32> to vector<8xf32>
    %398 = vector.shape_cast %397 : vector<8xf32> to vector<8x1xf32>
    %cst_156 = arith.constant 6.400000e+01 : f32
    %399 = vector.broadcast %cst_156 : f32 to vector<8x1xf32>
    %400 = arith.divf %398, %399 : vector<8x1xf32>
    %401 = vector.broadcast %400 : vector<8x1xf32> to vector<8x64xf32>
    %402 = arith.subf %394, %401 : vector<8x64xf32>
    %403 = arith.mulf %402, %402 : vector<8x64xf32>
    %cst_157 = arith.constant dense<0.000000e+00> : vector<8xf32>
    %404 = vector.multi_reduction <add>, %403, %cst_157 [1] : vector<8x64xf32> to vector<8xf32>
    %405 = vector.shape_cast %404 : vector<8xf32> to vector<8x1xf32>
    %cst_158 = arith.constant 6.400000e+01 : f32
    %406 = vector.broadcast %cst_158 : f32 to vector<8x1xf32>
    %407 = arith.divf %405, %406 : vector<8x1xf32>
    %408 = vector.broadcast %400 : vector<8x1xf32> to vector<8x64xf32>
    %409 = arith.subf %394, %408 : vector<8x64xf32>
    %cst_159 = arith.constant 9.99999974E-6 : f32
    %410 = vector.broadcast %cst_159 : f32 to vector<8x1xf32>
    %411 = arith.addf %407, %410 : vector<8x1xf32>
    %412 = math.rsqrt %411 : vector<8x1xf32>
    %413 = vector.broadcast %412 : vector<8x1xf32> to vector<8x64xf32>
    %414 = arith.mulf %409, %413 : vector<8x64xf32>
    %415 = vector.broadcast %395 : vector<1x64xf32> to vector<8x64xf32>
    %416 = arith.mulf %414, %415 : vector<8x64xf32>
    %417 = vector.broadcast %396 : vector<1x64xf32> to vector<8x64xf32>
    %418 = arith.addf %416, %417 : vector<8x64xf32>
    %c0_160 = arith.constant 0 : index
    %c0_161 = arith.constant 0 : index
    %419 = vector.load %arg22[%c0_160, %c0_161] : memref<64x256xf32, #tpu.memory_space<vmem>>, vector<64x256xf32>
    %cst_162 = arith.constant dense<0.000000e+00> : vector<8x256xf32>
    %420 = tpu.matmul %418, %419, %cst_162 {dimension_numbers = #tpu.dot_dimension_numbers<[1], [0], [0], [1], [0, 0, 1, 1], [], []>} : vector<8x64xf32>, vector<64x256xf32>, vector<8x256xf32> -> vector<8x256xf32>
    %c0_163 = arith.constant 0 : index
    %c0_164 = arith.constant 0 : index
    %421 = vector.load %arg23[%c0_163, %c0_164] : memref<1x256xf32, #tpu.memory_space<vmem>>, vector<1x256xf32>
    %422 = vector.broadcast %421 : vector<1x256xf32> to vector<8x256xf32>
    %423 = arith.addf %420, %422 : vector<8x256xf32>
    %cst_165 = arith.constant 0.000000e+00 : f32
    %424 = vector.broadcast %cst_165 : f32 to vector<8x256xf32>
    %425 = arith.maximumf %423, %424 : vector<8x256xf32>
    %c0_166 = arith.constant 0 : index
    %c0_167 = arith.constant 0 : index
    %426 = vector.load %arg24[%c0_166, %c0_167] : memref<256x64xf32, #tpu.memory_space<vmem>>, vector<256x64xf32>
    %cst_168 = arith.constant dense<0.000000e+00> : vector<8x64xf32>
    %427 = tpu.matmul %425, %426, %cst_168 {dimension_numbers = #tpu.dot_dimension_numbers<[1], [0], [0], [1], [0, 0, 1, 1], [], []>} : vector<8x256xf32>, vector<256x64xf32>, vector<8x64xf32> -> vector<8x64xf32>
    %c0_169 = arith.constant 0 : index
    %c0_170 = arith.constant 0 : index
    %428 = vector.load %arg25[%c0_169, %c0_170] : memref<1x64xf32, #tpu.memory_space<vmem>>, vector<1x64xf32>
    %429 = vector.broadcast %428 : vector<1x64xf32> to vector<8x64xf32>
    %430 = arith.addf %427, %429 : vector<8x64xf32>
    %431 = arith.addf %418, %430 : vector<8x64xf32>
    %c0_171 = arith.constant 0 : index
    %c0_172 = arith.constant 0 : index
    %432 = vector.load %arg26[%c0_171, %c0_172] : memref<1x64xf32, #tpu.memory_space<vmem>>, vector<1x64xf32>
    %c0_173 = arith.constant 0 : index
    %c0_174 = arith.constant 0 : index
    %433 = vector.load %arg27[%c0_173, %c0_174] : memref<1x64xf32, #tpu.memory_space<vmem>>, vector<1x64xf32>
    %cst_175 = arith.constant dense<0.000000e+00> : vector<8xf32>
    %434 = vector.multi_reduction <add>, %431, %cst_175 [1] : vector<8x64xf32> to vector<8xf32>
    %435 = vector.shape_cast %434 : vector<8xf32> to vector<8x1xf32>
    %cst_176 = arith.constant 6.400000e+01 : f32
    %436 = vector.broadcast %cst_176 : f32 to vector<8x1xf32>
    %437 = arith.divf %435, %436 : vector<8x1xf32>
    %438 = vector.broadcast %437 : vector<8x1xf32> to vector<8x64xf32>
    %439 = arith.subf %431, %438 : vector<8x64xf32>
    %440 = arith.mulf %439, %439 : vector<8x64xf32>
    %cst_177 = arith.constant dense<0.000000e+00> : vector<8xf32>
    %441 = vector.multi_reduction <add>, %440, %cst_177 [1] : vector<8x64xf32> to vector<8xf32>
    %442 = vector.shape_cast %441 : vector<8xf32> to vector<8x1xf32>
    %cst_178 = arith.constant 6.400000e+01 : f32
    %443 = vector.broadcast %cst_178 : f32 to vector<8x1xf32>
    %444 = arith.divf %442, %443 : vector<8x1xf32>
    %445 = vector.broadcast %437 : vector<8x1xf32> to vector<8x64xf32>
    %446 = arith.subf %431, %445 : vector<8x64xf32>
    %cst_179 = arith.constant 9.99999974E-6 : f32
    %447 = vector.broadcast %cst_179 : f32 to vector<8x1xf32>
    %448 = arith.addf %444, %447 : vector<8x1xf32>
    %449 = math.rsqrt %448 : vector<8x1xf32>
    %450 = vector.broadcast %449 : vector<8x1xf32> to vector<8x64xf32>
    %451 = arith.mulf %446, %450 : vector<8x64xf32>
    %452 = vector.broadcast %432 : vector<1x64xf32> to vector<8x64xf32>
    %453 = arith.mulf %451, %452 : vector<8x64xf32>
    %454 = vector.broadcast %433 : vector<1x64xf32> to vector<8x64xf32>
    %455 = arith.addf %453, %454 : vector<8x64xf32>
    %c0_180 = arith.constant 0 : index
    %c0_181 = arith.constant 0 : index
    %c0_182 = arith.constant 0 : index
    %456 = vector.load %arg28[%c0_180, %c0_181, %c0_182] : memref<1x8x64xf32, #tpu.memory_space<vmem>>, vector<1x8x64xf32>
    %457 = vector.shape_cast %456 : vector<1x8x64xf32> to vector<8x64xf32>
    %458 = vector.shape_cast %455 : vector<8x64xf32> to vector<1x8x64xf32>
    tpu.vector_store %arg28[%c0_180, %c0_181, %c0_182], %458 {strides = array<i32>} : memref<1x8x64xf32, #tpu.memory_space<vmem>>, vector<1x8x64xf32>,
    return
  }
  func.func @transform_0(%arg0: i32, %arg1: memref<2xi32, #tpu.memory_space<smem>>) -> (i32, i32, i32) {
    %c0_i32 = arith.constant 0 : i32
    %c0_i32_0 = arith.constant 0 : i32
    %c0_i32_1 = arith.constant 0 : i32
    return %arg0, %c0_i32, %c0_i32_0 : i32, i32, i32
  }
  func.func @transform_1(%arg0: i32, %arg1: memref<2xi32, #tpu.memory_space<smem>>) -> (i32, i32, i32) {
    %c0_i32 = arith.constant 0 : i32
    %c0_i32_0 = arith.constant 0 : i32
    %c0_i32_1 = arith.constant 0 : i32
    return %arg0, %c0_i32, %c0_i32_0 : i32, i32, i32
  }
  func.func @transform_2(%arg0: i32, %arg1: memref<2xi32, #tpu.memory_space<smem>>) -> (i32, i32) {
    %c0_i32 = arith.constant 0 : i32
    %c0_i32_0 = arith.constant 0 : i32
    %c0_i32_1 = arith.constant 0 : i32
    return %c0_i32, %c0_i32_0 : i32, i32
  }
  func.func @transform_3(%arg0: i32, %arg1: memref<2xi32, #tpu.memory_space<smem>>) -> (i32, i32) {
    %c0_i32 = arith.constant 0 : i32
    %c0_i32_0 = arith.constant 0 : i32
    %c0_i32_1 = arith.constant 0 : i32
    return %c0_i32, %c0_i32_0 : i32, i32
  }
  func.func @transform_4(%arg0: i32, %arg1: memref<2xi32, #tpu.memory_space<smem>>) -> (i32, i32) {
    %c0_i32 = arith.constant 0 : i32
    %c0_i32_0 = arith.constant 0 : i32
    %c0_i32_1 = arith.constant 0 : i32
    return %c0_i32, %c0_i32_0 : i32, i32
  }
  func.func @transform_5(%arg0: i32, %arg1: memref<2xi32, #tpu.memory_space<smem>>) -> (i32, i32) {
    %c0_i32 = arith.constant 0 : i32
    %c0_i32_0 = arith.constant 0 : i32
    %c0_i32_1 = arith.constant 0 : i32
    return %c0_i32, %c0_i32_0 : i32, i32
  }
  func.func @transform_6(%arg0: i32, %arg1: memref<2xi32, #tpu.memory_space<smem>>) -> (i32, i32) {
    %c0_i32 = arith.constant 0 : i32
    %c0_i32_0 = arith.constant 0 : i32
    %c0_i32_1 = arith.constant 0 : i32
    return %c0_i32, %c0_i32_0 : i32, i32
  }
  func.func @transform_7(%arg0: i32, %arg1: memref<2xi32, #tpu.memory_space<smem>>) -> (i32, i32) {
    %c0_i32 = arith.constant 0 : i32
    %c0_i32_0 = arith.constant 0 : i32
    %c0_i32_1 = arith.constant 0 : i32
    return %c0_i32, %c0_i32_0 : i32, i32
  }
  func.func @transform_8(%arg0: i32, %arg1: memref<2xi32, #tpu.memory_space<smem>>) -> (i32, i32) {
    %c0_i32 = arith.constant 0 : i32
    %c0_i32_0 = arith.constant 0 : i32
    %c0_i32_1 = arith.constant 0 : i32
    return %c0_i32, %c0_i32_0 : i32, i32
  }
  func.func @transform_9(%arg0: i32, %arg1: memref<2xi32, #tpu.memory_space<smem>>) -> (i32, i32) {
    %c0_i32 = arith.constant 0 : i32
    %c0_i32_0 = arith.constant 0 : i32
    %c0_i32_1 = arith.constant 0 : i32
    return %c0_i32, %c0_i32_0 : i32, i32
  }
  func.func @transform_10(%arg0: i32, %arg1: memref<2xi32, #tpu.memory_space<smem>>) -> (i32, i32) {
    %c0_i32 = arith.constant 0 : i32
    %c0_i32_0 = arith.constant 0 : i32
    %c0_i32_1 = arith.constant 0 : i32
    return %c0_i32, %c0_i32_0 : i32, i32
  }
  func.func @transform_11(%arg0: i32, %arg1: memref<2xi32, #tpu.memory_space<smem>>) -> (i32, i32) {
    %c0_i32 = arith.constant 0 : i32
    %c0_i32_0 = arith.constant 0 : i32
    %c0_i32_1 = arith.constant 0 : i32
    return %c0_i32, %c0_i32_0 : i32, i32
  }
  func.func @transform_12(%arg0: i32, %arg1: memref<2xi32, #tpu.memory_space<smem>>) -> (i32, i32) {
    %c0_i32 = arith.constant 0 : i32
    %c0_i32_0 = arith.constant 0 : i32
    %c0_i32_1 = arith.constant 0 : i32
    return %c0_i32, %c0_i32_0 : i32, i32
  }
  func.func @transform_13(%arg0: i32, %arg1: memref<2xi32, #tpu.memory_space<smem>>) -> (i32, i32) {
    %c0_i32 = arith.constant 0 : i32
    %c0_i32_0 = arith.constant 0 : i32
    %c0_i32_1 = arith.constant 0 : i32
    return %c0_i32, %c0_i32_0 : i32, i32
  }
  func.func @transform_14(%arg0: i32, %arg1: memref<2xi32, #tpu.memory_space<smem>>) -> (i32, i32) {
    %c0_i32 = arith.constant 0 : i32
    %c0_i32_0 = arith.constant 0 : i32
    %c0_i32_1 = arith.constant 0 : i32
    return %c0_i32, %c0_i32_0 : i32, i32
  }
  func.func @transform_15(%arg0: i32, %arg1: memref<2xi32, #tpu.memory_space<smem>>) -> (i32, i32) {
    %c0_i32 = arith.constant 0 : i32
    %c0_i32_0 = arith.constant 0 : i32
    %c0_i32_1 = arith.constant 0 : i32
    return %c0_i32, %c0_i32_0 : i32, i32
  }
  func.func @transform_16(%arg0: i32, %arg1: memref<2xi32, #tpu.memory_space<smem>>) -> (i32, i32) {
    %c0_i32 = arith.constant 0 : i32
    %c0_i32_0 = arith.constant 0 : i32
    %c0_i32_1 = arith.constant 0 : i32
    return %c0_i32, %c0_i32_0 : i32, i32
  }
  func.func @transform_17(%arg0: i32, %arg1: memref<2xi32, #tpu.memory_space<smem>>) -> (i32, i32) {
    %c0_i32 = arith.constant 0 : i32
    %c0_i32_0 = arith.constant 0 : i32
    %c0_i32_1 = arith.constant 0 : i32
    return %c0_i32, %c0_i32_0 : i32, i32
  }
  func.func @transform_18(%arg0: i32, %arg1: memref<2xi32, #tpu.memory_space<smem>>) -> (i32, i32) {
    %c0_i32 = arith.constant 0 : i32
    %c0_i32_0 = arith.constant 0 : i32
    %c0_i32_1 = arith.constant 0 : i32
    return %c0_i32, %c0_i32_0 : i32, i32
  }
  func.func @transform_19(%arg0: i32, %arg1: memref<2xi32, #tpu.memory_space<smem>>) -> (i32, i32) {
    %c0_i32 = arith.constant 0 : i32
    %c0_i32_0 = arith.constant 0 : i32
    %c0_i32_1 = arith.constant 0 : i32
    return %c0_i32, %c0_i32_0 : i32, i32
  }
  func.func @transform_20(%arg0: i32, %arg1: memref<2xi32, #tpu.memory_space<smem>>) -> (i32, i32) {
    %c0_i32 = arith.constant 0 : i32
    %c0_i32_0 = arith.constant 0 : i32
    %c0_i32_1 = arith.constant 0 : i32
    return %c0_i32, %c0_i32_0 : i32, i32
  }
  func.func @transform_21(%arg0: i32, %arg1: memref<2xi32, #tpu.memory_space<smem>>) -> (i32, i32) {
    %c0_i32 = arith.constant 0 : i32
    %c0_i32_0 = arith.constant 0 : i32
    %c0_i32_1 = arith.constant 0 : i32
    return %c0_i32, %c0_i32_0 : i32, i32
  }
  func.func @transform_22(%arg0: i32, %arg1: memref<2xi32, #tpu.memory_space<smem>>) -> (i32, i32) {
    %c0_i32 = arith.constant 0 : i32
    %c0_i32_0 = arith.constant 0 : i32
    %c0_i32_1 = arith.constant 0 : i32
    return %c0_i32, %c0_i32_0 : i32, i32
  }
  func.func @transform_23(%arg0: i32, %arg1: memref<2xi32, #tpu.memory_space<smem>>) -> (i32, i32) {
    %c0_i32 = arith.constant 0 : i32
    %c0_i32_0 = arith.constant 0 : i32
    %c0_i32_1 = arith.constant 0 : i32
    return %c0_i32, %c0_i32_0 : i32, i32
  }
  func.func @transform_24(%arg0: i32, %arg1: memref<2xi32, #tpu.memory_space<smem>>) -> (i32, i32) {
    %c0_i32 = arith.constant 0 : i32
    %c0_i32_0 = arith.constant 0 : i32
    %c0_i32_1 = arith.constant 0 : i32
    return %c0_i32, %c0_i32_0 : i32, i32
  }
  func.func @transform_25(%arg0: i32, %arg1: memref<2xi32, #tpu.memory_space<smem>>) -> (i32, i32) {
    %c0_i32 = arith.constant 0 : i32
    %c0_i32_0 = arith.constant 0 : i32
    %c0_i32_1 = arith.constant 0 : i32
    return %c0_i32, %c0_i32_0 : i32, i32
  }
  func.func @transform_26(%arg0: i32, %arg1: memref<2xi32, #tpu.memory_space<smem>>) -> (i32, i32, i32) {
    %c0_i32 = arith.constant 0 : i32
    %c0_i32_0 = arith.constant 0 : i32
    %c0_i32_1 = arith.constant 0 : i32
    return %arg0, %c0_i32, %c0_i32_0 : i32, i32, i32
  }
}

</mosaic_0001>

<llo_original>
// kernel: transformer_fwd.1
$region0: #{transformer_fwd.1}
  #allocation0 [shape = 'u32[]', space=smem, size = 0x4, offset = 0x4, fixed_abs, tag = 'smem constant byte address 0x4 - core index']
  #allocation1 [shape = 'u32[144,128]{1,0:T(1,128)}', space=vmem, size = 0x12000, scoped, tag = 'internal scratch']
  #allocation2 [shape = 's32[1]{0}', space=sflag, size = 0x4, scoped, tag = 'scoped memory for transformer_fwd.1']
  #allocation3 [shape = 'u8[512]{0}', space=smem, size = 0x200, scoped, tag = 'prefetched SMEM operand 0']
  %s0 = inlined_call_operand.vmem [shape: s32[2], index: 0, kind: input, shape index: {}]
  %s1 = inlined_call_operand.vmem [shape: f32[2,8,64], index: 1, kind: input, shape index: {}]
  %s2 = inlined_call_operand.vmem [shape: f32[2,8,64], index: 2, kind: input, shape index: {}]
  %s3 = inlined_call_operand.vmem [shape: f32[64,512], index: 3, kind: input, shape index: {}]
  %s4 = inlined_call_operand.vmem [shape: f32[64,1024], index: 4, kind: input, shape index: {}]
  %s5 = inlined_call_operand.vmem [shape: f32[512,64], index: 5, kind: input, shape index: {}]
  %s6 = inlined_call_operand.vmem [shape: f32[1,64], index: 6, kind: input, shape index: {}]
  %s7 = inlined_call_operand.vmem [shape: f32[1,64], index: 7, kind: input, shape index: {}]
  %s8 = inlined_call_operand.vmem [shape: f32[1,64], index: 8, kind: input, shape index: {}]
  %s9 = inlined_call_operand.vmem [shape: f32[64,256], index: 9, kind: input, shape index: {}]
  %s10 = inlined_call_operand.vmem [shape: f32[1,256], index: 10, kind: input, shape index: {}]
  %s11 = inlined_call_operand.vmem [shape: f32[256,64], index: 11, kind: input, shape index: {}]
  %s12 = inlined_call_operand.vmem [shape: f32[1,64], index: 12, kind: input, shape index: {}]
  %s13 = inlined_call_operand.vmem [shape: f32[1,64], index: 13, kind: input, shape index: {}]
  %s14 = inlined_call_operand.vmem [shape: f32[1,64], index: 14, kind: input, shape index: {}]
  %s15 = inlined_call_operand.vmem [shape: f32[64,512], index: 15, kind: input, shape index: {}]
  %s16 = inlined_call_operand.vmem [shape: f32[64,1024], index: 16, kind: input, shape index: {}]
  %s17 = inlined_call_operand.vmem [shape: f32[512,64], index: 17, kind: input, shape index: {}]
  %s18 = inlined_call_operand.hbm [shape: f32[1,64], index: 18, kind: input, shape index: {}]
  %s19 = inlined_call_operand.hbm [shape: f32[1,64], index: 19, kind: input, shape index: {}]
  %s20 = inlined_call_operand.hbm [shape: f32[1,64], index: 20, kind: input, shape index: {}]
  %s21 = inlined_call_operand.hbm [shape: f32[64,256], index: 21, kind: input, shape index: {}]
  %s22 = inlined_call_operand.hbm [shape: f32[1,256], index: 22, kind: input, shape index: {}]
  %s23 = inlined_call_operand.vmem [shape: f32[256,64], index: 23, kind: input, shape index: {}]
  %s24 = inlined_call_operand.hbm [shape: f32[1,64], index: 24, kind: input, shape index: {}]
  %s25 = inlined_call_operand.hbm [shape: f32[1,64], index: 25, kind: input, shape index: {}]
  %s26 = inlined_call_operand.hbm [shape: f32[1,64], index: 26, kind: input, shape index: {}]
  %s27 = inlined_call_operand.hbm [shape: f32[2,8,64], index: 27, kind: output, shape index: {}]
  %s28 = sld [smem:[#allocation0]]
  $region169: #{transformer_fwd.1} parent=0
    _
  %s30 = ssub.s32 1, %s28
  %s31 = scalar_select 0, %s30, %s28
  %s32 = sshll.u32 %s0, 4
  %s33 = int_to_ptr.vmem [resolvable:$true] %s32
  %35 = dma.vmem_to_smem %s33, 16, [#allocation3], [#allocation2]
  %36 = dma.done [#allocation2], 16
  %37 = sfence
  $region1: #{transformer_fwd.1} parent=0
    #allocation4 [shape = 'u8[512]{0}', space=vmem, size = 0x400, scoped, tag = 'input window, operand 18, single buffered']
    #allocation5 [shape = 's32[2]{0}', space=sflag, size = 0x8, scoped, tag = 'scoped memory for transformer_fwd.1']
    #allocation6 [shape = 's32[2]{0}', space=sflag, size = 0x8, scoped, tag = 'scoped memory for transformer_fwd.1']
    #allocation7 [shape = 'u8[512]{0}', space=vmem, size = 0x400, scoped, tag = 'input window, operand 19, single buffered']
    #allocation8 [shape = 's32[1]{0}', space=sflag, size = 0x4, scoped, tag = 'scoped memory for transformer_fwd.1']
    #allocation9 [shape = 'u8[512]{0}', space=vmem, size = 0x400, scoped, tag = 'input window, operand 20, single buffered']
    #allocation10 [shape = 'u8[65536]{0}', space=vmem, size = 0x10000, scoped, tag = 'input window, operand 21, single buffered']
    #allocation11 [shape = 's32[1]{0}', space=sflag, size = 0x4, scoped, tag = 'scoped memory for transformer_fwd.1']
    #allocation12 [shape = 'u8[1024]{0}', space=vmem, size = 0x400, scoped, tag = 'input window, operand 22, single buffered']
    #allocation13 [shape = 'u8[512]{0}', space=vmem, size = 0x400, scoped, tag = 'input window, operand 24, single buffered']
    #allocation14 [shape = 's32[1]{0}', space=sflag, size = 0x4, scoped, tag = 'scoped memory for transformer_fwd.1']
    #allocation15 [shape = 'u8[512]{0}', space=vmem, size = 0x400, scoped, tag = 'input window, operand 25, single buffered']
    #allocation16 [shape = 'u8[512]{0}', space=vmem, size = 0x400, scoped, tag = 'input window, operand 26, single buffered']
    #allocation17 [shape = 's32[1]{0}', space=sflag, size = 0x4, scoped, tag = 'scoped memory for transformer_fwd.1']
    #allocation18 [shape = 'u8[8192]{0}', space=vmem, size = 0x2000, scoped, tag = 'output window, operand 0']
    %38 = vsyncpa [#allocation5], 0
    %39 = vsyncpa [#allocation8], 0
    %40 = vsyncpa [#allocation11], 0
    %41 = vsyncpa [#allocation14], 0
    %42 = vsyncpa [#allocation17], 0
    %43 = vsyncpa [#allocation6], 0
    %s44 = scalar_lea.sflag [#allocation6], 1
    %45 = vsyncpa %s44, 0
    loop: start=0, step=1, limit=4
    $region2: #{transformer_fwd.1} parent=1 // loop_pre_header
      _
    $region3: #{transformer_fwd.1} parent=1 // loop_header
      %s47 = sphi 0, %s51
      %p48 = scmp.ge.s32.totalorder %s47, 4
      %s57 = sphi 0, %s59
      %s60 = sphi 0, %s57
      %s61 = sphi 0, %s60
      %s77 = sphi 0, %s61
      %s83 = sphi 0, %s85
      %s86 = sphi 0, %s83
      %s87 = sphi 0, %s86
      %s103 = sphi 0, %s87
      %s107 = sphi 0, %s107
      %s109 = sphi 0, %s107
      %s110 = sphi 0, %s109
      %s124 = sphi 0, %s110
      %s128 = sphi 0, %s128
      %s130 = sphi 0, %s128
      %s131 = sphi 0, %s130
      %s145 = sphi 0, %s131
      %s149 = sphi 0, %s149
      %s151 = sphi 0, %s149
      %s152 = sphi 0, %s151
      %s166 = sphi 0, %s152
      %s170 = sphi 0, %s170
      %s172 = sphi 0, %s170
      %s173 = sphi 0, %s172
      %s187 = sphi 0, %s173
      %s191 = sphi 0, %s191
      %s193 = sphi 0, %s191
      %s194 = sphi 0, %s193
      %s208 = sphi 0, %s194
      %s212 = sphi 0, %s212
      %s214 = sphi 0, %s212
      %s215 = sphi 0, %s214
      %s229 = sphi 0, %s215
      %s233 = sphi 0, %s233
      %s235 = sphi 0, %s233
      %s236 = sphi 0, %s235
      %s250 = sphi 0, %s236
      %s254 = sphi 0, %s254
      %s256 = sphi 0, %s254
      %s257 = sphi 0, %s256
      %s271 = sphi 0, %s257
      %s275 = sphi 0, %s275
      %s277 = sphi 0, %s275
      %s278 = sphi 0, %s277
      %s292 = sphi 0, %s278
      %s296 = sphi 0, %s296
      %s298 = sphi 0, %s296
      %s299 = sphi 0, %s298
      %s313 = sphi 0, %s299
      %s317 = sphi 0, %s317
      %s319 = sphi 0, %s317
      %s320 = sphi 0, %s319
      %s334 = sphi 0, %s320
      %s338 = sphi 0, %s338
      %s340 = sphi 0, %s338
      %s341 = sphi 0, %s340
      %s355 = sphi 0, %s341
      %s359 = sphi 0, %s359
      %s361 = sphi 0, %s359
      %s362 = sphi 0, %s361
      %s376 = sphi 0, %s362
      %s380 = sphi 0, %s380
      %s382 = sphi 0, %s380
      %s383 = sphi 0, %s382
      %s397 = sphi 0, %s383
      %s401 = sphi 0, %s401
      %s403 = sphi 0, %s401
      %s404 = sphi 0, %s403
      %s418 = sphi 0, %s404
      %s422 = sphi 0, %s422
      %s424 = sphi 0, %s422
      %s425 = sphi 0, %s424
      %s439 = sphi 0, %s425
      %s443 = sphi 0, %s443
      %s445 = sphi 0, %s443
      %s446 = sphi 0, %s445
      %s460 = sphi 0, %s446
      %s464 = sphi 0, %s464
      %s466 = sphi 0, %s464
      %s467 = sphi 0, %s466
      %s481 = sphi 0, %s467
      %s485 = sphi 0, %s485
      %s487 = sphi 0, %s485
      %s488 = sphi 0, %s487
      %s502 = sphi 0, %s488
      %s506 = sphi 0, %s506
      %s508 = sphi 0, %s506
      %s509 = sphi 0, %s508
      %s523 = sphi 0, %s509
      %s527 = sphi 0, %s527
      %s529 = sphi 0, %s527
      %s530 = sphi 0, %s529
      %s544 = sphi 0, %s530
      %s548 = sphi 0, %s548
      %s550 = sphi 0, %s548
      %s551 = sphi 0, %s550
      %s565 = sphi 0, %s551
      %s569 = sphi 0, %s569
      %s571 = sphi 0, %s569
      %s572 = sphi 0, %s571
      %s586 = sphi 0, %s572
      %s590 = sphi 0, %s590
      %s592 = sphi 0, %s590
      %s593 = sphi 0, %s592
      %s607 = sphi 0, %s593
      %s613 = sphi 0, %s615
      %s616 = sphi 0, %s613
      %s617 = sphi 0, %s616
      %s633 = sphi 0, %s617
    $region4: #{transformer_fwd.1} parent=1 // loop_header_branch
      %50 = sbr.rel (%p48) target = $region8
    $region5: #{transformer_fwd.1} parent=1 // loop_body
      %s52 = ssub.s32 %s47, 1
      %s53 = ssub.s32 %s47, 2
      %s54 = sadd.s32 %s47, 1
      %s55 = ssub.s32 %s47, %s54
      %p56 = scmp.eq.s32.totalorder %s55, 0
      %s58 = sadd.s32 %s57, 1
      %s59 = scalar_select %p56, %s57, %s58
      %p62 = pneg %p56
      %p63 = scmp.eq.s32.totalorder %s47, 1
      %p64 = por %p62, %p63
      %p65 = scmp.ne.s32.totalorder %s57, %s60
      %p66 = scmp.eq.s32.totalorder %s47, 0
      %p67 = por %p65, %p66
      %p68 = scmp.ne.s32.totalorder %s57, %s60
      %p69 = scmp.eq.s32.totalorder %s52, 1
      %p70 = por %p68, %p69
      %p71 = scmp.ne.s32.totalorder %s60, %s61
      %p72 = scmp.eq.s32.totalorder %s52, 0
      %p73 = por %p71, %p72
      %p74 = scmp.ne.s32.totalorder %s60, %s61
      %p75 = scmp.eq.s32.totalorder %s53, 1
      %p76 = por %p74, %p75
      %p78 = scmp.ne.s32.totalorder %s61, %s77
      %p79 = scmp.eq.s32.totalorder %s53, 0
      %p80 = por %p78, %p79
      %s81 = ssub.s32 %s47, %s54
      %p82 = scmp.eq.s32.totalorder %s81, 0
      %s84 = sadd.s32 %s83, 1
      %s85 = scalar_select %p82, %s83, %s84
      %p88 = pneg %p82
      %p89 = scmp.eq.s32.totalorder %s47, 1
      %p90 = por %p88, %p89
      %p91 = scmp.ne.s32.totalorder %s83, %s86
      %p92 = scmp.eq.s32.totalorder %s47, 0
      %p93 = por %p91, %p92
      %p94 = scmp.ne.s32.totalorder %s83, %s86
      %p95 = scmp.eq.s32.totalorder %s52, 1
      %p96 = por %p94, %p95
      %p97 = scmp.ne.s32.totalorder %s86, %s87
      %p98 = scmp.eq.s32.totalorder %s52, 0
      %p99 = por %p97, %p98
      %p100 = scmp.ne.s32.totalorder %s86, %s87
      %p101 = scmp.eq.s32.totalorder %s53, 1
      %p102 = por %p100, %p101
      %p104 = scmp.ne.s32.totalorder %s87, %s103
      %p105 = scmp.eq.s32.totalorder %s53, 0
      %p106 = por %p104, %p105
      %s108 = sadd.s32 %s107, 1
      %p111 = scmp.eq.s32.totalorder %s47, 1
      %p112 = scmp.ne.s32.totalorder %s107, %s109
      %p113 = scmp.eq.s32.totalorder %s47, 0
      %p114 = por %p112, %p113
      %p115 = scmp.ne.s32.totalorder %s107, %s109
      %p116 = scmp.eq.s32.totalorder %s52, 1
      %p117 = por %p115, %p116
      %p118 = scmp.ne.s32.totalorder %s109, %s110
      %p119 = scmp.eq.s32.totalorder %s52, 0
      %p120 = por %p118, %p119
      %p121 = scmp.ne.s32.totalorder %s109, %s110
      %p122 = scmp.eq.s32.totalorder %s53, 1
      %p123 = por %p121, %p122
      %p125 = scmp.ne.s32.totalorder %s110, %s124
      %p126 = scmp.eq.s32.totalorder %s53, 0
      %p127 = por %p125, %p126
      %s129 = sadd.s32 %s128, 1
      %p132 = scmp.eq.s32.totalorder %s47, 1
      %p133 = scmp.ne.s32.totalorder %s128, %s130
      %p134 = scmp.eq.s32.totalorder %s47, 0
      %p135 = por %p133, %p134
      %p136 = scmp.ne.s32.totalorder %s128, %s130
      %p137 = scmp.eq.s32.totalorder %s52, 1
      %p138 = por %p136, %p137
      %p139 = scmp.ne.s32.totalorder %s130, %s131
      %p140 = scmp.eq.s32.totalorder %s52, 0
      %p141 = por %p139, %p140
      %p142 = scmp.ne.s32.totalorder %s130, %s131
      %p143 = scmp.eq.s32.totalorder %s53, 1
      %p144 = por %p142, %p143
      %p146 = scmp.ne.s32.totalorder %s131, %s145
      %p147 = scmp.eq.s32.totalorder %s53, 0
      %p148 = por %p146, %p147
      %s150 = sadd.s32 %s149, 1
      %p153 = scmp.eq.s32.totalorder %s47, 1
      %p154 = scmp.ne.s32.totalorder %s149, %s151
      %p155 = scmp.eq.s32.totalorder %s47, 0
      %p156 = por %p154, %p155
      %p157 = scmp.ne.s32.totalorder %s149, %s151
      %p158 = scmp.eq.s32.totalorder %s52, 1
      %p159 = por %p157, %p158
      %p160 = scmp.ne.s32.totalorder %s151, %s152
      %p161 = scmp.eq.s32.totalorder %s52, 0
      %p162 = por %p160, %p161
      %p163 = scmp.ne.s32.totalorder %s151, %s152
      %p164 = scmp.eq.s32.totalorder %s53, 1
      %p165 = por %p163, %p164
      %p167 = scmp.ne.s32.totalorder %s152, %s166
      %p168 = scmp.eq.s32.totalorder %s53, 0
      %p169 = por %p167, %p168
      %s171 = sadd.s32 %s170, 1
      %p174 = scmp.eq.s32.totalorder %s47, 1
      %p175 = scmp.ne.s32.totalorder %s170, %s172
      %p176 = scmp.eq.s32.totalorder %s47, 0
      %p177 = por %p175, %p176
      %p178 = scmp.ne.s32.totalorder %s170, %s172
      %p179 = scmp.eq.s32.totalorder %s52, 1
      %p180 = por %p178, %p179
      %p181 = scmp.ne.s32.totalorder %s172, %s173
      %p182 = scmp.eq.s32.totalorder %s52, 0
      %p183 = por %p181, %p182
      %p184 = scmp.ne.s32.totalorder %s172, %s173
      %p185 = scmp.eq.s32.totalorder %s53, 1
      %p186 = por %p184, %p185
      %p188 = scmp.ne.s32.totalorder %s173, %s187
      %p189 = scmp.eq.s32.totalorder %s53, 0
      %p190 = por %p188, %p189
      %s192 = sadd.s32 %s191, 1
      %p195 = scmp.eq.s32.totalorder %s47, 1
      %p196 = scmp.ne.s32.totalorder %s191, %s193
      %p197 = scmp.eq.s32.totalorder %s47, 0
      %p198 = por %p196, %p197
      %p199 = scmp.ne.s32.totalorder %s191, %s193
      %p200 = scmp.eq.s32.totalorder %s52, 1
      %p201 = por %p199, %p200
      %p202 = scmp.ne.s32.totalorder %s193, %s194
      %p203 = scmp.eq.s32.totalorder %s52, 0
      %p204 = por %p202, %p203
      %p205 = scmp.ne.s32.totalorder %s193, %s194
      %p206 = scmp.eq.s32.totalorder %s53, 1
      %p207 = por %p205, %p206
      %p209 = scmp.ne.s32.totalorder %s194, %s208
      %p210 = scmp.eq.s32.totalorder %s53, 0
      %p211 = por %p209, %p210
      %s213 = sadd.s32 %s212, 1
      %p216 = scmp.eq.s32.totalorder %s47, 1
      %p217 = scmp.ne.s32.totalorder %s212, %s214
      %p218 = scmp.eq.s32.totalorder %s47, 0
      %p219 = por %p217, %p218
      %p220 = scmp.ne.s32.totalorder %s212, %s214
      %p221 = scmp.eq.s32.totalorder %s52, 1
      %p222 = por %p220, %p221
      %p223 = scmp.ne.s32.totalorder %s214, %s215
      %p224 = scmp.eq.s32.totalorder %s52, 0
      %p225 = por %p223, %p224
      %p226 = scmp.ne.s32.totalorder %s214, %s215
      %p227 = scmp.eq.s32.totalorder %s53, 1
      %p228 = por %p226, %p227
      %p230 = scmp.ne.s32.totalorder %s215, %s229
      %p231 = scmp.eq.s32.totalorder %s53, 0
      %p232 = por %p230, %p231
      %s234 = sadd.s32 %s233, 1
      %p237 = scmp.eq.s32.totalorder %s47, 1
      %p238 = scmp.ne.s32.totalorder %s233, %s235
      %p239 = scmp.eq.s32.totalorder %s47, 0
      %p240 = por %p238, %p239
      %p241 = scmp.ne.s32.totalorder %s233, %s235
      %p242 = scmp.eq.s32.totalorder %s52, 1
      %p243 = por %p241, %p242
      %p244 = scmp.ne.s32.totalorder %s235, %s236
      %p245 = scmp.eq.s32.totalorder %s52, 0
      %p246 = por %p244, %p245
      %p247 = scmp.ne.s32.totalorder %s235, %s236
      %p248 = scmp.eq.s32.totalorder %s53, 1
      %p249 = por %p247, %p248
      %p251 = scmp.ne.s32.totalorder %s236, %s250
      %p252 = scmp.eq.s32.totalorder %s53, 0
      %p253 = por %p251, %p252
      %s255 = sadd.s32 %s254, 1
      %p258 = scmp.eq.s32.totalorder %s47, 1
      %p259 = scmp.ne.s32.totalorder %s254, %s256
      %p260 = scmp.eq.s32.totalorder %s47, 0
      %p261 = por %p259, %p260
      %p262 = scmp.ne.s32.totalorder %s254, %s256
      %p263 = scmp.eq.s32.totalorder %s52, 1
      %p264 = por %p262, %p263
      %p265 = scmp.ne.s32.totalorder %s256, %s257
      %p266 = scmp.eq.s32.totalorder %s52, 0
      %p267 = por %p265, %p266
      %p268 = scmp.ne.s32.totalorder %s256, %s257
      %p269 = scmp.eq.s32.totalorder %s53, 1
      %p270 = por %p268, %p269
      %p272 = scmp.ne.s32.totalorder %s257, %s271
      %p273 = scmp.eq.s32.totalorder %s53, 0
      %p274 = por %p272, %p273
      %s276 = sadd.s32 %s275, 1
      %p279 = scmp.eq.s32.totalorder %s47, 1
      %p280 = scmp.ne.s32.totalorder %s275, %s277
      %p281 = scmp.eq.s32.totalorder %s47, 0
      %p282 = por %p280, %p281
      %p283 = scmp.ne.s32.totalorder %s275, %s277
      %p284 = scmp.eq.s32.totalorder %s52, 1
      %p285 = por %p283, %p284
      %p286 = scmp.ne.s32.totalorder %s277, %s278
      %p287 = scmp.eq.s32.totalorder %s52, 0
      %p288 = por %p286, %p287
      %p289 = scmp.ne.s32.totalorder %s277, %s278
      %p290 = scmp.eq.s32.totalorder %s53, 1
      %p291 = por %p289, %p290
      %p293 = scmp.ne.s32.totalorder %s278, %s292
      %p294 = scmp.eq.s32.totalorder %s53, 0
      %p295 = por %p293, %p294
      %s297 = sadd.s32 %s296, 1
      %p300 = scmp.eq.s32.totalorder %s47, 1
      %p301 = scmp.ne.s32.totalorder %s296, %s298
      %p302 = scmp.eq.s32.totalorder %s47, 0
      %p303 = por %p301, %p302
      %p304 = scmp.ne.s32.totalorder %s296, %s298
      %p305 = scmp.eq.s32.totalorder %s52, 1
      %p306 = por %p304, %p305
      %p307 = scmp.ne.s32.totalorder %s298, %s299
      %p308 = scmp.eq.s32.totalorder %s52, 0
      %p309 = por %p307, %p308
      %p310 = scmp.ne.s32.totalorder %s298, %s299
      %p311 = scmp.eq.s32.totalorder %s53, 1
      %p312 = por %p310, %p311
      %p314 = scmp.ne.s32.totalorder %s299, %s313
      %p315 = scmp.eq.s32.totalorder %s53, 0
      %p316 = por %p314, %p315
      %s318 = sadd.s32 %s317, 1
      %p321 = scmp.eq.s32.totalorder %s47, 1
      %p322 = scmp.ne.s32.totalorder %s317, %s319
      %p323 = scmp.eq.s32.totalorder %s47, 0
      %p324 = por %p322, %p323
      %p325 = scmp.ne.s32.totalorder %s317, %s319
      %p326 = scmp.eq.s32.totalorder %s52, 1
      %p327 = por %p325, %p326
      %p328 = scmp.ne.s32.totalorder %s319, %s320
      %p329 = scmp.eq.s32.totalorder %s52, 0
      %p330 = por %p328, %p329
      %p331 = scmp.ne.s32.totalorder %s319, %s320
      %p332 = scmp.eq.s32.totalorder %s53, 1
      %p333 = por %p331, %p332
      %p335 = scmp.ne.s32.totalorder %s320, %s334
      %p336 = scmp.eq.s32.totalorder %s53, 0
      %p337 = por %p335, %p336
      %s339 = sadd.s32 %s338, 1
      %p342 = scmp.eq.s32.totalorder %s47, 1
      %p343 = scmp.ne.s32.totalorder %s338, %s340
      %p344 = scmp.eq.s32.totalorder %s47, 0
      %p345 = por %p343, %p344
      %p346 = scmp.ne.s32.totalorder %s338, %s340
      %p347 = scmp.eq.s32.totalorder %s52, 1
      %p348 = por %p346, %p347
      %p349 = scmp.ne.s32.totalorder %s340, %s341
      %p350 = scmp.eq.s32.totalorder %s52, 0
      %p351 = por %p349, %p350
      %p352 = scmp.ne.s32.totalorder %s340, %s341
      %p353 = scmp.eq.s32.totalorder %s53, 1
      %p354 = por %p352, %p353
      %p356 = scmp.ne.s32.totalorder %s341, %s355
      %p357 = scmp.eq.s32.totalorder %s53, 0
      %p358 = por %p356, %p357
      %s360 = sadd.s32 %s359, 1
      %p363 = scmp.eq.s32.totalorder %s47, 1
      %p364 = scmp.ne.s32.totalorder %s359, %s361
      %p365 = scmp.eq.s32.totalorder %s47, 0
      %p366 = por %p364, %p365
      %p367 = scmp.ne.s32.totalorder %s359, %s361
      %p368 = scmp.eq.s32.totalorder %s52, 1
      %p369 = por %p367, %p368
      %p370 = scmp.ne.s32.totalorder %s361, %s362
      %p371 = scmp.eq.s32.totalorder %s52, 0
      %p372 = por %p370, %p371
      %p373 = scmp.ne.s32.totalorder %s361, %s362
      %p374 = scmp.eq.s32.totalorder %s53, 1
      %p375 = por %p373, %p374
      %p377 = scmp.ne.s32.totalorder %s362, %s376
      %p378 = scmp.eq.s32.totalorder %s53, 0
      %p379 = por %p377, %p378
      %s381 = sadd.s32 %s380, 1
      %p384 = scmp.eq.s32.totalorder %s47, 1
      %p385 = scmp.ne.s32.totalorder %s380, %s382
      %p386 = scmp.eq.s32.totalorder %s47, 0
      %p387 = por %p385, %p386
      %p388 = scmp.ne.s32.totalorder %s380, %s382
      %p389 = scmp.eq.s32.totalorder %s52, 1
      %p390 = por %p388, %p389
      %p391 = scmp.ne.s32.totalorder %s382, %s383
      %p392 = scmp.eq.s32.totalorder %s52, 0
      %p393 = por %p391, %p392
      %p394 = scmp.ne.s32.totalorder %s382, %s383
      %p395 = scmp.eq.s32.totalorder %s53, 1
      %p396 = por %p394, %p395
      %p398 = scmp.ne.s32.totalorder %s383, %s397
      %p399 = scmp.eq.s32.totalorder %s53, 0
      %p400 = por %p398, %p399
      %s402 = sadd.s32 %s401, 1
      %p405 = scmp.eq.s32.totalorder %s47, 1
      %p406 = scmp.ne.s32.totalorder %s401, %s403
      %p407 = scmp.eq.s32.totalorder %s47, 0
      %p408 = por %p406, %p407
      %p409 = scmp.ne.s32.totalorder %s401, %s403
      %p410 = scmp.eq.s32.totalorder %s52, 1
      %p411 = por %p409, %p410
      %p412 = scmp.ne.s32.totalorder %s403, %s404
      %p413 = scmp.eq.s32.totalorder %s52, 0
      %p414 = por %p412, %p413
      %p415 = scmp.ne.s32.totalorder %s403, %s404
      %p416 = scmp.eq.s32.totalorder %s53, 1
      %p417 = por %p415, %p416
      %p419 = scmp.ne.s32.totalorder %s404, %s418
      %p420 = scmp.eq.s32.totalorder %s53, 0
      %p421 = por %p419, %p420
      %s423 = sadd.s32 %s422, 1
      %p426 = scmp.eq.s32.totalorder %s47, 1
      %p427 = scmp.ne.s32.totalorder %s422, %s424
      %p428 = scmp.eq.s32.totalorder %s47, 0
      %p429 = por %p427, %p428
      %p430 = scmp.ne.s32.totalorder %s422, %s424
      %p431 = scmp.eq.s32.totalorder %s52, 1
      %p432 = por %p430, %p431
      %p433 = scmp.ne.s32.totalorder %s424, %s425
      %p434 = scmp.eq.s32.totalorder %s52, 0
      %p435 = por %p433, %p434
      %p436 = scmp.ne.s32.totalorder %s424, %s425
      %p437 = scmp.eq.s32.totalorder %s53, 1
      %p438 = por %p436, %p437
      %p440 = scmp.ne.s32.totalorder %s425, %s439
      %p441 = scmp.eq.s32.totalorder %s53, 0
      %p442 = por %p440, %p441
      %s444 = sadd.s32 %s443, 1
      %p447 = scmp.eq.s32.totalorder %s47, 1
      %p448 = scmp.ne.s32.totalorder %s443, %s445
      %p449 = scmp.eq.s32.totalorder %s47, 0
      %p450 = por %p448, %p449
      %p451 = scmp.ne.s32.totalorder %s443, %s445
      %p452 = scmp.eq.s32.totalorder %s52, 1
      %p453 = por %p451, %p452
      %p454 = scmp.ne.s32.totalorder %s445, %s446
      %p455 = scmp.eq.s32.totalorder %s52, 0
      %p456 = por %p454, %p455
      %p457 = scmp.ne.s32.totalorder %s445, %s446
      %p458 = scmp.eq.s32.totalorder %s53, 1
      %p459 = por %p457, %p458
      %p461 = scmp.ne.s32.totalorder %s446, %s460
      %p462 = scmp.eq.s32.totalorder %s53, 0
      %p463 = por %p461, %p462
      %s465 = sadd.s32 %s464, 1
      %p468 = scmp.eq.s32.totalorder %s47, 1
      %p469 = scmp.ne.s32.totalorder %s464, %s466
      %p470 = scmp.eq.s32.totalorder %s47, 0
      %p471 = por %p469, %p470
      %p472 = scmp.ne.s32.totalorder %s464, %s466
      %p473 = scmp.eq.s32.totalorder %s52, 1
      %p474 = por %p472, %p473
      %p475 = scmp.ne.s32.totalorder %s466, %s467
      %p476 = scmp.eq.s32.totalorder %s52, 0
      %p477 = por %p475, %p476
      %p478 = scmp.ne.s32.totalorder %s466, %s467
      %p479 = scmp.eq.s32.totalorder %s53, 1
      %p480 = por %p478, %p479
      %p482 = scmp.ne.s32.totalorder %s467, %s481
      %p483 = scmp.eq.s32.totalorder %s53, 0
      %p484 = por %p482, %p483
      %s486 = sadd.s32 %s485, 1
      %p489 = scmp.eq.s32.totalorder %s47, 1
      %p490 = scmp.ne.s32.totalorder %s485, %s487
      %p491 = scmp.eq.s32.totalorder %s47, 0
      %p492 = por %p490, %p491
      %p493 = scmp.ne.s32.totalorder %s485, %s487
      %p494 = scmp.eq.s32.totalorder %s52, 1
      %p495 = por %p493, %p494
      %p496 = scmp.ne.s32.totalorder %s487, %s488
      %p497 = scmp.eq.s32.totalorder %s52, 0
      %p498 = por %p496, %p497
      %p499 = scmp.ne.s32.totalorder %s487, %s488
      %p500 = scmp.eq.s32.totalorder %s53, 1
      %p501 = por %p499, %p500
      %p503 = scmp.ne.s32.totalorder %s488, %s502
      %p504 = scmp.eq.s32.totalorder %s53, 0
      %p505 = por %p503, %p504
      %s507 = sadd.s32 %s506, 1
      %p510 = scmp.eq.s32.totalorder %s47, 1
      %p511 = scmp.ne.s32.totalorder %s506, %s508
      %p512 = scmp.eq.s32.totalorder %s47, 0
      %p513 = por %p511, %p512
      %p514 = scmp.ne.s32.totalorder %s506, %s508
      %p515 = scmp.eq.s32.totalorder %s52, 1
      %p516 = por %p514, %p515
      %p517 = scmp.ne.s32.totalorder %s508, %s509
      %p518 = scmp.eq.s32.totalorder %s52, 0
      %p519 = por %p517, %p518
      %p520 = scmp.ne.s32.totalorder %s508, %s509
      %p521 = scmp.eq.s32.totalorder %s53, 1
      %p522 = por %p520, %p521
      %p524 = scmp.ne.s32.totalorder %s509, %s523
      %p525 = scmp.eq.s32.totalorder %s53, 0
      %p526 = por %p524, %p525
      %s528 = sadd.s32 %s527, 1
      %p531 = scmp.eq.s32.totalorder %s47, 1
      %p532 = scmp.ne.s32.totalorder %s527, %s529
      %p533 = scmp.eq.s32.totalorder %s47, 0
      %p534 = por %p532, %p533
      %p535 = scmp.ne.s32.totalorder %s527, %s529
      %p536 = scmp.eq.s32.totalorder %s52, 1
      %p537 = por %p535, %p536
      %p538 = scmp.ne.s32.totalorder %s529, %s530
      %p539 = scmp.eq.s32.totalorder %s52, 0
      %p540 = por %p538, %p539
      %p541 = scmp.ne.s32.totalorder %s529, %s530
      %p542 = scmp.eq.s32.totalorder %s53, 1
      %p543 = por %p541, %p542
      %p545 = scmp.ne.s32.totalorder %s530, %s544
      %p546 = scmp.eq.s32.totalorder %s53, 0
      %p547 = por %p545, %p546
      %s549 = sadd.s32 %s548, 1
      %p552 = scmp.eq.s32.totalorder %s47, 1
      %p553 = scmp.ne.s32.totalorder %s548, %s550
      %p554 = scmp.eq.s32.totalorder %s47, 0
      %p555 = por %p553, %p554
      %p556 = scmp.ne.s32.totalorder %s548, %s550
      %p557 = scmp.eq.s32.totalorder %s52, 1
      %p558 = por %p556, %p557
      %p559 = scmp.ne.s32.totalorder %s550, %s551
      %p560 = scmp.eq.s32.totalorder %s52, 0
      %p561 = por %p559, %p560
      %p562 = scmp.ne.s32.totalorder %s550, %s551
      %p563 = scmp.eq.s32.totalorder %s53, 1
      %p564 = por %p562, %p563
      %p566 = scmp.ne.s32.totalorder %s551, %s565
      %p567 = scmp.eq.s32.totalorder %s53, 0
      %p568 = por %p566, %p567
      %s570 = sadd.s32 %s569, 1
      %p573 = scmp.eq.s32.totalorder %s47, 1
      %p574 = scmp.ne.s32.totalorder %s569, %s571
      %p575 = scmp.eq.s32.totalorder %s47, 0
      %p576 = por %p574, %p575
      %p577 = scmp.ne.s32.totalorder %s569, %s571
      %p578 = scmp.eq.s32.totalorder %s52, 1
      %p579 = por %p577, %p578
      %p580 = scmp.ne.s32.totalorder %s571, %s572
      %p581 = scmp.eq.s32.totalorder %s52, 0
      %p582 = por %p580, %p581
      %p583 = scmp.ne.s32.totalorder %s571, %s572
      %p584 = scmp.eq.s32.totalorder %s53, 1
      %p585 = por %p583, %p584
      %p587 = scmp.ne.s32.totalorder %s572, %s586
      %p588 = scmp.eq.s32.totalorder %s53, 0
      %p589 = por %p587, %p588
      %s591 = sadd.s32 %s590, 1
      %p594 = scmp.eq.s32.totalorder %s47, 1
      %p595 = scmp.ne.s32.totalorder %s590, %s592
      %p596 = scmp.eq.s32.totalorder %s47, 0
      %p597 = por %p595, %p596
      %p598 = scmp.ne.s32.totalorder %s590, %s592
      %p599 = scmp.eq.s32.totalorder %s52, 1
      %p600 = por %p598, %p599
      %p601 = scmp.ne.s32.totalorder %s592, %s593
      %p602 = scmp.eq.s32.totalorder %s52, 0
      %p603 = por %p601, %p602
      %p604 = scmp.ne.s32.totalorder %s592, %s593
      %p605 = scmp.eq.s32.totalorder %s53, 1
      %p606 = por %p604, %p605
      %p608 = scmp.ne.s32.totalorder %s593, %s607
      %p609 = scmp.eq.s32.totalorder %s53, 0
      %p610 = por %p608, %p609
      %s611 = ssub.s32 %s47, %s54
      %p612 = scmp.eq.s32.totalorder %s611, 0
      %s614 = sadd.s32 %s613, 1
      %s615 = scalar_select %p612, %s613, %s614
      %p618 = pneg %p612
      %p619 = scmp.eq.s32.totalorder %s47, 1
      %p620 = por %p618, %p619
      %p621 = scmp.ne.s32.totalorder %s613, %s616
      %p622 = scmp.eq.s32.totalorder %s47, 0
      %p623 = por %p621, %p622
      %p624 = scmp.ne.s32.totalorder %s613, %s616
      %p625 = scmp.eq.s32.totalorder %s52, 1
      %p626 = por %p624, %p625
      %p627 = scmp.ne.s32.totalorder %s616, %s617
      %p628 = scmp.eq.s32.totalorder %s52, 0
      %p629 = por %p627, %p628
      %p630 = scmp.ne.s32.totalorder %s616, %s617
      %p631 = scmp.eq.s32.totalorder %s53, 1
      %p632 = por %p630, %p631
      %p634 = scmp.ne.s32.totalorder %s617, %s633
      %p635 = scmp.eq.s32.totalorder %s53, 0
      %p636 = por %p634, %p635
      %p637 = scmp.le.s32.totalorder 1, %s47
      %p638 = scmp.lt.s32.totalorder %s47, 3
      %p639 = pnand %p637, %p638
      %p640 = pneg %p639
      // Predicated region
      $region9: #{transformer_fwd.1} parent=5 // pred_check
        _
      $region10: #{transformer_fwd.1} parent=5 // pred_check_branch
        %642 = sbr.rel (%p639) target = $region12
      $region11: #{transformer_fwd.1} parent=5 // pred_region
        %s643 = ssub.s32 %s47, 1
        // Predicated region
        $region13: #{transformer_fwd.1} parent=11 // pred_check
          %p644 = pneg %p120
        $region14: #{transformer_fwd.1} parent=11 // pred_check_branch
          %646 = sbr.rel (%p644) target = $region16
        $region15: #{transformer_fwd.1} parent=11 // pred_region
          _
        $region16: #{transformer_fwd.1} parent=11 // pred_fallthru
          _
        // Predicated region
        $region17: #{transformer_fwd.1} parent=11 // pred_check
          %p647 = pneg %p141
        $region18: #{transformer_fwd.1} parent=11 // pred_check_branch
          %649 = sbr.rel (%p647) target = $region20
        $region19: #{transformer_fwd.1} parent=11 // pred_region
          _
        $region20: #{transformer_fwd.1} parent=11 // pred_fallthru
          _
        // Predicated region
        $region21: #{transformer_fwd.1} parent=11 // pred_check
          %p650 = pneg %p162
        $region22: #{transformer_fwd.1} parent=11 // pred_check_branch
          %652 = sbr.rel (%p650) target = $region24
        $region23: #{transformer_fwd.1} parent=11 // pred_region
          _
        $region24: #{transformer_fwd.1} parent=11 // pred_fallthru
          _
        // Predicated region
        $region25: #{transformer_fwd.1} parent=11 // pred_check
          %p653 = pneg %p183
        $region26: #{transformer_fwd.1} parent=11 // pred_check_branch
          %655 = sbr.rel (%p653) target = $region28
        $region27: #{transformer_fwd.1} parent=11 // pred_region
          _
        $region28: #{transformer_fwd.1} parent=11 // pred_fallthru
          _
        // Predicated region
        $region29: #{transformer_fwd.1} parent=11 // pred_check
          %p656 = pneg %p204
        $region30: #{transformer_fwd.1} parent=11 // pred_check_branch
          %658 = sbr.rel (%p656) target = $region32
        $region31: #{transformer_fwd.1} parent=11 // pred_region
          _
        $region32: #{transformer_fwd.1} parent=11 // pred_fallthru
          _
        // Predicated region
        $region33: #{transformer_fwd.1} parent=11 // pred_check
          %p659 = pneg %p225
        $region34: #{transformer_fwd.1} parent=11 // pred_check_branch
          %661 = sbr.rel (%p659) target = $region36
        $region35: #{transformer_fwd.1} parent=11 // pred_region
          _
        $region36: #{transformer_fwd.1} parent=11 // pred_fallthru
          _
        // Predicated region
        $region37: #{transformer_fwd.1} parent=11 // pred_check
          %p662 = pneg %p246
        $region38: #{transformer_fwd.1} parent=11 // pred_check_branch
          %664 = sbr.rel (%p662) target = $region40
        $region39: #{transformer_fwd.1} parent=11 // pred_region
          _
        $region40: #{transformer_fwd.1} parent=11 // pred_fallthru
          _
        // Predicated region
        $region41: #{transformer_fwd.1} parent=11 // pred_check
          %p665 = pneg %p267
        $region42: #{transformer_fwd.1} parent=11 // pred_check_branch
          %667 = sbr.rel (%p665) target = $region44
        $region43: #{transformer_fwd.1} parent=11 // pred_region
          _
        $region44: #{transformer_fwd.1} parent=11 // pred_fallthru
          _
        // Predicated region
        $region45: #{transformer_fwd.1} parent=11 // pred_check
          %p668 = pneg %p288
        $region46: #{transformer_fwd.1} parent=11 // pred_check_branch
          %670 = sbr.rel (%p668) target = $region48
        $region47: #{transformer_fwd.1} parent=11 // pred_region
          _
        $region48: #{transformer_fwd.1} parent=11 // pred_fallthru
          _
        // Predicated region
        $region49: #{transformer_fwd.1} parent=11 // pred_check
          %p671 = pneg %p309
        $region50: #{transformer_fwd.1} parent=11 // pred_check_branch
          %673 = sbr.rel (%p671) target = $region52
        $region51: #{transformer_fwd.1} parent=11 // pred_region
          _
        $region52: #{transformer_fwd.1} parent=11 // pred_fallthru
          _
        // Predicated region
        $region53: #{transformer_fwd.1} parent=11 // pred_check
          %p674 = pneg %p330
        $region54: #{transformer_fwd.1} parent=11 // pred_check_branch
          %676 = sbr.rel (%p674) target = $region56
        $region55: #{transformer_fwd.1} parent=11 // pred_region
          _
        $region56: #{transformer_fwd.1} parent=11 // pred_fallthru
          _
        // Predicated region
        $region57: #{transformer_fwd.1} parent=11 // pred_check
          %p677 = pneg %p351
        $region58: #{transformer_fwd.1} parent=11 // pred_check_branch
          %679 = sbr.rel (%p677) target = $region60
        $region59: #{transformer_fwd.1} parent=11 // pred_region
          _
        $region60: #{transformer_fwd.1} parent=11 // pred_fallthru
          _
        // Predicated region
        $region61: #{transformer_fwd.1} parent=11 // pred_check
          %p680 = pneg %p372
        $region62: #{transformer_fwd.1} parent=11 // pred_check_branch
          %682 = sbr.rel (%p680) target = $region64
        $region63: #{transformer_fwd.1} parent=11 // pred_region
          _
        $region64: #{transformer_fwd.1} parent=11 // pred_fallthru
          _
        // Predicated region
        $region65: #{transformer_fwd.1} parent=11 // pred_check
          %p683 = pneg %p393
        $region66: #{transformer_fwd.1} parent=11 // pred_check_branch
          %685 = sbr.rel (%p683) target = $region68
        $region67: #{transformer_fwd.1} parent=11 // pred_region
          _
        $region68: #{transformer_fwd.1} parent=11 // pred_fallthru
          _
        // Predicated region
        $region69: #{transformer_fwd.1} parent=11 // pred_check
          %p686 = pneg %p414
        $region70: #{transformer_fwd.1} parent=11 // pred_check_branch
          %688 = sbr.rel (%p686) target = $region72
        $region71: #{transformer_fwd.1} parent=11 // pred_region
          _
        $region72: #{transformer_fwd.1} parent=11 // pred_fallthru
          _
        // Predicated region
        $region73: #{transformer_fwd.1} parent=11 // pred_check
          %p689 = pneg %p435
        $region74: #{transformer_fwd.1} parent=11 // pred_check_branch
          %691 = sbr.rel (%p689) target = $region76
        $region75: #{transformer_fwd.1} parent=11 // pred_region
          %s693 = ssub.s32 16, 16
          %694 = vsyncadd [#allocation5], %s693
          %s696 = sshll.u32 [#allocation4], 4
          %s697 = int_to_ptr.vmem [resolvable:$true] %s696
          %699 = dma.hbm_to_vmem [thread:$0]  %s18, 16, %s697, [#allocation5]
        $region76: #{transformer_fwd.1} parent=11 // pred_fallthru
          _
        // Predicated region
        $region77: #{transformer_fwd.1} parent=11 // pred_check
          %p700 = pneg %p456
        $region78: #{transformer_fwd.1} parent=11 // pred_check_branch
          %702 = sbr.rel (%p700) target = $region80
        $region79: #{transformer_fwd.1} parent=11 // pred_region
          %s704 = ssub.s32 16, 16
          %705 = vsyncadd [#allocation8], %s704
          %s707 = sshll.u32 [#allocation7], 4
          %s708 = int_to_ptr.vmem [resolvable:$true] %s707
          %710 = dma.hbm_to_vmem [thread:$0]  %s19, 16, %s708, [#allocation8]
        $region80: #{transformer_fwd.1} parent=11 // pred_fallthru
          _
        // Predicated region
        $region81: #{transformer_fwd.1} parent=11 // pred_check
          %p711 = pneg %p477
        $region82: #{transformer_fwd.1} parent=11 // pred_check_branch
          %713 = sbr.rel (%p711) target = $region84
        $region83: #{transformer_fwd.1} parent=11 // pred_region
          %s715 = ssub.s32 16, 16
          %716 = vsyncadd [#allocation8], %s715
          %s718 = sshll.u32 [#allocation9], 4
          %s719 = int_to_ptr.vmem [resolvable:$true] %s718
          %721 = dma.hbm_to_vmem [thread:$0]  %s20, 16, %s719, [#allocation8]
        $region84: #{transformer_fwd.1} parent=11 // pred_fallthru
          _
        // Predicated region
        $region85: #{transformer_fwd.1} parent=11 // pred_check
          %p722 = pneg %p498
        $region86: #{transformer_fwd.1} parent=11 // pred_check_branch
          %724 = sbr.rel (%p722) target = $region88
        $region87: #{transformer_fwd.1} parent=11 // pred_region
          %s726 = ssub.s32 2048, 2048
          %727 = vsyncadd [#allocation11], %s726
          %s728 = sshll.u32 [#allocation10], 4
          %s729 = int_to_ptr.vmem [resolvable:$true] %s728
          %734 = dma.hbm_to_vmem [thread:$0]  %s21, 2048, %s729, [#allocation11], 256, 256, 16
        $region88: #{transformer_fwd.1} parent=11 // pred_fallthru
          _
        // Predicated region
        $region89: #{transformer_fwd.1} parent=11 // pred_check
          %p735 = pneg %p519
        $region90: #{transformer_fwd.1} parent=11 // pred_check_branch
          %737 = sbr.rel (%p735) target = $region92
        $region91: #{transformer_fwd.1} parent=11 // pred_region
          %s739 = ssub.s32 32, 32
          %740 = vsyncadd [#allocation11], %s739
          %s742 = sshll.u32 [#allocation12], 4
          %s743 = int_to_ptr.vmem [resolvable:$true] %s742
          %745 = dma.hbm_to_vmem [thread:$0]  %s22, 32, %s743, [#allocation11]
        $region92: #{transformer_fwd.1} parent=11 // pred_fallthru
          _
        // Predicated region
        $region93: #{transformer_fwd.1} parent=11 // pred_check
          %p746 = pneg %p540
        $region94: #{transformer_fwd.1} parent=11 // pred_check_branch
          %748 = sbr.rel (%p746) target = $region96
        $region95: #{transformer_fwd.1} parent=11 // pred_region
          _
        $region96: #{transformer_fwd.1} parent=11 // pred_fallthru
          _
        // Predicated region
        $region97: #{transformer_fwd.1} parent=11 // pred_check
          %p749 = pneg %p561
        $region98: #{transformer_fwd.1} parent=11 // pred_check_branch
          %751 = sbr.rel (%p749) target = $region100
        $region99: #{transformer_fwd.1} parent=11 // pred_region
          %s753 = ssub.s32 16, 16
          %754 = vsyncadd [#allocation14], %s753
          %s756 = sshll.u32 [#allocation13], 4
          %s757 = int_to_ptr.vmem [resolvable:$true] %s756
          %759 = dma.hbm_to_vmem [thread:$0]  %s24, 16, %s757, [#allocation14]
        $region100: #{transformer_fwd.1} parent=11 // pred_fallthru
          _
        // Predicated region
        $region101: #{transformer_fwd.1} parent=11 // pred_check
          %p760 = pneg %p582
        $region102: #{transformer_fwd.1} parent=11 // pred_check_branch
          %762 = sbr.rel (%p760) target = $region104
        $region103: #{transformer_fwd.1} parent=11 // pred_region
          %s764 = ssub.s32 16, 16
          %765 = vsyncadd [#allocation14], %s764
          %s767 = sshll.u32 [#allocation15], 4
          %s768 = int_to_ptr.vmem [resolvable:$true] %s767
          %770 = dma.hbm_to_vmem [thread:$0]  %s25, 16, %s768, [#allocation14]
        $region104: #{transformer_fwd.1} parent=11 // pred_fallthru
          _
        // Predicated region
        $region105: #{transformer_fwd.1} parent=11 // pred_check
          %p771 = pneg %p603
        $region106: #{transformer_fwd.1} parent=11 // pred_check_branch
          %773 = sbr.rel (%p771) target = $region108
        $region107: #{transformer_fwd.1} parent=11 // pred_region
          %s775 = ssub.s32 16, 16
          %776 = vsyncadd [#allocation17], %s775
          %s778 = sshll.u32 [#allocation16], 4
          %s779 = int_to_ptr.vmem [resolvable:$true] %s778
          %781 = dma.hbm_to_vmem [thread:$0]  %s26, 16, %s779, [#allocation17]
        $region108: #{transformer_fwd.1} parent=11 // pred_fallthru
          _
      $region12: #{transformer_fwd.1} parent=5 // pred_fallthru
        _
      %p782 = scmp.lt.s32.totalorder %s47, 2
      // Predicated region
      $region109: #{transformer_fwd.1} parent=5 // pred_check
        %p783 = pneg %p782
      $region110: #{transformer_fwd.1} parent=5 // pred_check_branch
        %785 = sbr.rel (%p783) target = $region112
      $region111: #{transformer_fwd.1} parent=5 // pred_region
        // Predicated region
        $region113: #{transformer_fwd.1} parent=111 // pred_check
          %p786 = pneg %p67
        $region114: #{transformer_fwd.1} parent=111 // pred_check_branch
          %788 = sbr.rel (%p786) target = $region116
        $region115: #{transformer_fwd.1} parent=111 // pred_region
          %p789 = scmp.lt.s32.totalorder %s47, 1
          %s790 = scalar_select %p789, %s47, 1
          %s791 = smul.addr %s790, 8
          %s792 = scalar_lea.vmem %s1, %s791
        $region116: #{transformer_fwd.1} parent=111 // pred_fallthru
          _
        // Predicated region
        $region117: #{transformer_fwd.1} parent=111 // pred_check
          %p793 = pneg %p93
        $region118: #{transformer_fwd.1} parent=111 // pred_check_branch
          %795 = sbr.rel (%p793) target = $region120
        $region119: #{transformer_fwd.1} parent=111 // pred_region
          %p796 = scmp.lt.s32.totalorder %s47, 1
          %s797 = scalar_select %p796, %s47, 1
          %s798 = smul.addr %s797, 8
          %s799 = scalar_lea.vmem %s2, %s798
        $region120: #{transformer_fwd.1} parent=111 // pred_fallthru
          _
      $region112: #{transformer_fwd.1} parent=5 // pred_fallthru
        _
      %p800 = scmp.le.s32.totalorder 1, %s47
      %p801 = scmp.lt.s32.totalorder %s47, 3
      %p802 = pnand %p800, %p801
      %p803 = pneg %p802
      // Predicated region
      $region121: #{transformer_fwd.1} parent=5 // pred_check
        _
      $region122: #{transformer_fwd.1} parent=5 // pred_check_branch
        %805 = sbr.rel (%p802) target = $region124
      $region123: #{transformer_fwd.1} parent=5 // pred_region
        %s806 = ssub.s32 %s47, 1
        // Predicated region
        $region125: #{transformer_fwd.1} parent=123 // pred_check
          %p807 = pneg %p435
        $region126: #{transformer_fwd.1} parent=123 // pred_check_branch
          %809 = sbr.rel (%p807) target = $region128
        $region127: #{transformer_fwd.1} parent=123 // pred_region
          %810 = dma.done [#allocation5], 16
        $region128: #{transformer_fwd.1} parent=123 // pred_fallthru
          _
        // Predicated region
        $region129: #{transformer_fwd.1} parent=123 // pred_check
          %p811 = pneg %p456
        $region130: #{transformer_fwd.1} parent=123 // pred_check_branch
          %813 = sbr.rel (%p811) target = $region132
        $region131: #{transformer_fwd.1} parent=123 // pred_region
          %814 = dma.done [#allocation8], 16
        $region132: #{transformer_fwd.1} parent=123 // pred_fallthru
          _
        // Predicated region
        $region133: #{transformer_fwd.1} parent=123 // pred_check
          %p815 = pneg %p477
        $region134: #{transformer_fwd.1} parent=123 // pred_check_branch
          %817 = sbr.rel (%p815) target = $region136
        $region135: #{transformer_fwd.1} parent=123 // pred_region
          %818 = dma.done [#allocation8], 16
        $region136: #{transformer_fwd.1} parent=123 // pred_fallthru
          _
        // Predicated region
        $region137: #{transformer_fwd.1} parent=123 // pred_check
          %p819 = pneg %p498
        $region138: #{transformer_fwd.1} parent=123 // pred_check_branch
          %821 = sbr.rel (%p819) target = $region140
        $region139: #{transformer_fwd.1} parent=123 // pred_region
          %822 = dma.done [#allocation11], 2048
        $region140: #{transformer_fwd.1} parent=123 // pred_fallthru
          _
        // Predicated region
        $region141: #{transformer_fwd.1} parent=123 // pred_check
          %p823 = pneg %p519
        $region142: #{transformer_fwd.1} parent=123 // pred_check_branch
          %825 = sbr.rel (%p823) target = $region144
        $region143: #{transformer_fwd.1} parent=123 // pred_region
          %826 = dma.done [#allocation11], 32
        $region144: #{transformer_fwd.1} parent=123 // pred_fallthru
          _
        // Predicated region
        $region145: #{transformer_fwd.1} parent=123 // pred_check
          %p827 = pneg %p561
        $region146: #{transformer_fwd.1} parent=123 // pred_check_branch
          %829 = sbr.rel (%p827) target = $region148
        $region147: #{transformer_fwd.1} parent=123 // pred_region
          %830 = dma.done [#allocation14], 16
        $region148: #{transformer_fwd.1} parent=123 // pred_fallthru
          _
        // Predicated region
        $region149: #{transformer_fwd.1} parent=123 // pred_check
          %p831 = pneg %p582
        $region150: #{transformer_fwd.1} parent=123 // pred_check_branch
          %833 = sbr.rel (%p831) target = $region152
        $region151: #{transformer_fwd.1} parent=123 // pred_region
          %834 = dma.done [#allocation14], 16
        $region152: #{transformer_fwd.1} parent=123 // pred_fallthru
          _
        // Predicated region
        $region153: #{transformer_fwd.1} parent=123 // pred_check
          %p835 = pneg %p603
        $region154: #{transformer_fwd.1} parent=123 // pred_check_branch
          %837 = sbr.rel (%p835) target = $region156
        $region155: #{transformer_fwd.1} parent=123 // pred_region
          %838 = dma.done [#allocation17], 16
        $region156: #{transformer_fwd.1} parent=123 // pred_fallthru
          _
        %p839 = scmp.lt.s32.totalorder %s52, 1
        %s840 = scalar_select %p839, %s52, 1
        %s841 = smul.addr %s840, 8
        %s842 = scalar_lea.vmem %s1, %s841
        %p843 = pneg %p73
        %p844 = pneg %p70
        %p845 = scmp.lt.s32.totalorder %s52, 1
        %s846 = scalar_select %p845, %s52, 1
        %s847 = smul.addr %s846, 8
        %s848 = scalar_lea.vmem %s2, %s847
        %p849 = pneg %p99
        %p850 = pneg %p96
        %p851 = pneg %p120
        %p852 = pneg %p117
        %p853 = pneg %p141
        %p854 = pneg %p138
        %p855 = pneg %p162
        %p856 = pneg %p159
        %p857 = pneg %p183
        %p858 = pneg %p180
        %p859 = pneg %p204
        %p860 = pneg %p201
        %p861 = pneg %p225
        %p862 = pneg %p222
        %p863 = pneg %p246
        %p864 = pneg %p243
        %p865 = pneg %p267
        %p866 = pneg %p264
        %p867 = pneg %p288
        %p868 = pneg %p285
        %p869 = pneg %p309
        %p870 = pneg %p306
        %p871 = pneg %p330
        %p872 = pneg %p327
        %p873 = pneg %p351
        %p874 = pneg %p348
        %p875 = pneg %p372
        %p876 = pneg %p369
        %p877 = pneg %p393
        %p878 = pneg %p390
        %p879 = pneg %p414
        %p880 = pneg %p411
        %p881 = pneg %p435
        %p882 = pneg %p432
        %p883 = pneg %p456
        %p884 = pneg %p453
        %p885 = pneg %p477
        %p886 = pneg %p474
        %p887 = pneg %p498
        %p888 = pneg %p495
        %p889 = pneg %p519
        %p890 = pneg %p516
        %p891 = pneg %p540
        %p892 = pneg %p537
        %p893 = pneg %p561
        %p894 = pneg %p558
        %p895 = pneg %p582
        %p896 = pneg %p579
        %p897 = pneg %p603
        %p898 = pneg %p600
        %p899 = pneg %p629
        %p900 = pneg %p626
        %s901 = sand.u32 %s616, 1
        %s902 = scalar_lea.sflag [#allocation6], %s901
        %s903 = sand.u32 %s616, 1
        %s904 = smul.addr %s903, 8
        %s905 = scalar_lea.vmem [#allocation18], %s904
        %p906 = scmp.lt.s32.totalorder %s52, 1
        %s907 = scalar_select %p906, %s52, 1
        %s908 = smul.addr %s907, 8
        %s909 = scalar_lea.vmem %s1, %s908
        %p910 = scmp.lt.s32.totalorder %s52, 1
        %s911 = scalar_select %p910, %s52, 1
        %s912 = smul.addr %s911, 8
        %s913 = scalar_lea.vmem %s2, %s912
        %s914 = sld [smem:[#allocation3 + %s52]]
        %v915 = vld [vmem:[%s909] sm:$0xff]
        %v916 = vld [vmem:[%s913] sm:$0xff]
        %v917 = vld [vmem:[%s3] sm:$0xff]
        %v918 = vld [vmem:[%s3 + $0x8] sm:$0xff]
        %v919 = vld [vmem:[%s3 + $0x10] sm:$0xff]
        %v920 = vld [vmem:[%s3 + $0x18] sm:$0xff]
        %v921 = vld [vmem:[%s3 + $0x20] sm:$0xff]
        %v922 = vld [vmem:[%s3 + $0x28] sm:$0xff]
        %v923 = vld [vmem:[%s3 + $0x30] sm:$0xff]
        %v924 = vld [vmem:[%s3 + $0x38] sm:$0xff]
        %v925 = vld [vmem:[%s3 + $0x40] sm:$0xff]
        %v926 = vld [vmem:[%s3 + $0x48] sm:$0xff]
        %v927 = vld [vmem:[%s3 + $0x50] sm:$0xff]
        %v928 = vld [vmem:[%s3 + $0x58] sm:$0xff]
        %v929 = vld [vmem:[%s3 + $0x60] sm:$0xff]
        %v930 = vld [vmem:[%s3 + $0x68] sm:$0xff]
        %v931 = vld [vmem:[%s3 + $0x70] sm:$0xff]
        %v932 = vld [vmem:[%s3 + $0x78] sm:$0xff]
        %v933 = vld [vmem:[%s3 + $0x80] sm:$0xff]
        %v934 = vld [vmem:[%s3 + $0x88] sm:$0xff]
        %v935 = vld [vmem:[%s3 + $0x90] sm:$0xff]
        %v936 = vld [vmem:[%s3 + $0x98] sm:$0xff]
        %v937 = vld [vmem:[%s3 + $0xa0] sm:$0xff]
        %v938 = vld [vmem:[%s3 + $0xa8] sm:$0xff]
        %v939 = vld [vmem:[%s3 + $0xb0] sm:$0xff]
        %v940 = vld [vmem:[%s3 + $0xb8] sm:$0xff]
        %v941 = vld [vmem:[%s3 + $0xc0] sm:$0xff]
        %v942 = vld [vmem:[%s3 + $0xc8] sm:$0xff]
        %v943 = vld [vmem:[%s3 + $0xd0] sm:$0xff]
        %v944 = vld [vmem:[%s3 + $0xd8] sm:$0xff]
        %v945 = vld [vmem:[%s3 + $0xe0] sm:$0xff]
        %v946 = vld [vmem:[%s3 + $0xe8] sm:$0xff]
        %v947 = vld [vmem:[%s3 + $0xf0] sm:$0xff]
        %v948 = vld [vmem:[%s3 + $0xf8] sm:$0xff]
        %vm949 = vcmask 523264
        %v951 = vsel %vm949, %v915, 0
        %953 = vmatprep.subr.mxu0 %v918
        %954 = vmatpush1.msra.mxu0 %v917
        %955 = vmatprep.subr.mxu0 %v922
        %956 = vmatpush1.msra.mxu0 %v921
        %957 = vmatprep.subr.mxu0 %v926
        %958 = vmatpush1.msra.mxu0 %v925
        %959 = vmatprep.subr.mxu0 %v930
        %960 = vmatpush1.msra.mxu0 %v929
        %961 = vmatprep.subr.mxu0 %v934
        %962 = vmatpush1.msra.mxu0 %v933
        %963 = vmatprep.subr.mxu0 %v938
        %964 = vmatpush1.msra.mxu0 %v937
        %965 = vmatprep.subr.mxu0 %v942
        %966 = vmatpush1.msra.mxu0 %v941
        %967 = vmatprep.subr.mxu0 %v946
        %968 = vmatpush1.msra.mxu0 %v945
        %969 = vmatprep.subr.mxu0 0.0
        %970 = vmatpush1.msra.mxu0 0.0
        %971 = vmatprep.subr.mxu0 0.0
        %972 = vmatpush1.msra.mxu0 0.0
        %973 = vmatprep.subr.mxu0 0.0
        %974 = vmatpush1.msra.mxu0 0.0
        %975 = vmatprep.subr.mxu0 0.0
        %976 = vmatpush1.msra.mxu0 0.0
        %977 = vmatprep.subr.mxu0 0.0
        %978 = vmatpush1.msra.mxu0 0.0
        %979 = vmatprep.subr.mxu0 0.0
        %980 = vmatpush1.msra.mxu0 0.0
        %981 = vmatprep.subr.mxu0 0.0
        %982 = vmatpush1.msra.mxu0 0.0
        %983 = vmatprep.subr.mxu0 0.0
        %984 = vmatpush1.msra.mxu0 0.0
        %985 = vmatprep.subr.mxu0 0.0
        %986 = vmatpush1.msra.mxu0 0.0
        %987 = vmatprep.subr.mxu0 0.0
        %988 = vmatpush1.msra.mxu0 0.0
        %989 = vmatprep.subr.mxu0 0.0
        %990 = vmatpush1.msra.mxu0 0.0
        %991 = vmatprep.subr.mxu0 0.0
        %992 = vmatpush1.msra.mxu0 0.0
        %993 = vmatprep.subr.mxu0 0.0
        %994 = vmatpush1.msra.mxu0 0.0
        %995 = vmatprep.subr.mxu0 0.0
        %996 = vmatpush1.msra.mxu0 0.0
        %997 = vmatprep.subr.mxu0 0.0
        %998 = vmatpush1.msra.mxu0 0.0
        %999 = vmatprep.subr.mxu0 0.0
        %1000 = vmatpush1.msra.mxu0 0.0
        %1001 = vmatprep.subr.mxu0 0.0
        %1002 = vmatpush1.msra.mxu0 0.0
        %1003 = vmatprep.subr.mxu0 0.0
        %1004 = vmatpush1.msra.mxu0 0.0
        %1005 = vmatprep.subr.mxu0 0.0
        %1006 = vmatpush1.msra.mxu0 0.0
        %1007 = vmatprep.subr.mxu0 0.0
        %1008 = vmatpush1.msra.mxu0 0.0
        %1009 = vmatprep.subr.mxu0 0.0
        %1010 = vmatpush1.msra.mxu0 0.0
        %1011 = vmatprep.subr.mxu0 0.0
        %1012 = vmatpush1.msra.mxu0 0.0
        %1013 = vmatprep.subr.mxu0 0.0
        %1014 = vmatpush1.msra.mxu0 0.0
        %1015 = vmatprep.subr.mxu0 0.0
        %1016 = vmatpush1.msra.mxu0 0.0
        %1017 = vmatprep.mubr.f32.mxu0 0.0
        %1018 = vmatmul.mubr.f32.gmra.mrb[0].mxu0 %v951
        %v1019 = vpop.f32.mrb[0].mxu0
        %v1020 = vadd.f32 0.0, %v1019
        %v1021 = vpop.f32.mrb[0].mxu0
        %v1022 = vadd.f32 0.0, %v1021
        %1023 = vdwg.mxu0
        %1024 = vmatprep.subr.mxu0 %v920
        %1025 = vmatpush1.msra.mxu0 %v919
        %1026 = vmatprep.subr.mxu0 %v924
        %1027 = vmatpush1.msra.mxu0 %v923
        %1028 = vmatprep.subr.mxu0 %v928
        %1029 = vmatpush1.msra.mxu0 %v927
        %1030 = vmatprep.subr.mxu0 %v932
        %1031 = vmatpush1.msra.mxu0 %v931
        %1032 = vmatprep.subr.mxu0 %v936
        %1033 = vmatpush1.msra.mxu0 %v935
        %1034 = vmatprep.subr.mxu0 %v940
        %1035 = vmatpush1.msra.mxu0 %v939
        %1036 = vmatprep.subr.mxu0 %v944
        %1037 = vmatpush1.msra.mxu0 %v943
        %1038 = vmatprep.subr.mxu0 %v948
        %1039 = vmatpush1.msra.mxu0 %v947
        %1040 = vmatprep.subr.mxu0 0.0
        %1041 = vmatpush1.msra.mxu0 0.0
        %1042 = vmatprep.subr.mxu0 0.0
        %1043 = vmatpush1.msra.mxu0 0.0
        %1044 = vmatprep.subr.mxu0 0.0
        %1045 = vmatpush1.msra.mxu0 0.0
        %1046 = vmatprep.subr.mxu0 0.0
        %1047 = vmatpush1.msra.mxu0 0.0
        %1048 = vmatprep.subr.mxu0 0.0
        %1049 = vmatpush1.msra.mxu0 0.0
        %1050 = vmatprep.subr.mxu0 0.0
        %1051 = vmatpush1.msra.mxu0 0.0
        %1052 = vmatprep.subr.mxu0 0.0
        %1053 = vmatpush1.msra.mxu0 0.0
        %1054 = vmatprep.subr.mxu0 0.0
        %1055 = vmatpush1.msra.mxu0 0.0
        %1056 = vmatprep.subr.mxu0 0.0
        %1057 = vmatpush1.msra.mxu0 0.0
        %1058 = vmatprep.subr.mxu0 0.0
        %1059 = vmatpush1.msra.mxu0 0.0
        %1060 = vmatprep.subr.mxu0 0.0
        %1061 = vmatpush1.msra.mxu0 0.0
        %1062 = vmatprep.subr.mxu0 0.0
        %1063 = vmatpush1.msra.mxu0 0.0
        %1064 = vmatprep.subr.mxu0 0.0
        %1065 = vmatpush1.msra.mxu0 0.0
        %1066 = vmatprep.subr.mxu0 0.0
        %1067 = vmatpush1.msra.mxu0 0.0
        %1068 = vmatprep.subr.mxu0 0.0
        %1069 = vmatpush1.msra.mxu0 0.0
        %1070 = vmatprep.subr.mxu0 0.0
        %1071 = vmatpush1.msra.mxu0 0.0
        %1072 = vmatprep.subr.mxu0 0.0
        %1073 = vmatpush1.msra.mxu0 0.0
        %1074 = vmatprep.subr.mxu0 0.0
        %1075 = vmatpush1.msra.mxu0 0.0
        %1076 = vmatprep.subr.mxu0 0.0
        %1077 = vmatpush1.msra.mxu0 0.0
        %1078 = vmatprep.subr.mxu0 0.0
        %1079 = vmatpush1.msra.mxu0 0.0
        %1080 = vmatprep.subr.mxu0 0.0
        %1081 = vmatpush1.msra.mxu0 0.0
        %1082 = vmatprep.subr.mxu0 0.0
        %1083 = vmatpush1.msra.mxu0 0.0
        %1084 = vmatprep.subr.mxu0 0.0
        %1085 = vmatpush1.msra.mxu0 0.0
        %1086 = vmatprep.subr.mxu0 0.0
        %1087 = vmatpush1.msra.mxu0 0.0
        %1088 = vmatprep.mubr.f32.mxu0 0.0
        %1089 = vmatmul.mubr.f32.gmra.mrb[0].mxu0 %v951
        %v1090 = vpop.f32.mrb[0].mxu0
        %v1091 = vadd.f32 0.0, %v1090
        %v1092 = vpop.f32.mrb[0].mxu0
        %v1093 = vadd.f32 0.0, %v1092
        %1094 = vdwg.mxu0
        %v1095 = vld [vmem:[%s4] sm:$0xff]
        %v1096 = vld [vmem:[%s4 + $0x8] sm:$0xff]
        %v1097 = vld [vmem:[%s4 + $0x10] sm:$0xff]
        %v1098 = vld [vmem:[%s4 + $0x18] sm:$0xff]
        %v1099 = vld [vmem:[%s4 + $0x20] sm:$0xff]
        %v1100 = vld [vmem:[%s4 + $0x28] sm:$0xff]
        %v1101 = vld [vmem:[%s4 + $0x30] sm:$0xff]
        %v1102 = vld [vmem:[%s4 + $0x38] sm:$0xff]
        %v1103 = vld [vmem:[%s4 + $0x40] sm:$0xff]
        %v1104 = vld [vmem:[%s4 + $0x48] sm:$0xff]
        %v1105 = vld [vmem:[%s4 + $0x50] sm:$0xff]
        %v1106 = vld [vmem:[%s4 + $0x58] sm:$0xff]
        %v1107 = vld [vmem:[%s4 + $0x60] sm:$0xff]
        %v1108 = vld [vmem:[%s4 + $0x68] sm:$0xff]
        %v1109 = vld [vmem:[%s4 + $0x70] sm:$0xff]
        %v1110 = vld [vmem:[%s4 + $0x78] sm:$0xff]
        %v1111 = vld [vmem:[%s4 + $0x80] sm:$0xff]
        %v1112 = vld [vmem:[%s4 + $0x88] sm:$0xff]
        %v1113 = vld [vmem:[%s4 + $0x90] sm:$0xff]
        %v1114 = vld [vmem:[%s4 + $0x98] sm:$0xff]
        %v1115 = vld [vmem:[%s4 + $0xa0] sm:$0xff]
        %v1116 = vld [vmem:[%s4 + $0xa8] sm:$0xff]
        %v1117 = vld [vmem:[%s4 + $0xb0] sm:$0xff]
        %v1118 = vld [vmem:[%s4 + $0xb8] sm:$0xff]
        %v1119 = vld [vmem:[%s4 + $0xc0] sm:$0xff]
        %v1120 = vld [vmem:[%s4 + $0xc8] sm:$0xff]
        %v1121 = vld [vmem:[%s4 + $0xd0] sm:$0xff]
        %v1122 = vld [vmem:[%s4 + $0xd8] sm:$0xff]
        %v1123 = vld [vmem:[%s4 + $0xe0] sm:$0xff]
        %v1124 = vld [vmem:[%s4 + $0xe8] sm:$0xff]
        %v1125 = vld [vmem:[%s4 + $0xf0] sm:$0xff]
        %v1126 = vld [vmem:[%s4 + $0xf8] sm:$0xff]
        %v1127 = vld [vmem:[%s4 + $0x100] sm:$0xff]
        %v1128 = vld [vmem:[%s4 + $0x108] sm:$0xff]
        %v1129 = vld [vmem:[%s4 + $0x110] sm:$0xff]
        %v1130 = vld [vmem:[%s4 + $0x118] sm:$0xff]
        %v1131 = vld [vmem:[%s4 + $0x120] sm:$0xff]
        %v1132 = vld [vmem:[%s4 + $0x128] sm:$0xff]
        %v1133 = vld [vmem:[%s4 + $0x130] sm:$0xff]
        %v1134 = vld [vmem:[%s4 + $0x138] sm:$0xff]
        %v1135 = vld [vmem:[%s4 + $0x140] sm:$0xff]
        %v1136 = vld [vmem:[%s4 + $0x148] sm:$0xff]
        %v1137 = vld [vmem:[%s4 + $0x150] sm:$0xff]
        %v1138 = vld [vmem:[%s4 + $0x158] sm:$0xff]
        %v1139 = vld [vmem:[%s4 + $0x160] sm:$0xff]
        %v1140 = vld [vmem:[%s4 + $0x168] sm:$0xff]
        %v1141 = vld [vmem:[%s4 + $0x170] sm:$0xff]
        %v1142 = vld [vmem:[%s4 + $0x178] sm:$0xff]
        %v1143 = vld [vmem:[%s4 + $0x180] sm:$0xff]
        %v1144 = vld [vmem:[%s4 + $0x188] sm:$0xff]
        %v1145 = vld [vmem:[%s4 + $0x190] sm:$0xff]
        %v1146 = vld [vmem:[%s4 + $0x198] sm:$0xff]
        %v1147 = vld [vmem:[%s4 + $0x1a0] sm:$0xff]
        %v1148 = vld [vmem:[%s4 + $0x1a8] sm:$0xff]
        %v1149 = vld [vmem:[%s4 + $0x1b0] sm:$0xff]
        %v1150 = vld [vmem:[%s4 + $0x1b8] sm:$0xff]
        %v1151 = vld [vmem:[%s4 + $0x1c0] sm:$0xff]
        %v1152 = vld [vmem:[%s4 + $0x1c8] sm:$0xff]
        %v1153 = vld [vmem:[%s4 + $0x1d0] sm:$0xff]
        %v1154 = vld [vmem:[%s4 + $0x1d8] sm:$0xff]
        %v1155 = vld [vmem:[%s4 + $0x1e0] sm:$0xff]
        %v1156 = vld [vmem:[%s4 + $0x1e8] sm:$0xff]
        %v1157 = vld [vmem:[%s4 + $0x1f0] sm:$0xff]
        %v1158 = vld [vmem:[%s4 + $0x1f8] sm:$0xff]
        %1159 = vmatprep.subr.mxu0 %v1096
        %1160 = vmatpush1.msra.mxu0 %v1095
        %1161 = vmatprep.subr.mxu0 %v1104
        %1162 = vmatpush1.msra.mxu0 %v1103
        %1163 = vmatprep.subr.mxu0 %v1112
        %1164 = vmatpush1.msra.mxu0 %v1111
        %1165 = vmatprep.subr.mxu0 %v1120
        %1166 = vmatpush1.msra.mxu0 %v1119
        %1167 = vmatprep.subr.mxu0 %v1128
        %1168 = vmatpush1.msra.mxu0 %v1127
        %1169 = vmatprep.subr.mxu0 %v1136
        %1170 = vmatpush1.msra.mxu0 %v1135
        %1171 = vmatprep.subr.mxu0 %v1144
        %1172 = vmatpush1.msra.mxu0 %v1143
        %1173 = vmatprep.subr.mxu0 %v1152
        %1174 = vmatpush1.msra.mxu0 %v1151
        %1175 = vmatprep.subr.mxu0 0.0
        %1176 = vmatpush1.msra.mxu0 0.0
        %1177 = vmatprep.subr.mxu0 0.0
        %1178 = vmatpush1.msra.mxu0 0.0
        %1179 = vmatprep.subr.mxu0 0.0
        %1180 = vmatpush1.msra.mxu0 0.0
        %1181 = vmatprep.subr.mxu0 0.0
        %1182 = vmatpush1.msra.mxu0 0.0
        %1183 = vmatprep.subr.mxu0 0.0
        %1184 = vmatpush1.msra.mxu0 0.0
        %1185 = vmatprep.subr.mxu0 0.0
        %1186 = vmatpush1.msra.mxu0 0.0
        %1187 = vmatprep.subr.mxu0 0.0
        %1188 = vmatpush1.msra.mxu0 0.0
        %1189 = vmatprep.subr.mxu0 0.0
        %1190 = vmatpush1.msra.mxu0 0.0
        %1191 = vmatprep.subr.mxu0 0.0
        %1192 = vmatpush1.msra.mxu0 0.0
        %1193 = vmatprep.subr.mxu0 0.0
        %1194 = vmatpush1.msra.mxu0 0.0
        %1195 = vmatprep.subr.mxu0 0.0
        %1196 = vmatpush1.msra.mxu0 0.0
        %1197 = vmatprep.subr.mxu0 0.0
        %1198 = vmatpush1.msra.mxu0 0.0
        %1199 = vmatprep.subr.mxu0 0.0
        %1200 = vmatpush1.msra.mxu0 0.0
        %1201 = vmatprep.subr.mxu0 0.0
        %1202 = vmatpush1.msra.mxu0 0.0
        %1203 = vmatprep.subr.mxu0 0.0
        %1204 = vmatpush1.msra.mxu0 0.0
        %1205 = vmatprep.subr.mxu0 0.0
        %1206 = vmatpush1.msra.mxu0 0.0
        %1207 = vmatprep.subr.mxu0 0.0
        %1208 = vmatpush1.msra.mxu0 0.0
        %1209 = vmatprep.subr.mxu0 0.0
        %1210 = vmatpush1.msra.mxu0 0.0
        %1211 = vmatprep.subr.mxu0 0.0
        %1212 = vmatpush1.msra.mxu0 0.0
        %1213 = vmatprep.subr.mxu0 0.0
        %1214 = vmatpush1.msra.mxu0 0.0
        %1215 = vmatprep.subr.mxu0 0.0
        %1216 = vmatpush1.msra.mxu0 0.0
        %1217 = vmatprep.subr.mxu0 0.0
        %1218 = vmatpush1.msra.mxu0 0.0
        %1219 = vmatprep.subr.mxu0 0.0
        %1220 = vmatpush1.msra.mxu0 0.0
        %1221 = vmatprep.subr.mxu0 0.0
        %1222 = vmatpush1.msra.mxu0 0.0
        %1223 = vmatprep.mubr.f32.mxu0 0.0
        %1224 = vmatmul.mubr.f32.gmra.mrb[0].mxu0 %v951
        %v1225 = vpop.f32.mrb[0].mxu0
        %v1226 = vadd.f32 0.0, %v1225
        %v1227 = vpop.f32.mrb[0].mxu0
        %v1228 = vadd.f32 0.0, %v1227
        %1229 = vdwg.mxu0
        %1230 = vmatprep.subr.mxu0 %v1098
        %1231 = vmatpush1.msra.mxu0 %v1097
        %1232 = vmatprep.subr.mxu0 %v1106
        %1233 = vmatpush1.msra.mxu0 %v1105
        %1234 = vmatprep.subr.mxu0 %v1114
        %1235 = vmatpush1.msra.mxu0 %v1113
        %1236 = vmatprep.subr.mxu0 %v1122
        %1237 = vmatpush1.msra.mxu0 %v1121
        %1238 = vmatprep.subr.mxu0 %v1130
        %1239 = vmatpush1.msra.mxu0 %v1129
        %1240 = vmatprep.subr.mxu0 %v1138
        %1241 = vmatpush1.msra.mxu0 %v1137
        %1242 = vmatprep.subr.mxu0 %v1146
        %1243 = vmatpush1.msra.mxu0 %v1145
        %1244 = vmatprep.subr.mxu0 %v1154
        %1245 = vmatpush1.msra.mxu0 %v1153
        %1246 = vmatprep.subr.mxu0 0.0
        %1247 = vmatpush1.msra.mxu0 0.0
        %1248 = vmatprep.subr.mxu0 0.0
        %1249 = vmatpush1.msra.mxu0 0.0
        %1250 = vmatprep.subr.mxu0 0.0
        %1251 = vmatpush1.msra.mxu0 0.0
        %1252 = vmatprep.subr.mxu0 0.0
        %1253 = vmatpush1.msra.mxu0 0.0
        %1254 = vmatprep.subr.mxu0 0.0
        %1255 = vmatpush1.msra.mxu0 0.0
        %1256 = vmatprep.subr.mxu0 0.0
        %1257 = vmatpush1.msra.mxu0 0.0
        %1258 = vmatprep.subr.mxu0 0.0
        %1259 = vmatpush1.msra.mxu0 0.0
        %1260 = vmatprep.subr.mxu0 0.0
        %1261 = vmatpush1.msra.mxu0 0.0
        %1262 = vmatprep.subr.mxu0 0.0
        %1263 = vmatpush1.msra.mxu0 0.0
        %1264 = vmatprep.subr.mxu0 0.0
        %1265 = vmatpush1.msra.mxu0 0.0
        %1266 = vmatprep.subr.mxu0 0.0
        %1267 = vmatpush1.msra.mxu0 0.0
        %1268 = vmatprep.subr.mxu0 0.0
        %1269 = vmatpush1.msra.mxu0 0.0
        %1270 = vmatprep.subr.mxu0 0.0
        %1271 = vmatpush1.msra.mxu0 0.0
        %1272 = vmatprep.subr.mxu0 0.0
        %1273 = vmatpush1.msra.mxu0 0.0
        %1274 = vmatprep.subr.mxu0 0.0
        %1275 = vmatpush1.msra.mxu0 0.0
        %1276 = vmatprep.subr.mxu0 0.0
        %1277 = vmatpush1.msra.mxu0 0.0
        %1278 = vmatprep.subr.mxu0 0.0
        %1279 = vmatpush1.msra.mxu0 0.0
        %1280 = vmatprep.subr.mxu0 0.0
        %1281 = vmatpush1.msra.mxu0 0.0
        %1282 = vmatprep.subr.mxu0 0.0
        %1283 = vmatpush1.msra.mxu0 0.0
        %1284 = vmatprep.subr.mxu0 0.0
        %1285 = vmatpush1.msra.mxu0 0.0
        %1286 = vmatprep.subr.mxu0 0.0
        %1287 = vmatpush1.msra.mxu0 0.0
        %1288 = vmatprep.subr.mxu0 0.0
        %1289 = vmatpush1.msra.mxu0 0.0
        %1290 = vmatprep.subr.mxu0 0.0
        %1291 = vmatpush1.msra.mxu0 0.0
        %1292 = vmatprep.subr.mxu0 0.0
        %1293 = vmatpush1.msra.mxu0 0.0
        %1294 = vmatprep.mubr.f32.mxu0 0.0
        %1295 = vmatmul.mubr.f32.gmra.mrb[0].mxu0 %v951
        %v1296 = vpop.f32.mrb[0].mxu0
        %v1297 = vadd.f32 0.0, %v1296
        %v1298 = vpop.f32.mrb[0].mxu0
        %v1299 = vadd.f32 0.0, %v1298
        %1300 = vdwg.mxu0
        %1301 = vmatprep.subr.mxu0 %v1100
        %1302 = vmatpush1.msra.mxu0 %v1099
        %1303 = vmatprep.subr.mxu0 %v1108
        %1304 = vmatpush1.msra.mxu0 %v1107
        %1305 = vmatprep.subr.mxu0 %v1116
        %1306 = vmatpush1.msra.mxu0 %v1115
        %1307 = vmatprep.subr.mxu0 %v1124
        %1308 = vmatpush1.msra.mxu0 %v1123
        %1309 = vmatprep.subr.mxu0 %v1132
        %1310 = vmatpush1.msra.mxu0 %v1131
        %1311 = vmatprep.subr.mxu0 %v1140
        %1312 = vmatpush1.msra.mxu0 %v1139
        %1313 = vmatprep.subr.mxu0 %v1148
        %1314 = vmatpush1.msra.mxu0 %v1147
        %1315 = vmatprep.subr.mxu0 %v1156
        %1316 = vmatpush1.msra.mxu0 %v1155
        %1317 = vmatprep.subr.mxu0 0.0
        %1318 = vmatpush1.msra.mxu0 0.0
        %1319 = vmatprep.subr.mxu0 0.0
        %1320 = vmatpush1.msra.mxu0 0.0
        %1321 = vmatprep.subr.mxu0 0.0
        %1322 = vmatpush1.msra.mxu0 0.0
        %1323 = vmatprep.subr.mxu0 0.0
        %1324 = vmatpush1.msra.mxu0 0.0
        %1325 = vmatprep.subr.mxu0 0.0
        %1326 = vmatpush1.msra.mxu0 0.0
        %1327 = vmatprep.subr.mxu0 0.0
        %1328 = vmatpush1.msra.mxu0 0.0
        %1329 = vmatprep.subr.mxu0 0.0
        %1330 = vmatpush1.msra.mxu0 0.0
        %1331 = vmatprep.subr.mxu0 0.0
        %1332 = vmatpush1.msra.mxu0 0.0
        %1333 = vmatprep.subr.mxu0 0.0
        %1334 = vmatpush1.msra.mxu0 0.0
        %1335 = vmatprep.subr.mxu0 0.0
        %1336 = vmatpush1.msra.mxu0 0.0
        %1337 = vmatprep.subr.mxu0 0.0
        %1338 = vmatpush1.msra.mxu0 0.0
        %1339 = vmatprep.subr.mxu0 0.0
        %1340 = vmatpush1.msra.mxu0 0.0
        %1341 = vmatprep.subr.mxu0 0.0
        %1342 = vmatpush1.msra.mxu0 0.0
        %1343 = vmatprep.subr.mxu0 0.0
        %1344 = vmatpush1.msra.mxu0 0.0
        %1345 = vmatprep.subr.mxu0 0.0
        %1346 = vmatpush1.msra.mxu0 0.0
        %1347 = vmatprep.subr.mxu0 0.0
        %1348 = vmatpush1.msra.mxu0 0.0
        %1349 = vmatprep.subr.mxu0 0.0
        %1350 = vmatpush1.msra.mxu0 0.0
        %1351 = vmatprep.subr.mxu0 0.0
        %1352 = vmatpush1.msra.mxu0 0.0
        %1353 = vmatprep.subr.mxu0 0.0
        %1354 = vmatpush1.msra.mxu0 0.0
        %1355 = vmatprep.subr.mxu0 0.0
        %1356 = vmatpush1.msra.mxu0 0.0
        %1357 = vmatprep.subr.mxu0 0.0
        %1358 = vmatpush1.msra.mxu0 0.0
        %1359 = vmatprep.subr.mxu0 0.0
        %1360 = vmatpush1.msra.mxu0 0.0
        %1361 = vmatprep.subr.mxu0 0.0
        %1362 = vmatpush1.msra.mxu0 0.0
        %1363 = vmatprep.subr.mxu0 0.0
        %1364 = vmatpush1.msra.mxu0 0.0
        %1365 = vmatprep.mubr.f32.mxu0 0.0
        %1366 = vmatmul.mubr.f32.gmra.mrb[0].mxu0 %v951
        %v1367 = vpop.f32.mrb[0].mxu0
        %v1368 = vadd.f32 0.0, %v1367
        %v1369 = vpop.f32.mrb[0].mxu0
        %v1370 = vadd.f32 0.0, %v1369
        %1371 = vdwg.mxu0
        %1372 = vmatprep.subr.mxu0 %v1102
        %1373 = vmatpush1.msra.mxu0 %v1101
        %1374 = vmatprep.subr.mxu0 %v1110
        %1375 = vmatpush1.msra.mxu0 %v1109
        %1376 = vmatprep.subr.mxu0 %v1118
        %1377 = vmatpush1.msra.mxu0 %v1117
        %1378 = vmatprep.subr.mxu0 %v1126
        %1379 = vmatpush1.msra.mxu0 %v1125
        %1380 = vmatprep.subr.mxu0 %v1134
        %1381 = vmatpush1.msra.mxu0 %v1133
        %1382 = vmatprep.subr.mxu0 %v1142
        %1383 = vmatpush1.msra.mxu0 %v1141
        %1384 = vmatprep.subr.mxu0 %v1150
        %1385 = vmatpush1.msra.mxu0 %v1149
        %1386 = vmatprep.subr.mxu0 %v1158
        %1387 = vmatpush1.msra.mxu0 %v1157
        %1388 = vmatprep.subr.mxu0 0.0
        %1389 = vmatpush1.msra.mxu0 0.0
        %1390 = vmatprep.subr.mxu0 0.0
        %1391 = vmatpush1.msra.mxu0 0.0
        %1392 = vmatprep.subr.mxu0 0.0
        %1393 = vmatpush1.msra.mxu0 0.0
        %1394 = vmatprep.subr.mxu0 0.0
        %1395 = vmatpush1.msra.mxu0 0.0
        %1396 = vmatprep.subr.mxu0 0.0
        %1397 = vmatpush1.msra.mxu0 0.0
        %1398 = vmatprep.subr.mxu0 0.0
        %1399 = vmatpush1.msra.mxu0 0.0
        %1400 = vmatprep.subr.mxu0 0.0
        %1401 = vmatpush1.msra.mxu0 0.0
        %1402 = vmatprep.subr.mxu0 0.0
        %1403 = vmatpush1.msra.mxu0 0.0
        %1404 = vmatprep.subr.mxu0 0.0
        %1405 = vmatpush1.msra.mxu0 0.0
        %1406 = vmatprep.subr.mxu0 0.0
        %1407 = vmatpush1.msra.mxu0 0.0
        %1408 = vmatprep.subr.mxu0 0.0
        %1409 = vmatpush1.msra.mxu0 0.0
        %1410 = vmatprep.subr.mxu0 0.0
        %1411 = vmatpush1.msra.mxu0 0.0
        %1412 = vmatprep.subr.mxu0 0.0
        %1413 = vmatpush1.msra.mxu0 0.0
        %1414 = vmatprep.subr.mxu0 0.0
        %1415 = vmatpush1.msra.mxu0 0.0
        %1416 = vmatprep.subr.mxu0 0.0
        %1417 = vmatpush1.msra.mxu0 0.0
        %1418 = vmatprep.subr.mxu0 0.0
        %1419 = vmatpush1.msra.mxu0 0.0
        %1420 = vmatprep.subr.mxu0 0.0
        %1421 = vmatpush1.msra.mxu0 0.0
        %1422 = vmatprep.subr.mxu0 0.0
        %1423 = vmatpush1.msra.mxu0 0.0
        %1424 = vmatprep.subr.mxu0 0.0
        %1425 = vmatpush1.msra.mxu0 0.0
        %1426 = vmatprep.subr.mxu0 0.0
        %1427 = vmatpush1.msra.mxu0 0.0
        %1428 = vmatprep.subr.mxu0 0.0
        %1429 = vmatpush1.msra.mxu0 0.0
        %1430 = vmatprep.subr.mxu0 0.0
        %1431 = vmatpush1.msra.mxu0 0.0
        %1432 = vmatprep.subr.mxu0 0.0
        %1433 = vmatpush1.msra.mxu0 0.0
        %1434 = vmatprep.subr.mxu0 0.0
        %1435 = vmatpush1.msra.mxu0 0.0
        %1436 = vmatprep.mubr.f32.mxu0 0.0
        %1437 = vmatmul.mubr.f32.gmra.mrb[0].mxu0 %v951
        %v1438 = vpop.f32.mrb[0].mxu0
        %v1439 = vadd.f32 0.0, %v1438
        %v1440 = vpop.f32.mrb[0].mxu0
        %v1441 = vadd.f32 0.0, %v1440
        %1442 = vdwg.mxu0
        %v1443 = vlaneseq
        %v1444 = vshrl.u32 %v1443, 7
        %v1445 = vlaneseq
        %v1446 = vand.u32 %v1445, 127
        %v1447 = vstv %s914
        %vm1448 = vcmp.lt.s32.totalorder %v1444, %v1447
        %vm1449 = vcmp.lt.s32.totalorder %v1446, %v1447
        %vm1450 = vmand %vm1448, %vm1449
        %v1452 = vsel %vm949, %v1020, 0
        %v1455 = vsel %vm949, %v1226, 0
        %1457 = vmatprep.subr.mxu0 0.0
        %1458 = vmatpush1.xpose.msra.mxu0 %v1455
        %1459 = vmatprep.subr.mxu0 0.0
        %1460 = vmatpush1.xpose.msra.mxu0 0.0
        %1461 = vmatprep.subr.mxu0 0.0
        %1462 = vmatpush1.xpose.msra.mxu0 0.0
        %1463 = vmatprep.subr.mxu0 0.0
        %1464 = vmatpush1.xpose.msra.mxu0 0.0
        %1465 = vmatprep.subr.mxu0 0.0
        %1466 = vmatpush1.xpose.msra.mxu0 0.0
        %1467 = vmatprep.subr.mxu0 0.0
        %1468 = vmatpush1.xpose.msra.mxu0 0.0
        %1469 = vmatprep.subr.mxu0 0.0
        %1470 = vmatpush1.xpose.msra.mxu0 0.0
        %1471 = vmatprep.subr.mxu0 0.0
        %1472 = vmatpush1.xpose.msra.mxu0 0.0
        %1473 = vmatprep.subr.mxu0 0.0
        %1474 = vmatpush1.xpose.msra.mxu0 0.0
        %1475 = vmatprep.subr.mxu0 0.0
        %1476 = vmatpush1.xpose.msra.mxu0 0.0
        %1477 = vmatprep.subr.mxu0 0.0
        %1478 = vmatpush1.xpose.msra.mxu0 0.0
        %1479 = vmatprep.subr.mxu0 0.0
        %1480 = vmatpush1.xpose.msra.mxu0 0.0
        %1481 = vmatprep.subr.mxu0 0.0
        %1482 = vmatpush1.xpose.msra.mxu0 0.0
        %1483 = vmatprep.subr.mxu0 0.0
        %1484 = vmatpush1.xpose.msra.mxu0 0.0
        %1485 = vmatprep.subr.mxu0 0.0
        %1486 = vmatpush1.xpose.msra.mxu0 0.0
        %1487 = vmatprep.subr.mxu0 0.0
        %1488 = vmatpush1.xpose.msra.mxu0 0.0
        %1489 = vmatprep.subr.mxu0 0.0
        %1490 = vmatpush1.xpose.msra.mxu0 0.0
        %1491 = vmatprep.subr.mxu0 0.0
        %1492 = vmatpush1.xpose.msra.mxu0 0.0
        %1493 = vmatprep.subr.mxu0 0.0
        %1494 = vmatpush1.xpose.msra.mxu0 0.0
        %1495 = vmatprep.subr.mxu0 0.0
        %1496 = vmatpush1.xpose.msra.mxu0 0.0
        %1497 = vmatprep.subr.mxu0 0.0
        %1498 = vmatpush1.xpose.msra.mxu0 0.0
        %1499 = vmatprep.subr.mxu0 0.0
        %1500 = vmatpush1.xpose.msra.mxu0 0.0
        %1501 = vmatprep.subr.mxu0 0.0
        %1502 = vmatpush1.xpose.msra.mxu0 0.0
        %1503 = vmatprep.subr.mxu0 0.0
        %1504 = vmatpush1.xpose.msra.mxu0 0.0
        %1505 = vmatprep.subr.mxu0 0.0
        %1506 = vmatpush1.xpose.msra.mxu0 0.0
        %1507 = vmatprep.subr.mxu0 0.0
        %1508 = vmatpush1.xpose.msra.mxu0 0.0
        %1509 = vmatprep.subr.mxu0 0.0
        %1510 = vmatpush1.xpose.msra.mxu0 0.0
        %1511 = vmatprep.subr.mxu0 0.0
        %1512 = vmatpush1.xpose.msra.mxu0 0.0
        %1513 = vmatprep.subr.mxu0 0.0
        %1514 = vmatpush1.xpose.msra.mxu0 0.0
        %1515 = vmatprep.subr.mxu0 0.0
        %1516 = vmatpush1.xpose.msra.mxu0 0.0
        %1517 = vmatprep.subr.mxu0 0.0
        %1518 = vmatpush1.xpose.msra.mxu0 0.0
        %1519 = vmatprep.subr.mxu0 0.0
        %1520 = vmatpush1.xpose.msra.mxu0 0.0
        %1521 = vmatprep.mubr.f32.mxu0 0.0
        %1522 = vmatmul.mubr.f32.gmra.mrb[0].mxu0 %v1452
        %v1523 = vpop.f32.mrb[0].mxu0
        %v1524 = vadd.f32 0.0, %v1523
        %v1525 = vpop.f32.mrb[0].mxu0
        %1526 = vdwg.mxu0
        %v1527 = vmul.f32 %v1524, 0.125
        %v1528 = vsel %vm1450, %v1527, -1e+09
        %vm1529 = vcmask 64512
        %v1530 = vsel %vm1529, %v1528, -inf
        %1531 = vmax.xlane.f32.xlu0 %v1530
        %v1532 = vpop.xlane.xlu0 %1531
        %v1533 = vsub.f32 %v1528, %v1532
        %v1534 = vmul.f32 %v1533, 1.442695
        %v1535 = vpow.pop %v1534
        %v1536 = vsel %vm1529, %v1535, 0.0
        %1537 = vadd.xlane.f32.xlu0 %v1536
        %v1538 = vpop.xlane.xlu0 %1537
        %v1539 = vrcp.pop %v1538
        %v1540 = vmul.f32 %v1535, %v1539
        %v1542 = vsel %vm1529, %v1540, 0
        %1544 = vmatprep.subr.mxu0 0.0
        %1545 = vmatpush1.msra.mxu0 %v1368
        %1546 = vmatprep.subr.mxu0 0.0
        %1547 = vmatpush1.msra.mxu0 0.0
        %1548 = vmatprep.subr.mxu0 0.0
        %1549 = vmatpush1.msra.mxu0 0.0
        %1550 = vmatprep.subr.mxu0 0.0
        %1551 = vmatpush1.msra.mxu0 0.0
        %1552 = vmatprep.subr.mxu0 0.0
        %1553 = vmatpush1.msra.mxu0 0.0
        %1554 = vmatprep.subr.mxu0 0.0
        %1555 = vmatpush1.msra.mxu0 0.0
        %1556 = vmatprep.subr.mxu0 0.0
        %1557 = vmatpush1.msra.mxu0 0.0
        %1558 = vmatprep.subr.mxu0 0.0
        %1559 = vmatpush1.msra.mxu0 0.0
        %1560 = vmatprep.subr.mxu0 0.0
        %1561 = vmatpush1.msra.mxu0 0.0
        %1562 = vmatprep.subr.mxu0 0.0
        %1563 = vmatpush1.msra.mxu0 0.0
        %1564 = vmatprep.subr.mxu0 0.0
        %1565 = vmatpush1.msra.mxu0 0.0
        %1566 = vmatprep.subr.mxu0 0.0
        %1567 = vmatpush1.msra.mxu0 0.0
        %1568 = vmatprep.subr.mxu0 0.0
        %1569 = vmatpush1.msra.mxu0 0.0
        %1570 = vmatprep.subr.mxu0 0.0
        %1571 = vmatpush1.msra.mxu0 0.0
        %1572 = vmatprep.subr.mxu0 0.0
        %1573 = vmatpush1.msra.mxu0 0.0
        %1574 = vmatprep.subr.mxu0 0.0
        %1575 = vmatpush1.msra.mxu0 0.0
        %1576 = vmatprep.subr.mxu0 0.0
        %1577 = vmatpush1.msra.mxu0 0.0
        %1578 = vmatprep.subr.mxu0 0.0
        %1579 = vmatpush1.msra.mxu0 0.0
        %1580 = vmatprep.subr.mxu0 0.0
        %1581 = vmatpush1.msra.mxu0 0.0
        %1582 = vmatprep.subr.mxu0 0.0
        %1583 = vmatpush1.msra.mxu0 0.0
        %1584 = vmatprep.subr.mxu0 0.0
        %1585 = vmatpush1.msra.mxu0 0.0
        %1586 = vmatprep.subr.mxu0 0.0
        %1587 = vmatpush1.msra.mxu0 0.0
        %1588 = vmatprep.subr.mxu0 0.0
        %1589 = vmatpush1.msra.mxu0 0.0
        %1590 = vmatprep.subr.mxu0 0.0
        %1591 = vmatpush1.msra.mxu0 0.0
        %1592 = vmatprep.subr.mxu0 0.0
        %1593 = vmatpush1.msra.mxu0 0.0
        %1594 = vmatprep.subr.mxu0 0.0
        %1595 = vmatpush1.msra.mxu0 0.0
        %1596 = vmatprep.subr.mxu0 0.0
        %1597 = vmatpush1.msra.mxu0 0.0
        %1598 = vmatprep.subr.mxu0 0.0
        %1599 = vmatpush1.msra.mxu0 0.0
        %1600 = vmatprep.subr.mxu0 0.0
        %1601 = vmatpush1.msra.mxu0 0.0
        %1602 = vmatprep.subr.mxu0 0.0
        %1603 = vmatpush1.msra.mxu0 0.0
        %1604 = vmatprep.subr.mxu0 0.0
        %1605 = vmatpush1.msra.mxu0 0.0
        %1606 = vmatprep.subr.mxu0 0.0
        %1607 = vmatpush1.msra.mxu0 0.0
        %1608 = vmatprep.mubr.f32.mxu0 0.0
        %1609 = vmatmul.mubr.f32.gmra.mrb[0].mxu0 %v1542
        %v1610 = vpop.f32.mrb[0].mxu0
        %v1611 = vadd.f32 0.0, %v1610
        %v1612 = vpop.f32.mrb[0].mxu0
        %1613 = vdwg.mxu0
        %1614 = vrot.lane.b32.xlu0 %v1020, 64
        %v1615 = vpop.permute.xlu0 %1614
        %1616 = vrot.lane.b32.xlu0 %v1226, 64
        %v1617 = vpop.permute.xlu0 %1616
        %v1618 = vsel %vm949, %v1615, 0
        %v1620 = vsel %vm949, %v1617, 0
        %1622 = vmatprep.subr.mxu0 0.0
        %1623 = vmatpush1.xpose.msra.mxu0 %v1620
        %1624 = vmatprep.subr.mxu0 0.0
        %1625 = vmatpush1.xpose.msra.mxu0 0.0
        %1626 = vmatprep.subr.mxu0 0.0
        %1627 = vmatpush1.xpose.msra.mxu0 0.0
        %1628 = vmatprep.subr.mxu0 0.0
        %1629 = vmatpush1.xpose.msra.mxu0 0.0
        %1630 = vmatprep.subr.mxu0 0.0
        %1631 = vmatpush1.xpose.msra.mxu0 0.0
        %1632 = vmatprep.subr.mxu0 0.0
        %1633 = vmatpush1.xpose.msra.mxu0 0.0
        %1634 = vmatprep.subr.mxu0 0.0
        %1635 = vmatpush1.xpose.msra.mxu0 0.0
        %1636 = vmatprep.subr.mxu0 0.0
        %1637 = vmatpush1.xpose.msra.mxu0 0.0
        %1638 = vmatprep.subr.mxu0 0.0
        %1639 = vmatpush1.xpose.msra.mxu0 0.0
        %1640 = vmatprep.subr.mxu0 0.0
        %1641 = vmatpush1.xpose.msra.mxu0 0.0
        %1642 = vmatprep.subr.mxu0 0.0
        %1643 = vmatpush1.xpose.msra.mxu0 0.0
        %1644 = vmatprep.subr.mxu0 0.0
        %1645 = vmatpush1.xpose.msra.mxu0 0.0
        %1646 = vmatprep.subr.mxu0 0.0
        %1647 = vmatpush1.xpose.msra.mxu0 0.0
        %1648 = vmatprep.subr.mxu0 0.0
        %1649 = vmatpush1.xpose.msra.mxu0 0.0
        %1650 = vmatprep.subr.mxu0 0.0
        %1651 = vmatpush1.xpose.msra.mxu0 0.0
        %1652 = vmatprep.subr.mxu0 0.0
        %1653 = vmatpush1.xpose.msra.mxu0 0.0
        %1654 = vmatprep.subr.mxu0 0.0
        %1655 = vmatpush1.xpose.msra.mxu0 0.0
        %1656 = vmatprep.subr.mxu0 0.0
        %1657 = vmatpush1.xpose.msra.mxu0 0.0
        %1658 = vmatprep.subr.mxu0 0.0
        %1659 = vmatpush1.xpose.msra.mxu0 0.0
        %1660 = vmatprep.subr.mxu0 0.0
        %1661 = vmatpush1.xpose.msra.mxu0 0.0
        %1662 = vmatprep.subr.mxu0 0.0
        %1663 = vmatpush1.xpose.msra.mxu0 0.0
        %1664 = vmatprep.subr.mxu0 0.0
        %1665 = vmatpush1.xpose.msra.mxu0 0.0
        %1666 = vmatprep.subr.mxu0 0.0
        %1667 = vmatpush1.xpose.msra.mxu0 0.0
        %1668 = vmatprep.subr.mxu0 0.0
        %1669 = vmatpush1.xpose.msra.mxu0 0.0
        %1670 = vmatprep.subr.mxu0 0.0
        %1671 = vmatpush1.xpose.msra.mxu0 0.0
        %1672 = vmatprep.subr.mxu0 0.0
        %1673 = vmatpush1.xpose.msra.mxu0 0.0
        %1674 = vmatprep.subr.mxu0 0.0
        %1675 = vmatpush1.xpose.msra.mxu0 0.0
        %1676 = vmatprep.subr.mxu0 0.0
        %1677 = vmatpush1.xpose.msra.mxu0 0.0
        %1678 = vmatprep.subr.mxu0 0.0
        %1679 = vmatpush1.xpose.msra.mxu0 0.0
        %1680 = vmatprep.subr.mxu0 0.0
        %1681 = vmatpush1.xpose.msra.mxu0 0.0
        %1682 = vmatprep.subr.mxu0 0.0
        %1683 = vmatpush1.xpose.msra.mxu0 0.0
        %1684 = vmatprep.subr.mxu0 0.0
        %1685 = vmatpush1.xpose.msra.mxu0 0.0
        %1686 = vmatprep.mubr.f32.mxu0 0.0
        %1687 = vmatmul.mubr.f32.gmra.mrb[0].mxu0 %v1618
        %v1688 = vpop.f32.mrb[0].mxu0
        %v1689 = vadd.f32 0.0, %v1688
        %v1690 = vpop.f32.mrb[0].mxu0
        %1691 = vdwg.mxu0
        %v1692 = vmul.f32 %v1689, 0.125
        %v1693 = vsel %vm1450, %v1692, -1e+09
        %v1694 = vsel %vm1529, %v1693, -inf
        %1695 = vmax.xlane.f32.xlu0 %v1694
        %v1696 = vpop.xlane.xlu0 %1695
        %v1697 = vsub.f32 %v1693, %v1696
        %v1698 = vmul.f32 %v1697, 1.442695
        %v1699 = vpow.pop %v1698
        %v1700 = vsel %vm1529, %v1699, 0.0
        %1701 = vadd.xlane.f32.xlu0 %v1700
        %v1702 = vpop.xlane.xlu0 %1701
        %v1703 = vrcp.pop %v1702
        %v1704 = vmul.f32 %v1699, %v1703
        %1706 = vrot.lane.b32.xlu0 %v1368, 64
        %v1707 = vpop.permute.xlu0 %1706
        %v1710 = vsel %vm1529, %v1704, 0
        %1712 = vmatprep.subr.mxu0 0.0
        %1713 = vmatpush1.msra.mxu0 %v1707
        %1714 = vmatprep.subr.mxu0 0.0
        %1715 = vmatpush1.msra.mxu0 0.0
        %1716 = vmatprep.subr.mxu0 0.0
        %1717 = vmatpush1.msra.mxu0 0.0
        %1718 = vmatprep.subr.mxu0 0.0
        %1719 = vmatpush1.msra.mxu0 0.0
        %1720 = vmatprep.subr.mxu0 0.0
        %1721 = vmatpush1.msra.mxu0 0.0
        %1722 = vmatprep.subr.mxu0 0.0
        %1723 = vmatpush1.msra.mxu0 0.0
        %1724 = vmatprep.subr.mxu0 0.0
        %1725 = vmatpush1.msra.mxu0 0.0
        %1726 = vmatprep.subr.mxu0 0.0
        %1727 = vmatpush1.msra.mxu0 0.0
        %1728 = vmatprep.subr.mxu0 0.0
        %1729 = vmatpush1.msra.mxu0 0.0
        %1730 = vmatprep.subr.mxu0 0.0
        %1731 = vmatpush1.msra.mxu0 0.0
        %1732 = vmatprep.subr.mxu0 0.0
        %1733 = vmatpush1.msra.mxu0 0.0
        %1734 = vmatprep.subr.mxu0 0.0
        %1735 = vmatpush1.msra.mxu0 0.0
        %1736 = vmatprep.subr.mxu0 0.0
        %1737 = vmatpush1.msra.mxu0 0.0
        %1738 = vmatprep.subr.mxu0 0.0
        %1739 = vmatpush1.msra.mxu0 0.0
        %1740 = vmatprep.subr.mxu0 0.0
        %1741 = vmatpush1.msra.mxu0 0.0
        %1742 = vmatprep.subr.mxu0 0.0
        %1743 = vmatpush1.msra.mxu0 0.0
        %1744 = vmatprep.subr.mxu0 0.0
        %1745 = vmatpush1.msra.mxu0 0.0
        %1746 = vmatprep.subr.mxu0 0.0
        %1747 = vmatpush1.msra.mxu0 0.0
        %1748 = vmatprep.subr.mxu0 0.0
        %1749 = vmatpush1.msra.mxu0 0.0
        %1750 = vmatprep.subr.mxu0 0.0
        %1751 = vmatpush1.msra.mxu0 0.0
        %1752 = vmatprep.subr.mxu0 0.0
        %1753 = vmatpush1.msra.mxu0 0.0
        %1754 = vmatprep.subr.mxu0 0.0
        %1755 = vmatpush1.msra.mxu0 0.0
        %1756 = vmatprep.subr.mxu0 0.0
        %1757 = vmatpush1.msra.mxu0 0.0
        %1758 = vmatprep.subr.mxu0 0.0
        %1759 = vmatpush1.msra.mxu0 0.0
        %1760 = vmatprep.subr.mxu0 0.0
        %1761 = vmatpush1.msra.mxu0 0.0
        %1762 = vmatprep.subr.mxu0 0.0
        %1763 = vmatpush1.msra.mxu0 0.0
        %1764 = vmatprep.subr.mxu0 0.0
        %1765 = vmatpush1.msra.mxu0 0.0
        %1766 = vmatprep.subr.mxu0 0.0
        %1767 = vmatpush1.msra.mxu0 0.0
        %1768 = vmatprep.subr.mxu0 0.0
        %1769 = vmatpush1.msra.mxu0 0.0
        %1770 = vmatprep.subr.mxu0 0.0
        %1771 = vmatpush1.msra.mxu0 0.0
        %1772 = vmatprep.subr.mxu0 0.0
        %1773 = vmatpush1.msra.mxu0 0.0
        %1774 = vmatprep.subr.mxu0 0.0
        %1775 = vmatpush1.msra.mxu0 0.0
        %1776 = vmatprep.mubr.f32.mxu0 0.0
        %1777 = vmatmul.mubr.f32.gmra.mrb[0].mxu0 %v1710
        %v1778 = vpop.f32.mrb[0].mxu0
        %v1779 = vadd.f32 0.0, %v1778
        %v1780 = vpop.f32.mrb[0].mxu0
        %1781 = vdwg.mxu0
        %v1783 = vsel %vm949, %v1022, 0
        %v1786 = vsel %vm949, %v1228, 0
        %1788 = vmatprep.subr.mxu0 0.0
        %1789 = vmatpush1.xpose.msra.mxu0 %v1786
        %1790 = vmatprep.subr.mxu0 0.0
        %1791 = vmatpush1.xpose.msra.mxu0 0.0
        %1792 = vmatprep.subr.mxu0 0.0
        %1793 = vmatpush1.xpose.msra.mxu0 0.0
        %1794 = vmatprep.subr.mxu0 0.0
        %1795 = vmatpush1.xpose.msra.mxu0 0.0
        %1796 = vmatprep.subr.mxu0 0.0
        %1797 = vmatpush1.xpose.msra.mxu0 0.0
        %1798 = vmatprep.subr.mxu0 0.0
        %1799 = vmatpush1.xpose.msra.mxu0 0.0
        %1800 = vmatprep.subr.mxu0 0.0
        %1801 = vmatpush1.xpose.msra.mxu0 0.0
        %1802 = vmatprep.subr.mxu0 0.0
        %1803 = vmatpush1.xpose.msra.mxu0 0.0
        %1804 = vmatprep.subr.mxu0 0.0
        %1805 = vmatpush1.xpose.msra.mxu0 0.0
        %1806 = vmatprep.subr.mxu0 0.0
        %1807 = vmatpush1.xpose.msra.mxu0 0.0
        %1808 = vmatprep.subr.mxu0 0.0
        %1809 = vmatpush1.xpose.msra.mxu0 0.0
        %1810 = vmatprep.subr.mxu0 0.0
        %1811 = vmatpush1.xpose.msra.mxu0 0.0
        %1812 = vmatprep.subr.mxu0 0.0
        %1813 = vmatpush1.xpose.msra.mxu0 0.0
        %1814 = vmatprep.subr.mxu0 0.0
        %1815 = vmatpush1.xpose.msra.mxu0 0.0
        %1816 = vmatprep.subr.mxu0 0.0
        %1817 = vmatpush1.xpose.msra.mxu0 0.0
        %1818 = vmatprep.subr.mxu0 0.0
        %1819 = vmatpush1.xpose.msra.mxu0 0.0
        %1820 = vmatprep.subr.mxu0 0.0
        %1821 = vmatpush1.xpose.msra.mxu0 0.0
        %1822 = vmatprep.subr.mxu0 0.0
        %1823 = vmatpush1.xpose.msra.mxu0 0.0
        %1824 = vmatprep.subr.mxu0 0.0
        %1825 = vmatpush1.xpose.msra.mxu0 0.0
        %1826 = vmatprep.subr.mxu0 0.0
        %1827 = vmatpush1.xpose.msra.mxu0 0.0
        %1828 = vmatprep.subr.mxu0 0.0
        %1829 = vmatpush1.xpose.msra.mxu0 0.0
        %1830 = vmatprep.subr.mxu0 0.0
        %1831 = vmatpush1.xpose.msra.mxu0 0.0
        %1832 = vmatprep.subr.mxu0 0.0
        %1833 = vmatpush1.xpose.msra.mxu0 0.0
        %1834 = vmatprep.subr.mxu0 0.0
        %1835 = vmatpush1.xpose.msra.mxu0 0.0
        %1836 = vmatprep.subr.mxu0 0.0
        %1837 = vmatpush1.xpose.msra.mxu0 0.0
        %1838 = vmatprep.subr.mxu0 0.0
        %1839 = vmatpush1.xpose.msra.mxu0 0.0
        %1840 = vmatprep.subr.mxu0 0.0
        %1841 = vmatpush1.xpose.msra.mxu0 0.0
        %1842 = vmatprep.subr.mxu0 0.0
        %1843 = vmatpush1.xpose.msra.mxu0 0.0
        %1844 = vmatprep.subr.mxu0 0.0
        %1845 = vmatpush1.xpose.msra.mxu0 0.0
        %1846 = vmatprep.subr.mxu0 0.0
        %1847 = vmatpush1.xpose.msra.mxu0 0.0
        %1848 = vmatprep.subr.mxu0 0.0
        %1849 = vmatpush1.xpose.msra.mxu0 0.0
        %1850 = vmatprep.subr.mxu0 0.0
        %1851 = vmatpush1.xpose.msra.mxu0 0.0
        %1852 = vmatprep.mubr.f32.mxu0 0.0
        %1853 = vmatmul.mubr.f32.gmra.mrb[0].mxu0 %v1783
        %v1854 = vpop.f32.mrb[0].mxu0
        %v1855 = vadd.f32 0.0, %v1854
        %v1856 = vpop.f32.mrb[0].mxu0
        %1857 = vdwg.mxu0
        %v1858 = vmul.f32 %v1855, 0.125
        %v1859 = vsel %vm1450, %v1858, -1e+09
        %v1860 = vsel %vm1529, %v1859, -inf
        %1861 = vmax.xlane.f32.xlu0 %v1860
        %v1862 = vpop.xlane.xlu0 %1861
        %v1863 = vsub.f32 %v1859, %v1862
        %v1864 = vmul.f32 %v1863, 1.442695
        %v1865 = vpow.pop %v1864
        %v1866 = vsel %vm1529, %v1865, 0.0
        %1867 = vadd.xlane.f32.xlu0 %v1866
        %v1868 = vpop.xlane.xlu0 %1867
        %v1869 = vrcp.pop %v1868
        %v1870 = vmul.f32 %v1865, %v1869
        %v1872 = vsel %vm1529, %v1870, 0
        %1874 = vmatprep.subr.mxu0 0.0
        %1875 = vmatpush1.msra.mxu0 %v1370
        %1876 = vmatprep.subr.mxu0 0.0
        %1877 = vmatpush1.msra.mxu0 0.0
        %1878 = vmatprep.subr.mxu0 0.0
        %1879 = vmatpush1.msra.mxu0 0.0
        %1880 = vmatprep.subr.mxu0 0.0
        %1881 = vmatpush1.msra.mxu0 0.0
        %1882 = vmatprep.subr.mxu0 0.0
        %1883 = vmatpush1.msra.mxu0 0.0
        %1884 = vmatprep.subr.mxu0 0.0
        %1885 = vmatpush1.msra.mxu0 0.0
        %1886 = vmatprep.subr.mxu0 0.0
        %1887 = vmatpush1.msra.mxu0 0.0
        %1888 = vmatprep.subr.mxu0 0.0
        %1889 = vmatpush1.msra.mxu0 0.0
        %1890 = vmatprep.subr.mxu0 0.0
        %1891 = vmatpush1.msra.mxu0 0.0
        %1892 = vmatprep.subr.mxu0 0.0
        %1893 = vmatpush1.msra.mxu0 0.0
        %1894 = vmatprep.subr.mxu0 0.0
        %1895 = vmatpush1.msra.mxu0 0.0
        %1896 = vmatprep.subr.mxu0 0.0
        %1897 = vmatpush1.msra.mxu0 0.0
        %1898 = vmatprep.subr.mxu0 0.0
        %1899 = vmatpush1.msra.mxu0 0.0
        %1900 = vmatprep.subr.mxu0 0.0
        %1901 = vmatpush1.msra.mxu0 0.0
        %1902 = vmatprep.subr.mxu0 0.0
        %1903 = vmatpush1.msra.mxu0 0.0
        %1904 = vmatprep.subr.mxu0 0.0
        %1905 = vmatpush1.msra.mxu0 0.0
        %1906 = vmatprep.subr.mxu0 0.0
        %1907 = vmatpush1.msra.mxu0 0.0
        %1908 = vmatprep.subr.mxu0 0.0
        %1909 = vmatpush1.msra.mxu0 0.0
        %1910 = vmatprep.subr.mxu0 0.0
        %1911 = vmatpush1.msra.mxu0 0.0
        %1912 = vmatprep.subr.mxu0 0.0
        %1913 = vmatpush1.msra.mxu0 0.0
        %1914 = vmatprep.subr.mxu0 0.0
        %1915 = vmatpush1.msra.mxu0 0.0
        %1916 = vmatprep.subr.mxu0 0.0
        %1917 = vmatpush1.msra.mxu0 0.0
        %1918 = vmatprep.subr.mxu0 0.0
        %1919 = vmatpush1.msra.mxu0 0.0
        %1920 = vmatprep.subr.mxu0 0.0
        %1921 = vmatpush1.msra.mxu0 0.0
        %1922 = vmatprep.subr.mxu0 0.0
        %1923 = vmatpush1.msra.mxu0 0.0
        %1924 = vmatprep.subr.mxu0 0.0
        %1925 = vmatpush1.msra.mxu0 0.0
        %1926 = vmatprep.subr.mxu0 0.0
        %1927 = vmatpush1.msra.mxu0 0.0
        %1928 = vmatprep.subr.mxu0 0.0
        %1929 = vmatpush1.msra.mxu0 0.0
        %1930 = vmatprep.subr.mxu0 0.0
        %1931 = vmatpush1.msra.mxu0 0.0
        %1932 = vmatprep.subr.mxu0 0.0
        %1933 = vmatpush1.msra.mxu0 0.0
        %1934 = vmatprep.subr.mxu0 0.0
        %1935 = vmatpush1.msra.mxu0 0.0
        %1936 = vmatprep.subr.mxu0 0.0
        %1937 = vmatpush1.msra.mxu0 0.0
        %1938 = vmatprep.mubr.f32.mxu0 0.0
        %1939 = vmatmul.mubr.f32.gmra.mrb[0].mxu0 %v1872
        %v1940 = vpop.f32.mrb[0].mxu0
        %v1941 = vadd.f32 0.0, %v1940
        %v1942 = vpop.f32.mrb[0].mxu0
        %1943 = vdwg.mxu0
        %1944 = vrot.lane.b32.xlu0 %v1022, 64
        %v1945 = vpop.permute.xlu0 %1944
        %1946 = vrot.lane.b32.xlu0 %v1228, 64
        %v1947 = vpop.permute.xlu0 %1946
        %v1948 = vsel %vm949, %v1945, 0
        %v1950 = vsel %vm949, %v1947, 0
        %1952 = vmatprep.subr.mxu0 0.0
        %1953 = vmatpush1.xpose.msra.mxu0 %v1950
        %1954 = vmatprep.subr.mxu0 0.0
        %1955 = vmatpush1.xpose.msra.mxu0 0.0
        %1956 = vmatprep.subr.mxu0 0.0
        %1957 = vmatpush1.xpose.msra.mxu0 0.0
        %1958 = vmatprep.subr.mxu0 0.0
        %1959 = vmatpush1.xpose.msra.mxu0 0.0
        %1960 = vmatprep.subr.mxu0 0.0
        %1961 = vmatpush1.xpose.msra.mxu0 0.0
        %1962 = vmatprep.subr.mxu0 0.0
        %1963 = vmatpush1.xpose.msra.mxu0 0.0
        %1964 = vmatprep.subr.mxu0 0.0
        %1965 = vmatpush1.xpose.msra.mxu0 0.0
        %1966 = vmatprep.subr.mxu0 0.0
        %1967 = vmatpush1.xpose.msra.mxu0 0.0
        %1968 = vmatprep.subr.mxu0 0.0
        %1969 = vmatpush1.xpose.msra.mxu0 0.0
        %1970 = vmatprep.subr.mxu0 0.0
        %1971 = vmatpush1.xpose.msra.mxu0 0.0
        %1972 = vmatprep.subr.mxu0 0.0
        %1973 = vmatpush1.xpose.msra.mxu0 0.0
        %1974 = vmatprep.subr.mxu0 0.0
        %1975 = vmatpush1.xpose.msra.mxu0 0.0
        %1976 = vmatprep.subr.mxu0 0.0
        %1977 = vmatpush1.xpose.msra.mxu0 0.0
        %1978 = vmatprep.subr.mxu0 0.0
        %1979 = vmatpush1.xpose.msra.mxu0 0.0
        %1980 = vmatprep.subr.mxu0 0.0
        %1981 = vmatpush1.xpose.msra.mxu0 0.0
        %1982 = vmatprep.subr.mxu0 0.0
        %1983 = vmatpush1.xpose.msra.mxu0 0.0
        %1984 = vmatprep.subr.mxu0 0.0
        %1985 = vmatpush1.xpose.msra.mxu0 0.0
        %1986 = vmatprep.subr.mxu0 0.0
        %1987 = vmatpush1.xpose.msra.mxu0 0.0
        %1988 = vmatprep.subr.mxu0 0.0
        %1989 = vmatpush1.xpose.msra.mxu0 0.0
        %1990 = vmatprep.subr.mxu0 0.0
        %1991 = vmatpush1.xpose.msra.mxu0 0.0
        %1992 = vmatprep.subr.mxu0 0.0
        %1993 = vmatpush1.xpose.msra.mxu0 0.0
        %1994 = vmatprep.subr.mxu0 0.0
        %1995 = vmatpush1.xpose.msra.mxu0 0.0
        %1996 = vmatprep.subr.mxu0 0.0
        %1997 = vmatpush1.xpose.msra.mxu0 0.0
        %1998 = vmatprep.subr.mxu0 0.0
        %1999 = vmatpush1.xpose.msra.mxu0 0.0
        %2000 = vmatprep.subr.mxu0 0.0
        %2001 = vmatpush1.xpose.msra.mxu0 0.0
        %2002 = vmatprep.subr.mxu0 0.0
        %2003 = vmatpush1.xpose.msra.mxu0 0.0
        %2004 = vmatprep.subr.mxu0 0.0
        %2005 = vmatpush1.xpose.msra.mxu0 0.0
        %2006 = vmatprep.subr.mxu0 0.0
        %2007 = vmatpush1.xpose.msra.mxu0 0.0
        %2008 = vmatprep.subr.mxu0 0.0
        %2009 = vmatpush1.xpose.msra.mxu0 0.0
        %2010 = vmatprep.subr.mxu0 0.0
        %2011 = vmatpush1.xpose.msra.mxu0 0.0
        %2012 = vmatprep.subr.mxu0 0.0
        %2013 = vmatpush1.xpose.msra.mxu0 0.0
        %2014 = vmatprep.subr.mxu0 0.0
        %2015 = vmatpush1.xpose.msra.mxu0 0.0
        %2016 = vmatprep.mubr.f32.mxu0 0.0
        %2017 = vmatmul.mubr.f32.gmra.mrb[0].mxu0 %v1948
        %v2018 = vpop.f32.mrb[0].mxu0
        %v2019 = vadd.f32 0.0, %v2018
        %v2020 = vpop.f32.mrb[0].mxu0
        %2021 = vdwg.mxu0
        %v2022 = vmul.f32 %v2019, 0.125
        %v2023 = vsel %vm1450, %v2022, -1e+09
        %v2024 = vsel %vm1529, %v2023, -inf
        %2025 = vmax.xlane.f32.xlu0 %v2024
        %v2026 = vpop.xlane.xlu0 %2025
        %v2027 = vsub.f32 %v2023, %v2026
        %v2028 = vmul.f32 %v2027, 1.442695
        %v2029 = vpow.pop %v2028
        %v2030 = vsel %vm1529, %v2029, 0.0
        %2031 = vadd.xlane.f32.xlu0 %v2030
        %v2032 = vpop.xlane.xlu0 %2031
        %v2033 = vrcp.pop %v2032
        %v2034 = vmul.f32 %v2029, %v2033
        %2036 = vrot.lane.b32.xlu0 %v1370, 64
        %v2037 = vpop.permute.xlu0 %2036
        %v2040 = vsel %vm1529, %v2034, 0
        %2042 = vmatprep.subr.mxu0 0.0
        %2043 = vmatpush1.msra.mxu0 %v2037
        %2044 = vmatprep.subr.mxu0 0.0
        %2045 = vmatpush1.msra.mxu0 0.0
        %2046 = vmatprep.subr.mxu0 0.0
        %2047 = vmatpush1.msra.mxu0 0.0
        %2048 = vmatprep.subr.mxu0 0.0
        %2049 = vmatpush1.msra.mxu0 0.0
        %2050 = vmatprep.subr.mxu0 0.0
        %2051 = vmatpush1.msra.mxu0 0.0
        %2052 = vmatprep.subr.mxu0 0.0
        %2053 = vmatpush1.msra.mxu0 0.0
        %2054 = vmatprep.subr.mxu0 0.0
        %2055 = vmatpush1.msra.mxu0 0.0
        %2056 = vmatprep.subr.mxu0 0.0
        %2057 = vmatpush1.msra.mxu0 0.0
        %2058 = vmatprep.subr.mxu0 0.0
        %2059 = vmatpush1.msra.mxu0 0.0
        %2060 = vmatprep.subr.mxu0 0.0
        %2061 = vmatpush1.msra.mxu0 0.0
        %2062 = vmatprep.subr.mxu0 0.0
        %2063 = vmatpush1.msra.mxu0 0.0
        %2064 = vmatprep.subr.mxu0 0.0
        %2065 = vmatpush1.msra.mxu0 0.0
        %2066 = vmatprep.subr.mxu0 0.0
        %2067 = vmatpush1.msra.mxu0 0.0
        %2068 = vmatprep.subr.mxu0 0.0
        %2069 = vmatpush1.msra.mxu0 0.0
        %2070 = vmatprep.subr.mxu0 0.0
        %2071 = vmatpush1.msra.mxu0 0.0
        %2072 = vmatprep.subr.mxu0 0.0
        %2073 = vmatpush1.msra.mxu0 0.0
        %2074 = vmatprep.subr.mxu0 0.0
        %2075 = vmatpush1.msra.mxu0 0.0
        %2076 = vmatprep.subr.mxu0 0.0
        %2077 = vmatpush1.msra.mxu0 0.0
        %2078 = vmatprep.subr.mxu0 0.0
        %2079 = vmatpush1.msra.mxu0 0.0
        %2080 = vmatprep.subr.mxu0 0.0
        %2081 = vmatpush1.msra.mxu0 0.0
        %2082 = vmatprep.subr.mxu0 0.0
        %2083 = vmatpush1.msra.mxu0 0.0
        %2084 = vmatprep.subr.mxu0 0.0
        %2085 = vmatpush1.msra.mxu0 0.0
        %2086 = vmatprep.subr.mxu0 0.0
        %2087 = vmatpush1.msra.mxu0 0.0
        %2088 = vmatprep.subr.mxu0 0.0
        %2089 = vmatpush1.msra.mxu0 0.0
        %2090 = vmatprep.subr.mxu0 0.0
        %2091 = vmatpush1.msra.mxu0 0.0
        %2092 = vmatprep.subr.mxu0 0.0
        %2093 = vmatpush1.msra.mxu0 0.0
        %2094 = vmatprep.subr.mxu0 0.0
        %2095 = vmatpush1.msra.mxu0 0.0
        %2096 = vmatprep.subr.mxu0 0.0
        %2097 = vmatpush1.msra.mxu0 0.0
        %2098 = vmatprep.subr.mxu0 0.0
        %2099 = vmatpush1.msra.mxu0 0.0
        %2100 = vmatprep.subr.mxu0 0.0
        %2101 = vmatpush1.msra.mxu0 0.0
        %2102 = vmatprep.subr.mxu0 0.0
        %2103 = vmatpush1.msra.mxu0 0.0
        %2104 = vmatprep.subr.mxu0 0.0
        %2105 = vmatpush1.msra.mxu0 0.0
        %2106 = vmatprep.mubr.f32.mxu0 0.0
        %2107 = vmatmul.mubr.f32.gmra.mrb[0].mxu0 %v2040
        %v2108 = vpop.f32.mrb[0].mxu0
        %v2109 = vadd.f32 0.0, %v2108
        %v2110 = vpop.f32.mrb[0].mxu0
        %2111 = vdwg.mxu0
        %v2113 = vsel %vm949, %v1091, 0
        %v2116 = vsel %vm949, %v1297, 0
        %2118 = vmatprep.subr.mxu0 0.0
        %2119 = vmatpush1.xpose.msra.mxu0 %v2116
        %2120 = vmatprep.subr.mxu0 0.0
        %2121 = vmatpush1.xpose.msra.mxu0 0.0
        %2122 = vmatprep.subr.mxu0 0.0
        %2123 = vmatpush1.xpose.msra.mxu0 0.0
        %2124 = vmatprep.subr.mxu0 0.0
        %2125 = vmatpush1.xpose.msra.mxu0 0.0
        %2126 = vmatprep.subr.mxu0 0.0
        %2127 = vmatpush1.xpose.msra.mxu0 0.0
        %2128 = vmatprep.subr.mxu0 0.0
        %2129 = vmatpush1.xpose.msra.mxu0 0.0
        %2130 = vmatprep.subr.mxu0 0.0
        %2131 = vmatpush1.xpose.msra.mxu0 0.0
        %2132 = vmatprep.subr.mxu0 0.0
        %2133 = vmatpush1.xpose.msra.mxu0 0.0
        %2134 = vmatprep.subr.mxu0 0.0
        %2135 = vmatpush1.xpose.msra.mxu0 0.0
        %2136 = vmatprep.subr.mxu0 0.0
        %2137 = vmatpush1.xpose.msra.mxu0 0.0
        %2138 = vmatprep.subr.mxu0 0.0
        %2139 = vmatpush1.xpose.msra.mxu0 0.0
        %2140 = vmatprep.subr.mxu0 0.0
        %2141 = vmatpush1.xpose.msra.mxu0 0.0
        %2142 = vmatprep.subr.mxu0 0.0
        %2143 = vmatpush1.xpose.msra.mxu0 0.0
        %2144 = vmatprep.subr.mxu0 0.0
        %2145 = vmatpush1.xpose.msra.mxu0 0.0
        %2146 = vmatprep.subr.mxu0 0.0
        %2147 = vmatpush1.xpose.msra.mxu0 0.0
        %2148 = vmatprep.subr.mxu0 0.0
        %2149 = vmatpush1.xpose.msra.mxu0 0.0
        %2150 = vmatprep.subr.mxu0 0.0
        %2151 = vmatpush1.xpose.msra.mxu0 0.0
        %2152 = vmatprep.subr.mxu0 0.0
        %2153 = vmatpush1.xpose.msra.mxu0 0.0
        %2154 = vmatprep.subr.mxu0 0.0
        %2155 = vmatpush1.xpose.msra.mxu0 0.0
        %2156 = vmatprep.subr.mxu0 0.0
        %2157 = vmatpush1.xpose.msra.mxu0 0.0
        %2158 = vmatprep.subr.mxu0 0.0
        %2159 = vmatpush1.xpose.msra.mxu0 0.0
        %2160 = vmatprep.subr.mxu0 0.0
        %2161 = vmatpush1.xpose.msra.mxu0 0.0
        %2162 = vmatprep.subr.mxu0 0.0
        %2163 = vmatpush1.xpose.msra.mxu0 0.0
        %2164 = vmatprep.subr.mxu0 0.0
        %2165 = vmatpush1.xpose.msra.mxu0 0.0
        %2166 = vmatprep.subr.mxu0 0.0
        %2167 = vmatpush1.xpose.msra.mxu0 0.0
        %2168 = vmatprep.subr.mxu0 0.0
        %2169 = vmatpush1.xpose.msra.mxu0 0.0
        %2170 = vmatprep.subr.mxu0 0.0
        %2171 = vmatpush1.xpose.msra.mxu0 0.0
        %2172 = vmatprep.subr.mxu0 0.0
        %2173 = vmatpush1.xpose.msra.mxu0 0.0
        %2174 = vmatprep.subr.mxu0 0.0
        %2175 = vmatpush1.xpose.msra.mxu0 0.0
        %2176 = vmatprep.subr.mxu0 0.0
        %2177 = vmatpush1.xpose.msra.mxu0 0.0
        %2178 = vmatprep.subr.mxu0 0.0
        %2179 = vmatpush1.xpose.msra.mxu0 0.0
        %2180 = vmatprep.subr.mxu0 0.0
        %2181 = vmatpush1.xpose.msra.mxu0 0.0
        %2182 = vmatprep.mubr.f32.mxu0 0.0
        %2183 = vmatmul.mubr.f32.gmra.mrb[0].mxu0 %v2113
        %v2184 = vpop.f32.mrb[0].mxu0
        %v2185 = vadd.f32 0.0, %v2184
        %v2186 = vpop.f32.mrb[0].mxu0
        %2187 = vdwg.mxu0
        %v2188 = vmul.f32 %v2185, 0.125
        %v2189 = vsel %vm1450, %v2188, -1e+09
        %v2190 = vsel %vm1529, %v2189, -inf
        %2191 = vmax.xlane.f32.xlu0 %v2190
        %v2192 = vpop.xlane.xlu0 %2191
        %v2193 = vsub.f32 %v2189, %v2192
        %v2194 = vmul.f32 %v2193, 1.442695
        %v2195 = vpow.pop %v2194
        %v2196 = vsel %vm1529, %v2195, 0.0
        %2197 = vadd.xlane.f32.xlu0 %v2196
        %v2198 = vpop.xlane.xlu0 %2197
        %v2199 = vrcp.pop %v2198
        %v2200 = vmul.f32 %v2195, %v2199
        %v2202 = vsel %vm1529, %v2200, 0
        %2204 = vmatprep.subr.mxu0 0.0
        %2205 = vmatpush1.msra.mxu0 %v1439
        %2206 = vmatprep.subr.mxu0 0.0
        %2207 = vmatpush1.msra.mxu0 0.0
        %2208 = vmatprep.subr.mxu0 0.0
        %2209 = vmatpush1.msra.mxu0 0.0
        %2210 = vmatprep.subr.mxu0 0.0
        %2211 = vmatpush1.msra.mxu0 0.0
        %2212 = vmatprep.subr.mxu0 0.0
        %2213 = vmatpush1.msra.mxu0 0.0
        %2214 = vmatprep.subr.mxu0 0.0
        %2215 = vmatpush1.msra.mxu0 0.0
        %2216 = vmatprep.subr.mxu0 0.0
        %2217 = vmatpush1.msra.mxu0 0.0
        %2218 = vmatprep.subr.mxu0 0.0
        %2219 = vmatpush1.msra.mxu0 0.0
        %2220 = vmatprep.subr.mxu0 0.0
        %2221 = vmatpush1.msra.mxu0 0.0
        %2222 = vmatprep.subr.mxu0 0.0
        %2223 = vmatpush1.msra.mxu0 0.0
        %2224 = vmatprep.subr.mxu0 0.0
        %2225 = vmatpush1.msra.mxu0 0.0
        %2226 = vmatprep.subr.mxu0 0.0
        %2227 = vmatpush1.msra.mxu0 0.0
        %2228 = vmatprep.subr.mxu0 0.0
        %2229 = vmatpush1.msra.mxu0 0.0
        %2230 = vmatprep.subr.mxu0 0.0
        %2231 = vmatpush1.msra.mxu0 0.0
        %2232 = vmatprep.subr.mxu0 0.0
        %2233 = vmatpush1.msra.mxu0 0.0
        %2234 = vmatprep.subr.mxu0 0.0
        %2235 = vmatpush1.msra.mxu0 0.0
        %2236 = vmatprep.subr.mxu0 0.0
        %2237 = vmatpush1.msra.mxu0 0.0
        %2238 = vmatprep.subr.mxu0 0.0
        %2239 = vmatpush1.msra.mxu0 0.0
        %2240 = vmatprep.subr.mxu0 0.0
        %2241 = vmatpush1.msra.mxu0 0.0
        %2242 = vmatprep.subr.mxu0 0.0
        %2243 = vmatpush1.msra.mxu0 0.0
        %2244 = vmatprep.subr.mxu0 0.0
        %2245 = vmatpush1.msra.mxu0 0.0
        %2246 = vmatprep.subr.mxu0 0.0
        %2247 = vmatpush1.msra.mxu0 0.0
        %2248 = vmatprep.subr.mxu0 0.0
        %2249 = vmatpush1.msra.mxu0 0.0
        %2250 = vmatprep.subr.mxu0 0.0
        %2251 = vmatpush1.msra.mxu0 0.0
        %2252 = vmatprep.subr.mxu0 0.0
        %2253 = vmatpush1.msra.mxu0 0.0
        %2254 = vmatprep.subr.mxu0 0.0
        %2255 = vmatpush1.msra.mxu0 0.0
        %2256 = vmatprep.subr.mxu0 0.0
        %2257 = vmatpush1.msra.mxu0 0.0
        %2258 = vmatprep.subr.mxu0 0.0
        %2259 = vmatpush1.msra.mxu0 0.0
        %2260 = vmatprep.subr.mxu0 0.0
        %2261 = vmatpush1.msra.mxu0 0.0
        %2262 = vmatprep.subr.mxu0 0.0
        %2263 = vmatpush1.msra.mxu0 0.0
        %2264 = vmatprep.subr.mxu0 0.0
        %2265 = vmatpush1.msra.mxu0 0.0
        %2266 = vmatprep.subr.mxu0 0.0
        %2267 = vmatpush1.msra.mxu0 0.0
        %2268 = vmatprep.mubr.f32.mxu0 0.0
        %2269 = vmatmul.mubr.f32.gmra.mrb[0].mxu0 %v2202
        %v2270 = vpop.f32.mrb[0].mxu0
        %v2271 = vadd.f32 0.0, %v2270
        %v2272 = vpop.f32.mrb[0].mxu0
        %2273 = vdwg.mxu0
        %2274 = vrot.lane.b32.xlu0 %v1091, 64
        %v2275 = vpop.permute.xlu0 %2274
        %2276 = vrot.lane.b32.xlu0 %v1297, 64
        %v2277 = vpop.permute.xlu0 %2276
        %v2278 = vsel %vm949, %v2275, 0
        %v2280 = vsel %vm949, %v2277, 0
        %2282 = vmatprep.subr.mxu0 0.0
        %2283 = vmatpush1.xpose.msra.mxu0 %v2280
        %2284 = vmatprep.subr.mxu0 0.0
        %2285 = vmatpush1.xpose.msra.mxu0 0.0
        %2286 = vmatprep.subr.mxu0 0.0
        %2287 = vmatpush1.xpose.msra.mxu0 0.0
        %2288 = vmatprep.subr.mxu0 0.0
        %2289 = vmatpush1.xpose.msra.mxu0 0.0
        %2290 = vmatprep.subr.mxu0 0.0
        %2291 = vmatpush1.xpose.msra.mxu0 0.0
        %2292 = vmatprep.subr.mxu0 0.0
        %2293 = vmatpush1.xpose.msra.mxu0 0.0
        %2294 = vmatprep.subr.mxu0 0.0
        %2295 = vmatpush1.xpose.msra.mxu0 0.0
        %2296 = vmatprep.subr.mxu0 0.0
        %2297 = vmatpush1.xpose.msra.mxu0 0.0
        %2298 = vmatprep.subr.mxu0 0.0
        %2299 = vmatpush1.xpose.msra.mxu0 0.0
        %2300 = vmatprep.subr.mxu0 0.0
        %2301 = vmatpush1.xpose.msra.mxu0 0.0
        %2302 = vmatprep.subr.mxu0 0.0
        %2303 = vmatpush1.xpose.msra.mxu0 0.0
        %2304 = vmatprep.subr.mxu0 0.0
        %2305 = vmatpush1.xpose.msra.mxu0 0.0
        %2306 = vmatprep.subr.mxu0 0.0
        %2307 = vmatpush1.xpose.msra.mxu0 0.0
        %2308 = vmatprep.subr.mxu0 0.0
        %2309 = vmatpush1.xpose.msra.mxu0 0.0
        %2310 = vmatprep.subr.mxu0 0.0
        %2311 = vmatpush1.xpose.msra.mxu0 0.0
        %2312 = vmatprep.subr.mxu0 0.0
        %2313 = vmatpush1.xpose.msra.mxu0 0.0
        %2314 = vmatprep.subr.mxu0 0.0
        %2315 = vmatpush1.xpose.msra.mxu0 0.0
        %2316 = vmatprep.subr.mxu0 0.0
        %2317 = vmatpush1.xpose.msra.mxu0 0.0
        %2318 = vmatprep.subr.mxu0 0.0
        %2319 = vmatpush1.xpose.msra.mxu0 0.0
        %2320 = vmatprep.subr.mxu0 0.0
        %2321 = vmatpush1.xpose.msra.mxu0 0.0
        %2322 = vmatprep.subr.mxu0 0.0
        %2323 = vmatpush1.xpose.msra.mxu0 0.0
        %2324 = vmatprep.subr.mxu0 0.0
        %2325 = vmatpush1.xpose.msra.mxu0 0.0
        %2326 = vmatprep.subr.mxu0 0.0
        %2327 = vmatpush1.xpose.msra.mxu0 0.0
        %2328 = vmatprep.subr.mxu0 0.0
        %2329 = vmatpush1.xpose.msra.mxu0 0.0
        %2330 = vmatprep.subr.mxu0 0.0
        %2331 = vmatpush1.xpose.msra.mxu0 0.0
        %2332 = vmatprep.subr.mxu0 0.0
        %2333 = vmatpush1.xpose.msra.mxu0 0.0
        %2334 = vmatprep.subr.mxu0 0.0
        %2335 = vmatpush1.xpose.msra.mxu0 0.0
        %2336 = vmatprep.subr.mxu0 0.0
        %2337 = vmatpush1.xpose.msra.mxu0 0.0
        %2338 = vmatprep.subr.mxu0 0.0
        %2339 = vmatpush1.xpose.msra.mxu0 0.0
        %2340 = vmatprep.subr.mxu0 0.0
        %2341 = vmatpush1.xpose.msra.mxu0 0.0
        %2342 = vmatprep.subr.mxu0 0.0
        %2343 = vmatpush1.xpose.msra.mxu0 0.0
        %2344 = vmatprep.subr.mxu0 0.0
        %2345 = vmatpush1.xpose.msra.mxu0 0.0
        %2346 = vmatprep.mubr.f32.mxu0 0.0
        %2347 = vmatmul.mubr.f32.gmra.mrb[0].mxu0 %v2278
        %v2348 = vpop.f32.mrb[0].mxu0
        %v2349 = vadd.f32 0.0, %v2348
        %v2350 = vpop.f32.mrb[0].mxu0
        %2351 = vdwg.mxu0
        %v2352 = vmul.f32 %v2349, 0.125
        %v2353 = vsel %vm1450, %v2352, -1e+09
        %v2354 = vsel %vm1529, %v2353, -inf
        %2355 = vmax.xlane.f32.xlu0 %v2354
        %v2356 = vpop.xlane.xlu0 %2355
        %v2357 = vsub.f32 %v2353, %v2356
        %v2358 = vmul.f32 %v2357, 1.442695
        %v2359 = vpow.pop %v2358
        %v2360 = vsel %vm1529, %v2359, 0.0
        %2361 = vadd.xlane.f32.xlu0 %v2360
        %v2362 = vpop.xlane.xlu0 %2361
        %v2363 = vrcp.pop %v2362
        %v2364 = vmul.f32 %v2359, %v2363
        %2366 = vrot.lane.b32.xlu0 %v1439, 64
        %v2367 = vpop.permute.xlu0 %2366
        %v2370 = vsel %vm1529, %v2364, 0
        %2372 = vmatprep.subr.mxu0 0.0
        %2373 = vmatpush1.msra.mxu0 %v2367
        %2374 = vmatprep.subr.mxu0 0.0
        %2375 = vmatpush1.msra.mxu0 0.0
        %2376 = vmatprep.subr.mxu0 0.0
        %2377 = vmatpush1.msra.mxu0 0.0
        %2378 = vmatprep.subr.mxu0 0.0
        %2379 = vmatpush1.msra.mxu0 0.0
        %2380 = vmatprep.subr.mxu0 0.0
        %2381 = vmatpush1.msra.mxu0 0.0
        %2382 = vmatprep.subr.mxu0 0.0
        %2383 = vmatpush1.msra.mxu0 0.0
        %2384 = vmatprep.subr.mxu0 0.0
        %2385 = vmatpush1.msra.mxu0 0.0
        %2386 = vmatprep.subr.mxu0 0.0
        %2387 = vmatpush1.msra.mxu0 0.0
        %2388 = vmatprep.subr.mxu0 0.0
        %2389 = vmatpush1.msra.mxu0 0.0
        %2390 = vmatprep.subr.mxu0 0.0
        %2391 = vmatpush1.msra.mxu0 0.0
        %2392 = vmatprep.subr.mxu0 0.0
        %2393 = vmatpush1.msra.mxu0 0.0
        %2394 = vmatprep.subr.mxu0 0.0
        %2395 = vmatpush1.msra.mxu0 0.0
        %2396 = vmatprep.subr.mxu0 0.0
        %2397 = vmatpush1.msra.mxu0 0.0
        %2398 = vmatprep.subr.mxu0 0.0
        %2399 = vmatpush1.msra.mxu0 0.0
        %2400 = vmatprep.subr.mxu0 0.0
        %2401 = vmatpush1.msra.mxu0 0.0
        %2402 = vmatprep.subr.mxu0 0.0
        %2403 = vmatpush1.msra.mxu0 0.0
        %2404 = vmatprep.subr.mxu0 0.0
        %2405 = vmatpush1.msra.mxu0 0.0
        %2406 = vmatprep.subr.mxu0 0.0
        %2407 = vmatpush1.msra.mxu0 0.0
        %2408 = vmatprep.subr.mxu0 0.0
        %2409 = vmatpush1.msra.mxu0 0.0
        %2410 = vmatprep.subr.mxu0 0.0
        %2411 = vmatpush1.msra.mxu0 0.0
        %2412 = vmatprep.subr.mxu0 0.0
        %2413 = vmatpush1.msra.mxu0 0.0
        %2414 = vmatprep.subr.mxu0 0.0
        %2415 = vmatpush1.msra.mxu0 0.0
        %2416 = vmatprep.subr.mxu0 0.0
        %2417 = vmatpush1.msra.mxu0 0.0
        %2418 = vmatprep.subr.mxu0 0.0
        %2419 = vmatpush1.msra.mxu0 0.0
        %2420 = vmatprep.subr.mxu0 0.0
        %2421 = vmatpush1.msra.mxu0 0.0
        %2422 = vmatprep.subr.mxu0 0.0
        %2423 = vmatpush1.msra.mxu0 0.0
        %2424 = vmatprep.subr.mxu0 0.0
        %2425 = vmatpush1.msra.mxu0 0.0
        %2426 = vmatprep.subr.mxu0 0.0
        %2427 = vmatpush1.msra.mxu0 0.0
        %2428 = vmatprep.subr.mxu0 0.0
        %2429 = vmatpush1.msra.mxu0 0.0
        %2430 = vmatprep.subr.mxu0 0.0
        %2431 = vmatpush1.msra.mxu0 0.0
        %2432 = vmatprep.subr.mxu0 0.0
        %2433 = vmatpush1.msra.mxu0 0.0
        %2434 = vmatprep.subr.mxu0 0.0
        %2435 = vmatpush1.msra.mxu0 0.0
        %2436 = vmatprep.mubr.f32.mxu0 0.0
        %2437 = vmatmul.mubr.f32.gmra.mrb[0].mxu0 %v2370
        %v2438 = vpop.f32.mrb[0].mxu0
        %v2439 = vadd.f32 0.0, %v2438
        %v2440 = vpop.f32.mrb[0].mxu0
        %2441 = vdwg.mxu0
        %v2443 = vsel %vm949, %v1093, 0
        %v2446 = vsel %vm949, %v1299, 0
        %2448 = vmatprep.subr.mxu0 0.0
        %2449 = vmatpush1.xpose.msra.mxu0 %v2446
        %2450 = vmatprep.subr.mxu0 0.0
        %2451 = vmatpush1.xpose.msra.mxu0 0.0
        %2452 = vmatprep.subr.mxu0 0.0
        %2453 = vmatpush1.xpose.msra.mxu0 0.0
        %2454 = vmatprep.subr.mxu0 0.0
        %2455 = vmatpush1.xpose.msra.mxu0 0.0
        %2456 = vmatprep.subr.mxu0 0.0
        %2457 = vmatpush1.xpose.msra.mxu0 0.0
        %2458 = vmatprep.subr.mxu0 0.0
        %2459 = vmatpush1.xpose.msra.mxu0 0.0
        %2460 = vmatprep.subr.mxu0 0.0
        %2461 = vmatpush1.xpose.msra.mxu0 0.0
        %2462 = vmatprep.subr.mxu0 0.0
        %2463 = vmatpush1.xpose.msra.mxu0 0.0
        %2464 = vmatprep.subr.mxu0 0.0
        %2465 = vmatpush1.xpose.msra.mxu0 0.0
        %2466 = vmatprep.subr.mxu0 0.0
        %2467 = vmatpush1.xpose.msra.mxu0 0.0
        %2468 = vmatprep.subr.mxu0 0.0
        %2469 = vmatpush1.xpose.msra.mxu0 0.0
        %2470 = vmatprep.subr.mxu0 0.0
        %2471 = vmatpush1.xpose.msra.mxu0 0.0
        %2472 = vmatprep.subr.mxu0 0.0
        %2473 = vmatpush1.xpose.msra.mxu0 0.0
        %2474 = vmatprep.subr.mxu0 0.0
        %2475 = vmatpush1.xpose.msra.mxu0 0.0
        %2476 = vmatprep.subr.mxu0 0.0
        %2477 = vmatpush1.xpose.msra.mxu0 0.0
        %2478 = vmatprep.subr.mxu0 0.0
        %2479 = vmatpush1.xpose.msra.mxu0 0.0
        %2480 = vmatprep.subr.mxu0 0.0
        %2481 = vmatpush1.xpose.msra.mxu0 0.0
        %2482 = vmatprep.subr.mxu0 0.0
        %2483 = vmatpush1.xpose.msra.mxu0 0.0
        %2484 = vmatprep.subr.mxu0 0.0
        %2485 = vmatpush1.xpose.msra.mxu0 0.0
        %2486 = vmatprep.subr.mxu0 0.0
        %2487 = vmatpush1.xpose.msra.mxu0 0.0
        %2488 = vmatprep.subr.mxu0 0.0
        %2489 = vmatpush1.xpose.msra.mxu0 0.0
        %2490 = vmatprep.subr.mxu0 0.0
        %2491 = vmatpush1.xpose.msra.mxu0 0.0
        %2492 = vmatprep.subr.mxu0 0.0
        %2493 = vmatpush1.xpose.msra.mxu0 0.0
        %2494 = vmatprep.subr.mxu0 0.0
        %2495 = vmatpush1.xpose.msra.mxu0 0.0
        %2496 = vmatprep.subr.mxu0 0.0
        %2497 = vmatpush1.xpose.msra.mxu0 0.0
        %2498 = vmatprep.subr.mxu0 0.0
        %2499 = vmatpush1.xpose.msra.mxu0 0.0
        %2500 = vmatprep.subr.mxu0 0.0
        %2501 = vmatpush1.xpose.msra.mxu0 0.0
        %2502 = vmatprep.subr.mxu0 0.0
        %2503 = vmatpush1.xpose.msra.mxu0 0.0
        %2504 = vmatprep.subr.mxu0 0.0
        %2505 = vmatpush1.xpose.msra.mxu0 0.0
        %2506 = vmatprep.subr.mxu0 0.0
        %2507 = vmatpush1.xpose.msra.mxu0 0.0
        %2508 = vmatprep.subr.mxu0 0.0
        %2509 = vmatpush1.xpose.msra.mxu0 0.0
        %2510 = vmatprep.subr.mxu0 0.0
        %2511 = vmatpush1.xpose.msra.mxu0 0.0
        %2512 = vmatprep.mubr.f32.mxu0 0.0
        %2513 = vmatmul.mubr.f32.gmra.mrb[0].mxu0 %v2443
        %v2514 = vpop.f32.mrb[0].mxu0
        %v2515 = vadd.f32 0.0, %v2514
        %v2516 = vpop.f32.mrb[0].mxu0
        %2517 = vdwg.mxu0
        %v2518 = vmul.f32 %v2515, 0.125
        %v2519 = vsel %vm1450, %v2518, -1e+09
        %v2520 = vsel %vm1529, %v2519, -inf
        %2521 = vmax.xlane.f32.xlu0 %v2520
        %v2522 = vpop.xlane.xlu0 %2521
        %v2523 = vsub.f32 %v2519, %v2522
        %v2524 = vmul.f32 %v2523, 1.442695
        %v2525 = vpow.pop %v2524
        %v2526 = vsel %vm1529, %v2525, 0.0
        %2527 = vadd.xlane.f32.xlu0 %v2526
        %v2528 = vpop.xlane.xlu0 %2527
        %v2529 = vrcp.pop %v2528
        %v2530 = vmul.f32 %v2525, %v2529
        %v2532 = vsel %vm1529, %v2530, 0
        %2534 = vmatprep.subr.mxu0 0.0
        %2535 = vmatpush1.msra.mxu0 %v1441
        %2536 = vmatprep.subr.mxu0 0.0
        %2537 = vmatpush1.msra.mxu0 0.0
        %2538 = vmatprep.subr.mxu0 0.0
        %2539 = vmatpush1.msra.mxu0 0.0
        %2540 = vmatprep.subr.mxu0 0.0
        %2541 = vmatpush1.msra.mxu0 0.0
        %2542 = vmatprep.subr.mxu0 0.0
        %2543 = vmatpush1.msra.mxu0 0.0
        %2544 = vmatprep.subr.mxu0 0.0
        %2545 = vmatpush1.msra.mxu0 0.0
        %2546 = vmatprep.subr.mxu0 0.0
        %2547 = vmatpush1.msra.mxu0 0.0
        %2548 = vmatprep.subr.mxu0 0.0
        %2549 = vmatpush1.msra.mxu0 0.0
        %2550 = vmatprep.subr.mxu0 0.0
        %2551 = vmatpush1.msra.mxu0 0.0
        %2552 = vmatprep.subr.mxu0 0.0
        %2553 = vmatpush1.msra.mxu0 0.0
        %2554 = vmatprep.subr.mxu0 0.0
        %2555 = vmatpush1.msra.mxu0 0.0
        %2556 = vmatprep.subr.mxu0 0.0
        %2557 = vmatpush1.msra.mxu0 0.0
        %2558 = vmatprep.subr.mxu0 0.0
        %2559 = vmatpush1.msra.mxu0 0.0
        %2560 = vmatprep.subr.mxu0 0.0
        %2561 = vmatpush1.msra.mxu0 0.0
        %2562 = vmatprep.subr.mxu0 0.0
        %2563 = vmatpush1.msra.mxu0 0.0
        %2564 = vmatprep.subr.mxu0 0.0
        %2565 = vmatpush1.msra.mxu0 0.0
        %2566 = vmatprep.subr.mxu0 0.0
        %2567 = vmatpush1.msra.mxu0 0.0
        %2568 = vmatprep.subr.mxu0 0.0
        %2569 = vmatpush1.msra.mxu0 0.0
        %2570 = vmatprep.subr.mxu0 0.0
        %2571 = vmatpush1.msra.mxu0 0.0
        %2572 = vmatprep.subr.mxu0 0.0
        %2573 = vmatpush1.msra.mxu0 0.0
        %2574 = vmatprep.subr.mxu0 0.0
        %2575 = vmatpush1.msra.mxu0 0.0
        %2576 = vmatprep.subr.mxu0 0.0
        %2577 = vmatpush1.msra.mxu0 0.0
        %2578 = vmatprep.subr.mxu0 0.0
        %2579 = vmatpush1.msra.mxu0 0.0
        %2580 = vmatprep.subr.mxu0 0.0
        %2581 = vmatpush1.msra.mxu0 0.0
        %2582 = vmatprep.subr.mxu0 0.0
        %2583 = vmatpush1.msra.mxu0 0.0
        %2584 = vmatprep.subr.mxu0 0.0
        %2585 = vmatpush1.msra.mxu0 0.0
        %2586 = vmatprep.subr.mxu0 0.0
        %2587 = vmatpush1.msra.mxu0 0.0
        %2588 = vmatprep.subr.mxu0 0.0
        %2589 = vmatpush1.msra.mxu0 0.0
        %2590 = vmatprep.subr.mxu0 0.0
        %2591 = vmatpush1.msra.mxu0 0.0
        %2592 = vmatprep.subr.mxu0 0.0
        %2593 = vmatpush1.msra.mxu0 0.0
        %2594 = vmatprep.subr.mxu0 0.0
        %2595 = vmatpush1.msra.mxu0 0.0
        %2596 = vmatprep.subr.mxu0 0.0
        %2597 = vmatpush1.msra.mxu0 0.0
        %2598 = vmatprep.mubr.f32.mxu0 0.0
        %2599 = vmatmul.mubr.f32.gmra.mrb[0].mxu0 %v2532
        %v2600 = vpop.f32.mrb[0].mxu0
        %v2601 = vadd.f32 0.0, %v2600
        %v2602 = vpop.f32.mrb[0].mxu0
        %2603 = vdwg.mxu0
        %2604 = vrot.lane.b32.xlu0 %v1093, 64
        %v2605 = vpop.permute.xlu0 %2604
        %2606 = vrot.lane.b32.xlu0 %v1299, 64
        %v2607 = vpop.permute.xlu0 %2606
        %v2608 = vsel %vm949, %v2605, 0
        %v2610 = vsel %vm949, %v2607, 0
        %2612 = vmatprep.subr.mxu0 0.0
        %2613 = vmatpush1.xpose.msra.mxu0 %v2610
        %2614 = vmatprep.subr.mxu0 0.0
        %2615 = vmatpush1.xpose.msra.mxu0 0.0
        %2616 = vmatprep.subr.mxu0 0.0
        %2617 = vmatpush1.xpose.msra.mxu0 0.0
        %2618 = vmatprep.subr.mxu0 0.0
        %2619 = vmatpush1.xpose.msra.mxu0 0.0
        %2620 = vmatprep.subr.mxu0 0.0
        %2621 = vmatpush1.xpose.msra.mxu0 0.0
        %2622 = vmatprep.subr.mxu0 0.0
        %2623 = vmatpush1.xpose.msra.mxu0 0.0
        %2624 = vmatprep.subr.mxu0 0.0
        %2625 = vmatpush1.xpose.msra.mxu0 0.0
        %2626 = vmatprep.subr.mxu0 0.0
        %2627 = vmatpush1.xpose.msra.mxu0 0.0
        %2628 = vmatprep.subr.mxu0 0.0
        %2629 = vmatpush1.xpose.msra.mxu0 0.0
        %2630 = vmatprep.subr.mxu0 0.0
        %2631 = vmatpush1.xpose.msra.mxu0 0.0
        %2632 = vmatprep.subr.mxu0 0.0
        %2633 = vmatpush1.xpose.msra.mxu0 0.0
        %2634 = vmatprep.subr.mxu0 0.0
        %2635 = vmatpush1.xpose.msra.mxu0 0.0
        %2636 = vmatprep.subr.mxu0 0.0
        %2637 = vmatpush1.xpose.msra.mxu0 0.0
        %2638 = vmatprep.subr.mxu0 0.0
        %2639 = vmatpush1.xpose.msra.mxu0 0.0
        %2640 = vmatprep.subr.mxu0 0.0
        %2641 = vmatpush1.xpose.msra.mxu0 0.0
        %2642 = vmatprep.subr.mxu0 0.0
        %2643 = vmatpush1.xpose.msra.mxu0 0.0
        %2644 = vmatprep.subr.mxu0 0.0
        %2645 = vmatpush1.xpose.msra.mxu0 0.0
        %2646 = vmatprep.subr.mxu0 0.0
        %2647 = vmatpush1.xpose.msra.mxu0 0.0
        %2648 = vmatprep.subr.mxu0 0.0
        %2649 = vmatpush1.xpose.msra.mxu0 0.0
        %2650 = vmatprep.subr.mxu0 0.0
        %2651 = vmatpush1.xpose.msra.mxu0 0.0
        %2652 = vmatprep.subr.mxu0 0.0
        %2653 = vmatpush1.xpose.msra.mxu0 0.0
        %2654 = vmatprep.subr.mxu0 0.0
        %2655 = vmatpush1.xpose.msra.mxu0 0.0
        %2656 = vmatprep.subr.mxu0 0.0
        %2657 = vmatpush1.xpose.msra.mxu0 0.0
        %2658 = vmatprep.subr.mxu0 0.0
        %2659 = vmatpush1.xpose.msra.mxu0 0.0
        %2660 = vmatprep.subr.mxu0 0.0
        %2661 = vmatpush1.xpose.msra.mxu0 0.0
        %2662 = vmatprep.subr.mxu0 0.0
        %2663 = vmatpush1.xpose.msra.mxu0 0.0
        %2664 = vmatprep.subr.mxu0 0.0
        %2665 = vmatpush1.xpose.msra.mxu0 0.0
        %2666 = vmatprep.subr.mxu0 0.0
        %2667 = vmatpush1.xpose.msra.mxu0 0.0
        %2668 = vmatprep.subr.mxu0 0.0
        %2669 = vmatpush1.xpose.msra.mxu0 0.0
        %2670 = vmatprep.subr.mxu0 0.0
        %2671 = vmatpush1.xpose.msra.mxu0 0.0
        %2672 = vmatprep.subr.mxu0 0.0
        %2673 = vmatpush1.xpose.msra.mxu0 0.0
        %2674 = vmatprep.subr.mxu0 0.0
        %2675 = vmatpush1.xpose.msra.mxu0 0.0
        %2676 = vmatprep.mubr.f32.mxu0 0.0
        %2677 = vmatmul.mubr.f32.gmra.mrb[0].mxu0 %v2608
        %v2678 = vpop.f32.mrb[0].mxu0
        %v2679 = vadd.f32 0.0, %v2678
        %v2680 = vpop.f32.mrb[0].mxu0
        %2681 = vdwg.mxu0
        %v2682 = vmul.f32 %v2679, 0.125
        %v2683 = vsel %vm1450, %v2682, -1e+09
        %v2684 = vsel %vm1529, %v2683, -inf
        %2685 = vmax.xlane.f32.xlu0 %v2684
        %v2686 = vpop.xlane.xlu0 %2685
        %v2687 = vsub.f32 %v2683, %v2686
        %v2688 = vmul.f32 %v2687, 1.442695
        %v2689 = vpow.pop %v2688
        %v2690 = vsel %vm1529, %v2689, 0.0
        %2691 = vadd.xlane.f32.xlu0 %v2690
        %v2692 = vpop.xlane.xlu0 %2691
        %v2693 = vrcp.pop %v2692
        %v2694 = vmul.f32 %v2689, %v2693
        %2696 = vrot.lane.b32.xlu0 %v1441, 64
        %v2697 = vpop.permute.xlu0 %2696
        %v2700 = vsel %vm1529, %v2694, 0
        %2702 = vmatprep.subr.mxu0 0.0
        %2703 = vmatpush1.msra.mxu0 %v2697
        %2704 = vmatprep.subr.mxu0 0.0
        %2705 = vmatpush1.msra.mxu0 0.0
        %2706 = vmatprep.subr.mxu0 0.0
        %2707 = vmatpush1.msra.mxu0 0.0
        %2708 = vmatprep.subr.mxu0 0.0
        %2709 = vmatpush1.msra.mxu0 0.0
        %2710 = vmatprep.subr.mxu0 0.0
        %2711 = vmatpush1.msra.mxu0 0.0
        %2712 = vmatprep.subr.mxu0 0.0
        %2713 = vmatpush1.msra.mxu0 0.0
        %2714 = vmatprep.subr.mxu0 0.0
        %2715 = vmatpush1.msra.mxu0 0.0
        %2716 = vmatprep.subr.mxu0 0.0
        %2717 = vmatpush1.msra.mxu0 0.0
        %2718 = vmatprep.subr.mxu0 0.0
        %2719 = vmatpush1.msra.mxu0 0.0
        %2720 = vmatprep.subr.mxu0 0.0
        %2721 = vmatpush1.msra.mxu0 0.0
        %2722 = vmatprep.subr.mxu0 0.0
        %2723 = vmatpush1.msra.mxu0 0.0
        %2724 = vmatprep.subr.mxu0 0.0
        %2725 = vmatpush1.msra.mxu0 0.0
        %2726 = vmatprep.subr.mxu0 0.0
        %2727 = vmatpush1.msra.mxu0 0.0
        %2728 = vmatprep.subr.mxu0 0.0
        %2729 = vmatpush1.msra.mxu0 0.0
        %2730 = vmatprep.subr.mxu0 0.0
        %2731 = vmatpush1.msra.mxu0 0.0
        %2732 = vmatprep.subr.mxu0 0.0
        %2733 = vmatpush1.msra.mxu0 0.0
        %2734 = vmatprep.subr.mxu0 0.0
        %2735 = vmatpush1.msra.mxu0 0.0
        %2736 = vmatprep.subr.mxu0 0.0
        %2737 = vmatpush1.msra.mxu0 0.0
        %2738 = vmatprep.subr.mxu0 0.0
        %2739 = vmatpush1.msra.mxu0 0.0
        %2740 = vmatprep.subr.mxu0 0.0
        %2741 = vmatpush1.msra.mxu0 0.0
        %2742 = vmatprep.subr.mxu0 0.0
        %2743 = vmatpush1.msra.mxu0 0.0
        %2744 = vmatprep.subr.mxu0 0.0
        %2745 = vmatpush1.msra.mxu0 0.0
        %2746 = vmatprep.subr.mxu0 0.0
        %2747 = vmatpush1.msra.mxu0 0.0
        %2748 = vmatprep.subr.mxu0 0.0
        %2749 = vmatpush1.msra.mxu0 0.0
        %2750 = vmatprep.subr.mxu0 0.0
        %2751 = vmatpush1.msra.mxu0 0.0
        %2752 = vmatprep.subr.mxu0 0.0
        %2753 = vmatpush1.msra.mxu0 0.0
        %2754 = vmatprep.subr.mxu0 0.0
        %2755 = vmatpush1.msra.mxu0 0.0
        %2756 = vmatprep.subr.mxu0 0.0
        %2757 = vmatpush1.msra.mxu0 0.0
        %2758 = vmatprep.subr.mxu0 0.0
        %2759 = vmatpush1.msra.mxu0 0.0
        %2760 = vmatprep.subr.mxu0 0.0
        %2761 = vmatpush1.msra.mxu0 0.0
        %2762 = vmatprep.subr.mxu0 0.0
        %2763 = vmatpush1.msra.mxu0 0.0
        %2764 = vmatprep.subr.mxu0 0.0
        %2765 = vmatpush1.msra.mxu0 0.0
        %2766 = vmatprep.mubr.f32.mxu0 0.0
        %2767 = vmatmul.mubr.f32.gmra.mrb[0].mxu0 %v2700
        %v2768 = vpop.f32.mrb[0].mxu0
        %v2769 = vadd.f32 0.0, %v2768
        %v2770 = vpop.f32.mrb[0].mxu0
        %2771 = vdwg.mxu0
        %2773 = vrot.lane.b32.xlu0 %v1779, 64
        %v2774 = vpop.permute.xlu0 %2773
        %2777 = vrot.lane.b32.xlu0 %v2109, 64
        %v2778 = vpop.permute.xlu0 %2777
        %2781 = vrot.lane.b32.xlu0 %v2439, 64
        %v2782 = vpop.permute.xlu0 %2781
        %2785 = vrot.lane.b32.xlu0 %v2769, 64
        %v2786 = vpop.permute.xlu0 %2785
        %v2788 = vsel %vm949, %v1611, %v2774
        %v2789 = vsel %vm949, %v1941, %v2778
        %v2790 = vsel %vm949, %v2271, %v2782
        %v2791 = vsel %vm949, %v2601, %v2786
        %v2792 = vld [vmem:[%s5] sm:$0xff]
        %v2793 = vld [vmem:[%s5 + $0x8] sm:$0xff]
        %v2794 = vld [vmem:[%s5 + $0x10] sm:$0xff]
        %v2795 = vld [vmem:[%s5 + $0x18] sm:$0xff]
        %v2796 = vld [vmem:[%s5 + $0x20] sm:$0xff]
        %v2797 = vld [vmem:[%s5 + $0x28] sm:$0xff]
        %v2798 = vld [vmem:[%s5 + $0x30] sm:$0xff]
        %v2799 = vld [vmem:[%s5 + $0x38] sm:$0xff]
        %v2800 = vld [vmem:[%s5 + $0x40] sm:$0xff]
        %v2801 = vld [vmem:[%s5 + $0x48] sm:$0xff]
        %v2802 = vld [vmem:[%s5 + $0x50] sm:$0xff]
        %v2803 = vld [vmem:[%s5 + $0x58] sm:$0xff]
        %v2804 = vld [vmem:[%s5 + $0x60] sm:$0xff]
        %v2805 = vld [vmem:[%s5 + $0x68] sm:$0xff]
        %v2806 = vld [vmem:[%s5 + $0x70] sm:$0xff]
        %v2807 = vld [vmem:[%s5 + $0x78] sm:$0xff]
        %v2808 = vld [vmem:[%s5 + $0x80] sm:$0xff]
        %v2809 = vld [vmem:[%s5 + $0x88] sm:$0xff]
        %v2810 = vld [vmem:[%s5 + $0x90] sm:$0xff]
        %v2811 = vld [vmem:[%s5 + $0x98] sm:$0xff]
        %v2812 = vld [vmem:[%s5 + $0xa0] sm:$0xff]
        %v2813 = vld [vmem:[%s5 + $0xa8] sm:$0xff]
        %v2814 = vld [vmem:[%s5 + $0xb0] sm:$0xff]
        %v2815 = vld [vmem:[%s5 + $0xb8] sm:$0xff]
        %v2816 = vld [vmem:[%s5 + $0xc0] sm:$0xff]
        %v2817 = vld [vmem:[%s5 + $0xc8] sm:$0xff]
        %v2818 = vld [vmem:[%s5 + $0xd0] sm:$0xff]
        %v2819 = vld [vmem:[%s5 + $0xd8] sm:$0xff]
        %v2820 = vld [vmem:[%s5 + $0xe0] sm:$0xff]
        %v2821 = vld [vmem:[%s5 + $0xe8] sm:$0xff]
        %v2822 = vld [vmem:[%s5 + $0xf0] sm:$0xff]
        %v2823 = vld [vmem:[%s5 + $0xf8] sm:$0xff]
        %v2824 = vld [vmem:[%s5 + $0x100] sm:$0xff]
        %v2825 = vld [vmem:[%s5 + $0x108] sm:$0xff]
        %v2826 = vld [vmem:[%s5 + $0x110] sm:$0xff]
        %v2827 = vld [vmem:[%s5 + $0x118] sm:$0xff]
        %v2828 = vld [vmem:[%s5 + $0x120] sm:$0xff]
        %v2829 = vld [vmem:[%s5 + $0x128] sm:$0xff]
        %v2830 = vld [vmem:[%s5 + $0x130] sm:$0xff]
        %v2831 = vld [vmem:[%s5 + $0x138] sm:$0xff]
        %v2832 = vld [vmem:[%s5 + $0x140] sm:$0xff]
        %v2833 = vld [vmem:[%s5 + $0x148] sm:$0xff]
        %v2834 = vld [vmem:[%s5 + $0x150] sm:$0xff]
        %v2835 = vld [vmem:[%s5 + $0x158] sm:$0xff]
        %v2836 = vld [vmem:[%s5 + $0x160] sm:$0xff]
        %v2837 = vld [vmem:[%s5 + $0x168] sm:$0xff]
        %v2838 = vld [vmem:[%s5 + $0x170] sm:$0xff]
        %v2839 = vld [vmem:[%s5 + $0x178] sm:$0xff]
        %v2840 = vld [vmem:[%s5 + $0x180] sm:$0xff]
        %v2841 = vld [vmem:[%s5 + $0x188] sm:$0xff]
        %v2842 = vld [vmem:[%s5 + $0x190] sm:$0xff]
        %v2843 = vld [vmem:[%s5 + $0x198] sm:$0xff]
        %v2844 = vld [vmem:[%s5 + $0x1a0] sm:$0xff]
        %v2845 = vld [vmem:[%s5 + $0x1a8] sm:$0xff]
        %v2846 = vld [vmem:[%s5 + $0x1b0] sm:$0xff]
        %v2847 = vld [vmem:[%s5 + $0x1b8] sm:$0xff]
        %v2848 = vld [vmem:[%s5 + $0x1c0] sm:$0xff]
        %v2849 = vld [vmem:[%s5 + $0x1c8] sm:$0xff]
        %v2850 = vld [vmem:[%s5 + $0x1d0] sm:$0xff]
        %v2851 = vld [vmem:[%s5 + $0x1d8] sm:$0xff]
        %v2852 = vld [vmem:[%s5 + $0x1e0] sm:$0xff]
        %v2853 = vld [vmem:[%s5 + $0x1e8] sm:$0xff]
        %v2854 = vld [vmem:[%s5 + $0x1f0] sm:$0xff]
        %v2855 = vld [vmem:[%s5 + $0x1f8] sm:$0xff]
        %v2856 = vld [vmem:[%s6] sm:$0x1]
        %v2858 = vlaneseq
        %v2859 = vshrl.u32 %v2858, 7
        %v2860 = vsub.s32 0, %v2859
        %v2861 = vrot.slane %v2856, %v2860
        %2863 = vmatprep.subr.mxu0 0.0
        %2864 = vmatpush1.msra.mxu0 %v2792
        %2865 = vmatprep.subr.mxu0 0.0
        %2866 = vmatpush1.msra.mxu0 %v2793
        %2867 = vmatprep.subr.mxu0 0.0
        %2868 = vmatpush1.msra.mxu0 %v2794
        %2869 = vmatprep.subr.mxu0 0.0
        %2870 = vmatpush1.msra.mxu0 %v2795
        %2871 = vmatprep.subr.mxu0 0.0
        %2872 = vmatpush1.msra.mxu0 %v2796
        %2873 = vmatprep.subr.mxu0 0.0
        %2874 = vmatpush1.msra.mxu0 %v2797
        %2875 = vmatprep.subr.mxu0 0.0
        %2876 = vmatpush1.msra.mxu0 %v2798
        %2877 = vmatprep.subr.mxu0 0.0
        %2878 = vmatpush1.msra.mxu0 %v2799
        %2879 = vmatprep.subr.mxu0 0.0
        %2880 = vmatpush1.msra.mxu0 %v2800
        %2881 = vmatprep.subr.mxu0 0.0
        %2882 = vmatpush1.msra.mxu0 %v2801
        %2883 = vmatprep.subr.mxu0 0.0
        %2884 = vmatpush1.msra.mxu0 %v2802
        %2885 = vmatprep.subr.mxu0 0.0
        %2886 = vmatpush1.msra.mxu0 %v2803
        %2887 = vmatprep.subr.mxu0 0.0
        %2888 = vmatpush1.msra.mxu0 %v2804
        %2889 = vmatprep.subr.mxu0 0.0
        %2890 = vmatpush1.msra.mxu0 %v2805
        %2891 = vmatprep.subr.mxu0 0.0
        %2892 = vmatpush1.msra.mxu0 %v2806
        %2893 = vmatprep.subr.mxu0 0.0
        %2894 = vmatpush1.msra.mxu0 %v2807
        %2895 = vmatprep.subr.mxu0 0.0
        %2896 = vmatpush1.msra.mxu0 %v2808
        %2897 = vmatprep.subr.mxu0 0.0
        %2898 = vmatpush1.msra.mxu0 %v2809
        %2899 = vmatprep.subr.mxu0 0.0
        %2900 = vmatpush1.msra.mxu0 %v2810
        %2901 = vmatprep.subr.mxu0 0.0
        %2902 = vmatpush1.msra.mxu0 %v2811
        %2903 = vmatprep.subr.mxu0 0.0
        %2904 = vmatpush1.msra.mxu0 %v2812
        %2905 = vmatprep.subr.mxu0 0.0
        %2906 = vmatpush1.msra.mxu0 %v2813
        %2907 = vmatprep.subr.mxu0 0.0
        %2908 = vmatpush1.msra.mxu0 %v2814
        %2909 = vmatprep.subr.mxu0 0.0
        %2910 = vmatpush1.msra.mxu0 %v2815
        %2911 = vmatprep.subr.mxu0 0.0
        %2912 = vmatpush1.msra.mxu0 %v2816
        %2913 = vmatprep.subr.mxu0 0.0
        %2914 = vmatpush1.msra.mxu0 %v2817
        %2915 = vmatprep.subr.mxu0 0.0
        %2916 = vmatpush1.msra.mxu0 %v2818
        %2917 = vmatprep.subr.mxu0 0.0
        %2918 = vmatpush1.msra.mxu0 %v2819
        %2919 = vmatprep.subr.mxu0 0.0
        %2920 = vmatpush1.msra.mxu0 %v2820
        %2921 = vmatprep.subr.mxu0 0.0
        %2922 = vmatpush1.msra.mxu0 %v2821
        %2923 = vmatprep.subr.mxu0 0.0
        %2924 = vmatpush1.msra.mxu0 %v2822
        %2925 = vmatprep.subr.mxu0 0.0
        %2926 = vmatpush1.msra.mxu0 %v2823
        %2927 = vmatprep.mubr.f32.mxu0 %v2789
        %2928 = vmatmul.mubr.f32.gmra.mrb[0].mxu0 %v2788
        %v2929 = vpop.f32.mrb[0].mxu0
        %v2930 = vadd.f32 %v2861, %v2929
        %v2931 = vpop.f32.mrb[0].mxu0
        %2932 = vdwg.mxu0
        %2933 = vmatprep.subr.mxu0 0.0
        %2934 = vmatpush1.msra.mxu0 %v2824
        %2935 = vmatprep.subr.mxu0 0.0
        %2936 = vmatpush1.msra.mxu0 %v2825
        %2937 = vmatprep.subr.mxu0 0.0
        %2938 = vmatpush1.msra.mxu0 %v2826
        %2939 = vmatprep.subr.mxu0 0.0
        %2940 = vmatpush1.msra.mxu0 %v2827
        %2941 = vmatprep.subr.mxu0 0.0
        %2942 = vmatpush1.msra.mxu0 %v2828
        %2943 = vmatprep.subr.mxu0 0.0
        %2944 = vmatpush1.msra.mxu0 %v2829
        %2945 = vmatprep.subr.mxu0 0.0
        %2946 = vmatpush1.msra.mxu0 %v2830
        %2947 = vmatprep.subr.mxu0 0.0
        %2948 = vmatpush1.msra.mxu0 %v2831
        %2949 = vmatprep.subr.mxu0 0.0
        %2950 = vmatpush1.msra.mxu0 %v2832
        %2951 = vmatprep.subr.mxu0 0.0
        %2952 = vmatpush1.msra.mxu0 %v2833
        %2953 = vmatprep.subr.mxu0 0.0
        %2954 = vmatpush1.msra.mxu0 %v2834
        %2955 = vmatprep.subr.mxu0 0.0
        %2956 = vmatpush1.msra.mxu0 %v2835
        %2957 = vmatprep.subr.mxu0 0.0
        %2958 = vmatpush1.msra.mxu0 %v2836
        %2959 = vmatprep.subr.mxu0 0.0
        %2960 = vmatpush1.msra.mxu0 %v2837
        %2961 = vmatprep.subr.mxu0 0.0
        %2962 = vmatpush1.msra.mxu0 %v2838
        %2963 = vmatprep.subr.mxu0 0.0
        %2964 = vmatpush1.msra.mxu0 %v2839
        %2965 = vmatprep.subr.mxu0 0.0
        %2966 = vmatpush1.msra.mxu0 %v2840
        %2967 = vmatprep.subr.mxu0 0.0
        %2968 = vmatpush1.msra.mxu0 %v2841
        %2969 = vmatprep.subr.mxu0 0.0
        %2970 = vmatpush1.msra.mxu0 %v2842
        %2971 = vmatprep.subr.mxu0 0.0
        %2972 = vmatpush1.msra.mxu0 %v2843
        %2973 = vmatprep.subr.mxu0 0.0
        %2974 = vmatpush1.msra.mxu0 %v2844
        %2975 = vmatprep.subr.mxu0 0.0
        %2976 = vmatpush1.msra.mxu0 %v2845
        %2977 = vmatprep.subr.mxu0 0.0
        %2978 = vmatpush1.msra.mxu0 %v2846
        %2979 = vmatprep.subr.mxu0 0.0
        %2980 = vmatpush1.msra.mxu0 %v2847
        %2981 = vmatprep.subr.mxu0 0.0
        %2982 = vmatpush1.msra.mxu0 %v2848
        %2983 = vmatprep.subr.mxu0 0.0
        %2984 = vmatpush1.msra.mxu0 %v2849
        %2985 = vmatprep.subr.mxu0 0.0
        %2986 = vmatpush1.msra.mxu0 %v2850
        %2987 = vmatprep.subr.mxu0 0.0
        %2988 = vmatpush1.msra.mxu0 %v2851
        %2989 = vmatprep.subr.mxu0 0.0
        %2990 = vmatpush1.msra.mxu0 %v2852
        %2991 = vmatprep.subr.mxu0 0.0
        %2992 = vmatpush1.msra.mxu0 %v2853
        %2993 = vmatprep.subr.mxu0 0.0
        %2994 = vmatpush1.msra.mxu0 %v2854
        %2995 = vmatprep.subr.mxu0 0.0
        %2996 = vmatpush1.msra.mxu0 %v2855
        %2997 = vmatprep.mubr.f32.mxu0 %v2791
        %2998 = vmatmul.mubr.f32.gmra.mrb[0].mxu0 %v2790
        %v2999 = vpop.f32.mrb[0].mxu0
        %v3000 = vadd.f32 %v2930, %v2999
        %v3001 = vpop.f32.mrb[0].mxu0
        %3002 = vdwg.mxu0
        %v3003 = vadd.f32 %v915, %v3000
        %v3004 = vld [vmem:[%s7] sm:$0x1]
        %v3005 = vld [vmem:[%s8] sm:$0x1]
        %v3006 = vsel %vm949, %v3003, 0.0
        %3007 = vadd.xlane.f32.xlu0 %v3006
        %v3008 = vpop.xlane.xlu0 %3007
        %v3009 = vrcp.pop 64.0
        %v3010 = vmul.f32 %v3008, %v3009
        %v3011 = vsub.f32 %v3003, %v3010
        %v3012 = vmul.f32 %v3011, %v3011
        %v3013 = vsel %vm949, %v3012, 0.0
        %3014 = vadd.xlane.f32.xlu0 %v3013
        %v3015 = vpop.xlane.xlu0 %3014
        %v3016 = vmul.f32 %v3015, %v3009
        %v3017 = vadd.f32 %v3016, 1e-05
        %v3018 = vrsqrt.pop %v3017
        %v3019 = vmul.f32 %v3011, %v3018
        %v3021 = vlaneseq
        %v3022 = vshrl.u32 %v3021, 7
        %v3023 = vsub.s32 0, %v3022
        %v3024 = vrot.slane %v3004, %v3023
        %v3026 = vmul.f32 %v3019, %v3024
        %v3028 = vlaneseq
        %v3029 = vshrl.u32 %v3028, 7
        %v3030 = vsub.s32 0, %v3029
        %v3031 = vrot.slane %v3005, %v3030
        %v3033 = vadd.f32 %v3026, %v3031
        %v3034 = vld [vmem:[%s9] sm:$0xff]
        %v3035 = vld [vmem:[%s9 + $0x8] sm:$0xff]
        %v3036 = vld [vmem:[%s9 + $0x10] sm:$0xff]
        %v3037 = vld [vmem:[%s9 + $0x18] sm:$0xff]
        %v3038 = vld [vmem:[%s9 + $0x20] sm:$0xff]
        %v3039 = vld [vmem:[%s9 + $0x28] sm:$0xff]
        %v3040 = vld [vmem:[%s9 + $0x30] sm:$0xff]
        %v3041 = vld [vmem:[%s9 + $0x38] sm:$0xff]
        %v3042 = vld [vmem:[%s9 + $0x40] sm:$0xff]
        %v3043 = vld [vmem:[%s9 + $0x48] sm:$0xff]
        %v3044 = vld [vmem:[%s9 + $0x50] sm:$0xff]
        %v3045 = vld [vmem:[%s9 + $0x58] sm:$0xff]
        %v3046 = vld [vmem:[%s9 + $0x60] sm:$0xff]
        %v3047 = vld [vmem:[%s9 + $0x68] sm:$0xff]
        %v3048 = vld [vmem:[%s9 + $0x70] sm:$0xff]
        %v3049 = vld [vmem:[%s9 + $0x78] sm:$0xff]
        %v3050 = vld [vmem:[%s10] sm:$0x3]
        %v3052 = vlaneseq
        %v3053 = vshrl.u32 %v3052, 7
        %v3054 = vsub.s32 0, %v3053
        %v3055 = vrot.slane %v3050, %v3054
        %v3056 = vlaneseq
        %v3057 = vshrl.u32 %v3056, 7
        %v3058 = vsub.s32 1, %v3057
        %v3059 = vrot.slane %v3050, %v3058
        %v3063 = vsel %vm949, %v3033, 0
        %3065 = vmatprep.subr.mxu0 %v3035
        %3066 = vmatpush1.msra.mxu0 %v3034
        %3067 = vmatprep.subr.mxu0 %v3037
        %3068 = vmatpush1.msra.mxu0 %v3036
        %3069 = vmatprep.subr.mxu0 %v3039
        %3070 = vmatpush1.msra.mxu0 %v3038
        %3071 = vmatprep.subr.mxu0 %v3041
        %3072 = vmatpush1.msra.mxu0 %v3040
        %3073 = vmatprep.subr.mxu0 %v3043
        %3074 = vmatpush1.msra.mxu0 %v3042
        %3075 = vmatprep.subr.mxu0 %v3045
        %3076 = vmatpush1.msra.mxu0 %v3044
        %3077 = vmatprep.subr.mxu0 %v3047
        %3078 = vmatpush1.msra.mxu0 %v3046
        %3079 = vmatprep.subr.mxu0 %v3049
        %3080 = vmatpush1.msra.mxu0 %v3048
        %3081 = vmatprep.subr.mxu0 0.0
        %3082 = vmatpush1.msra.mxu0 0.0
        %3083 = vmatprep.subr.mxu0 0.0
        %3084 = vmatpush1.msra.mxu0 0.0
        %3085 = vmatprep.subr.mxu0 0.0
        %3086 = vmatpush1.msra.mxu0 0.0
        %3087 = vmatprep.subr.mxu0 0.0
        %3088 = vmatpush1.msra.mxu0 0.0
        %3089 = vmatprep.subr.mxu0 0.0
        %3090 = vmatpush1.msra.mxu0 0.0
        %3091 = vmatprep.subr.mxu0 0.0
        %3092 = vmatpush1.msra.mxu0 0.0
        %3093 = vmatprep.subr.mxu0 0.0
        %3094 = vmatpush1.msra.mxu0 0.0
        %3095 = vmatprep.subr.mxu0 0.0
        %3096 = vmatpush1.msra.mxu0 0.0
        %3097 = vmatprep.subr.mxu0 0.0
        %3098 = vmatpush1.msra.mxu0 0.0
        %3099 = vmatprep.subr.mxu0 0.0
        %3100 = vmatpush1.msra.mxu0 0.0
        %3101 = vmatprep.subr.mxu0 0.0
        %3102 = vmatpush1.msra.mxu0 0.0
        %3103 = vmatprep.subr.mxu0 0.0
        %3104 = vmatpush1.msra.mxu0 0.0
        %3105 = vmatprep.subr.mxu0 0.0
        %3106 = vmatpush1.msra.mxu0 0.0
        %3107 = vmatprep.subr.mxu0 0.0
        %3108 = vmatpush1.msra.mxu0 0.0
        %3109 = vmatprep.subr.mxu0 0.0
        %3110 = vmatpush1.msra.mxu0 0.0
        %3111 = vmatprep.subr.mxu0 0.0
        %3112 = vmatpush1.msra.mxu0 0.0
        %3113 = vmatprep.subr.mxu0 0.0
        %3114 = vmatpush1.msra.mxu0 0.0
        %3115 = vmatprep.subr.mxu0 0.0
        %3116 = vmatpush1.msra.mxu0 0.0
        %3117 = vmatprep.subr.mxu0 0.0
        %3118 = vmatpush1.msra.mxu0 0.0
        %3119 = vmatprep.subr.mxu0 0.0
        %3120 = vmatpush1.msra.mxu0 0.0
        %3121 = vmatprep.subr.mxu0 0.0
        %3122 = vmatpush1.msra.mxu0 0.0
        %3123 = vmatprep.subr.mxu0 0.0
        %3124 = vmatpush1.msra.mxu0 0.0
        %3125 = vmatprep.subr.mxu0 0.0
        %3126 = vmatpush1.msra.mxu0 0.0
        %3127 = vmatprep.subr.mxu0 0.0
        %3128 = vmatpush1.msra.mxu0 0.0
        %3129 = vmatprep.mubr.f32.mxu0 0.0
        %3130 = vmatmul.mubr.f32.gmra.mrb[0].mxu0 %v3063
        %v3131 = vpop.f32.mrb[0].mxu0
        %v3132 = vadd.f32 %v3055, %v3131
        %v3133 = vpop.f32.mrb[0].mxu0
        %v3134 = vadd.f32 %v3059, %v3133
        %3135 = vdwg.mxu0
        %v3136 = vmax.f32 %v3132, 0.0
        %v3137 = vmax.f32 %v3134, 0.0
        %v3138 = vld [vmem:[%s11] sm:$0xff]
        %v3139 = vld [vmem:[%s11 + $0x8] sm:$0xff]
        %v3140 = vld [vmem:[%s11 + $0x10] sm:$0xff]
        %v3141 = vld [vmem:[%s11 + $0x18] sm:$0xff]
        %v3142 = vld [vmem:[%s11 + $0x20] sm:$0xff]
        %v3143 = vld [vmem:[%s11 + $0x28] sm:$0xff]
        %v3144 = vld [vmem:[%s11 + $0x30] sm:$0xff]
        %v3145 = vld [vmem:[%s11 + $0x38] sm:$0xff]
        %v3146 = vld [vmem:[%s11 + $0x40] sm:$0xff]
        %v3147 = vld [vmem:[%s11 + $0x48] sm:$0xff]
        %v3148 = vld [vmem:[%s11 + $0x50] sm:$0xff]
        %v3149 = vld [vmem:[%s11 + $0x58] sm:$0xff]
        %v3150 = vld [vmem:[%s11 + $0x60] sm:$0xff]
        %v3151 = vld [vmem:[%s11 + $0x68] sm:$0xff]
        %v3152 = vld [vmem:[%s11 + $0x70] sm:$0xff]
        %v3153 = vld [vmem:[%s11 + $0x78] sm:$0xff]
        %v3154 = vld [vmem:[%s11 + $0x80] sm:$0xff]
        %v3155 = vld [vmem:[%s11 + $0x88] sm:$0xff]
        %v3156 = vld [vmem:[%s11 + $0x90] sm:$0xff]
        %v3157 = vld [vmem:[%s11 + $0x98] sm:$0xff]
        %v3158 = vld [vmem:[%s11 + $0xa0] sm:$0xff]
        %v3159 = vld [vmem:[%s11 + $0xa8] sm:$0xff]
        %v3160 = vld [vmem:[%s11 + $0xb0] sm:$0xff]
        %v3161 = vld [vmem:[%s11 + $0xb8] sm:$0xff]
        %v3162 = vld [vmem:[%s11 + $0xc0] sm:$0xff]
        %v3163 = vld [vmem:[%s11 + $0xc8] sm:$0xff]
        %v3164 = vld [vmem:[%s11 + $0xd0] sm:$0xff]
        %v3165 = vld [vmem:[%s11 + $0xd8] sm:$0xff]
        %v3166 = vld [vmem:[%s11 + $0xe0] sm:$0xff]
        %v3167 = vld [vmem:[%s11 + $0xe8] sm:$0xff]
        %v3168 = vld [vmem:[%s11 + $0xf0] sm:$0xff]
        %v3169 = vld [vmem:[%s11 + $0xf8] sm:$0xff]
        %v3170 = vld [vmem:[%s12] sm:$0x1]
        %v3172 = vlaneseq
        %v3173 = vshrl.u32 %v3172, 7
        %v3174 = vsub.s32 0, %v3173
        %v3175 = vrot.slane %v3170, %v3174
        %3177 = vmatprep.subr.mxu0 0.0
        %3178 = vmatpush1.msra.mxu0 %v3138
        %3179 = vmatprep.subr.mxu0 0.0
        %3180 = vmatpush1.msra.mxu0 %v3139
        %3181 = vmatprep.subr.mxu0 0.0
        %3182 = vmatpush1.msra.mxu0 %v3140
        %3183 = vmatprep.subr.mxu0 0.0
        %3184 = vmatpush1.msra.mxu0 %v3141
        %3185 = vmatprep.subr.mxu0 0.0
        %3186 = vmatpush1.msra.mxu0 %v3142
        %3187 = vmatprep.subr.mxu0 0.0
        %3188 = vmatpush1.msra.mxu0 %v3143
        %3189 = vmatprep.subr.mxu0 0.0
        %3190 = vmatpush1.msra.mxu0 %v3144
        %3191 = vmatprep.subr.mxu0 0.0
        %3192 = vmatpush1.msra.mxu0 %v3145
        %3193 = vmatprep.subr.mxu0 0.0
        %3194 = vmatpush1.msra.mxu0 %v3146
        %3195 = vmatprep.subr.mxu0 0.0
        %3196 = vmatpush1.msra.mxu0 %v3147
        %3197 = vmatprep.subr.mxu0 0.0
        %3198 = vmatpush1.msra.mxu0 %v3148
        %3199 = vmatprep.subr.mxu0 0.0
        %3200 = vmatpush1.msra.mxu0 %v3149
        %3201 = vmatprep.subr.mxu0 0.0
        %3202 = vmatpush1.msra.mxu0 %v3150
        %3203 = vmatprep.subr.mxu0 0.0
        %3204 = vmatpush1.msra.mxu0 %v3151
        %3205 = vmatprep.subr.mxu0 0.0
        %3206 = vmatpush1.msra.mxu0 %v3152
        %3207 = vmatprep.subr.mxu0 0.0
        %3208 = vmatpush1.msra.mxu0 %v3153
        %3209 = vmatprep.subr.mxu0 0.0
        %3210 = vmatpush1.msra.mxu0 %v3154
        %3211 = vmatprep.subr.mxu0 0.0
        %3212 = vmatpush1.msra.mxu0 %v3155
        %3213 = vmatprep.subr.mxu0 0.0
        %3214 = vmatpush1.msra.mxu0 %v3156
        %3215 = vmatprep.subr.mxu0 0.0
        %3216 = vmatpush1.msra.mxu0 %v3157
        %3217 = vmatprep.subr.mxu0 0.0
        %3218 = vmatpush1.msra.mxu0 %v3158
        %3219 = vmatprep.subr.mxu0 0.0
        %3220 = vmatpush1.msra.mxu0 %v3159
        %3221 = vmatprep.subr.mxu0 0.0
        %3222 = vmatpush1.msra.mxu0 %v3160
        %3223 = vmatprep.subr.mxu0 0.0
        %3224 = vmatpush1.msra.mxu0 %v3161
        %3225 = vmatprep.subr.mxu0 0.0
        %3226 = vmatpush1.msra.mxu0 %v3162
        %3227 = vmatprep.subr.mxu0 0.0
        %3228 = vmatpush1.msra.mxu0 %v3163
        %3229 = vmatprep.subr.mxu0 0.0
        %3230 = vmatpush1.msra.mxu0 %v3164
        %3231 = vmatprep.subr.mxu0 0.0
        %3232 = vmatpush1.msra.mxu0 %v3165
        %3233 = vmatprep.subr.mxu0 0.0
        %3234 = vmatpush1.msra.mxu0 %v3166
        %3235 = vmatprep.subr.mxu0 0.0
        %3236 = vmatpush1.msra.mxu0 %v3167
        %3237 = vmatprep.subr.mxu0 0.0
        %3238 = vmatpush1.msra.mxu0 %v3168
        %3239 = vmatprep.subr.mxu0 0.0
        %3240 = vmatpush1.msra.mxu0 %v3169
        %3241 = vmatprep.mubr.f32.mxu0 %v3137
        %3242 = vmatmul.mubr.f32.gmra.mrb[0].mxu0 %v3136
        %v3243 = vpop.f32.mrb[0].mxu0
        %v3244 = vadd.f32 %v3175, %v3243
        %v3245 = vpop.f32.mrb[0].mxu0
        %3246 = vdwg.mxu0
        %v3247 = vadd.f32 %v3033, %v3244
        %v3248 = vld [vmem:[%s13] sm:$0x1]
        %v3249 = vld [vmem:[%s14] sm:$0x1]
        %v3250 = vsel %vm949, %v3247, 0.0
        %3251 = vadd.xlane.f32.xlu0 %v3250
        %v3252 = vpop.xlane.xlu0 %3251
        %v3253 = vmul.f32 %v3252, %v3009
        %v3254 = vsub.f32 %v3247, %v3253
        %v3255 = vmul.f32 %v3254, %v3254
        %v3256 = vsel %vm949, %v3255, 0.0
        %3257 = vadd.xlane.f32.xlu0 %v3256
        %v3258 = vpop.xlane.xlu0 %3257
        %v3259 = vmul.f32 %v3258, %v3009
        %v3260 = vadd.f32 %v3259, 1e-05
        %v3261 = vrsqrt.pop %v3260
        %v3262 = vmul.f32 %v3254, %v3261
        %v3264 = vlaneseq
        %v3265 = vshrl.u32 %v3264, 7
        %v3266 = vsub.s32 0, %v3265
        %v3267 = vrot.slane %v3248, %v3266
        %v3269 = vmul.f32 %v3262, %v3267
        %v3271 = vlaneseq
        %v3272 = vshrl.u32 %v3271, 7
        %v3273 = vsub.s32 0, %v3272
        %v3274 = vrot.slane %v3249, %v3273
        %v3276 = vadd.f32 %v3269, %v3274
        %v3277 = vld [vmem:[%s15] sm:$0xff]
        %v3278 = vld [vmem:[%s15 + $0x8] sm:$0xff]
        %v3279 = vld [vmem:[%s15 + $0x10] sm:$0xff]
        %v3280 = vld [vmem:[%s15 + $0x18] sm:$0xff]
        %v3281 = vld [vmem:[%s15 + $0x20] sm:$0xff]
        %v3282 = vld [vmem:[%s15 + $0x28] sm:$0xff]
        %v3283 = vld [vmem:[%s15 + $0x30] sm:$0xff]
        %v3284 = vld [vmem:[%s15 + $0x38] sm:$0xff]
        %v3285 = vld [vmem:[%s15 + $0x40] sm:$0xff]
        %v3286 = vld [vmem:[%s15 + $0x48] sm:$0xff]
        %v3287 = vld [vmem:[%s15 + $0x50] sm:$0xff]
        %v3288 = vld [vmem:[%s15 + $0x58] sm:$0xff]
        %v3289 = vld [vmem:[%s15 + $0x60] sm:$0xff]
        %v3290 = vld [vmem:[%s15 + $0x68] sm:$0xff]
        %v3291 = vld [vmem:[%s15 + $0x70] sm:$0xff]
        %v3292 = vld [vmem:[%s15 + $0x78] sm:$0xff]
        %v3293 = vld [vmem:[%s15 + $0x80] sm:$0xff]
        %v3294 = vld [vmem:[%s15 + $0x88] sm:$0xff]
        %v3295 = vld [vmem:[%s15 + $0x90] sm:$0xff]
        %v3296 = vld [vmem:[%s15 + $0x98] sm:$0xff]
        %v3297 = vld [vmem:[%s15 + $0xa0] sm:$0xff]
        %v3298 = vld [vmem:[%s15 + $0xa8] sm:$0xff]
        %v3299 = vld [vmem:[%s15 + $0xb0] sm:$0xff]
        %v3300 = vld [vmem:[%s15 + $0xb8] sm:$0xff]
        %v3301 = vld [vmem:[%s15 + $0xc0] sm:$0xff]
        %v3302 = vld [vmem:[%s15 + $0xc8] sm:$0xff]
        %v3303 = vld [vmem:[%s15 + $0xd0] sm:$0xff]
        %v3304 = vld [vmem:[%s15 + $0xd8] sm:$0xff]
        %v3305 = vld [vmem:[%s15 + $0xe0] sm:$0xff]
        %v3306 = vld [vmem:[%s15 + $0xe8] sm:$0xff]
        %v3307 = vld [vmem:[%s15 + $0xf0] sm:$0xff]
        %v3308 = vld [vmem:[%s15 + $0xf8] sm:$0xff]
        %v3310 = vsel %vm949, %v916, 0
        %3312 = vmatprep.subr.mxu0 %v3278
        %3313 = vmatpush1.msra.mxu0 %v3277
        %3314 = vmatprep.subr.mxu0 %v3282
        %3315 = vmatpush1.msra.mxu0 %v3281
        %3316 = vmatprep.subr.mxu0 %v3286
        %3317 = vmatpush1.msra.mxu0 %v3285
        %3318 = vmatprep.subr.mxu0 %v3290
        %3319 = vmatpush1.msra.mxu0 %v3289
        %3320 = vmatprep.subr.mxu0 %v3294
        %3321 = vmatpush1.msra.mxu0 %v3293
        %3322 = vmatprep.subr.mxu0 %v3298
        %3323 = vmatpush1.msra.mxu0 %v3297
        %3324 = vmatprep.subr.mxu0 %v3302
        %3325 = vmatpush1.msra.mxu0 %v3301
        %3326 = vmatprep.subr.mxu0 %v3306
        %3327 = vmatpush1.msra.mxu0 %v3305
        %3328 = vmatprep.subr.mxu0 0.0
        %3329 = vmatpush1.msra.mxu0 0.0
        %3330 = vmatprep.subr.mxu0 0.0
        %3331 = vmatpush1.msra.mxu0 0.0
        %3332 = vmatprep.subr.mxu0 0.0
        %3333 = vmatpush1.msra.mxu0 0.0
        %3334 = vmatprep.subr.mxu0 0.0
        %3335 = vmatpush1.msra.mxu0 0.0
        %3336 = vmatprep.subr.mxu0 0.0
        %3337 = vmatpush1.msra.mxu0 0.0
        %3338 = vmatprep.subr.mxu0 0.0
        %3339 = vmatpush1.msra.mxu0 0.0
        %3340 = vmatprep.subr.mxu0 0.0
        %3341 = vmatpush1.msra.mxu0 0.0
        %3342 = vmatprep.subr.mxu0 0.0
        %3343 = vmatpush1.msra.mxu0 0.0
        %3344 = vmatprep.subr.mxu0 0.0
        %3345 = vmatpush1.msra.mxu0 0.0
        %3346 = vmatprep.subr.mxu0 0.0
        %3347 = vmatpush1.msra.mxu0 0.0
        %3348 = vmatprep.subr.mxu0 0.0
        %3349 = vmatpush1.msra.mxu0 0.0
        %3350 = vmatprep.subr.mxu0 0.0
        %3351 = vmatpush1.msra.mxu0 0.0
        %3352 = vmatprep.subr.mxu0 0.0
        %3353 = vmatpush1.msra.mxu0 0.0
        %3354 = vmatprep.subr.mxu0 0.0
        %3355 = vmatpush1.msra.mxu0 0.0
        %3356 = vmatprep.subr.mxu0 0.0
        %3357 = vmatpush1.msra.mxu0 0.0
        %3358 = vmatprep.subr.mxu0 0.0
        %3359 = vmatpush1.msra.mxu0 0.0
        %3360 = vmatprep.subr.mxu0 0.0
        %3361 = vmatpush1.msra.mxu0 0.0
        %3362 = vmatprep.subr.mxu0 0.0
        %3363 = vmatpush1.msra.mxu0 0.0
        %3364 = vmatprep.subr.mxu0 0.0
        %3365 = vmatpush1.msra.mxu0 0.0
        %3366 = vmatprep.subr.mxu0 0.0
        %3367 = vmatpush1.msra.mxu0 0.0
        %3368 = vmatprep.subr.mxu0 0.0
        %3369 = vmatpush1.msra.mxu0 0.0
        %3370 = vmatprep.subr.mxu0 0.0
        %3371 = vmatpush1.msra.mxu0 0.0
        %3372 = vmatprep.subr.mxu0 0.0
        %3373 = vmatpush1.msra.mxu0 0.0
        %3374 = vmatprep.subr.mxu0 0.0
        %3375 = vmatpush1.msra.mxu0 0.0
        %3376 = vmatprep.mubr.f32.mxu0 0.0
        %3377 = vmatmul.mubr.f32.gmra.mrb[0].mxu0 %v3310
        %v3378 = vpop.f32.mrb[0].mxu0
        %v3379 = vadd.f32 0.0, %v3378
        %v3380 = vpop.f32.mrb[0].mxu0
        %v3381 = vadd.f32 0.0, %v3380
        %3382 = vdwg.mxu0
        %3383 = vmatprep.subr.mxu0 %v3280
        %3384 = vmatpush1.msra.mxu0 %v3279
        %3385 = vmatprep.subr.mxu0 %v3284
        %3386 = vmatpush1.msra.mxu0 %v3283
        %3387 = vmatprep.subr.mxu0 %v3288
        %3388 = vmatpush1.msra.mxu0 %v3287
        %3389 = vmatprep.subr.mxu0 %v3292
        %3390 = vmatpush1.msra.mxu0 %v3291
        %3391 = vmatprep.subr.mxu0 %v3296
        %3392 = vmatpush1.msra.mxu0 %v3295
        %3393 = vmatprep.subr.mxu0 %v3300
        %3394 = vmatpush1.msra.mxu0 %v3299
        %3395 = vmatprep.subr.mxu0 %v3304
        %3396 = vmatpush1.msra.mxu0 %v3303
        %3397 = vmatprep.subr.mxu0 %v3308
        %3398 = vmatpush1.msra.mxu0 %v3307
        %3399 = vmatprep.subr.mxu0 0.0
        %3400 = vmatpush1.msra.mxu0 0.0
        %3401 = vmatprep.subr.mxu0 0.0
        %3402 = vmatpush1.msra.mxu0 0.0
        %3403 = vmatprep.subr.mxu0 0.0
        %3404 = vmatpush1.msra.mxu0 0.0
        %3405 = vmatprep.subr.mxu0 0.0
        %3406 = vmatpush1.msra.mxu0 0.0
        %3407 = vmatprep.subr.mxu0 0.0
        %3408 = vmatpush1.msra.mxu0 0.0
        %3409 = vmatprep.subr.mxu0 0.0
        %3410 = vmatpush1.msra.mxu0 0.0
        %3411 = vmatprep.subr.mxu0 0.0
        %3412 = vmatpush1.msra.mxu0 0.0
        %3413 = vmatprep.subr.mxu0 0.0
        %3414 = vmatpush1.msra.mxu0 0.0
        %3415 = vmatprep.subr.mxu0 0.0
        %3416 = vmatpush1.msra.mxu0 0.0
        %3417 = vmatprep.subr.mxu0 0.0
        %3418 = vmatpush1.msra.mxu0 0.0
        %3419 = vmatprep.subr.mxu0 0.0
        %3420 = vmatpush1.msra.mxu0 0.0
        %3421 = vmatprep.subr.mxu0 0.0
        %3422 = vmatpush1.msra.mxu0 0.0
        %3423 = vmatprep.subr.mxu0 0.0
        %3424 = vmatpush1.msra.mxu0 0.0
        %3425 = vmatprep.subr.mxu0 0.0
        %3426 = vmatpush1.msra.mxu0 0.0
        %3427 = vmatprep.subr.mxu0 0.0
        %3428 = vmatpush1.msra.mxu0 0.0
        %3429 = vmatprep.subr.mxu0 0.0
        %3430 = vmatpush1.msra.mxu0 0.0
        %3431 = vmatprep.subr.mxu0 0.0
        %3432 = vmatpush1.msra.mxu0 0.0
        %3433 = vmatprep.subr.mxu0 0.0
        %3434 = vmatpush1.msra.mxu0 0.0
        %3435 = vmatprep.subr.mxu0 0.0
        %3436 = vmatpush1.msra.mxu0 0.0
        %3437 = vmatprep.subr.mxu0 0.0
        %3438 = vmatpush1.msra.mxu0 0.0
        %3439 = vmatprep.subr.mxu0 0.0
        %3440 = vmatpush1.msra.mxu0 0.0
        %3441 = vmatprep.subr.mxu0 0.0
        %3442 = vmatpush1.msra.mxu0 0.0
        %3443 = vmatprep.subr.mxu0 0.0
        %3444 = vmatpush1.msra.mxu0 0.0
        %3445 = vmatprep.subr.mxu0 0.0
        %3446 = vmatpush1.msra.mxu0 0.0
        %3447 = vmatprep.mubr.f32.mxu0 0.0
        %3448 = vmatmul.mubr.f32.gmra.mrb[0].mxu0 %v3310
        %v3449 = vpop.f32.mrb[0].mxu0
        %v3450 = vadd.f32 0.0, %v3449
        %v3451 = vpop.f32.mrb[0].mxu0
        %v3452 = vadd.f32 0.0, %v3451
        %3453 = vdwg.mxu0
        %v3454 = vld [vmem:[%s16] sm:$0xff]
        %v3455 = vld [vmem:[%s16 + $0x8] sm:$0xff]
        %v3456 = vld [vmem:[%s16 + $0x10] sm:$0xff]
        %v3457 = vld [vmem:[%s16 + $0x18] sm:$0xff]
        %v3458 = vld [vmem:[%s16 + $0x20] sm:$0xff]
        %v3459 = vld [vmem:[%s16 + $0x28] sm:$0xff]
        %v3460 = vld [vmem:[%s16 + $0x30] sm:$0xff]
        %v3461 = vld [vmem:[%s16 + $0x38] sm:$0xff]
        %v3462 = vld [vmem:[%s16 + $0x40] sm:$0xff]
        %v3463 = vld [vmem:[%s16 + $0x48] sm:$0xff]
        %v3464 = vld [vmem:[%s16 + $0x50] sm:$0xff]
        %v3465 = vld [vmem:[%s16 + $0x58] sm:$0xff]
        %v3466 = vld [vmem:[%s16 + $0x60] sm:$0xff]
        %v3467 = vld [vmem:[%s16 + $0x68] sm:$0xff]
        %v3468 = vld [vmem:[%s16 + $0x70] sm:$0xff]
        %v3469 = vld [vmem:[%s16 + $0x78] sm:$0xff]
        %v3470 = vld [vmem:[%s16 + $0x80] sm:$0xff]
        %v3471 = vld [vmem:[%s16 + $0x88] sm:$0xff]
        %v3472 = vld [vmem:[%s16 + $0x90] sm:$0xff]
        %v3473 = vld [vmem:[%s16 + $0x98] sm:$0xff]
        %v3474 = vld [vmem:[%s16 + $0xa0] sm:$0xff]
        %v3475 = vld [vmem:[%s16 + $0xa8] sm:$0xff]
        %v3476 = vld [vmem:[%s16 + $0xb0] sm:$0xff]
        %v3477 = vld [vmem:[%s16 + $0xb8] sm:$0xff]
        %v3478 = vld [vmem:[%s16 + $0xc0] sm:$0xff]
        %v3479 = vld [vmem:[%s16 + $0xc8] sm:$0xff]
        %v3480 = vld [vmem:[%s16 + $0xd0] sm:$0xff]
        %v3481 = vld [vmem:[%s16 + $0xd8] sm:$0xff]
        %v3482 = vld [vmem:[%s16 + $0xe0] sm:$0xff]
        %v3483 = vld [vmem:[%s16 + $0xe8] sm:$0xff]
        %v3484 = vld [vmem:[%s16 + $0xf0] sm:$0xff]
        %v3485 = vld [vmem:[%s16 + $0xf8] sm:$0xff]
        %v3486 = vld [vmem:[%s16 + $0x100] sm:$0xff]
        %v3487 = vld [vmem:[%s16 + $0x108] sm:$0xff]
        %v3488 = vld [vmem:[%s16 + $0x110] sm:$0xff]
        %v3489 = vld [vmem:[%s16 + $0x118] sm:$0xff]
        %v3490 = vld [vmem:[%s16 + $0x120] sm:$0xff]
        %v3491 = vld [vmem:[%s16 + $0x128] sm:$0xff]
        %v3492 = vld [vmem:[%s16 + $0x130] sm:$0xff]
        %v3493 = vld [vmem:[%s16 + $0x138] sm:$0xff]
        %v3494 = vld [vmem:[%s16 + $0x140] sm:$0xff]
        %v3495 = vld [vmem:[%s16 + $0x148] sm:$0xff]
        %v3496 = vld [vmem:[%s16 + $0x150] sm:$0xff]
        %v3497 = vld [vmem:[%s16 + $0x158] sm:$0xff]
        %v3498 = vld [vmem:[%s16 + $0x160] sm:$0xff]
        %v3499 = vld [vmem:[%s16 + $0x168] sm:$0xff]
        %v3500 = vld [vmem:[%s16 + $0x170] sm:$0xff]
        %v3501 = vld [vmem:[%s16 + $0x178] sm:$0xff]
        %v3502 = vld [vmem:[%s16 + $0x180] sm:$0xff]
        %v3503 = vld [vmem:[%s16 + $0x188] sm:$0xff]
        %v3504 = vld [vmem:[%s16 + $0x190] sm:$0xff]
        %v3505 = vld [vmem:[%s16 + $0x198] sm:$0xff]
        %v3506 = vld [vmem:[%s16 + $0x1a0] sm:$0xff]
        %v3507 = vld [vmem:[%s16 + $0x1a8] sm:$0xff]
        %v3508 = vld [vmem:[%s16 + $0x1b0] sm:$0xff]
        %v3509 = vld [vmem:[%s16 + $0x1b8] sm:$0xff]
        %v3510 = vld [vmem:[%s16 + $0x1c0] sm:$0xff]
        %v3511 = vld [vmem:[%s16 + $0x1c8] sm:$0xff]
        %v3512 = vld [vmem:[%s16 + $0x1d0] sm:$0xff]
        %v3513 = vld [vmem:[%s16 + $0x1d8] sm:$0xff]
        %v3514 = vld [vmem:[%s16 + $0x1e0] sm:$0xff]
        %v3515 = vld [vmem:[%s16 + $0x1e8] sm:$0xff]
        %v3516 = vld [vmem:[%s16 + $0x1f0] sm:$0xff]
        %v3517 = vld [vmem:[%s16 + $0x1f8] sm:$0xff]
        %v3519 = vsel %vm949, %v3276, 0
        %3521 = vmatprep.subr.mxu0 %v3455
        %3522 = vmatpush1.msra.mxu0 %v3454
        %3523 = vmatprep.subr.mxu0 %v3463
        %3524 = vmatpush1.msra.mxu0 %v3462
        %3525 = vmatprep.subr.mxu0 %v3471
        %3526 = vmatpush1.msra.mxu0 %v3470
        %3527 = vmatprep.subr.mxu0 %v3479
        %3528 = vmatpush1.msra.mxu0 %v3478
        %3529 = vmatprep.subr.mxu0 %v3487
        %3530 = vmatpush1.msra.mxu0 %v3486
        %3531 = vmatprep.subr.mxu0 %v3495
        %3532 = vmatpush1.msra.mxu0 %v3494
        %3533 = vmatprep.subr.mxu0 %v3503
        %3534 = vmatpush1.msra.mxu0 %v3502
        %3535 = vmatprep.subr.mxu0 %v3511
        %3536 = vmatpush1.msra.mxu0 %v3510
        %3537 = vmatprep.subr.mxu0 0.0
        %3538 = vmatpush1.msra.mxu0 0.0
        %3539 = vmatprep.subr.mxu0 0.0
        %3540 = vmatpush1.msra.mxu0 0.0
        %3541 = vmatprep.subr.mxu0 0.0
        %3542 = vmatpush1.msra.mxu0 0.0
        %3543 = vmatprep.subr.mxu0 0.0
        %3544 = vmatpush1.msra.mxu0 0.0
        %3545 = vmatprep.subr.mxu0 0.0
        %3546 = vmatpush1.msra.mxu0 0.0
        %3547 = vmatprep.subr.mxu0 0.0
        %3548 = vmatpush1.msra.mxu0 0.0
        %3549 = vmatprep.subr.mxu0 0.0
        %3550 = vmatpush1.msra.mxu0 0.0
        %3551 = vmatprep.subr.mxu0 0.0
        %3552 = vmatpush1.msra.mxu0 0.0
        %3553 = vmatprep.subr.mxu0 0.0
        %3554 = vmatpush1.msra.mxu0 0.0
        %3555 = vmatprep.subr.mxu0 0.0
        %3556 = vmatpush1.msra.mxu0 0.0
        %3557 = vmatprep.subr.mxu0 0.0
        %3558 = vmatpush1.msra.mxu0 0.0
        %3559 = vmatprep.subr.mxu0 0.0
        %3560 = vmatpush1.msra.mxu0 0.0
        %3561 = vmatprep.subr.mxu0 0.0
        %3562 = vmatpush1.msra.mxu0 0.0
        %3563 = vmatprep.subr.mxu0 0.0
        %3564 = vmatpush1.msra.mxu0 0.0
        %3565 = vmatprep.subr.mxu0 0.0
        %3566 = vmatpush1.msra.mxu0 0.0
        %3567 = vmatprep.subr.mxu0 0.0
        %3568 = vmatpush1.msra.mxu0 0.0
        %3569 = vmatprep.subr.mxu0 0.0
        %3570 = vmatpush1.msra.mxu0 0.0
        %3571 = vmatprep.subr.mxu0 0.0
        %3572 = vmatpush1.msra.mxu0 0.0
        %3573 = vmatprep.subr.mxu0 0.0
        %3574 = vmatpush1.msra.mxu0 0.0
        %3575 = vmatprep.subr.mxu0 0.0
        %3576 = vmatpush1.msra.mxu0 0.0
        %3577 = vmatprep.subr.mxu0 0.0
        %3578 = vmatpush1.msra.mxu0 0.0
        %3579 = vmatprep.subr.mxu0 0.0
        %3580 = vmatpush1.msra.mxu0 0.0
        %3581 = vmatprep.subr.mxu0 0.0
        %3582 = vmatpush1.msra.mxu0 0.0
        %3583 = vmatprep.subr.mxu0 0.0
        %3584 = vmatpush1.msra.mxu0 0.0
        %3585 = vmatprep.mubr.f32.mxu0 0.0
        %3586 = vmatmul.mubr.f32.gmra.mrb[0].mxu0 %v3519
        %v3587 = vpop.f32.mrb[0].mxu0
        %v3588 = vadd.f32 0.0, %v3587
        %v3589 = vpop.f32.mrb[0].mxu0
        %v3590 = vadd.f32 0.0, %v3589
        %3591 = vdwg.mxu0
        %3592 = vmatprep.subr.mxu0 %v3457
        %3593 = vmatpush1.msra.mxu0 %v3456
        %3594 = vmatprep.subr.mxu0 %v3465
        %3595 = vmatpush1.msra.mxu0 %v3464
        %3596 = vmatprep.subr.mxu0 %v3473
        %3597 = vmatpush1.msra.mxu0 %v3472
        %3598 = vmatprep.subr.mxu0 %v3481
        %3599 = vmatpush1.msra.mxu0 %v3480
        %3600 = vmatprep.subr.mxu0 %v3489
        %3601 = vmatpush1.msra.mxu0 %v3488
        %3602 = vmatprep.subr.mxu0 %v3497
        %3603 = vmatpush1.msra.mxu0 %v3496
        %3604 = vmatprep.subr.mxu0 %v3505
        %3605 = vmatpush1.msra.mxu0 %v3504
        %3606 = vmatprep.subr.mxu0 %v3513
        %3607 = vmatpush1.msra.mxu0 %v3512
        %3608 = vmatprep.subr.mxu0 0.0
        %3609 = vmatpush1.msra.mxu0 0.0
        %3610 = vmatprep.subr.mxu0 0.0
        %3611 = vmatpush1.msra.mxu0 0.0
        %3612 = vmatprep.subr.mxu0 0.0
        %3613 = vmatpush1.msra.mxu0 0.0
        %3614 = vmatprep.subr.mxu0 0.0
        %3615 = vmatpush1.msra.mxu0 0.0
        %3616 = vmatprep.subr.mxu0 0.0
        %3617 = vmatpush1.msra.mxu0 0.0
        %3618 = vmatprep.subr.mxu0 0.0
        %3619 = vmatpush1.msra.mxu0 0.0
        %3620 = vmatprep.subr.mxu0 0.0
        %3621 = vmatpush1.msra.mxu0 0.0
        %3622 = vmatprep.subr.mxu0 0.0
        %3623 = vmatpush1.msra.mxu0 0.0
        %3624 = vmatprep.subr.mxu0 0.0
        %3625 = vmatpush1.msra.mxu0 0.0
        %3626 = vmatprep.subr.mxu0 0.0
        %3627 = vmatpush1.msra.mxu0 0.0
        %3628 = vmatprep.subr.mxu0 0.0
        %3629 = vmatpush1.msra.mxu0 0.0
        %3630 = vmatprep.subr.mxu0 0.0
        %3631 = vmatpush1.msra.mxu0 0.0
        %3632 = vmatprep.subr.mxu0 0.0
        %3633 = vmatpush1.msra.mxu0 0.0
        %3634 = vmatprep.subr.mxu0 0.0
        %3635 = vmatpush1.msra.mxu0 0.0
        %3636 = vmatprep.subr.mxu0 0.0
        %3637 = vmatpush1.msra.mxu0 0.0
        %3638 = vmatprep.subr.mxu0 0.0
        %3639 = vmatpush1.msra.mxu0 0.0
        %3640 = vmatprep.subr.mxu0 0.0
        %3641 = vmatpush1.msra.mxu0 0.0
        %3642 = vmatprep.subr.mxu0 0.0
        %3643 = vmatpush1.msra.mxu0 0.0
        %3644 = vmatprep.subr.mxu0 0.0
        %3645 = vmatpush1.msra.mxu0 0.0
        %3646 = vmatprep.subr.mxu0 0.0
        %3647 = vmatpush1.msra.mxu0 0.0
        %3648 = vmatprep.subr.mxu0 0.0
        %3649 = vmatpush1.msra.mxu0 0.0
        %3650 = vmatprep.subr.mxu0 0.0
        %3651 = vmatpush1.msra.mxu0 0.0
        %3652 = vmatprep.subr.mxu0 0.0
        %3653 = vmatpush1.msra.mxu0 0.0
        %3654 = vmatprep.subr.mxu0 0.0
        %3655 = vmatpush1.msra.mxu0 0.0
        %3656 = vmatprep.mubr.f32.mxu0 0.0
        %3657 = vmatmul.mubr.f32.gmra.mrb[0].mxu0 %v3519
        %v3658 = vpop.f32.mrb[0].mxu0
        %v3659 = vadd.f32 0.0, %v3658
        %v3660 = vpop.f32.mrb[0].mxu0
        %v3661 = vadd.f32 0.0, %v3660
        %3662 = vdwg.mxu0
        %3663 = vmatprep.subr.mxu0 %v3459
        %3664 = vmatpush1.msra.mxu0 %v3458
        %3665 = vmatprep.subr.mxu0 %v3467
        %3666 = vmatpush1.msra.mxu0 %v3466
        %3667 = vmatprep.subr.mxu0 %v3475
        %3668 = vmatpush1.msra.mxu0 %v3474
        %3669 = vmatprep.subr.mxu0 %v3483
        %3670 = vmatpush1.msra.mxu0 %v3482
        %3671 = vmatprep.subr.mxu0 %v3491
        %3672 = vmatpush1.msra.mxu0 %v3490
        %3673 = vmatprep.subr.mxu0 %v3499
        %3674 = vmatpush1.msra.mxu0 %v3498
        %3675 = vmatprep.subr.mxu0 %v3507
        %3676 = vmatpush1.msra.mxu0 %v3506
        %3677 = vmatprep.subr.mxu0 %v3515
        %3678 = vmatpush1.msra.mxu0 %v3514
        %3679 = vmatprep.subr.mxu0 0.0
        %3680 = vmatpush1.msra.mxu0 0.0
        %3681 = vmatprep.subr.mxu0 0.0
        %3682 = vmatpush1.msra.mxu0 0.0
        %3683 = vmatprep.subr.mxu0 0.0
        %3684 = vmatpush1.msra.mxu0 0.0
        %3685 = vmatprep.subr.mxu0 0.0
        %3686 = vmatpush1.msra.mxu0 0.0
        %3687 = vmatprep.subr.mxu0 0.0
        %3688 = vmatpush1.msra.mxu0 0.0
        %3689 = vmatprep.subr.mxu0 0.0
        %3690 = vmatpush1.msra.mxu0 0.0
        %3691 = vmatprep.subr.mxu0 0.0
        %3692 = vmatpush1.msra.mxu0 0.0
        %3693 = vmatprep.subr.mxu0 0.0
        %3694 = vmatpush1.msra.mxu0 0.0
        %3695 = vmatprep.subr.mxu0 0.0
        %3696 = vmatpush1.msra.mxu0 0.0
        %3697 = vmatprep.subr.mxu0 0.0
        %3698 = vmatpush1.msra.mxu0 0.0
        %3699 = vmatprep.subr.mxu0 0.0
        %3700 = vmatpush1.msra.mxu0 0.0
        %3701 = vmatprep.subr.mxu0 0.0
        %3702 = vmatpush1.msra.mxu0 0.0
        %3703 = vmatprep.subr.mxu0 0.0
        %3704 = vmatpush1.msra.mxu0 0.0
        %3705 = vmatprep.subr.mxu0 0.0
        %3706 = vmatpush1.msra.mxu0 0.0
        %3707 = vmatprep.subr.mxu0 0.0
        %3708 = vmatpush1.msra.mxu0 0.0
        %3709 = vmatprep.subr.mxu0 0.0
        %3710 = vmatpush1.msra.mxu0 0.0
        %3711 = vmatprep.subr.mxu0 0.0
        %3712 = vmatpush1.msra.mxu0 0.0
        %3713 = vmatprep.subr.mxu0 0.0
        %3714 = vmatpush1.msra.mxu0 0.0
        %3715 = vmatprep.subr.mxu0 0.0
        %3716 = vmatpush1.msra.mxu0 0.0
        %3717 = vmatprep.subr.mxu0 0.0
        %3718 = vmatpush1.msra.mxu0 0.0
        %3719 = vmatprep.subr.mxu0 0.0
        %3720 = vmatpush1.msra.mxu0 0.0
        %3721 = vmatprep.subr.mxu0 0.0
        %3722 = vmatpush1.msra.mxu0 0.0
        %3723 = vmatprep.subr.mxu0 0.0
        %3724 = vmatpush1.msra.mxu0 0.0
        %3725 = vmatprep.subr.mxu0 0.0
        %3726 = vmatpush1.msra.mxu0 0.0
        %3727 = vmatprep.mubr.f32.mxu0 0.0
        %3728 = vmatmul.mubr.f32.gmra.mrb[0].mxu0 %v3519
        %v3729 = vpop.f32.mrb[0].mxu0
        %v3730 = vadd.f32 0.0, %v3729
        %v3731 = vpop.f32.mrb[0].mxu0
        %v3732 = vadd.f32 0.0, %v3731
        %3733 = vdwg.mxu0
        %3734 = vmatprep.subr.mxu0 %v3461
        %3735 = vmatpush1.msra.mxu0 %v3460
        %3736 = vmatprep.subr.mxu0 %v3469
        %3737 = vmatpush1.msra.mxu0 %v3468
        %3738 = vmatprep.subr.mxu0 %v3477
        %3739 = vmatpush1.msra.mxu0 %v3476
        %3740 = vmatprep.subr.mxu0 %v3485
        %3741 = vmatpush1.msra.mxu0 %v3484
        %3742 = vmatprep.subr.mxu0 %v3493
        %3743 = vmatpush1.msra.mxu0 %v3492
        %3744 = vmatprep.subr.mxu0 %v3501
        %3745 = vmatpush1.msra.mxu0 %v3500
        %3746 = vmatprep.subr.mxu0 %v3509
        %3747 = vmatpush1.msra.mxu0 %v3508
        %3748 = vmatprep.subr.mxu0 %v3517
        %3749 = vmatpush1.msra.mxu0 %v3516
        %3750 = vmatprep.subr.mxu0 0.0
        %3751 = vmatpush1.msra.mxu0 0.0
        %3752 = vmatprep.subr.mxu0 0.0
        %3753 = vmatpush1.msra.mxu0 0.0
        %3754 = vmatprep.subr.mxu0 0.0
        %3755 = vmatpush1.msra.mxu0 0.0
        %3756 = vmatprep.subr.mxu0 0.0
        %3757 = vmatpush1.msra.mxu0 0.0
        %3758 = vmatprep.subr.mxu0 0.0
        %3759 = vmatpush1.msra.mxu0 0.0
        %3760 = vmatprep.subr.mxu0 0.0
        %3761 = vmatpush1.msra.mxu0 0.0
        %3762 = vmatprep.subr.mxu0 0.0
        %3763 = vmatpush1.msra.mxu0 0.0
        %3764 = vmatprep.subr.mxu0 0.0
        %3765 = vmatpush1.msra.mxu0 0.0
        %3766 = vmatprep.subr.mxu0 0.0
        %3767 = vmatpush1.msra.mxu0 0.0
        %3768 = vmatprep.subr.mxu0 0.0
        %3769 = vmatpush1.msra.mxu0 0.0
        %3770 = vmatprep.subr.mxu0 0.0
        %3771 = vmatpush1.msra.mxu0 0.0
        %3772 = vmatprep.subr.mxu0 0.0
        %3773 = vmatpush1.msra.mxu0 0.0
        %3774 = vmatprep.subr.mxu0 0.0
        %3775 = vmatpush1.msra.mxu0 0.0
        %3776 = vmatprep.subr.mxu0 0.0
        %3777 = vmatpush1.msra.mxu0 0.0
        %3778 = vmatprep.subr.mxu0 0.0
        %3779 = vmatpush1.msra.mxu0 0.0
        %3780 = vmatprep.subr.mxu0 0.0
        %3781 = vmatpush1.msra.mxu0 0.0
        %3782 = vmatprep.subr.mxu0 0.0
        %3783 = vmatpush1.msra.mxu0 0.0
        %3784 = vmatprep.subr.mxu0 0.0
        %3785 = vmatpush1.msra.mxu0 0.0
        %3786 = vmatprep.subr.mxu0 0.0
        %3787 = vmatpush1.msra.mxu0 0.0
        %3788 = vmatprep.subr.mxu0 0.0
        %3789 = vmatpush1.msra.mxu0 0.0
        %3790 = vmatprep.subr.mxu0 0.0
        %3791 = vmatpush1.msra.mxu0 0.0
        %3792 = vmatprep.subr.mxu0 0.0
        %3793 = vmatpush1.msra.mxu0 0.0
        %3794 = vmatprep.subr.mxu0 0.0
        %3795 = vmatpush1.msra.mxu0 0.0
        %3796 = vmatprep.subr.mxu0 0.0
        %3797 = vmatpush1.msra.mxu0 0.0
        %3798 = vmatprep.mubr.f32.mxu0 0.0
        %3799 = vmatmul.mubr.f32.gmra.mrb[0].mxu0 %v3519
        %v3800 = vpop.f32.mrb[0].mxu0
        %v3801 = vadd.f32 0.0, %v3800
        %v3802 = vpop.f32.mrb[0].mxu0
        %v3803 = vadd.f32 0.0, %v3802
        %3804 = vdwg.mxu0
        %vm3805 = vcmp.lt.s32.totalorder %v1444, 8
        %vm3806 = vmand %vm3805, %vm1449
        %v3808 = vsel %vm949, %v3379, 0
        %v3811 = vsel %vm949, %v3588, 0
        %3813 = vmatprep.subr.mxu0 0.0
        %3814 = vmatpush1.xpose.msra.mxu0 %v3811
        %3815 = vmatprep.subr.mxu0 0.0
        %3816 = vmatpush1.xpose.msra.mxu0 0.0
        %3817 = vmatprep.subr.mxu0 0.0
        %3818 = vmatpush1.xpose.msra.mxu0 0.0
        %3819 = vmatprep.subr.mxu0 0.0
        %3820 = vmatpush1.xpose.msra.mxu0 0.0
        %3821 = vmatprep.subr.mxu0 0.0
        %3822 = vmatpush1.xpose.msra.mxu0 0.0
        %3823 = vmatprep.subr.mxu0 0.0
        %3824 = vmatpush1.xpose.msra.mxu0 0.0
        %3825 = vmatprep.subr.mxu0 0.0
        %3826 = vmatpush1.xpose.msra.mxu0 0.0
        %3827 = vmatprep.subr.mxu0 0.0
        %3828 = vmatpush1.xpose.msra.mxu0 0.0
        %3829 = vmatprep.subr.mxu0 0.0
        %3830 = vmatpush1.xpose.msra.mxu0 0.0
        %3831 = vmatprep.subr.mxu0 0.0
        %3832 = vmatpush1.xpose.msra.mxu0 0.0
        %3833 = vmatprep.subr.mxu0 0.0
        %3834 = vmatpush1.xpose.msra.mxu0 0.0
        %3835 = vmatprep.subr.mxu0 0.0
        %3836 = vmatpush1.xpose.msra.mxu0 0.0
        %3837 = vmatprep.subr.mxu0 0.0
        %3838 = vmatpush1.xpose.msra.mxu0 0.0
        %3839 = vmatprep.subr.mxu0 0.0
        %3840 = vmatpush1.xpose.msra.mxu0 0.0
        %3841 = vmatprep.subr.mxu0 0.0
        %3842 = vmatpush1.xpose.msra.mxu0 0.0
        %3843 = vmatprep.subr.mxu0 0.0
        %3844 = vmatpush1.xpose.msra.mxu0 0.0
        %3845 = vmatprep.subr.mxu0 0.0
        %3846 = vmatpush1.xpose.msra.mxu0 0.0
        %3847 = vmatprep.subr.mxu0 0.0
        %3848 = vmatpush1.xpose.msra.mxu0 0.0
        %3849 = vmatprep.subr.mxu0 0.0
        %3850 = vmatpush1.xpose.msra.mxu0 0.0
        %3851 = vmatprep.subr.mxu0 0.0
        %3852 = vmatpush1.xpose.msra.mxu0 0.0
        %3853 = vmatprep.subr.mxu0 0.0
        %3854 = vmatpush1.xpose.msra.mxu0 0.0
        %3855 = vmatprep.subr.mxu0 0.0
        %3856 = vmatpush1.xpose.msra.mxu0 0.0
        %3857 = vmatprep.subr.mxu0 0.0
        %3858 = vmatpush1.xpose.msra.mxu0 0.0
        %3859 = vmatprep.subr.mxu0 0.0
        %3860 = vmatpush1.xpose.msra.mxu0 0.0
        %3861 = vmatprep.subr.mxu0 0.0
        %3862 = vmatpush1.xpose.msra.mxu0 0.0
        %3863 = vmatprep.subr.mxu0 0.0
        %3864 = vmatpush1.xpose.msra.mxu0 0.0
        %3865 = vmatprep.subr.mxu0 0.0
        %3866 = vmatpush1.xpose.msra.mxu0 0.0
        %3867 = vmatprep.subr.mxu0 0.0
        %3868 = vmatpush1.xpose.msra.mxu0 0.0
        %3869 = vmatprep.subr.mxu0 0.0
        %3870 = vmatpush1.xpose.msra.mxu0 0.0
        %3871 = vmatprep.subr.mxu0 0.0
        %3872 = vmatpush1.xpose.msra.mxu0 0.0
        %3873 = vmatprep.subr.mxu0 0.0
        %3874 = vmatpush1.xpose.msra.mxu0 0.0
        %3875 = vmatprep.subr.mxu0 0.0
        %3876 = vmatpush1.xpose.msra.mxu0 0.0
        %3877 = vmatprep.mubr.f32.mxu0 0.0
        %3878 = vmatmul.mubr.f32.gmra.mrb[0].mxu0 %v3808
        %v3879 = vpop.f32.mrb[0].mxu0
        %v3880 = vadd.f32 0.0, %v3879
        %v3881 = vpop.f32.mrb[0].mxu0
        %3882 = vdwg.mxu0
        %v3883 = vmul.f32 %v3880, 0.125
        %v3884 = vsel %vm3806, %v3883, -1e+09
        %v3885 = vsel %vm1529, %v3884, -inf
        %3886 = vmax.xlane.f32.xlu0 %v3885
        %v3887 = vpop.xlane.xlu0 %3886
        %v3888 = vsub.f32 %v3884, %v3887
        %v3889 = vmul.f32 %v3888, 1.442695
        %v3890 = vpow.pop %v3889
        %v3891 = vsel %vm1529, %v3890, 0.0
        %3892 = vadd.xlane.f32.xlu0 %v3891
        %v3893 = vpop.xlane.xlu0 %3892
        %v3894 = vrcp.pop %v3893
        %v3895 = vmul.f32 %v3890, %v3894
        %v3897 = vsel %vm1529, %v3895, 0
        %3899 = vmatprep.subr.mxu0 0.0
        %3900 = vmatpush1.msra.mxu0 %v3730
        %3901 = vmatprep.subr.mxu0 0.0
        %3902 = vmatpush1.msra.mxu0 0.0
        %3903 = vmatprep.subr.mxu0 0.0
        %3904 = vmatpush1.msra.mxu0 0.0
        %3905 = vmatprep.subr.mxu0 0.0
        %3906 = vmatpush1.msra.mxu0 0.0
        %3907 = vmatprep.subr.mxu0 0.0
        %3908 = vmatpush1.msra.mxu0 0.0
        %3909 = vmatprep.subr.mxu0 0.0
        %3910 = vmatpush1.msra.mxu0 0.0
        %3911 = vmatprep.subr.mxu0 0.0
        %3912 = vmatpush1.msra.mxu0 0.0
        %3913 = vmatprep.subr.mxu0 0.0
        %3914 = vmatpush1.msra.mxu0 0.0
        %3915 = vmatprep.subr.mxu0 0.0
        %3916 = vmatpush1.msra.mxu0 0.0
        %3917 = vmatprep.subr.mxu0 0.0
        %3918 = vmatpush1.msra.mxu0 0.0
        %3919 = vmatprep.subr.mxu0 0.0
        %3920 = vmatpush1.msra.mxu0 0.0
        %3921 = vmatprep.subr.mxu0 0.0
        %3922 = vmatpush1.msra.mxu0 0.0
        %3923 = vmatprep.subr.mxu0 0.0
        %3924 = vmatpush1.msra.mxu0 0.0
        %3925 = vmatprep.subr.mxu0 0.0
        %3926 = vmatpush1.msra.mxu0 0.0
        %3927 = vmatprep.subr.mxu0 0.0
        %3928 = vmatpush1.msra.mxu0 0.0
        %3929 = vmatprep.subr.mxu0 0.0
        %3930 = vmatpush1.msra.mxu0 0.0
        %3931 = vmatprep.subr.mxu0 0.0
        %3932 = vmatpush1.msra.mxu0 0.0
        %3933 = vmatprep.subr.mxu0 0.0
        %3934 = vmatpush1.msra.mxu0 0.0
        %3935 = vmatprep.subr.mxu0 0.0
        %3936 = vmatpush1.msra.mxu0 0.0
        %3937 = vmatprep.subr.mxu0 0.0
        %3938 = vmatpush1.msra.mxu0 0.0
        %3939 = vmatprep.subr.mxu0 0.0
        %3940 = vmatpush1.msra.mxu0 0.0
        %3941 = vmatprep.subr.mxu0 0.0
        %3942 = vmatpush1.msra.mxu0 0.0
        %3943 = vmatprep.subr.mxu0 0.0
        %3944 = vmatpush1.msra.mxu0 0.0
        %3945 = vmatprep.subr.mxu0 0.0
        %3946 = vmatpush1.msra.mxu0 0.0
        %3947 = vmatprep.subr.mxu0 0.0
        %3948 = vmatpush1.msra.mxu0 0.0
        %3949 = vmatprep.subr.mxu0 0.0
        %3950 = vmatpush1.msra.mxu0 0.0
        %3951 = vmatprep.subr.mxu0 0.0
        %3952 = vmatpush1.msra.mxu0 0.0
        %3953 = vmatprep.subr.mxu0 0.0
        %3954 = vmatpush1.msra.mxu0 0.0
        %3955 = vmatprep.subr.mxu0 0.0
        %3956 = vmatpush1.msra.mxu0 0.0
        %3957 = vmatprep.subr.mxu0 0.0
        %3958 = vmatpush1.msra.mxu0 0.0
        %3959 = vmatprep.subr.mxu0 0.0
        %3960 = vmatpush1.msra.mxu0 0.0
        %3961 = vmatprep.subr.mxu0 0.0
        %3962 = vmatpush1.msra.mxu0 0.0
        %3963 = vmatprep.mubr.f32.mxu0 0.0
        %3964 = vmatmul.mubr.f32.gmra.mrb[0].mxu0 %v3897
        %v3965 = vpop.f32.mrb[0].mxu0
        %v3966 = vadd.f32 0.0, %v3965
        %v3967 = vpop.f32.mrb[0].mxu0
        %3968 = vdwg.mxu0
        %3969 = vrot.lane.b32.xlu0 %v3379, 64
        %v3970 = vpop.permute.xlu0 %3969
        %3971 = vrot.lane.b32.xlu0 %v3588, 64
        %v3972 = vpop.permute.xlu0 %3971
        %v3973 = vsel %vm949, %v3970, 0
        %v3975 = vsel %vm949, %v3972, 0
        %3977 = vmatprep.subr.mxu0 0.0
        %3978 = vmatpush1.xpose.msra.mxu0 %v3975
        %3979 = vmatprep.subr.mxu0 0.0
        %3980 = vmatpush1.xpose.msra.mxu0 0.0
        %3981 = vmatprep.subr.mxu0 0.0
        %3982 = vmatpush1.xpose.msra.mxu0 0.0
        %3983 = vmatprep.subr.mxu0 0.0
        %3984 = vmatpush1.xpose.msra.mxu0 0.0
        %3985 = vmatprep.subr.mxu0 0.0
        %3986 = vmatpush1.xpose.msra.mxu0 0.0
        %3987 = vmatprep.subr.mxu0 0.0
        %3988 = vmatpush1.xpose.msra.mxu0 0.0
        %3989 = vmatprep.subr.mxu0 0.0
        %3990 = vmatpush1.xpose.msra.mxu0 0.0
        %3991 = vmatprep.subr.mxu0 0.0
        %3992 = vmatpush1.xpose.msra.mxu0 0.0
        %3993 = vmatprep.subr.mxu0 0.0
        %3994 = vmatpush1.xpose.msra.mxu0 0.0
        %3995 = vmatprep.subr.mxu0 0.0
        %3996 = vmatpush1.xpose.msra.mxu0 0.0
        %3997 = vmatprep.subr.mxu0 0.0
        %3998 = vmatpush1.xpose.msra.mxu0 0.0
        %3999 = vmatprep.subr.mxu0 0.0
        %4000 = vmatpush1.xpose.msra.mxu0 0.0
        %4001 = vmatprep.subr.mxu0 0.0
        %4002 = vmatpush1.xpose.msra.mxu0 0.0
        %4003 = vmatprep.subr.mxu0 0.0
        %4004 = vmatpush1.xpose.msra.mxu0 0.0
        %4005 = vmatprep.subr.mxu0 0.0
        %4006 = vmatpush1.xpose.msra.mxu0 0.0
        %4007 = vmatprep.subr.mxu0 0.0
        %4008 = vmatpush1.xpose.msra.mxu0 0.0
        %4009 = vmatprep.subr.mxu0 0.0
        %4010 = vmatpush1.xpose.msra.mxu0 0.0
        %4011 = vmatprep.subr.mxu0 0.0
        %4012 = vmatpush1.xpose.msra.mxu0 0.0
        %4013 = vmatprep.subr.mxu0 0.0
        %4014 = vmatpush1.xpose.msra.mxu0 0.0
        %4015 = vmatprep.subr.mxu0 0.0
        %4016 = vmatpush1.xpose.msra.mxu0 0.0
        %4017 = vmatprep.subr.mxu0 0.0
        %4018 = vmatpush1.xpose.msra.mxu0 0.0
        %4019 = vmatprep.subr.mxu0 0.0
        %4020 = vmatpush1.xpose.msra.mxu0 0.0
        %4021 = vmatprep.subr.mxu0 0.0
        %4022 = vmatpush1.xpose.msra.mxu0 0.0
        %4023 = vmatprep.subr.mxu0 0.0
        %4024 = vmatpush1.xpose.msra.mxu0 0.0
        %4025 = vmatprep.subr.mxu0 0.0
        %4026 = vmatpush1.xpose.msra.mxu0 0.0
        %4027 = vmatprep.subr.mxu0 0.0
        %4028 = vmatpush1.xpose.msra.mxu0 0.0
        %4029 = vmatprep.subr.mxu0 0.0
        %4030 = vmatpush1.xpose.msra.mxu0 0.0
        %4031 = vmatprep.subr.mxu0 0.0
        %4032 = vmatpush1.xpose.msra.mxu0 0.0
        %4033 = vmatprep.subr.mxu0 0.0
        %4034 = vmatpush1.xpose.msra.mxu0 0.0
        %4035 = vmatprep.subr.mxu0 0.0
        %4036 = vmatpush1.xpose.msra.mxu0 0.0
        %4037 = vmatprep.subr.mxu0 0.0
        %4038 = vmatpush1.xpose.msra.mxu0 0.0
        %4039 = vmatprep.subr.mxu0 0.0
        %4040 = vmatpush1.xpose.msra.mxu0 0.0
        %4041 = vmatprep.mubr.f32.mxu0 0.0
        %4042 = vmatmul.mubr.f32.gmra.mrb[0].mxu0 %v3973
        %v4043 = vpop.f32.mrb[0].mxu0
        %v4044 = vadd.f32 0.0, %v4043
        %v4045 = vpop.f32.mrb[0].mxu0
        %4046 = vdwg.mxu0
        %v4047 = vmul.f32 %v4044, 0.125
        %v4048 = vsel %vm3806, %v4047, -1e+09
        %v4049 = vsel %vm1529, %v4048, -inf
        %4050 = vmax.xlane.f32.xlu0 %v4049
        %v4051 = vpop.xlane.xlu0 %4050
        %v4052 = vsub.f32 %v4048, %v4051
        %v4053 = vmul.f32 %v4052, 1.442695
        %v4054 = vpow.pop %v4053
        %v4055 = vsel %vm1529, %v4054, 0.0
        %4056 = vadd.xlane.f32.xlu0 %v4055
        %v4057 = vpop.xlane.xlu0 %4056
        %v4058 = vrcp.pop %v4057
        %v4059 = vmul.f32 %v4054, %v4058
        %4061 = vrot.lane.b32.xlu0 %v3730, 64
        %v4062 = vpop.permute.xlu0 %4061
        %v4065 = vsel %vm1529, %v4059, 0
        %4067 = vmatprep.subr.mxu0 0.0
        %4068 = vmatpush1.msra.mxu0 %v4062
        %4069 = vmatprep.subr.mxu0 0.0
        %4070 = vmatpush1.msra.mxu0 0.0
        %4071 = vmatprep.subr.mxu0 0.0
        %4072 = vmatpush1.msra.mxu0 0.0
        %4073 = vmatprep.subr.mxu0 0.0
        %4074 = vmatpush1.msra.mxu0 0.0
        %4075 = vmatprep.subr.mxu0 0.0
        %4076 = vmatpush1.msra.mxu0 0.0
        %4077 = vmatprep.subr.mxu0 0.0
        %4078 = vmatpush1.msra.mxu0 0.0
        %4079 = vmatprep.subr.mxu0 0.0
        %4080 = vmatpush1.msra.mxu0 0.0
        %4081 = vmatprep.subr.mxu0 0.0
        %4082 = vmatpush1.msra.mxu0 0.0
        %4083 = vmatprep.subr.mxu0 0.0
        %4084 = vmatpush1.msra.mxu0 0.0
        %4085 = vmatprep.subr.mxu0 0.0
        %4086 = vmatpush1.msra.mxu0 0.0
        %4087 = vmatprep.subr.mxu0 0.0
        %4088 = vmatpush1.msra.mxu0 0.0
        %4089 = vmatprep.subr.mxu0 0.0
        %4090 = vmatpush1.msra.mxu0 0.0
        %4091 = vmatprep.subr.mxu0 0.0
        %4092 = vmatpush1.msra.mxu0 0.0
        %4093 = vmatprep.subr.mxu0 0.0
        %4094 = vmatpush1.msra.mxu0 0.0
        %4095 = vmatprep.subr.mxu0 0.0
        %4096 = vmatpush1.msra.mxu0 0.0
        %4097 = vmatprep.subr.mxu0 0.0
        %4098 = vmatpush1.msra.mxu0 0.0
        %4099 = vmatprep.subr.mxu0 0.0
        %4100 = vmatpush1.msra.mxu0 0.0
        %4101 = vmatprep.subr.mxu0 0.0
        %4102 = vmatpush1.msra.mxu0 0.0
        %4103 = vmatprep.subr.mxu0 0.0
        %4104 = vmatpush1.msra.mxu0 0.0
        %4105 = vmatprep.subr.mxu0 0.0
        %4106 = vmatpush1.msra.mxu0 0.0
        %4107 = vmatprep.subr.mxu0 0.0
        %4108 = vmatpush1.msra.mxu0 0.0
        %4109 = vmatprep.subr.mxu0 0.0
        %4110 = vmatpush1.msra.mxu0 0.0
        %4111 = vmatprep.subr.mxu0 0.0
        %4112 = vmatpush1.msra.mxu0 0.0
        %4113 = vmatprep.subr.mxu0 0.0
        %4114 = vmatpush1.msra.mxu0 0.0
        %4115 = vmatprep.subr.mxu0 0.0
        %4116 = vmatpush1.msra.mxu0 0.0
        %4117 = vmatprep.subr.mxu0 0.0
        %4118 = vmatpush1.msra.mxu0 0.0
        %4119 = vmatprep.subr.mxu0 0.0
        %4120 = vmatpush1.msra.mxu0 0.0
        %4121 = vmatprep.subr.mxu0 0.0
        %4122 = vmatpush1.msra.mxu0 0.0
        %4123 = vmatprep.subr.mxu0 0.0
        %4124 = vmatpush1.msra.mxu0 0.0
        %4125 = vmatprep.subr.mxu0 0.0
        %4126 = vmatpush1.msra.mxu0 0.0
        %4127 = vmatprep.subr.mxu0 0.0
        %4128 = vmatpush1.msra.mxu0 0.0
        %4129 = vmatprep.subr.mxu0 0.0
        %4130 = vmatpush1.msra.mxu0 0.0
        %4131 = vmatprep.mubr.f32.mxu0 0.0
        %4132 = vmatmul.mubr.f32.gmra.mrb[0].mxu0 %v4065
        %v4133 = vpop.f32.mrb[0].mxu0
        %v4134 = vadd.f32 0.0, %v4133
        %v4135 = vpop.f32.mrb[0].mxu0
        %4136 = vdwg.mxu0
        %v4138 = vsel %vm949, %v3381, 0
        %v4141 = vsel %vm949, %v3590, 0
        %4143 = vmatprep.subr.mxu0 0.0
        %4144 = vmatpush1.xpose.msra.mxu0 %v4141
        %4145 = vmatprep.subr.mxu0 0.0
        %4146 = vmatpush1.xpose.msra.mxu0 0.0
        %4147 = vmatprep.subr.mxu0 0.0
        %4148 = vmatpush1.xpose.msra.mxu0 0.0
        %4149 = vmatprep.subr.mxu0 0.0
        %4150 = vmatpush1.xpose.msra.mxu0 0.0
        %4151 = vmatprep.subr.mxu0 0.0
        %4152 = vmatpush1.xpose.msra.mxu0 0.0
        %4153 = vmatprep.subr.mxu0 0.0
        %4154 = vmatpush1.xpose.msra.mxu0 0.0
        %4155 = vmatprep.subr.mxu0 0.0
        %4156 = vmatpush1.xpose.msra.mxu0 0.0
        %4157 = vmatprep.subr.mxu0 0.0
        %4158 = vmatpush1.xpose.msra.mxu0 0.0
        %4159 = vmatprep.subr.mxu0 0.0
        %4160 = vmatpush1.xpose.msra.mxu0 0.0
        %4161 = vmatprep.subr.mxu0 0.0
        %4162 = vmatpush1.xpose.msra.mxu0 0.0
        %4163 = vmatprep.subr.mxu0 0.0
        %4164 = vmatpush1.xpose.msra.mxu0 0.0
        %4165 = vmatprep.subr.mxu0 0.0
        %4166 = vmatpush1.xpose.msra.mxu0 0.0
        %4167 = vmatprep.subr.mxu0 0.0
        %4168 = vmatpush1.xpose.msra.mxu0 0.0
        %4169 = vmatprep.subr.mxu0 0.0
        %4170 = vmatpush1.xpose.msra.mxu0 0.0
        %4171 = vmatprep.subr.mxu0 0.0
        %4172 = vmatpush1.xpose.msra.mxu0 0.0
        %4173 = vmatprep.subr.mxu0 0.0
        %4174 = vmatpush1.xpose.msra.mxu0 0.0
        %4175 = vmatprep.subr.mxu0 0.0
        %4176 = vmatpush1.xpose.msra.mxu0 0.0
        %4177 = vmatprep.subr.mxu0 0.0
        %4178 = vmatpush1.xpose.msra.mxu0 0.0
        %4179 = vmatprep.subr.mxu0 0.0
        %4180 = vmatpush1.xpose.msra.mxu0 0.0
        %4181 = vmatprep.subr.mxu0 0.0
        %4182 = vmatpush1.xpose.msra.mxu0 0.0
        %4183 = vmatprep.subr.mxu0 0.0
        %4184 = vmatpush1.xpose.msra.mxu0 0.0
        %4185 = vmatprep.subr.mxu0 0.0
        %4186 = vmatpush1.xpose.msra.mxu0 0.0
        %4187 = vmatprep.subr.mxu0 0.0
        %4188 = vmatpush1.xpose.msra.mxu0 0.0
        %4189 = vmatprep.subr.mxu0 0.0
        %4190 = vmatpush1.xpose.msra.mxu0 0.0
        %4191 = vmatprep.subr.mxu0 0.0
        %4192 = vmatpush1.xpose.msra.mxu0 0.0
        %4193 = vmatprep.subr.mxu0 0.0
        %4194 = vmatpush1.xpose.msra.mxu0 0.0
        %4195 = vmatprep.subr.mxu0 0.0
        %4196 = vmatpush1.xpose.msra.mxu0 0.0
        %4197 = vmatprep.subr.mxu0 0.0
        %4198 = vmatpush1.xpose.msra.mxu0 0.0
        %4199 = vmatprep.subr.mxu0 0.0
        %4200 = vmatpush1.xpose.msra.mxu0 0.0
        %4201 = vmatprep.subr.mxu0 0.0
        %4202 = vmatpush1.xpose.msra.mxu0 0.0
        %4203 = vmatprep.subr.mxu0 0.0
        %4204 = vmatpush1.xpose.msra.mxu0 0.0
        %4205 = vmatprep.subr.mxu0 0.0
        %4206 = vmatpush1.xpose.msra.mxu0 0.0
        %4207 = vmatprep.mubr.f32.mxu0 0.0
        %4208 = vmatmul.mubr.f32.gmra.mrb[0].mxu0 %v4138
        %v4209 = vpop.f32.mrb[0].mxu0
        %v4210 = vadd.f32 0.0, %v4209
        %v4211 = vpop.f32.mrb[0].mxu0
        %4212 = vdwg.mxu0
        %v4213 = vmul.f32 %v4210, 0.125
        %v4214 = vsel %vm3806, %v4213, -1e+09
        %v4215 = vsel %vm1529, %v4214, -inf
        %4216 = vmax.xlane.f32.xlu0 %v4215
        %v4217 = vpop.xlane.xlu0 %4216
        %v4218 = vsub.f32 %v4214, %v4217
        %v4219 = vmul.f32 %v4218, 1.442695
        %v4220 = vpow.pop %v4219
        %v4221 = vsel %vm1529, %v4220, 0.0
        %4222 = vadd.xlane.f32.xlu0 %v4221
        %v4223 = vpop.xlane.xlu0 %4222
        %v4224 = vrcp.pop %v4223
        %v4225 = vmul.f32 %v4220, %v4224
        %v4227 = vsel %vm1529, %v4225, 0
        %4229 = vmatprep.subr.mxu0 0.0
        %4230 = vmatpush1.msra.mxu0 %v3732
        %4231 = vmatprep.subr.mxu0 0.0
        %4232 = vmatpush1.msra.mxu0 0.0
        %4233 = vmatprep.subr.mxu0 0.0
        %4234 = vmatpush1.msra.mxu0 0.0
        %4235 = vmatprep.subr.mxu0 0.0
        %4236 = vmatpush1.msra.mxu0 0.0
        %4237 = vmatprep.subr.mxu0 0.0
        %4238 = vmatpush1.msra.mxu0 0.0
        %4239 = vmatprep.subr.mxu0 0.0
        %4240 = vmatpush1.msra.mxu0 0.0
        %4241 = vmatprep.subr.mxu0 0.0
        %4242 = vmatpush1.msra.mxu0 0.0
        %4243 = vmatprep.subr.mxu0 0.0
        %4244 = vmatpush1.msra.mxu0 0.0
        %4245 = vmatprep.subr.mxu0 0.0
        %4246 = vmatpush1.msra.mxu0 0.0
        %4247 = vmatprep.subr.mxu0 0.0
        %4248 = vmatpush1.msra.mxu0 0.0
        %4249 = vmatprep.subr.mxu0 0.0
        %4250 = vmatpush1.msra.mxu0 0.0
        %4251 = vmatprep.subr.mxu0 0.0
        %4252 = vmatpush1.msra.mxu0 0.0
        %4253 = vmatprep.subr.mxu0 0.0
        %4254 = vmatpush1.msra.mxu0 0.0
        %4255 = vmatprep.subr.mxu0 0.0
        %4256 = vmatpush1.msra.mxu0 0.0
        %4257 = vmatprep.subr.mxu0 0.0
        %4258 = vmatpush1.msra.mxu0 0.0
        %4259 = vmatprep.subr.mxu0 0.0
        %4260 = vmatpush1.msra.mxu0 0.0
        %4261 = vmatprep.subr.mxu0 0.0
        %4262 = vmatpush1.msra.mxu0 0.0
        %4263 = vmatprep.subr.mxu0 0.0
        %4264 = vmatpush1.msra.mxu0 0.0
        %4265 = vmatprep.subr.mxu0 0.0
        %4266 = vmatpush1.msra.mxu0 0.0
        %4267 = vmatprep.subr.mxu0 0.0
        %4268 = vmatpush1.msra.mxu0 0.0
        %4269 = vmatprep.subr.mxu0 0.0
        %4270 = vmatpush1.msra.mxu0 0.0
        %4271 = vmatprep.subr.mxu0 0.0
        %4272 = vmatpush1.msra.mxu0 0.0
        %4273 = vmatprep.subr.mxu0 0.0
        %4274 = vmatpush1.msra.mxu0 0.0
        %4275 = vmatprep.subr.mxu0 0.0
        %4276 = vmatpush1.msra.mxu0 0.0
        %4277 = vmatprep.subr.mxu0 0.0
        %4278 = vmatpush1.msra.mxu0 0.0
        %4279 = vmatprep.subr.mxu0 0.0
        %4280 = vmatpush1.msra.mxu0 0.0
        %4281 = vmatprep.subr.mxu0 0.0
        %4282 = vmatpush1.msra.mxu0 0.0
        %4283 = vmatprep.subr.mxu0 0.0
        %4284 = vmatpush1.msra.mxu0 0.0
        %4285 = vmatprep.subr.mxu0 0.0
        %4286 = vmatpush1.msra.mxu0 0.0
        %4287 = vmatprep.subr.mxu0 0.0
        %4288 = vmatpush1.msra.mxu0 0.0
        %4289 = vmatprep.subr.mxu0 0.0
        %4290 = vmatpush1.msra.mxu0 0.0
        %4291 = vmatprep.subr.mxu0 0.0
        %4292 = vmatpush1.msra.mxu0 0.0
        %4293 = vmatprep.mubr.f32.mxu0 0.0
        %4294 = vmatmul.mubr.f32.gmra.mrb[0].mxu0 %v4227
        %v4295 = vpop.f32.mrb[0].mxu0
        %v4296 = vadd.f32 0.0, %v4295
        %v4297 = vpop.f32.mrb[0].mxu0
        %4298 = vdwg.mxu0
        %4299 = vrot.lane.b32.xlu0 %v3381, 64
        %v4300 = vpop.permute.xlu0 %4299
        %4301 = vrot.lane.b32.xlu0 %v3590, 64
        %v4302 = vpop.permute.xlu0 %4301
        %v4303 = vsel %vm949, %v4300, 0
        %v4305 = vsel %vm949, %v4302, 0
        %4307 = vmatprep.subr.mxu0 0.0
        %4308 = vmatpush1.xpose.msra.mxu0 %v4305
        %4309 = vmatprep.subr.mxu0 0.0
        %4310 = vmatpush1.xpose.msra.mxu0 0.0
        %4311 = vmatprep.subr.mxu0 0.0
        %4312 = vmatpush1.xpose.msra.mxu0 0.0
        %4313 = vmatprep.subr.mxu0 0.0
        %4314 = vmatpush1.xpose.msra.mxu0 0.0
        %4315 = vmatprep.subr.mxu0 0.0
        %4316 = vmatpush1.xpose.msra.mxu0 0.0
        %4317 = vmatprep.subr.mxu0 0.0
        %4318 = vmatpush1.xpose.msra.mxu0 0.0
        %4319 = vmatprep.subr.mxu0 0.0
        %4320 = vmatpush1.xpose.msra.mxu0 0.0
        %4321 = vmatprep.subr.mxu0 0.0
        %4322 = vmatpush1.xpose.msra.mxu0 0.0
        %4323 = vmatprep.subr.mxu0 0.0
        %4324 = vmatpush1.xpose.msra.mxu0 0.0
        %4325 = vmatprep.subr.mxu0 0.0
        %4326 = vmatpush1.xpose.msra.mxu0 0.0
        %4327 = vmatprep.subr.mxu0 0.0
        %4328 = vmatpush1.xpose.msra.mxu0 0.0
        %4329 = vmatprep.subr.mxu0 0.0
        %4330 = vmatpush1.xpose.msra.mxu0 0.0
        %4331 = vmatprep.subr.mxu0 0.0
        %4332 = vmatpush1.xpose.msra.mxu0 0.0
        %4333 = vmatprep.subr.mxu0 0.0
        %4334 = vmatpush1.xpose.msra.mxu0 0.0
        %4335 = vmatprep.subr.mxu0 0.0
        %4336 = vmatpush1.xpose.msra.mxu0 0.0
        %4337 = vmatprep.subr.mxu0 0.0
        %4338 = vmatpush1.xpose.msra.mxu0 0.0
        %4339 = vmatprep.subr.mxu0 0.0
        %4340 = vmatpush1.xpose.msra.mxu0 0.0
        %4341 = vmatprep.subr.mxu0 0.0
        %4342 = vmatpush1.xpose.msra.mxu0 0.0
        %4343 = vmatprep.subr.mxu0 0.0
        %4344 = vmatpush1.xpose.msra.mxu0 0.0
        %4345 = vmatprep.subr.mxu0 0.0
        %4346 = vmatpush1.xpose.msra.mxu0 0.0
        %4347 = vmatprep.subr.mxu0 0.0
        %4348 = vmatpush1.xpose.msra.mxu0 0.0
        %4349 = vmatprep.subr.mxu0 0.0
        %4350 = vmatpush1.xpose.msra.mxu0 0.0
        %4351 = vmatprep.subr.mxu0 0.0
        %4352 = vmatpush1.xpose.msra.mxu0 0.0
        %4353 = vmatprep.subr.mxu0 0.0
        %4354 = vmatpush1.xpose.msra.mxu0 0.0
        %4355 = vmatprep.subr.mxu0 0.0
        %4356 = vmatpush1.xpose.msra.mxu0 0.0
        %4357 = vmatprep.subr.mxu0 0.0
        %4358 = vmatpush1.xpose.msra.mxu0 0.0
        %4359 = vmatprep.subr.mxu0 0.0
        %4360 = vmatpush1.xpose.msra.mxu0 0.0
        %4361 = vmatprep.subr.mxu0 0.0
        %4362 = vmatpush1.xpose.msra.mxu0 0.0
        %4363 = vmatprep.subr.mxu0 0.0
        %4364 = vmatpush1.xpose.msra.mxu0 0.0
        %4365 = vmatprep.subr.mxu0 0.0
        %4366 = vmatpush1.xpose.msra.mxu0 0.0
        %4367 = vmatprep.subr.mxu0 0.0
        %4368 = vmatpush1.xpose.msra.mxu0 0.0
        %4369 = vmatprep.subr.mxu0 0.0
        %4370 = vmatpush1.xpose.msra.mxu0 0.0
        %4371 = vmatprep.mubr.f32.mxu0 0.0
        %4372 = vmatmul.mubr.f32.gmra.mrb[0].mxu0 %v4303
        %v4373 = vpop.f32.mrb[0].mxu0
        %v4374 = vadd.f32 0.0, %v4373
        %v4375 = vpop.f32.mrb[0].mxu0
        %4376 = vdwg.mxu0
        %v4377 = vmul.f32 %v4374, 0.125
        %v4378 = vsel %vm3806, %v4377, -1e+09
        %v4379 = vsel %vm1529, %v4378, -inf
        %4380 = vmax.xlane.f32.xlu0 %v4379
        %v4381 = vpop.xlane.xlu0 %4380
        %v4382 = vsub.f32 %v4378, %v4381
        %v4383 = vmul.f32 %v4382, 1.442695
        %v4384 = vpow.pop %v4383
        %v4385 = vsel %vm1529, %v4384, 0.0
        %4386 = vadd.xlane.f32.xlu0 %v4385
        %v4387 = vpop.xlane.xlu0 %4386
        %v4388 = vrcp.pop %v4387
        %v4389 = vmul.f32 %v4384, %v4388
        %4391 = vrot.lane.b32.xlu0 %v3732, 64
        %v4392 = vpop.permute.xlu0 %4391
        %v4395 = vsel %vm1529, %v4389, 0
        %4397 = vmatprep.subr.mxu0 0.0
        %4398 = vmatpush1.msra.mxu0 %v4392
        %4399 = vmatprep.subr.mxu0 0.0
        %4400 = vmatpush1.msra.mxu0 0.0
        %4401 = vmatprep.subr.mxu0 0.0
        %4402 = vmatpush1.msra.mxu0 0.0
        %4403 = vmatprep.subr.mxu0 0.0
        %4404 = vmatpush1.msra.mxu0 0.0
        %4405 = vmatprep.subr.mxu0 0.0
        %4406 = vmatpush1.msra.mxu0 0.0
        %4407 = vmatprep.subr.mxu0 0.0
        %4408 = vmatpush1.msra.mxu0 0.0
        %4409 = vmatprep.subr.mxu0 0.0
        %4410 = vmatpush1.msra.mxu0 0.0
        %4411 = vmatprep.subr.mxu0 0.0
        %4412 = vmatpush1.msra.mxu0 0.0
        %4413 = vmatprep.subr.mxu0 0.0
        %4414 = vmatpush1.msra.mxu0 0.0
        %4415 = vmatprep.subr.mxu0 0.0
        %4416 = vmatpush1.msra.mxu0 0.0
        %4417 = vmatprep.subr.mxu0 0.0
        %4418 = vmatpush1.msra.mxu0 0.0
        %4419 = vmatprep.subr.mxu0 0.0
        %4420 = vmatpush1.msra.mxu0 0.0
        %4421 = vmatprep.subr.mxu0 0.0
        %4422 = vmatpush1.msra.mxu0 0.0
        %4423 = vmatprep.subr.mxu0 0.0
        %4424 = vmatpush1.msra.mxu0 0.0
        %4425 = vmatprep.subr.mxu0 0.0
        %4426 = vmatpush1.msra.mxu0 0.0
        %4427 = vmatprep.subr.mxu0 0.0
        %4428 = vmatpush1.msra.mxu0 0.0
        %4429 = vmatprep.subr.mxu0 0.0
        %4430 = vmatpush1.msra.mxu0 0.0
        %4431 = vmatprep.subr.mxu0 0.0
        %4432 = vmatpush1.msra.mxu0 0.0
        %4433 = vmatprep.subr.mxu0 0.0
        %4434 = vmatpush1.msra.mxu0 0.0
        %4435 = vmatprep.subr.mxu0 0.0
        %4436 = vmatpush1.msra.mxu0 0.0
        %4437 = vmatprep.subr.mxu0 0.0
        %4438 = vmatpush1.msra.mxu0 0.0
        %4439 = vmatprep.subr.mxu0 0.0
        %4440 = vmatpush1.msra.mxu0 0.0
        %4441 = vmatprep.subr.mxu0 0.0
        %4442 = vmatpush1.msra.mxu0 0.0
        %4443 = vmatprep.subr.mxu0 0.0
        %4444 = vmatpush1.msra.mxu0 0.0
        %4445 = vmatprep.subr.mxu0 0.0
        %4446 = vmatpush1.msra.mxu0 0.0
        %4447 = vmatprep.subr.mxu0 0.0
        %4448 = vmatpush1.msra.mxu0 0.0
        %4449 = vmatprep.subr.mxu0 0.0
        %4450 = vmatpush1.msra.mxu0 0.0
        %4451 = vmatprep.subr.mxu0 0.0
        %4452 = vmatpush1.msra.mxu0 0.0
        %4453 = vmatprep.subr.mxu0 0.0
        %4454 = vmatpush1.msra.mxu0 0.0
        %4455 = vmatprep.subr.mxu0 0.0
        %4456 = vmatpush1.msra.mxu0 0.0
        %4457 = vmatprep.subr.mxu0 0.0
        %4458 = vmatpush1.msra.mxu0 0.0
        %4459 = vmatprep.subr.mxu0 0.0
        %4460 = vmatpush1.msra.mxu0 0.0
        %4461 = vmatprep.mubr.f32.mxu0 0.0
        %4462 = vmatmul.mubr.f32.gmra.mrb[0].mxu0 %v4395
        %v4463 = vpop.f32.mrb[0].mxu0
        %v4464 = vadd.f32 0.0, %v4463
        %v4465 = vpop.f32.mrb[0].mxu0
        %4466 = vdwg.mxu0
        %v4468 = vsel %vm949, %v3450, 0
        %v4471 = vsel %vm949, %v3659, 0
        %4473 = vmatprep.subr.mxu0 0.0
        %4474 = vmatpush1.xpose.msra.mxu0 %v4471
        %4475 = vmatprep.subr.mxu0 0.0
        %4476 = vmatpush1.xpose.msra.mxu0 0.0
        %4477 = vmatprep.subr.mxu0 0.0
        %4478 = vmatpush1.xpose.msra.mxu0 0.0
        %4479 = vmatprep.subr.mxu0 0.0
        %4480 = vmatpush1.xpose.msra.mxu0 0.0
        %4481 = vmatprep.subr.mxu0 0.0
        %4482 = vmatpush1.xpose.msra.mxu0 0.0
        %4483 = vmatprep.subr.mxu0 0.0
        %4484 = vmatpush1.xpose.msra.mxu0 0.0
        %4485 = vmatprep.subr.mxu0 0.0
        %4486 = vmatpush1.xpose.msra.mxu0 0.0
        %4487 = vmatprep.subr.mxu0 0.0
        %4488 = vmatpush1.xpose.msra.mxu0 0.0
        %4489 = vmatprep.subr.mxu0 0.0
        %4490 = vmatpush1.xpose.msra.mxu0 0.0
        %4491 = vmatprep.subr.mxu0 0.0
        %4492 = vmatpush1.xpose.msra.mxu0 0.0
        %4493 = vmatprep.subr.mxu0 0.0
        %4494 = vmatpush1.xpose.msra.mxu0 0.0
        %4495 = vmatprep.subr.mxu0 0.0
        %4496 = vmatpush1.xpose.msra.mxu0 0.0
        %4497 = vmatprep.subr.mxu0 0.0
        %4498 = vmatpush1.xpose.msra.mxu0 0.0
        %4499 = vmatprep.subr.mxu0 0.0
        %4500 = vmatpush1.xpose.msra.mxu0 0.0
        %4501 = vmatprep.subr.mxu0 0.0
        %4502 = vmatpush1.xpose.msra.mxu0 0.0
        %4503 = vmatprep.subr.mxu0 0.0
        %4504 = vmatpush1.xpose.msra.mxu0 0.0
        %4505 = vmatprep.subr.mxu0 0.0
        %4506 = vmatpush1.xpose.msra.mxu0 0.0
        %4507 = vmatprep.subr.mxu0 0.0
        %4508 = vmatpush1.xpose.msra.mxu0 0.0
        %4509 = vmatprep.subr.mxu0 0.0
        %4510 = vmatpush1.xpose.msra.mxu0 0.0
        %4511 = vmatprep.subr.mxu0 0.0
        %4512 = vmatpush1.xpose.msra.mxu0 0.0
        %4513 = vmatprep.subr.mxu0 0.0
        %4514 = vmatpush1.xpose.msra.mxu0 0.0
        %4515 = vmatprep.subr.mxu0 0.0
        %4516 = vmatpush1.xpose.msra.mxu0 0.0
        %4517 = vmatprep.subr.mxu0 0.0
        %4518 = vmatpush1.xpose.msra.mxu0 0.0
        %4519 = vmatprep.subr.mxu0 0.0
        %4520 = vmatpush1.xpose.msra.mxu0 0.0
        %4521 = vmatprep.subr.mxu0 0.0
        %4522 = vmatpush1.xpose.msra.mxu0 0.0
        %4523 = vmatprep.subr.mxu0 0.0
        %4524 = vmatpush1.xpose.msra.mxu0 0.0
        %4525 = vmatprep.subr.mxu0 0.0
        %4526 = vmatpush1.xpose.msra.mxu0 0.0
        %4527 = vmatprep.subr.mxu0 0.0
        %4528 = vmatpush1.xpose.msra.mxu0 0.0
        %4529 = vmatprep.subr.mxu0 0.0
        %4530 = vmatpush1.xpose.msra.mxu0 0.0
        %4531 = vmatprep.subr.mxu0 0.0
        %4532 = vmatpush1.xpose.msra.mxu0 0.0
        %4533 = vmatprep.subr.mxu0 0.0
        %4534 = vmatpush1.xpose.msra.mxu0 0.0
        %4535 = vmatprep.subr.mxu0 0.0
        %4536 = vmatpush1.xpose.msra.mxu0 0.0
        %4537 = vmatprep.mubr.f32.mxu0 0.0
        %4538 = vmatmul.mubr.f32.gmra.mrb[0].mxu0 %v4468
        %v4539 = vpop.f32.mrb[0].mxu0
        %v4540 = vadd.f32 0.0, %v4539
        %v4541 = vpop.f32.mrb[0].mxu0
        %4542 = vdwg.mxu0
        %v4543 = vmul.f32 %v4540, 0.125
        %v4544 = vsel %vm3806, %v4543, -1e+09
        %v4545 = vsel %vm1529, %v4544, -inf
        %4546 = vmax.xlane.f32.xlu0 %v4545
        %v4547 = vpop.xlane.xlu0 %4546
        %v4548 = vsub.f32 %v4544, %v4547
        %v4549 = vmul.f32 %v4548, 1.442695
        %v4550 = vpow.pop %v4549
        %v4551 = vsel %vm1529, %v4550, 0.0
        %4552 = vadd.xlane.f32.xlu0 %v4551
        %v4553 = vpop.xlane.xlu0 %4552
        %v4554 = vrcp.pop %v4553
        %v4555 = vmul.f32 %v4550, %v4554
        %v4557 = vsel %vm1529, %v4555, 0
        %4559 = vmatprep.subr.mxu0 0.0
        %4560 = vmatpush1.msra.mxu0 %v3801
        %4561 = vmatprep.subr.mxu0 0.0
        %4562 = vmatpush1.msra.mxu0 0.0
        %4563 = vmatprep.subr.mxu0 0.0
        %4564 = vmatpush1.msra.mxu0 0.0
        %4565 = vmatprep.subr.mxu0 0.0
        %4566 = vmatpush1.msra.mxu0 0.0
        %4567 = vmatprep.subr.mxu0 0.0
        %4568 = vmatpush1.msra.mxu0 0.0
        %4569 = vmatprep.subr.mxu0 0.0
        %4570 = vmatpush1.msra.mxu0 0.0
        %4571 = vmatprep.subr.mxu0 0.0
        %4572 = vmatpush1.msra.mxu0 0.0
        %4573 = vmatprep.subr.mxu0 0.0
        %4574 = vmatpush1.msra.mxu0 0.0
        %4575 = vmatprep.subr.mxu0 0.0
        %4576 = vmatpush1.msra.mxu0 0.0
        %4577 = vmatprep.subr.mxu0 0.0
        %4578 = vmatpush1.msra.mxu0 0.0
        %4579 = vmatprep.subr.mxu0 0.0
        %4580 = vmatpush1.msra.mxu0 0.0
        %4581 = vmatprep.subr.mxu0 0.0
        %4582 = vmatpush1.msra.mxu0 0.0
        %4583 = vmatprep.subr.mxu0 0.0
        %4584 = vmatpush1.msra.mxu0 0.0
        %4585 = vmatprep.subr.mxu0 0.0
        %4586 = vmatpush1.msra.mxu0 0.0
        %4587 = vmatprep.subr.mxu0 0.0
        %4588 = vmatpush1.msra.mxu0 0.0
        %4589 = vmatprep.subr.mxu0 0.0
        %4590 = vmatpush1.msra.mxu0 0.0
        %4591 = vmatprep.subr.mxu0 0.0
        %4592 = vmatpush1.msra.mxu0 0.0
        %4593 = vmatprep.subr.mxu0 0.0
        %4594 = vmatpush1.msra.mxu0 0.0
        %4595 = vmatprep.subr.mxu0 0.0
        %4596 = vmatpush1.msra.mxu0 0.0
        %4597 = vmatprep.subr.mxu0 0.0
        %4598 = vmatpush1.msra.mxu0 0.0
        %4599 = vmatprep.subr.mxu0 0.0
        %4600 = vmatpush1.msra.mxu0 0.0
        %4601 = vmatprep.subr.mxu0 0.0
        %4602 = vmatpush1.msra.mxu0 0.0
        %4603 = vmatprep.subr.mxu0 0.0
        %4604 = vmatpush1.msra.mxu0 0.0
        %4605 = vmatprep.subr.mxu0 0.0
        %4606 = vmatpush1.msra.mxu0 0.0
        %4607 = vmatprep.subr.mxu0 0.0
        %4608 = vmatpush1.msra.mxu0 0.0
        %4609 = vmatprep.subr.mxu0 0.0
        %4610 = vmatpush1.msra.mxu0 0.0
        %4611 = vmatprep.subr.mxu0 0.0
        %4612 = vmatpush1.msra.mxu0 0.0
        %4613 = vmatprep.subr.mxu0 0.0
        %4614 = vmatpush1.msra.mxu0 0.0
        %4615 = vmatprep.subr.mxu0 0.0
        %4616 = vmatpush1.msra.mxu0 0.0
        %4617 = vmatprep.subr.mxu0 0.0
        %4618 = vmatpush1.msra.mxu0 0.0
        %4619 = vmatprep.subr.mxu0 0.0
        %4620 = vmatpush1.msra.mxu0 0.0
        %4621 = vmatprep.subr.mxu0 0.0
        %4622 = vmatpush1.msra.mxu0 0.0
        %4623 = vmatprep.mubr.f32.mxu0 0.0
        %4624 = vmatmul.mubr.f32.gmra.mrb[0].mxu0 %v4557
        %v4625 = vpop.f32.mrb[0].mxu0
        %v4626 = vadd.f32 0.0, %v4625
        %v4627 = vpop.f32.mrb[0].mxu0
        %4628 = vdwg.mxu0
        %4629 = vrot.lane.b32.xlu0 %v3450, 64
        %v4630 = vpop.permute.xlu0 %4629
        %4631 = vrot.lane.b32.xlu0 %v3659, 64
        %v4632 = vpop.permute.xlu0 %4631
        %v4633 = vsel %vm949, %v4630, 0
        %v4635 = vsel %vm949, %v4632, 0
        %4637 = vmatprep.subr.mxu0 0.0
        %4638 = vmatpush1.xpose.msra.mxu0 %v4635
        %4639 = vmatprep.subr.mxu0 0.0
        %4640 = vmatpush1.xpose.msra.mxu0 0.0
        %4641 = vmatprep.subr.mxu0 0.0
        %4642 = vmatpush1.xpose.msra.mxu0 0.0
        %4643 = vmatprep.subr.mxu0 0.0
        %4644 = vmatpush1.xpose.msra.mxu0 0.0
        %4645 = vmatprep.subr.mxu0 0.0
        %4646 = vmatpush1.xpose.msra.mxu0 0.0
        %4647 = vmatprep.subr.mxu0 0.0
        %4648 = vmatpush1.xpose.msra.mxu0 0.0
        %4649 = vmatprep.subr.mxu0 0.0
        %4650 = vmatpush1.xpose.msra.mxu0 0.0
        %4651 = vmatprep.subr.mxu0 0.0
        %4652 = vmatpush1.xpose.msra.mxu0 0.0
        %4653 = vmatprep.subr.mxu0 0.0
        %4654 = vmatpush1.xpose.msra.mxu0 0.0
        %4655 = vmatprep.subr.mxu0 0.0
        %4656 = vmatpush1.xpose.msra.mxu0 0.0
        %4657 = vmatprep.subr.mxu0 0.0
        %4658 = vmatpush1.xpose.msra.mxu0 0.0
        %4659 = vmatprep.subr.mxu0 0.0
        %4660 = vmatpush1.xpose.msra.mxu0 0.0
        %4661 = vmatprep.subr.mxu0 0.0
        %4662 = vmatpush1.xpose.msra.mxu0 0.0
        %4663 = vmatprep.subr.mxu0 0.0
        %4664 = vmatpush1.xpose.msra.mxu0 0.0
        %4665 = vmatprep.subr.mxu0 0.0
        %4666 = vmatpush1.xpose.msra.mxu0 0.0
        %4667 = vmatprep.subr.mxu0 0.0
        %4668 = vmatpush1.xpose.msra.mxu0 0.0
        %4669 = vmatprep.subr.mxu0 0.0
        %4670 = vmatpush1.xpose.msra.mxu0 0.0
        %4671 = vmatprep.subr.mxu0 0.0
        %4672 = vmatpush1.xpose.msra.mxu0 0.0
        %4673 = vmatprep.subr.mxu0 0.0
        %4674 = vmatpush1.xpose.msra.mxu0 0.0
        %4675 = vmatprep.subr.mxu0 0.0
        %4676 = vmatpush1.xpose.msra.mxu0 0.0
        %4677 = vmatprep.subr.mxu0 0.0
        %4678 = vmatpush1.xpose.msra.mxu0 0.0
        %4679 = vmatprep.subr.mxu0 0.0
        %4680 = vmatpush1.xpose.msra.mxu0 0.0
        %4681 = vmatprep.subr.mxu0 0.0
        %4682 = vmatpush1.xpose.msra.mxu0 0.0
        %4683 = vmatprep.subr.mxu0 0.0
        %4684 = vmatpush1.xpose.msra.mxu0 0.0
        %4685 = vmatprep.subr.mxu0 0.0
        %4686 = vmatpush1.xpose.msra.mxu0 0.0
        %4687 = vmatprep.subr.mxu0 0.0
        %4688 = vmatpush1.xpose.msra.mxu0 0.0
        %4689 = vmatprep.subr.mxu0 0.0
        %4690 = vmatpush1.xpose.msra.mxu0 0.0
        %4691 = vmatprep.subr.mxu0 0.0
        %4692 = vmatpush1.xpose.msra.mxu0 0.0
        %4693 = vmatprep.subr.mxu0 0.0
        %4694 = vmatpush1.xpose.msra.mxu0 0.0
        %4695 = vmatprep.subr.mxu0 0.0
        %4696 = vmatpush1.xpose.msra.mxu0 0.0
        %4697 = vmatprep.subr.mxu0 0.0
        %4698 = vmatpush1.xpose.msra.mxu0 0.0
        %4699 = vmatprep.subr.mxu0 0.0
        %4700 = vmatpush1.xpose.msra.mxu0 0.0
        %4701 = vmatprep.mubr.f32.mxu0 0.0
        %4702 = vmatmul.mubr.f32.gmra.mrb[0].mxu0 %v4633
        %v4703 = vpop.f32.mrb[0].mxu0
        %v4704 = vadd.f32 0.0, %v4703
        %v4705 = vpop.f32.mrb[0].mxu0
        %4706 = vdwg.mxu0
        %v4707 = vmul.f32 %v4704, 0.125
        %v4708 = vsel %vm3806, %v4707, -1e+09
        %v4709 = vsel %vm1529, %v4708, -inf
        %4710 = vmax.xlane.f32.xlu0 %v4709
        %v4711 = vpop.xlane.xlu0 %4710
        %v4712 = vsub.f32 %v4708, %v4711
        %v4713 = vmul.f32 %v4712, 1.442695
        %v4714 = vpow.pop %v4713
        %v4715 = vsel %vm1529, %v4714, 0.0
        %4716 = vadd.xlane.f32.xlu0 %v4715
        %v4717 = vpop.xlane.xlu0 %4716
        %v4718 = vrcp.pop %v4717
        %v4719 = vmul.f32 %v4714, %v4718
        %4721 = vrot.lane.b32.xlu0 %v3801, 64
        %v4722 = vpop.permute.xlu0 %4721
        %v4725 = vsel %vm1529, %v4719, 0
        %4727 = vmatprep.subr.mxu0 0.0
        %4728 = vmatpush1.msra.mxu0 %v4722
        %4729 = vmatprep.subr.mxu0 0.0
        %4730 = vmatpush1.msra.mxu0 0.0
        %4731 = vmatprep.subr.mxu0 0.0
        %4732 = vmatpush1.msra.mxu0 0.0
        %4733 = vmatprep.subr.mxu0 0.0
        %4734 = vmatpush1.msra.mxu0 0.0
        %4735 = vmatprep.subr.mxu0 0.0
        %4736 = vmatpush1.msra.mxu0 0.0
        %4737 = vmatprep.subr.mxu0 0.0
        %4738 = vmatpush1.msra.mxu0 0.0
        %4739 = vmatprep.subr.mxu0 0.0
        %4740 = vmatpush1.msra.mxu0 0.0
        %4741 = vmatprep.subr.mxu0 0.0
        %4742 = vmatpush1.msra.mxu0 0.0
        %4743 = vmatprep.subr.mxu0 0.0
        %4744 = vmatpush1.msra.mxu0 0.0
        %4745 = vmatprep.subr.mxu0 0.0
        %4746 = vmatpush1.msra.mxu0 0.0
        %4747 = vmatprep.subr.mxu0 0.0
        %4748 = vmatpush1.msra.mxu0 0.0
        %4749 = vmatprep.subr.mxu0 0.0
        %4750 = vmatpush1.msra.mxu0 0.0
        %4751 = vmatprep.subr.mxu0 0.0
        %4752 = vmatpush1.msra.mxu0 0.0
        %4753 = vmatprep.subr.mxu0 0.0
        %4754 = vmatpush1.msra.mxu0 0.0
        %4755 = vmatprep.subr.mxu0 0.0
        %4756 = vmatpush1.msra.mxu0 0.0
        %4757 = vmatprep.subr.mxu0 0.0
        %4758 = vmatpush1.msra.mxu0 0.0
        %4759 = vmatprep.subr.mxu0 0.0
        %4760 = vmatpush1.msra.mxu0 0.0
        %4761 = vmatprep.subr.mxu0 0.0
        %4762 = vmatpush1.msra.mxu0 0.0
        %4763 = vmatprep.subr.mxu0 0.0
        %4764 = vmatpush1.msra.mxu0 0.0
        %4765 = vmatprep.subr.mxu0 0.0
        %4766 = vmatpush1.msra.mxu0 0.0
        %4767 = vmatprep.subr.mxu0 0.0
        %4768 = vmatpush1.msra.mxu0 0.0
        %4769 = vmatprep.subr.mxu0 0.0
        %4770 = vmatpush1.msra.mxu0 0.0
        %4771 = vmatprep.subr.mxu0 0.0
        %4772 = vmatpush1.msra.mxu0 0.0
        %4773 = vmatprep.subr.mxu0 0.0
        %4774 = vmatpush1.msra.mxu0 0.0
        %4775 = vmatprep.subr.mxu0 0.0
        %4776 = vmatpush1.msra.mxu0 0.0
        %4777 = vmatprep.subr.mxu0 0.0
        %4778 = vmatpush1.msra.mxu0 0.0
        %4779 = vmatprep.subr.mxu0 0.0
        %4780 = vmatpush1.msra.mxu0 0.0
        %4781 = vmatprep.subr.mxu0 0.0
        %4782 = vmatpush1.msra.mxu0 0.0
        %4783 = vmatprep.subr.mxu0 0.0
        %4784 = vmatpush1.msra.mxu0 0.0
        %4785 = vmatprep.subr.mxu0 0.0
        %4786 = vmatpush1.msra.mxu0 0.0
        %4787 = vmatprep.subr.mxu0 0.0
        %4788 = vmatpush1.msra.mxu0 0.0
        %4789 = vmatprep.subr.mxu0 0.0
        %4790 = vmatpush1.msra.mxu0 0.0
        %4791 = vmatprep.mubr.f32.mxu0 0.0
        %4792 = vmatmul.mubr.f32.gmra.mrb[0].mxu0 %v4725
        %v4793 = vpop.f32.mrb[0].mxu0
        %v4794 = vadd.f32 0.0, %v4793
        %v4795 = vpop.f32.mrb[0].mxu0
        %4796 = vdwg.mxu0
        %v4798 = vsel %vm949, %v3452, 0
        %v4801 = vsel %vm949, %v3661, 0
        %4803 = vmatprep.subr.mxu0 0.0
        %4804 = vmatpush1.xpose.msra.mxu0 %v4801
        %4805 = vmatprep.subr.mxu0 0.0
        %4806 = vmatpush1.xpose.msra.mxu0 0.0
        %4807 = vmatprep.subr.mxu0 0.0
        %4808 = vmatpush1.xpose.msra.mxu0 0.0
        %4809 = vmatprep.subr.mxu0 0.0
        %4810 = vmatpush1.xpose.msra.mxu0 0.0
        %4811 = vmatprep.subr.mxu0 0.0
        %4812 = vmatpush1.xpose.msra.mxu0 0.0
        %4813 = vmatprep.subr.mxu0 0.0
        %4814 = vmatpush1.xpose.msra.mxu0 0.0
        %4815 = vmatprep.subr.mxu0 0.0
        %4816 = vmatpush1.xpose.msra.mxu0 0.0
        %4817 = vmatprep.subr.mxu0 0.0
        %4818 = vmatpush1.xpose.msra.mxu0 0.0
        %4819 = vmatprep.subr.mxu0 0.0
        %4820 = vmatpush1.xpose.msra.mxu0 0.0
        %4821 = vmatprep.subr.mxu0 0.0
        %4822 = vmatpush1.xpose.msra.mxu0 0.0
        %4823 = vmatprep.subr.mxu0 0.0
        %4824 = vmatpush1.xpose.msra.mxu0 0.0
        %4825 = vmatprep.subr.mxu0 0.0
        %4826 = vmatpush1.xpose.msra.mxu0 0.0
        %4827 = vmatprep.subr.mxu0 0.0
        %4828 = vmatpush1.xpose.msra.mxu0 0.0
        %4829 = vmatprep.subr.mxu0 0.0
        %4830 = vmatpush1.xpose.msra.mxu0 0.0
        %4831 = vmatprep.subr.mxu0 0.0
        %4832 = vmatpush1.xpose.msra.mxu0 0.0
        %4833 = vmatprep.subr.mxu0 0.0
        %4834 = vmatpush1.xpose.msra.mxu0 0.0
        %4835 = vmatprep.subr.mxu0 0.0
        %4836 = vmatpush1.xpose.msra.mxu0 0.0
        %4837 = vmatprep.subr.mxu0 0.0
        %4838 = vmatpush1.xpose.msra.mxu0 0.0
        %4839 = vmatprep.subr.mxu0 0.0
        %4840 = vmatpush1.xpose.msra.mxu0 0.0
        %4841 = vmatprep.subr.mxu0 0.0
        %4842 = vmatpush1.xpose.msra.mxu0 0.0
        %4843 = vmatprep.subr.mxu0 0.0
        %4844 = vmatpush1.xpose.msra.mxu0 0.0
        %4845 = vmatprep.subr.mxu0 0.0
        %4846 = vmatpush1.xpose.msra.mxu0 0.0
        %4847 = vmatprep.subr.mxu0 0.0
        %4848 = vmatpush1.xpose.msra.mxu0 0.0
        %4849 = vmatprep.subr.mxu0 0.0
        %4850 = vmatpush1.xpose.msra.mxu0 0.0
        %4851 = vmatprep.subr.mxu0 0.0
        %4852 = vmatpush1.xpose.msra.mxu0 0.0
        %4853 = vmatprep.subr.mxu0 0.0
        %4854 = vmatpush1.xpose.msra.mxu0 0.0
        %4855 = vmatprep.subr.mxu0 0.0
        %4856 = vmatpush1.xpose.msra.mxu0 0.0
        %4857 = vmatprep.subr.mxu0 0.0
        %4858 = vmatpush1.xpose.msra.mxu0 0.0
        %4859 = vmatprep.subr.mxu0 0.0
        %4860 = vmatpush1.xpose.msra.mxu0 0.0
        %4861 = vmatprep.subr.mxu0 0.0
        %4862 = vmatpush1.xpose.msra.mxu0 0.0
        %4863 = vmatprep.subr.mxu0 0.0
        %4864 = vmatpush1.xpose.msra.mxu0 0.0
        %4865 = vmatprep.subr.mxu0 0.0
        %4866 = vmatpush1.xpose.msra.mxu0 0.0
        %4867 = vmatprep.mubr.f32.mxu0 0.0
        %4868 = vmatmul.mubr.f32.gmra.mrb[0].mxu0 %v4798
        %v4869 = vpop.f32.mrb[0].mxu0
        %v4870 = vadd.f32 0.0, %v4869
        %v4871 = vpop.f32.mrb[0].mxu0
        %4872 = vdwg.mxu0
        %v4873 = vmul.f32 %v4870, 0.125
        %v4874 = vsel %vm3806, %v4873, -1e+09
        %v4875 = vsel %vm1529, %v4874, -inf
        %4876 = vmax.xlane.f32.xlu0 %v4875
        %v4877 = vpop.xlane.xlu0 %4876
        %v4878 = vsub.f32 %v4874, %v4877
        %v4879 = vmul.f32 %v4878, 1.442695
        %v4880 = vpow.pop %v4879
        %v4881 = vsel %vm1529, %v4880, 0.0
        %4882 = vadd.xlane.f32.xlu0 %v4881
        %v4883 = vpop.xlane.xlu0 %4882
        %v4884 = vrcp.pop %v4883
        %v4885 = vmul.f32 %v4880, %v4884
        %v4887 = vsel %vm1529, %v4885, 0
        %4889 = vmatprep.subr.mxu0 0.0
        %4890 = vmatpush1.msra.mxu0 %v3803
        %4891 = vmatprep.subr.mxu0 0.0
        %4892 = vmatpush1.msra.mxu0 0.0
        %4893 = vmatprep.subr.mxu0 0.0
        %4894 = vmatpush1.msra.mxu0 0.0
        %4895 = vmatprep.subr.mxu0 0.0
        %4896 = vmatpush1.msra.mxu0 0.0
        %4897 = vmatprep.subr.mxu0 0.0
        %4898 = vmatpush1.msra.mxu0 0.0
        %4899 = vmatprep.subr.mxu0 0.0
        %4900 = vmatpush1.msra.mxu0 0.0
        %4901 = vmatprep.subr.mxu0 0.0
        %4902 = vmatpush1.msra.mxu0 0.0
        %4903 = vmatprep.subr.mxu0 0.0
        %4904 = vmatpush1.msra.mxu0 0.0
        %4905 = vmatprep.subr.mxu0 0.0
        %4906 = vmatpush1.msra.mxu0 0.0
        %4907 = vmatprep.subr.mxu0 0.0
        %4908 = vmatpush1.msra.mxu0 0.0
        %4909 = vmatprep.subr.mxu0 0.0
        %4910 = vmatpush1.msra.mxu0 0.0
        %4911 = vmatprep.subr.mxu0 0.0
        %4912 = vmatpush1.msra.mxu0 0.0
        %4913 = vmatprep.subr.mxu0 0.0
        %4914 = vmatpush1.msra.mxu0 0.0
        %4915 = vmatprep.subr.mxu0 0.0
        %4916 = vmatpush1.msra.mxu0 0.0
        %4917 = vmatprep.subr.mxu0 0.0
        %4918 = vmatpush1.msra.mxu0 0.0
        %4919 = vmatprep.subr.mxu0 0.0
        %4920 = vmatpush1.msra.mxu0 0.0
        %4921 = vmatprep.subr.mxu0 0.0
        %4922 = vmatpush1.msra.mxu0 0.0
        %4923 = vmatprep.subr.mxu0 0.0
        %4924 = vmatpush1.msra.mxu0 0.0
        %4925 = vmatprep.subr.mxu0 0.0
        %4926 = vmatpush1.msra.mxu0 0.0
        %4927 = vmatprep.subr.mxu0 0.0
        %4928 = vmatpush1.msra.mxu0 0.0
        %4929 = vmatprep.subr.mxu0 0.0
        %4930 = vmatpush1.msra.mxu0 0.0
        %4931 = vmatprep.subr.mxu0 0.0
        %4932 = vmatpush1.msra.mxu0 0.0
        %4933 = vmatprep.subr.mxu0 0.0
        %4934 = vmatpush1.msra.mxu0 0.0
        %4935 = vmatprep.subr.mxu0 0.0
        %4936 = vmatpush1.msra.mxu0 0.0
        %4937 = vmatprep.subr.mxu0 0.0
        %4938 = vmatpush1.msra.mxu0 0.0
        %4939 = vmatprep.subr.mxu0 0.0
        %4940 = vmatpush1.msra.mxu0 0.0
        %4941 = vmatprep.subr.mxu0 0.0
        %4942 = vmatpush1.msra.mxu0 0.0
        %4943 = vmatprep.subr.mxu0 0.0
        %4944 = vmatpush1.msra.mxu0 0.0
        %4945 = vmatprep.subr.mxu0 0.0
        %4946 = vmatpush1.msra.mxu0 0.0
        %4947 = vmatprep.subr.mxu0 0.0
        %4948 = vmatpush1.msra.mxu0 0.0
        %4949 = vmatprep.subr.mxu0 0.0
        %4950 = vmatpush1.msra.mxu0 0.0
        %4951 = vmatprep.subr.mxu0 0.0
        %4952 = vmatpush1.msra.mxu0 0.0
        %4953 = vmatprep.mubr.f32.mxu0 0.0
        %4954 = vmatmul.mubr.f32.gmra.mrb[0].mxu0 %v4887
        %v4955 = vpop.f32.mrb[0].mxu0
        %v4956 = vadd.f32 0.0, %v4955
        %v4957 = vpop.f32.mrb[0].mxu0
        %4958 = vdwg.mxu0
        %4959 = vrot.lane.b32.xlu0 %v3452, 64
        %v4960 = vpop.permute.xlu0 %4959
        %4961 = vrot.lane.b32.xlu0 %v3661, 64
        %v4962 = vpop.permute.xlu0 %4961
        %v4963 = vsel %vm949, %v4960, 0
        %v4965 = vsel %vm949, %v4962, 0
        %4967 = vmatprep.subr.mxu0 0.0
        %4968 = vmatpush1.xpose.msra.mxu0 %v4965
        %4969 = vmatprep.subr.mxu0 0.0
        %4970 = vmatpush1.xpose.msra.mxu0 0.0
        %4971 = vmatprep.subr.mxu0 0.0
        %4972 = vmatpush1.xpose.msra.mxu0 0.0
        %4973 = vmatprep.subr.mxu0 0.0
        %4974 = vmatpush1.xpose.msra.mxu0 0.0
        %4975 = vmatprep.subr.mxu0 0.0
        %4976 = vmatpush1.xpose.msra.mxu0 0.0
        %4977 = vmatprep.subr.mxu0 0.0
        %4978 = vmatpush1.xpose.msra.mxu0 0.0
        %4979 = vmatprep.subr.mxu0 0.0
        %4980 = vmatpush1.xpose.msra.mxu0 0.0
        %4981 = vmatprep.subr.mxu0 0.0
        %4982 = vmatpush1.xpose.msra.mxu0 0.0
        %4983 = vmatprep.subr.mxu0 0.0
        %4984 = vmatpush1.xpose.msra.mxu0 0.0
        %4985 = vmatprep.subr.mxu0 0.0
        %4986 = vmatpush1.xpose.msra.mxu0 0.0
        %4987 = vmatprep.subr.mxu0 0.0
        %4988 = vmatpush1.xpose.msra.mxu0 0.0
        %4989 = vmatprep.subr.mxu0 0.0
        %4990 = vmatpush1.xpose.msra.mxu0 0.0
        %4991 = vmatprep.subr.mxu0 0.0
        %4992 = vmatpush1.xpose.msra.mxu0 0.0
        %4993 = vmatprep.subr.mxu0 0.0
        %4994 = vmatpush1.xpose.msra.mxu0 0.0
        %4995 = vmatprep.subr.mxu0 0.0
        %4996 = vmatpush1.xpose.msra.mxu0 0.0
        %4997 = vmatprep.subr.mxu0 0.0
        %4998 = vmatpush1.xpose.msra.mxu0 0.0
        %4999 = vmatprep.subr.mxu0 0.0
        %5000 = vmatpush1.xpose.msra.mxu0 0.0
        %5001 = vmatprep.subr.mxu0 0.0
        %5002 = vmatpush1.xpose.msra.mxu0 0.0
        %5003 = vmatprep.subr.mxu0 0.0
        %5004 = vmatpush1.xpose.msra.mxu0 0.0
        %5005 = vmatprep.subr.mxu0 0.0
        %5006 = vmatpush1.xpose.msra.mxu0 0.0
        %5007 = vmatprep.subr.mxu0 0.0
        %5008 = vmatpush1.xpose.msra.mxu0 0.0
        %5009 = vmatprep.subr.mxu0 0.0
        %5010 = vmatpush1.xpose.msra.mxu0 0.0
        %5011 = vmatprep.subr.mxu0 0.0
        %5012 = vmatpush1.xpose.msra.mxu0 0.0
        %5013 = vmatprep.subr.mxu0 0.0
        %5014 = vmatpush1.xpose.msra.mxu0 0.0
        %5015 = vmatprep.subr.mxu0 0.0
        %5016 = vmatpush1.xpose.msra.mxu0 0.0
        %5017 = vmatprep.subr.mxu0 0.0
        %5018 = vmatpush1.xpose.msra.mxu0 0.0
        %5019 = vmatprep.subr.mxu0 0.0
        %5020 = vmatpush1.xpose.msra.mxu0 0.0
        %5021 = vmatprep.subr.mxu0 0.0
        %5022 = vmatpush1.xpose.msra.mxu0 0.0
        %5023 = vmatprep.subr.mxu0 0.0
        %5024 = vmatpush1.xpose.msra.mxu0 0.0
        %5025 = vmatprep.subr.mxu0 0.0
        %5026 = vmatpush1.xpose.msra.mxu0 0.0
        %5027 = vmatprep.subr.mxu0 0.0
        %5028 = vmatpush1.xpose.msra.mxu0 0.0
        %5029 = vmatprep.subr.mxu0 0.0
        %5030 = vmatpush1.xpose.msra.mxu0 0.0
        %5031 = vmatprep.mubr.f32.mxu0 0.0
        %5032 = vmatmul.mubr.f32.gmra.mrb[0].mxu0 %v4963
        %v5033 = vpop.f32.mrb[0].mxu0
        %v5034 = vadd.f32 0.0, %v5033
        %v5035 = vpop.f32.mrb[0].mxu0
        %5036 = vdwg.mxu0
        %v5037 = vmul.f32 %v5034, 0.125
        %v5038 = vsel %vm3806, %v5037, -1e+09
        %v5039 = vsel %vm1529, %v5038, -inf
        %5040 = vmax.xlane.f32.xlu0 %v5039
        %v5041 = vpop.xlane.xlu0 %5040
        %v5042 = vsub.f32 %v5038, %v5041
        %v5043 = vmul.f32 %v5042, 1.442695
        %v5044 = vpow.pop %v5043
        %v5045 = vsel %vm1529, %v5044, 0.0
        %5046 = vadd.xlane.f32.xlu0 %v5045
        %v5047 = vpop.xlane.xlu0 %5046
        %v5048 = vrcp.pop %v5047
        %v5049 = vmul.f32 %v5044, %v5048
        %5051 = vrot.lane.b32.xlu0 %v3803, 64
        %v5052 = vpop.permute.xlu0 %5051
        %v5055 = vsel %vm1529, %v5049, 0
        %5057 = vmatprep.subr.mxu0 0.0
        %5058 = vmatpush1.msra.mxu0 %v5052
        %5059 = vmatprep.subr.mxu0 0.0
        %5060 = vmatpush1.msra.mxu0 0.0
        %5061 = vmatprep.subr.mxu0 0.0
        %5062 = vmatpush1.msra.mxu0 0.0
        %5063 = vmatprep.subr.mxu0 0.0
        %5064 = vmatpush1.msra.mxu0 0.0
        %5065 = vmatprep.subr.mxu0 0.0
        %5066 = vmatpush1.msra.mxu0 0.0
        %5067 = vmatprep.subr.mxu0 0.0
        %5068 = vmatpush1.msra.mxu0 0.0
        %5069 = vmatprep.subr.mxu0 0.0
        %5070 = vmatpush1.msra.mxu0 0.0
        %5071 = vmatprep.subr.mxu0 0.0
        %5072 = vmatpush1.msra.mxu0 0.0
        %5073 = vmatprep.subr.mxu0 0.0
        %5074 = vmatpush1.msra.mxu0 0.0
        %5075 = vmatprep.subr.mxu0 0.0
        %5076 = vmatpush1.msra.mxu0 0.0
        %5077 = vmatprep.subr.mxu0 0.0
        %5078 = vmatpush1.msra.mxu0 0.0
        %5079 = vmatprep.subr.mxu0 0.0
        %5080 = vmatpush1.msra.mxu0 0.0
        %5081 = vmatprep.subr.mxu0 0.0
        %5082 = vmatpush1.msra.mxu0 0.0
        %5083 = vmatprep.subr.mxu0 0.0
        %5084 = vmatpush1.msra.mxu0 0.0
        %5085 = vmatprep.subr.mxu0 0.0
        %5086 = vmatpush1.msra.mxu0 0.0
        %5087 = vmatprep.subr.mxu0 0.0
        %5088 = vmatpush1.msra.mxu0 0.0
        %5089 = vmatprep.subr.mxu0 0.0
        %5090 = vmatpush1.msra.mxu0 0.0
        %5091 = vmatprep.subr.mxu0 0.0
        %5092 = vmatpush1.msra.mxu0 0.0
        %5093 = vmatprep.subr.mxu0 0.0
        %5094 = vmatpush1.msra.mxu0 0.0
        %5095 = vmatprep.subr.mxu0 0.0
        %5096 = vmatpush1.msra.mxu0 0.0
        %5097 = vmatprep.subr.mxu0 0.0
        %5098 = vmatpush1.msra.mxu0 0.0
        %5099 = vmatprep.subr.mxu0 0.0
        %5100 = vmatpush1.msra.mxu0 0.0
        %5101 = vmatprep.subr.mxu0 0.0
        %5102 = vmatpush1.msra.mxu0 0.0
        %5103 = vmatprep.subr.mxu0 0.0
        %5104 = vmatpush1.msra.mxu0 0.0
        %5105 = vmatprep.subr.mxu0 0.0
        %5106 = vmatpush1.msra.mxu0 0.0
        %5107 = vmatprep.subr.mxu0 0.0
        %5108 = vmatpush1.msra.mxu0 0.0
        %5109 = vmatprep.subr.mxu0 0.0
        %5110 = vmatpush1.msra.mxu0 0.0
        %5111 = vmatprep.subr.mxu0 0.0
        %5112 = vmatpush1.msra.mxu0 0.0
        %5113 = vmatprep.subr.mxu0 0.0
        %5114 = vmatpush1.msra.mxu0 0.0
        %5115 = vmatprep.subr.mxu0 0.0
        %5116 = vmatpush1.msra.mxu0 0.0
        %5117 = vmatprep.subr.mxu0 0.0
        %5118 = vmatpush1.msra.mxu0 0.0
        %5119 = vmatprep.subr.mxu0 0.0
        %5120 = vmatpush1.msra.mxu0 0.0
        %5121 = vmatprep.mubr.f32.mxu0 0.0
        %5122 = vmatmul.mubr.f32.gmra.mrb[0].mxu0 %v5055
        %v5123 = vpop.f32.mrb[0].mxu0
        %v5124 = vadd.f32 0.0, %v5123
        %v5125 = vpop.f32.mrb[0].mxu0
        %5126 = vdwg.mxu0
        %5128 = vrot.lane.b32.xlu0 %v4134, 64
        %v5129 = vpop.permute.xlu0 %5128
        %5132 = vrot.lane.b32.xlu0 %v4464, 64
        %v5133 = vpop.permute.xlu0 %5132
        %5136 = vrot.lane.b32.xlu0 %v4794, 64
        %v5137 = vpop.permute.xlu0 %5136
        %5140 = vrot.lane.b32.xlu0 %v5124, 64
        %v5141 = vpop.permute.xlu0 %5140
        %v5143 = vsel %vm949, %v3966, %v5129
        %v5144 = vsel %vm949, %v4296, %v5133
        %v5145 = vsel %vm949, %v4626, %v5137
        %v5146 = vsel %vm949, %v4956, %v5141
        %v5147 = vld [vmem:[%s17] sm:$0xff]
        %v5148 = vld [vmem:[%s17 + $0x8] sm:$0xff]
        %v5149 = vld [vmem:[%s17 + $0x10] sm:$0xff]
        %v5150 = vld [vmem:[%s17 + $0x18] sm:$0xff]
        %v5151 = vld [vmem:[%s17 + $0x20] sm:$0xff]
        %v5152 = vld [vmem:[%s17 + $0x28] sm:$0xff]
        %v5153 = vld [vmem:[%s17 + $0x30] sm:$0xff]
        %v5154 = vld [vmem:[%s17 + $0x38] sm:$0xff]
        %v5155 = vld [vmem:[%s17 + $0x40] sm:$0xff]
        %v5156 = vld [vmem:[%s17 + $0x48] sm:$0xff]
        %v5157 = vld [vmem:[%s17 + $0x50] sm:$0xff]
        %v5158 = vld [vmem:[%s17 + $0x58] sm:$0xff]
        %v5159 = vld [vmem:[%s17 + $0x60] sm:$0xff]
        %v5160 = vld [vmem:[%s17 + $0x68] sm:$0xff]
        %v5161 = vld [vmem:[%s17 + $0x70] sm:$0xff]
        %v5162 = vld [vmem:[%s17 + $0x78] sm:$0xff]
        %v5163 = vld [vmem:[%s17 + $0x80] sm:$0xff]
        %v5164 = vld [vmem:[%s17 + $0x88] sm:$0xff]
        %v5165 = vld [vmem:[%s17 + $0x90] sm:$0xff]
        %v5166 = vld [vmem:[%s17 + $0x98] sm:$0xff]
        %v5167 = vld [vmem:[%s17 + $0xa0] sm:$0xff]
        %v5168 = vld [vmem:[%s17 + $0xa8] sm:$0xff]
        %v5169 = vld [vmem:[%s17 + $0xb0] sm:$0xff]
        %v5170 = vld [vmem:[%s17 + $0xb8] sm:$0xff]
        %v5171 = vld [vmem:[%s17 + $0xc0] sm:$0xff]
        %v5172 = vld [vmem:[%s17 + $0xc8] sm:$0xff]
        %v5173 = vld [vmem:[%s17 + $0xd0] sm:$0xff]
        %v5174 = vld [vmem:[%s17 + $0xd8] sm:$0xff]
        %v5175 = vld [vmem:[%s17 + $0xe0] sm:$0xff]
        %v5176 = vld [vmem:[%s17 + $0xe8] sm:$0xff]
        %v5177 = vld [vmem:[%s17 + $0xf0] sm:$0xff]
        %v5178 = vld [vmem:[%s17 + $0xf8] sm:$0xff]
        %v5179 = vld [vmem:[%s17 + $0x100] sm:$0xff]
        %v5180 = vld [vmem:[%s17 + $0x108] sm:$0xff]
        %v5181 = vld [vmem:[%s17 + $0x110] sm:$0xff]
        %v5182 = vld [vmem:[%s17 + $0x118] sm:$0xff]
        %v5183 = vld [vmem:[%s17 + $0x120] sm:$0xff]
        %v5184 = vld [vmem:[%s17 + $0x128] sm:$0xff]
        %v5185 = vld [vmem:[%s17 + $0x130] sm:$0xff]
        %v5186 = vld [vmem:[%s17 + $0x138] sm:$0xff]
        %v5187 = vld [vmem:[%s17 + $0x140] sm:$0xff]
        %v5188 = vld [vmem:[%s17 + $0x148] sm:$0xff]
        %v5189 = vld [vmem:[%s17 + $0x150] sm:$0xff]
        %v5190 = vld [vmem:[%s17 + $0x158] sm:$0xff]
        %v5191 = vld [vmem:[%s17 + $0x160] sm:$0xff]
        %v5192 = vld [vmem:[%s17 + $0x168] sm:$0xff]
        %v5193 = vld [vmem:[%s17 + $0x170] sm:$0xff]
        %v5194 = vld [vmem:[%s17 + $0x178] sm:$0xff]
        %v5195 = vld [vmem:[%s17 + $0x180] sm:$0xff]
        %v5196 = vld [vmem:[%s17 + $0x188] sm:$0xff]
        %v5197 = vld [vmem:[%s17 + $0x190] sm:$0xff]
        %v5198 = vld [vmem:[%s17 + $0x198] sm:$0xff]
        %v5199 = vld [vmem:[%s17 + $0x1a0] sm:$0xff]
        %v5200 = vld [vmem:[%s17 + $0x1a8] sm:$0xff]
        %v5201 = vld [vmem:[%s17 + $0x1b0] sm:$0xff]
        %v5202 = vld [vmem:[%s17 + $0x1b8] sm:$0xff]
        %v5203 = vld [vmem:[%s17 + $0x1c0] sm:$0xff]
        %v5204 = vld [vmem:[%s17 + $0x1c8] sm:$0xff]
        %v5205 = vld [vmem:[%s17 + $0x1d0] sm:$0xff]
        %v5206 = vld [vmem:[%s17 + $0x1d8] sm:$0xff]
        %v5207 = vld [vmem:[%s17 + $0x1e0] sm:$0xff]
        %v5208 = vld [vmem:[%s17 + $0x1e8] sm:$0xff]
        %v5209 = vld [vmem:[%s17 + $0x1f0] sm:$0xff]
        %v5210 = vld [vmem:[%s17 + $0x1f8] sm:$0xff]
        %v5211 = vld [vmem:[#allocation4] sm:$0x1]
        %v5213 = vlaneseq
        %v5214 = vshrl.u32 %v5213, 7
        %v5215 = vsub.s32 0, %v5214
        %v5216 = vrot.slane %v5211, %v5215
        %5218 = vmatprep.subr.mxu0 0.0
        %5219 = vmatpush1.msra.mxu0 %v5147
        %5220 = vmatprep.subr.mxu0 0.0
        %5221 = vmatpush1.msra.mxu0 %v5148
        %5222 = vmatprep.subr.mxu0 0.0
        %5223 = vmatpush1.msra.mxu0 %v5149
        %5224 = vmatprep.subr.mxu0 0.0
        %5225 = vmatpush1.msra.mxu0 %v5150
        %5226 = vmatprep.subr.mxu0 0.0
        %5227 = vmatpush1.msra.mxu0 %v5151
        %5228 = vmatprep.subr.mxu0 0.0
        %5229 = vmatpush1.msra.mxu0 %v5152
        %5230 = vmatprep.subr.mxu0 0.0
        %5231 = vmatpush1.msra.mxu0 %v5153
        %5232 = vmatprep.subr.mxu0 0.0
        %5233 = vmatpush1.msra.mxu0 %v5154
        %5234 = vmatprep.subr.mxu0 0.0
        %5235 = vmatpush1.msra.mxu0 %v5155
        %5236 = vmatprep.subr.mxu0 0.0
        %5237 = vmatpush1.msra.mxu0 %v5156
        %5238 = vmatprep.subr.mxu0 0.0
        %5239 = vmatpush1.msra.mxu0 %v5157
        %5240 = vmatprep.subr.mxu0 0.0
        %5241 = vmatpush1.msra.mxu0 %v5158
        %5242 = vmatprep.subr.mxu0 0.0
        %5243 = vmatpush1.msra.mxu0 %v5159
        %5244 = vmatprep.subr.mxu0 0.0
        %5245 = vmatpush1.msra.mxu0 %v5160
        %5246 = vmatprep.subr.mxu0 0.0
        %5247 = vmatpush1.msra.mxu0 %v5161
        %5248 = vmatprep.subr.mxu0 0.0
        %5249 = vmatpush1.msra.mxu0 %v5162
        %5250 = vmatprep.subr.mxu0 0.0
        %5251 = vmatpush1.msra.mxu0 %v5163
        %5252 = vmatprep.subr.mxu0 0.0
        %5253 = vmatpush1.msra.mxu0 %v5164
        %5254 = vmatprep.subr.mxu0 0.0
        %5255 = vmatpush1.msra.mxu0 %v5165
        %5256 = vmatprep.subr.mxu0 0.0
        %5257 = vmatpush1.msra.mxu0 %v5166
        %5258 = vmatprep.subr.mxu0 0.0
        %5259 = vmatpush1.msra.mxu0 %v5167
        %5260 = vmatprep.subr.mxu0 0.0
        %5261 = vmatpush1.msra.mxu0 %v5168
        %5262 = vmatprep.subr.mxu0 0.0
        %5263 = vmatpush1.msra.mxu0 %v5169
        %5264 = vmatprep.subr.mxu0 0.0
        %5265 = vmatpush1.msra.mxu0 %v5170
        %5266 = vmatprep.subr.mxu0 0.0
        %5267 = vmatpush1.msra.mxu0 %v5171
        %5268 = vmatprep.subr.mxu0 0.0
        %5269 = vmatpush1.msra.mxu0 %v5172
        %5270 = vmatprep.subr.mxu0 0.0
        %5271 = vmatpush1.msra.mxu0 %v5173
        %5272 = vmatprep.subr.mxu0 0.0
        %5273 = vmatpush1.msra.mxu0 %v5174
        %5274 = vmatprep.subr.mxu0 0.0
        %5275 = vmatpush1.msra.mxu0 %v5175
        %5276 = vmatprep.subr.mxu0 0.0
        %5277 = vmatpush1.msra.mxu0 %v5176
        %5278 = vmatprep.subr.mxu0 0.0
        %5279 = vmatpush1.msra.mxu0 %v5177
        %5280 = vmatprep.subr.mxu0 0.0
        %5281 = vmatpush1.msra.mxu0 %v5178
        %5282 = vmatprep.mubr.f32.mxu0 %v5144
        %5283 = vmatmul.mubr.f32.gmra.mrb[0].mxu0 %v5143
        %v5284 = vpop.f32.mrb[0].mxu0
        %v5285 = vadd.f32 %v5216, %v5284
        %v5286 = vpop.f32.mrb[0].mxu0
        %5287 = vdwg.mxu0
        %5288 = vmatprep.subr.mxu0 0.0
        %5289 = vmatpush1.msra.mxu0 %v5179
        %5290 = vmatprep.subr.mxu0 0.0
        %5291 = vmatpush1.msra.mxu0 %v5180
        %5292 = vmatprep.subr.mxu0 0.0
        %5293 = vmatpush1.msra.mxu0 %v5181
        %5294 = vmatprep.subr.mxu0 0.0
        %5295 = vmatpush1.msra.mxu0 %v5182
        %5296 = vmatprep.subr.mxu0 0.0
        %5297 = vmatpush1.msra.mxu0 %v5183
        %5298 = vmatprep.subr.mxu0 0.0
        %5299 = vmatpush1.msra.mxu0 %v5184
        %5300 = vmatprep.subr.mxu0 0.0
        %5301 = vmatpush1.msra.mxu0 %v5185
        %5302 = vmatprep.subr.mxu0 0.0
        %5303 = vmatpush1.msra.mxu0 %v5186
        %5304 = vmatprep.subr.mxu0 0.0
        %5305 = vmatpush1.msra.mxu0 %v5187
        %5306 = vmatprep.subr.mxu0 0.0
        %5307 = vmatpush1.msra.mxu0 %v5188
        %5308 = vmatprep.subr.mxu0 0.0
        %5309 = vmatpush1.msra.mxu0 %v5189
        %5310 = vmatprep.subr.mxu0 0.0
        %5311 = vmatpush1.msra.mxu0 %v5190
        %5312 = vmatprep.subr.mxu0 0.0
        %5313 = vmatpush1.msra.mxu0 %v5191
        %5314 = vmatprep.subr.mxu0 0.0
        %5315 = vmatpush1.msra.mxu0 %v5192
        %5316 = vmatprep.subr.mxu0 0.0
        %5317 = vmatpush1.msra.mxu0 %v5193
        %5318 = vmatprep.subr.mxu0 0.0
        %5319 = vmatpush1.msra.mxu0 %v5194
        %5320 = vmatprep.subr.mxu0 0.0
        %5321 = vmatpush1.msra.mxu0 %v5195
        %5322 = vmatprep.subr.mxu0 0.0
        %5323 = vmatpush1.msra.mxu0 %v5196
        %5324 = vmatprep.subr.mxu0 0.0
        %5325 = vmatpush1.msra.mxu0 %v5197
        %5326 = vmatprep.subr.mxu0 0.0
        %5327 = vmatpush1.msra.mxu0 %v5198
        %5328 = vmatprep.subr.mxu0 0.0
        %5329 = vmatpush1.msra.mxu0 %v5199
        %5330 = vmatprep.subr.mxu0 0.0
        %5331 = vmatpush1.msra.mxu0 %v5200
        %5332 = vmatprep.subr.mxu0 0.0
        %5333 = vmatpush1.msra.mxu0 %v5201
        %5334 = vmatprep.subr.mxu0 0.0
        %5335 = vmatpush1.msra.mxu0 %v5202
        %5336 = vmatprep.subr.mxu0 0.0
        %5337 = vmatpush1.msra.mxu0 %v5203
        %5338 = vmatprep.subr.mxu0 0.0
        %5339 = vmatpush1.msra.mxu0 %v5204
        %5340 = vmatprep.subr.mxu0 0.0
        %5341 = vmatpush1.msra.mxu0 %v5205
        %5342 = vmatprep.subr.mxu0 0.0
        %5343 = vmatpush1.msra.mxu0 %v5206
        %5344 = vmatprep.subr.mxu0 0.0
        %5345 = vmatpush1.msra.mxu0 %v5207
        %5346 = vmatprep.subr.mxu0 0.0
        %5347 = vmatpush1.msra.mxu0 %v5208
        %5348 = vmatprep.subr.mxu0 0.0
        %5349 = vmatpush1.msra.mxu0 %v5209
        %5350 = vmatprep.subr.mxu0 0.0
        %5351 = vmatpush1.msra.mxu0 %v5210
        %5352 = vmatprep.mubr.f32.mxu0 %v5146
        %5353 = vmatmul.mubr.f32.gmra.mrb[0].mxu0 %v5145
        %v5354 = vpop.f32.mrb[0].mxu0
        %v5355 = vadd.f32 %v5285, %v5354
        %v5356 = vpop.f32.mrb[0].mxu0
        %5357 = vdwg.mxu0
        %v5358 = vadd.f32 %v916, %v5355
        %v5359 = vld [vmem:[#allocation7] sm:$0x1]
        %v5360 = vld [vmem:[#allocation9] sm:$0x1]
        %v5361 = vsel %vm949, %v5358, 0.0
        %5362 = vadd.xlane.f32.xlu0 %v5361
        %v5363 = vpop.xlane.xlu0 %5362
        %v5364 = vmul.f32 %v5363, %v3009
        %v5365 = vsub.f32 %v5358, %v5364
        %v5366 = vmul.f32 %v5365, %v5365
        %v5367 = vsel %vm949, %v5366, 0.0
        %5368 = vadd.xlane.f32.xlu0 %v5367
        %v5369 = vpop.xlane.xlu0 %5368
        %v5370 = vmul.f32 %v5369, %v3009
        %v5371 = vadd.f32 %v5370, 1e-05
        %v5372 = vrsqrt.pop %v5371
        %v5373 = vmul.f32 %v5365, %v5372
        %v5375 = vlaneseq
        %v5376 = vshrl.u32 %v5375, 7
        %v5377 = vsub.s32 0, %v5376
        %v5378 = vrot.slane %v5359, %v5377
        %v5380 = vmul.f32 %v5373, %v5378
        %v5382 = vlaneseq
        %v5383 = vshrl.u32 %v5382, 7
        %v5384 = vsub.s32 0, %v5383
        %v5385 = vrot.slane %v5360, %v5384
        %v5387 = vadd.f32 %v5380, %v5385
        %v5388 = vld [vmem:[#allocation10] sm:$0xff]
        %v5389 = vld [vmem:[#allocation10 + $0x8] sm:$0xff]
        %v5390 = vld [vmem:[#allocation10 + $0x10] sm:$0xff]
        %v5391 = vld [vmem:[#allocation10 + $0x18] sm:$0xff]
        %v5392 = vld [vmem:[#allocation10 + $0x20] sm:$0xff]
        %v5393 = vld [vmem:[#allocation10 + $0x28] sm:$0xff]
        %v5394 = vld [vmem:[#allocation10 + $0x30] sm:$0xff]
        %v5395 = vld [vmem:[#allocation10 + $0x38] sm:$0xff]
        %v5396 = vld [vmem:[#allocation10 + $0x40] sm:$0xff]
        %v5397 = vld [vmem:[#allocation10 + $0x48] sm:$0xff]
        %v5398 = vld [vmem:[#allocation10 + $0x50] sm:$0xff]
        %v5399 = vld [vmem:[#allocation10 + $0x58] sm:$0xff]
        %v5400 = vld [vmem:[#allocation10 + $0x60] sm:$0xff]
        %v5401 = vld [vmem:[#allocation10 + $0x68] sm:$0xff]
        %v5402 = vld [vmem:[#allocation10 + $0x70] sm:$0xff]
        %v5403 = vld [vmem:[#allocation10 + $0x78] sm:$0xff]
        %v5404 = vld [vmem:[#allocation12] sm:$0x3]
        %v5406 = vlaneseq
        %v5407 = vshrl.u32 %v5406, 7
        %v5408 = vsub.s32 0, %v5407
        %v5409 = vrot.slane %v5404, %v5408
        %v5410 = vlaneseq
        %v5411 = vshrl.u32 %v5410, 7
        %v5412 = vsub.s32 1, %v5411
        %v5413 = vrot.slane %v5404, %v5412
        %v5417 = vsel %vm949, %v5387, 0
        %5419 = vmatprep.subr.mxu0 %v5389
        %5420 = vmatpush1.msra.mxu0 %v5388
        %5421 = vmatprep.subr.mxu0 %v5391
        %5422 = vmatpush1.msra.mxu0 %v5390
        %5423 = vmatprep.subr.mxu0 %v5393
        %5424 = vmatpush1.msra.mxu0 %v5392
        %5425 = vmatprep.subr.mxu0 %v5395
        %5426 = vmatpush1.msra.mxu0 %v5394
        %5427 = vmatprep.subr.mxu0 %v5397
        %5428 = vmatpush1.msra.mxu0 %v5396
        %5429 = vmatprep.subr.mxu0 %v5399
        %5430 = vmatpush1.msra.mxu0 %v5398
        %5431 = vmatprep.subr.mxu0 %v5401
        %5432 = vmatpush1.msra.mxu0 %v5400
        %5433 = vmatprep.subr.mxu0 %v5403
        %5434 = vmatpush1.msra.mxu0 %v5402
        %5435 = vmatprep.subr.mxu0 0.0
        %5436 = vmatpush1.msra.mxu0 0.0
        %5437 = vmatprep.subr.mxu0 0.0
        %5438 = vmatpush1.msra.mxu0 0.0
        %5439 = vmatprep.subr.mxu0 0.0
        %5440 = vmatpush1.msra.mxu0 0.0
        %5441 = vmatprep.subr.mxu0 0.0
        %5442 = vmatpush1.msra.mxu0 0.0
        %5443 = vmatprep.subr.mxu0 0.0
        %5444 = vmatpush1.msra.mxu0 0.0
        %5445 = vmatprep.subr.mxu0 0.0
        %5446 = vmatpush1.msra.mxu0 0.0
        %5447 = vmatprep.subr.mxu0 0.0
        %5448 = vmatpush1.msra.mxu0 0.0
        %5449 = vmatprep.subr.mxu0 0.0
        %5450 = vmatpush1.msra.mxu0 0.0
        %5451 = vmatprep.subr.mxu0 0.0
        %5452 = vmatpush1.msra.mxu0 0.0
        %5453 = vmatprep.subr.mxu0 0.0
        %5454 = vmatpush1.msra.mxu0 0.0
        %5455 = vmatprep.subr.mxu0 0.0
        %5456 = vmatpush1.msra.mxu0 0.0
        %5457 = vmatprep.subr.mxu0 0.0
        %5458 = vmatpush1.msra.mxu0 0.0
        %5459 = vmatprep.subr.mxu0 0.0
        %5460 = vmatpush1.msra.mxu0 0.0
        %5461 = vmatprep.subr.mxu0 0.0
        %5462 = vmatpush1.msra.mxu0 0.0
        %5463 = vmatprep.subr.mxu0 0.0
        %5464 = vmatpush1.msra.mxu0 0.0
        %5465 = vmatprep.subr.mxu0 0.0
        %5466 = vmatpush1.msra.mxu0 0.0
        %5467 = vmatprep.subr.mxu0 0.0
        %5468 = vmatpush1.msra.mxu0 0.0
        %5469 = vmatprep.subr.mxu0 0.0
        %5470 = vmatpush1.msra.mxu0 0.0
        %5471 = vmatprep.subr.mxu0 0.0
        %5472 = vmatpush1.msra.mxu0 0.0
        %5473 = vmatprep.subr.mxu0 0.0
        %5474 = vmatpush1.msra.mxu0 0.0
        %5475 = vmatprep.subr.mxu0 0.0
        %5476 = vmatpush1.msra.mxu0 0.0
        %5477 = vmatprep.subr.mxu0 0.0
        %5478 = vmatpush1.msra.mxu0 0.0
        %5479 = vmatprep.subr.mxu0 0.0
        %5480 = vmatpush1.msra.mxu0 0.0
        %5481 = vmatprep.subr.mxu0 0.0
        %5482 = vmatpush1.msra.mxu0 0.0
        %5483 = vmatprep.mubr.f32.mxu0 0.0
        %5484 = vmatmul.mubr.f32.gmra.mrb[0].mxu0 %v5417
        %v5485 = vpop.f32.mrb[0].mxu0
        %v5486 = vadd.f32 %v5409, %v5485
        %v5487 = vpop.f32.mrb[0].mxu0
        %v5488 = vadd.f32 %v5413, %v5487
        %5489 = vdwg.mxu0
        %v5490 = vmax.f32 %v5486, 0.0
        %v5491 = vmax.f32 %v5488, 0.0
        %v5492 = vld [vmem:[%s23] sm:$0xff]
        %v5493 = vld [vmem:[%s23 + $0x8] sm:$0xff]
        %v5494 = vld [vmem:[%s23 + $0x10] sm:$0xff]
        %v5495 = vld [vmem:[%s23 + $0x18] sm:$0xff]
        %v5496 = vld [vmem:[%s23 + $0x20] sm:$0xff]
        %v5497 = vld [vmem:[%s23 + $0x28] sm:$0xff]
        %v5498 = vld [vmem:[%s23 + $0x30] sm:$0xff]
        %v5499 = vld [vmem:[%s23 + $0x38] sm:$0xff]
        %v5500 = vld [vmem:[%s23 + $0x40] sm:$0xff]
        %v5501 = vld [vmem:[%s23 + $0x48] sm:$0xff]
        %v5502 = vld [vmem:[%s23 + $0x50] sm:$0xff]
        %v5503 = vld [vmem:[%s23 + $0x58] sm:$0xff]
        %v5504 = vld [vmem:[%s23 + $0x60] sm:$0xff]
        %v5505 = vld [vmem:[%s23 + $0x68] sm:$0xff]
        %v5506 = vld [vmem:[%s23 + $0x70] sm:$0xff]
        %v5507 = vld [vmem:[%s23 + $0x78] sm:$0xff]
        %v5508 = vld [vmem:[%s23 + $0x80] sm:$0xff]
        %v5509 = vld [vmem:[%s23 + $0x88] sm:$0xff]
        %v5510 = vld [vmem:[%s23 + $0x90] sm:$0xff]
        %v5511 = vld [vmem:[%s23 + $0x98] sm:$0xff]
        %v5512 = vld [vmem:[%s23 + $0xa0] sm:$0xff]
        %v5513 = vld [vmem:[%s23 + $0xa8] sm:$0xff]
        %v5514 = vld [vmem:[%s23 + $0xb0] sm:$0xff]
        %v5515 = vld [vmem:[%s23 + $0xb8] sm:$0xff]
        %v5516 = vld [vmem:[%s23 + $0xc0] sm:$0xff]
        %v5517 = vld [vmem:[%s23 + $0xc8] sm:$0xff]
        %v5518 = vld [vmem:[%s23 + $0xd0] sm:$0xff]
        %v5519 = vld [vmem:[%s23 + $0xd8] sm:$0xff]
        %v5520 = vld [vmem:[%s23 + $0xe0] sm:$0xff]
        %v5521 = vld [vmem:[%s23 + $0xe8] sm:$0xff]
        %v5522 = vld [vmem:[%s23 + $0xf0] sm:$0xff]
        %v5523 = vld [vmem:[%s23 + $0xf8] sm:$0xff]
        %v5524 = vld [vmem:[#allocation13] sm:$0x1]
        %v5526 = vlaneseq
        %v5527 = vshrl.u32 %v5526, 7
        %v5528 = vsub.s32 0, %v5527
        %v5529 = vrot.slane %v5524, %v5528
        %5531 = vmatprep.subr.mxu0 0.0
        %5532 = vmatpush1.msra.mxu0 %v5492
        %5533 = vmatprep.subr.mxu0 0.0
        %5534 = vmatpush1.msra.mxu0 %v5493
        %5535 = vmatprep.subr.mxu0 0.0
        %5536 = vmatpush1.msra.mxu0 %v5494
        %5537 = vmatprep.subr.mxu0 0.0
        %5538 = vmatpush1.msra.mxu0 %v5495
        %5539 = vmatprep.subr.mxu0 0.0
        %5540 = vmatpush1.msra.mxu0 %v5496
        %5541 = vmatprep.subr.mxu0 0.0
        %5542 = vmatpush1.msra.mxu0 %v5497
        %5543 = vmatprep.subr.mxu0 0.0
        %5544 = vmatpush1.msra.mxu0 %v5498
        %5545 = vmatprep.subr.mxu0 0.0
        %5546 = vmatpush1.msra.mxu0 %v5499
        %5547 = vmatprep.subr.mxu0 0.0
        %5548 = vmatpush1.msra.mxu0 %v5500
        %5549 = vmatprep.subr.mxu0 0.0
        %5550 = vmatpush1.msra.mxu0 %v5501
        %5551 = vmatprep.subr.mxu0 0.0
        %5552 = vmatpush1.msra.mxu0 %v5502
        %5553 = vmatprep.subr.mxu0 0.0
        %5554 = vmatpush1.msra.mxu0 %v5503
        %5555 = vmatprep.subr.mxu0 0.0
        %5556 = vmatpush1.msra.mxu0 %v5504
        %5557 = vmatprep.subr.mxu0 0.0
        %5558 = vmatpush1.msra.mxu0 %v5505
        %5559 = vmatprep.subr.mxu0 0.0
        %5560 = vmatpush1.msra.mxu0 %v5506
        %5561 = vmatprep.subr.mxu0 0.0
        %5562 = vmatpush1.msra.mxu0 %v5507
        %5563 = vmatprep.subr.mxu0 0.0
        %5564 = vmatpush1.msra.mxu0 %v5508
        %5565 = vmatprep.subr.mxu0 0.0
        %5566 = vmatpush1.msra.mxu0 %v5509
        %5567 = vmatprep.subr.mxu0 0.0
        %5568 = vmatpush1.msra.mxu0 %v5510
        %5569 = vmatprep.subr.mxu0 0.0
        %5570 = vmatpush1.msra.mxu0 %v5511
        %5571 = vmatprep.subr.mxu0 0.0
        %5572 = vmatpush1.msra.mxu0 %v5512
        %5573 = vmatprep.subr.mxu0 0.0
        %5574 = vmatpush1.msra.mxu0 %v5513
        %5575 = vmatprep.subr.mxu0 0.0
        %5576 = vmatpush1.msra.mxu0 %v5514
        %5577 = vmatprep.subr.mxu0 0.0
        %5578 = vmatpush1.msra.mxu0 %v5515
        %5579 = vmatprep.subr.mxu0 0.0
        %5580 = vmatpush1.msra.mxu0 %v5516
        %5581 = vmatprep.subr.mxu0 0.0
        %5582 = vmatpush1.msra.mxu0 %v5517
        %5583 = vmatprep.subr.mxu0 0.0
        %5584 = vmatpush1.msra.mxu0 %v5518
        %5585 = vmatprep.subr.mxu0 0.0
        %5586 = vmatpush1.msra.mxu0 %v5519
        %5587 = vmatprep.subr.mxu0 0.0
        %5588 = vmatpush1.msra.mxu0 %v5520
        %5589 = vmatprep.subr.mxu0 0.0
        %5590 = vmatpush1.msra.mxu0 %v5521
        %5591 = vmatprep.subr.mxu0 0.0
        %5592 = vmatpush1.msra.mxu0 %v5522
        %5593 = vmatprep.subr.mxu0 0.0
        %5594 = vmatpush1.msra.mxu0 %v5523
        %5595 = vmatprep.mubr.f32.mxu0 %v5491
        %5596 = vmatmul.mubr.f32.gmra.mrb[0].mxu0 %v5490
        %v5597 = vpop.f32.mrb[0].mxu0
        %v5598 = vadd.f32 %v5529, %v5597
        %v5599 = vpop.f32.mrb[0].mxu0
        %5600 = vdwg.mxu0
        %v5601 = vadd.f32 %v5387, %v5598
        %v5602 = vld [vmem:[#allocation15] sm:$0x1]
        %v5603 = vld [vmem:[#allocation16] sm:$0x1]
        %v5604 = vsel %vm949, %v5601, 0.0
        %5605 = vadd.xlane.f32.xlu0 %v5604
        %v5606 = vpop.xlane.xlu0 %5605
        %v5607 = vmul.f32 %v5606, %v3009
        %v5608 = vsub.f32 %v5601, %v5607
        %v5609 = vmul.f32 %v5608, %v5608
        %v5610 = vsel %vm949, %v5609, 0.0
        %5611 = vadd.xlane.f32.xlu0 %v5610
        %v5612 = vpop.xlane.xlu0 %5611
        %v5613 = vmul.f32 %v5612, %v3009
        %v5614 = vadd.f32 %v5613, 1e-05
        %v5615 = vrsqrt.pop %v5614
        %v5616 = vmul.f32 %v5608, %v5615
        %v5618 = vlaneseq
        %v5619 = vshrl.u32 %v5618, 7
        %v5620 = vsub.s32 0, %v5619
        %v5621 = vrot.slane %v5602, %v5620
        %v5623 = vmul.f32 %v5616, %v5621
        %v5625 = vlaneseq
        %v5626 = vshrl.u32 %v5625, 7
        %v5627 = vsub.s32 0, %v5626
        %v5628 = vrot.slane %v5603, %v5627
        %v5630 = vadd.f32 %v5623, %v5628
        %5631 = vst.msk [vmem:[%s905] sm:$0xff] %vm949, %v5630
        %s5632 = sand.u32 %s616, 1
        %s5633 = scalar_lea.sflag [#allocation6], %s5632
        %s5634 = sand.u32 %s616, 1
        %s5635 = smul.addr %s5634, 8
        %s5636 = scalar_lea.vmem [#allocation18], %s5635
        // Predicated region
        $region157: #{transformer_fwd.1} parent=123 // pred_check
          %p5637 = pneg %p626
        $region158: #{transformer_fwd.1} parent=123 // pred_check_branch
          %5639 = sbr.rel (%p5637) target = $region160
        $region159: #{transformer_fwd.1} parent=123 // pred_region
          %s5641 = ssub.s32 128, 128
          %5642 = vsyncadd %s5633, %s5641
          %s5643 = smul.addr %s52, 128
          %s5644 = scalar_lea.hbm %s27, %s5643
          %s5646 = sshll.u32 %s5636, 4
          %s5647 = int_to_ptr.vmem [resolvable:$true] %s5646
          %5649 = dma.vmem_to_hbm [thread:$0]  %s5647, 128, %s5644, %s5633
        $region160: #{transformer_fwd.1} parent=123 // pred_fallthru
          _
      $region124: #{transformer_fwd.1} parent=5 // pred_fallthru
        _
      %p5650 = scmp.le.s32.totalorder 2, %s47
      // Predicated region
      $region161: #{transformer_fwd.1} parent=5 // pred_check
        %p5651 = pneg %p5650
      $region162: #{transformer_fwd.1} parent=5 // pred_check_branch
        %5653 = sbr.rel (%p5651) target = $region164
      $region163: #{transformer_fwd.1} parent=5 // pred_region
        %s5654 = ssub.s32 %s47, 2
        // Predicated region
        $region165: #{transformer_fwd.1} parent=163 // pred_check
          %p5655 = pneg %p632
        $region166: #{transformer_fwd.1} parent=163 // pred_check_branch
          %5657 = sbr.rel (%p5655) target = $region168
        $region167: #{transformer_fwd.1} parent=163 // pred_region
          %s5658 = sand.u32 %s617, 1
          %s5659 = scalar_lea.sflag [#allocation6], %s5658
          %s5660 = sand.u32 %s617, 1
          %s5661 = smul.addr %s5660, 8
          %s5662 = scalar_lea.vmem [#allocation18], %s5661
          %5663 = dma.done %s5659, 128
        $region168: #{transformer_fwd.1} parent=163 // pred_fallthru
          _
      $region164: #{transformer_fwd.1} parent=5 // pred_fallthru
        _
    $region6: #{transformer_fwd.1} parent=1 // loop_footer
      %s51 = sadd.s32 1, %s47
    $region7: #{transformer_fwd.1} parent=1 // loop_footer_branch
      %46 = sbr.rel target = $region3
    $region8: #{transformer_fwd.1} parent=1 // loop_exit
      _
    %5664 = vsyncpa [#allocation5], 1
    %s5665 = scalar_lea.sflag [#allocation5], 1
    %5666 = vsyncpa %s5665, 1
    %5667 = vsyncpa [#allocation8], 1
    %5668 = vsyncpa [#allocation11], 1
    %5669 = vsyncpa [#allocation14], 1
    %5670 = vsyncpa [#allocation17], 1
    %5671 = vsyncpa [#allocation6], 1
    %s5672 = scalar_lea.sflag [#allocation6], 1
    %5673 = vsyncpa %s5672, 1

</llo_original>
